<compile_context>
chip_gen: v7x
topology: tpu7x:2x2x1
jax: 0.10.0
libtpu: 0.0.40
codegen_flags: <defaults>
</compile_context>

<pallas_src>
import functools

import jax
import jax.numpy as jnp
from jax.experimental import pallas as pl
from jax.experimental.pallas import tpu as pltpu

LSTM_SIZE = 128
EMBED_DIM = 128
NUM_LAYERS = 3

REC_TIME_CHUNK = 8   # time steps per grid iteration of the recurrent kernel
FC_TM_CAP = 512      # FC row-tile cap
FC_TN_CAP = 1024     # FC vocab-tile cap (conservative: ~5-6 MiB working set,
                     # fits v7x 64 MiB VMEM and the 32 MiB default scoped limit)


def _round_up(x, m):
    return (x + m - 1) // m * m


# ----------------------------------------------------------------------------
# Kernel 1: the serialized recurrence (3 stacked LSTM layers, T steps / call).
# ----------------------------------------------------------------------------
def _lstm_cell(gates, c_prev):
    """Gate order is [i, f, o, g] (weights are pre-permuted)."""
    H = LSTM_SIZE
    sig = jax.nn.sigmoid(gates[:, : 3 * H])   # one EUP dispatch for i, f, o
    i_g = sig[:, :H]
    f_g = sig[:, H:2 * H]
    o_g = sig[:, 2 * H:3 * H]
    g_g = jnp.tanh(gates[:, 3 * H:])
    c_new = f_g * c_prev + i_g * g_g
    h_new = o_g * jnp.tanh(c_new)
    return h_new, c_new


def lstm_recurrent_kernel(
    xg0_ref,    # (T, Bp, 4H) f32   precomputed layer-0 input gates (+ bias)
    h0_ref,     # (3, Bp, H)  f32   initial hidden state
    c0_ref,     # (3, Bp, H)  f32   initial cell state
    w_ih_ref,   # (2, H, 4H)  bf16  layers 1..2 input->gate weights (transposed)
    w_hh_ref,   # (3, H, 4H)  bf16  hidden->gate weights (transposed)
    b_ref,      # (2, 1, 4H)  f32   layers 1..2 pre-summed biases
    h_top_ref,  # (T, Bp, H)  f32   output: top-layer hidden per time step
    hn_ref,     # (3, Bp, H)  f32   output-resident recurrent h state
    cn_ref,     # (3, Bp, H)  f32   output-resident recurrent c state
    *, seq_len, mask_tail,
):
    s = pl.program_id(0)
    T, Bp, _ = xg0_ref.shape
    H = LSTM_SIZE

    @pl.when(s == 0)
    def _():
        hn_ref[...] = h0_ref[...]
        cn_ref[...] = c0_ref[...]

    # Carry (h, c) in register values across the whole time chunk; the
    # output-resident refs are read once here and written once at the end.
    h = [hn_ref[l] for l in range(NUM_LAYERS)]
    c = [cn_ref[l] for l in range(NUM_LAYERS)]

    # Hoist weight loads and bias broadcasts out of the unrolled time loop
    # (JAX does not CSE broadcast_in_dim).
    w_hh = [w_hh_ref[l] for l in range(NUM_LAYERS)]
    w_ih = [w_ih_ref[l] for l in range(NUM_LAYERS - 1)]
    b_bc = [jnp.broadcast_to(b_ref[l], (Bp, 4 * H)) for l in range(NUM_LAYERS - 1)]

    # Static unroll over the (small) time chunk; the recurrence stays in order.
    for t in range(T):
        # ---- layer 0: input->gate contribution was precomputed time-parallel
        gates0 = xg0_ref[t] + jnp.dot(
            h[0].astype(jnp.bfloat16), w_hh[0],
            preferred_element_type=jnp.float32)
        h_new, c_new = _lstm_cell(gates0, c[0])
        if mask_tail:  # only traced when S was padded up to a multiple of T
            valid = (s * T + t) < seq_len
            h_new = jnp.where(valid, h_new, h[0])
            c_new = jnp.where(valid, c_new, c[0])
        h[0], c[0] = h_new, c_new

        inp = h[0]
        for l in range(1, NUM_LAYERS):
            gates = (
                jnp.dot(inp.astype(jnp.bfloat16), w_ih[l - 1],
                        preferred_element_type=jnp.float32)
                + jnp.dot(h[l].astype(jnp.bfloat16), w_hh[l],
                          preferred_element_type=jnp.float32)
                + b_bc[l - 1]
            )
            h_new, c_new = _lstm_cell(gates, c[l])
            if mask_tail:
                valid = (s * T + t) < seq_len
                h_new = jnp.where(valid, h_new, h[l])
                c_new = jnp.where(valid, c_new, c[l])
            h[l], c[l] = h_new, c_new
            inp = h[l]   # inter-layer dropout(p=0.2) is identity in eval mode
        h_top_ref[t, :, :] = h[NUM_LAYERS - 1]

    # Single write-back of the recurrent state per chunk.
    for l in range(NUM_LAYERS):
        hn_ref[l, :, :] = h[l]
        cn_ref[l, :, :] = c[l]


# ----------------------------------------------------------------------------
# Kernel 2: time-parallel FC, tiled over rows and vocab (lane-dense stores).
# ----------------------------------------------------------------------------
def fc_kernel(h_ref, w_ref, b_ref, out_ref):
    out_ref[...] = (
        jnp.dot(h_ref[...].astype(jnp.bfloat16), w_ref[...],
                preferred_element_type=jnp.float32)
        + b_ref[...]
    )


# ----------------------------------------------------------------------------
# One-time parameter preprocessing (hoisted out of the forward call).
# ----------------------------------------------------------------------------
def preprocess_params(params):
    emb_table, w_ih, w_hh, b_ih, b_hh, w_fc, b_fc = params
    H = LSTM_SIZE
    V = w_fc.shape[0]

    # Gate reorder [i, f, g, o] -> [i, f, o, g].
    perm = jnp.concatenate([jnp.arange(0, 2 * H),
                            jnp.arange(3 * H, 4 * H),
                            jnp.arange(2 * H, 3 * H)])
    w_ih_r = w_ih[:, perm, :]                       # (3, 4H, H)
    w_hh_r = w_hh[:, perm, :]
    b_sum = (b_ih + b_hh)[:, perm]                  # (3, 4H)

    # Fold layer-0 input->gate matmul (+ bias) into the embedding table (f32).
    gate_table0 = emb_table @ w_ih_r[0].T + b_sum[0]          # (n_vocab, 4H)

    # Remaining recurrent weights: transposed for x @ W, cast to bf16
    # (activations and accumulation stay f32 in the kernel).
    w_ih_t = jnp.transpose(w_ih_r[1:], (0, 2, 1)).astype(jnp.bfloat16)   # (2, H, 4H)
    w_hh_t = jnp.transpose(w_hh_r, (0, 2, 1)).astype(jnp.bfloat16)       # (3, H, 4H)
    b_rest = b_sum[1:].reshape(NUM_LAYERS - 1, 1, 4 * H)                 # (2, 1, 4H)

    # FC weights: vocab padded lane-dense to a multiple of the vocab tile, bf16.
    Vp = _round_up(V, 128)
    tn = min(FC_TN_CAP, Vp)
    Vp = _round_up(Vp, tn)
    w_fc_t = jnp.pad(w_fc.T, ((0, 0), (0, Vp - V))).astype(jnp.bfloat16)  # (H, Vp)
    b_fc_p = jnp.pad(b_fc, (0, Vp - V)).reshape(1, Vp)                    # (1, Vp) f32

    return dict(gate_table0=gate_table0, w_ih_t=w_ih_t, w_hh_t=w_hh_t,
                b_rest=b_rest, w_fc_t=w_fc_t, b_fc_p=b_fc_p, n_vocab=int(V))


# ----------------------------------------------------------------------------
# Forward: equivalent of LSTM.forward(x, prev_state) -> (logits, (h_n, c_n)).
# ----------------------------------------------------------------------------
def lstm_forward(x_tokens, prev_state, pre):
    h0, c0 = prev_state
    S, B = x_tokens.shape
    H = LSTM_SIZE
    V = pre["n_vocab"]
    Vp = pre["w_fc_t"].shape[1]

    # ---- glue: layer-0 gate-table gather (replaces the embedding gather) ----
    x_gates0 = pre["gate_table0"][x_tokens]                    # (S, B, 4H)

    T = REC_TIME_CHUNK
    S_pad = _round_up(S, T)                                    # time padded to chunk
    Bp = max(8, _round_up(B, 8))                               # sublane-dense batch

    x_gates0_p = jnp.pad(x_gates0, ((0, S_pad - S), (0, Bp - B), (0, 0)))
    h0_p = jnp.pad(h0, ((0, 0), (0, Bp - B), (0, 0)))
    c0_p = jnp.pad(c0, ((0, 0), (0, Bp - B), (0, 0)))

    kernel = functools.partial(lstm_recurrent_kernel,
                               seq_len=S, mask_tail=(S_pad != S))

    h_top, hn_p, cn_p = pl.pallas_call(
        kernel,
        out_shape=(
            jax.ShapeDtypeStruct((S_pad, Bp, H), jnp.float32),
            jax.ShapeDtypeStruct((NUM_LAYERS, Bp, H), jnp.float32),
            jax.ShapeDtypeStruct((NUM_LAYERS, Bp, H), jnp.float32),
        ),
        grid_spec=pltpu.PrefetchScalarGridSpec(
            num_scalar_prefetch=0,
            grid=(S_pad // T,),
            in_specs=[
                pl.BlockSpec((T, Bp, 4 * H), lambda s: (s, 0, 0)),
                pl.BlockSpec((NUM_LAYERS, Bp, H), lambda s: (0, 0, 0)),
                pl.BlockSpec((NUM_LAYERS, Bp, H), lambda s: (0, 0, 0)),
                pl.BlockSpec((NUM_LAYERS - 1, H, 4 * H), lambda s: (0, 0, 0)),
                pl.BlockSpec((NUM_LAYERS, H, 4 * H), lambda s: (0, 0, 0)),
                pl.BlockSpec((NUM_LAYERS - 1, 1, 4 * H), lambda s: (0, 0, 0)),
            ],
            out_specs=(
                pl.BlockSpec((T, Bp, H), lambda s: (s, 0, 0)),
                pl.BlockSpec((NUM_LAYERS, Bp, H), lambda s: (0, 0, 0)),
                pl.BlockSpec((NUM_LAYERS, Bp, H), lambda s: (0, 0, 0)),
            ),
        ),
        compiler_params=pltpu.CompilerParams(
            dimension_semantics=("arbitrary",),   # recurrence: run chunks in order
        ),
    )(x_gates0_p, h0_p, c0_p, pre["w_ih_t"], pre["w_hh_t"], pre["b_rest"])

    # ---- time-parallel FC on only the VALID (S*B) rows (padding sliced off) ----
    rows = S * B
    h_flat = h_top[:S, :B, :].reshape(rows, H)
    TM = min(FC_TM_CAP, _round_up(rows, 8))
    rows_p = _round_up(rows, TM)
    h_flat_p = jnp.pad(h_flat, ((0, rows_p - rows), (0, 0)))
    TN = min(FC_TN_CAP, Vp)

    logits_p = pl.pallas_call(
        fc_kernel,
        out_shape=jax.ShapeDtypeStruct((rows_p, Vp), jnp.float32),
        grid_spec=pltpu.PrefetchScalarGridSpec(
            num_scalar_prefetch=0,
            grid=(rows_p // TM, Vp // TN),
            in_specs=[
                pl.BlockSpec((TM, H), lambda i, j: (i, 0)),
                pl.BlockSpec((H, TN), lambda i, j: (0, j)),
                pl.BlockSpec((1, TN), lambda i, j: (0, j)),
            ],
            out_specs=pl.BlockSpec((TM, TN), lambda i, j: (i, j)),
        ),
        compiler_params=pltpu.CompilerParams(
            dimension_semantics=("parallel", "parallel"),  # megacore-shardable
        ),
    )(h_flat_p, pre["w_fc_t"], pre["b_fc_p"])

    logits = logits_p[:rows, :V].reshape(S, B, V)
    return logits, (hn_p[:, :B, :], cn_p[:, :B, :])


# ----------------------------------------------------------------------------
# Pure-JAX reference (matches PyTorch nn.LSTM eval-mode semantics) + params.
# ----------------------------------------------------------------------------
def lstm_reference(x_tokens, prev_state, params):
    emb_table, w_ih, w_hh, b_ih, b_hh, w_fc, b_fc = params
    h0, c0 = prev_state
    embed = emb_table[x_tokens]
    H = LSTM_SIZE

    def step(carry, x_t):
        h, c = carry
        inp = x_t
        hs, cs = [], []
        for l in range(NUM_LAYERS):
            gates = inp @ w_ih[l].T + h[l] @ w_hh[l].T + b_ih[l] + b_hh[l]
            i_g = jax.nn.sigmoid(gates[:, :H])
            f_g = jax.nn.sigmoid(gates[:, H:2 * H])
            g_g = jnp.tanh(gates[:, 2 * H:3 * H])
            o_g = jax.nn.sigmoid(gates[:, 3 * H:])
            c_new = f_g * c[l] + i_g * g_g
            h_new = o_g * jnp.tanh(c_new)
            hs.append(h_new)
            cs.append(c_new)
            inp = h_new
        return (jnp.stack(hs), jnp.stack(cs)), inp

    (hn, cn), outs = jax.lax.scan(step, (h0, c0), embed)
    logits = outs @ w_fc.T + b_fc
    return logits, (hn, cn)


def init_params(key, n_vocab):
    keys = jax.random.split(key, 8)
    H = LSTM_SIZE
    k = 1.0 / jnp.sqrt(jnp.float32(H))
    emb_table = jax.random.normal(keys[0], (n_vocab, EMBED_DIM), jnp.float32)
    w_ih = jax.random.uniform(keys[1], (NUM_LAYERS, 4 * H, H), jnp.float32, -k, k)
    w_hh = jax.random.uniform(keys[2], (NUM_LAYERS, 4 * H, H), jnp.float32, -k, k)
    b_ih = jax.random.uniform(keys[3], (NUM_LAYERS, 4 * H), jnp.float32, -k, k)
    b_hh = jax.random.uniform(keys[4], (NUM_LAYERS, 4 * H), jnp.float32, -k, k)
    w_fc = jax.random.uniform(keys[5], (n_vocab, H), jnp.float32, -k, k)
    b_fc = jax.random.uniform(keys[6], (n_vocab,), jnp.float32, -k, k)
    return (emb_table, w_ih, w_hh, b_ih, b_hh, w_fc, b_fc)


if __name__ == "__main__":
    key = jax.random.PRNGKey(0)
    n_vocab = 64
    seq_len = 8
    batch = 2

    pkey, xkey = jax.random.split(key)
    params = init_params(pkey, n_vocab)
    pre = preprocess_params(params)   # one-time weight prep

    # tokens: (S, B) int32, time-major like PyTorch nn.LSTM default
    x = jax.random.randint(xkey, (seq_len, batch), 0, n_vocab, dtype=jnp.int32)
    h0 = jnp.zeros((NUM_LAYERS, batch, LSTM_SIZE), jnp.float32)
    c0 = jnp.zeros((NUM_LAYERS, batch, LSTM_SIZE), jnp.float32)

    logits, (h_n, c_n) = lstm_forward(x, (h0, c0), pre)
    jax.block_until_ready((logits, h_n, c_n))

    assert logits.shape == (seq_len, batch, n_vocab)
    assert h_n.shape == (NUM_LAYERS, batch, LSTM_SIZE)
    assert c_n.shape == (NUM_LAYERS, batch, LSTM_SIZE)

    # Correctness check against a pure-JAX reference of the PyTorch module.
    # Tolerance relaxed from 1e-4 because gate/FC weights are bf16 on the MXU
    # (activations and accumulation stay f32).
    ref_logits, (ref_hn, ref_cn) = lstm_reference(x, (h0, c0), params)
    assert jnp.allclose(logits, ref_logits, atol=5e-2, rtol=5e-2)
    assert jnp.allclose(h_n, ref_hn, atol=5e-2, rtol=5e-2)
    assert jnp.allclose(c_n, ref_cn, atol=5e-2, rtol=5e-2)

    print("KERNEL_OK")
</pallas_src>

<mosaic_0001>
module attributes {stable_mosaic.version = 11 : i64} {
  func.func @lstm_recurrent_kernel(%arg0: i32, %arg1: memref<8x8x512xf32, #tpu.memory_space<vmem>>, %arg2: memref<3x8x128xf32, #tpu.memory_space<vmem>>, %arg3: memref<3x8x128xf32, #tpu.memory_space<vmem>>, %arg4: memref<2x128x512xbf16, #tpu.memory_space<vmem>>, %arg5: memref<3x128x512xbf16, #tpu.memory_space<vmem>>, %arg6: memref<2x1x512xf32, #tpu.memory_space<vmem>>, %arg7: memref<8x8x128xf32, #tpu.memory_space<vmem>>, %arg8: memref<3x8x128xf32, #tpu.memory_space<vmem>>, %arg9: memref<3x8x128xf32, #tpu.memory_space<vmem>>) attributes {dimension_semantics = [#tpu.dimension_semantics<arbitrary>], iteration_bounds = array<i64: 1>, scalar_prefetch = 0 : i64, scratch_operands = 0 : i64, tpu.core_type = #tpu.core_type<tc>, window_params = [{transform_indices = @transform_0, window_bounds = array<i64: 8, 8, 512>}, {pipeline_mode = #tpu.pipeline_mode<synchronous>, transform_indices = @transform_1, window_bounds = array<i64: 3, 8, 128>}, {pipeline_mode = #tpu.pipeline_mode<synchronous>, transform_indices = @transform_2, window_bounds = array<i64: 3, 8, 128>}, {pipeline_mode = #tpu.pipeline_mode<synchronous>, transform_indices = @transform_3, window_bounds = array<i64: 2, 128, 512>}, {pipeline_mode = #tpu.pipeline_mode<synchronous>, transform_indices = @transform_4, window_bounds = array<i64: 3, 128, 512>}, {pipeline_mode = #tpu.pipeline_mode<synchronous>, transform_indices = @transform_5, window_bounds = array<i64: 2, 1, 512>}, {transform_indices = @transform_6, window_bounds = array<i64: 8, 8, 128>}, {pipeline_mode = #tpu.pipeline_mode<synchronous>, transform_indices = @transform_7, window_bounds = array<i64: 3, 8, 128>}, {pipeline_mode = #tpu.pipeline_mode<synchronous>, transform_indices = @transform_8, window_bounds = array<i64: 3, 8, 128>}]} {
    %c0_i32 = arith.constant 0 : i32
    %0 = arith.cmpi eq, %arg0, %c0_i32 : i32
    %1 = arith.extui %0 : i1 to i32
    %c0_i32_0 = arith.constant 0 : i32
    %2 = arith.cmpi ne, %1, %c0_i32_0 : i32
    scf.if %2 {
      %c0_161 = arith.constant 0 : index
      %c0_162 = arith.constant 0 : index
      %c0_163 = arith.constant 0 : index
      %595 = vector.load %arg2[%c0_161, %c0_162, %c0_163] : memref<3x8x128xf32, #tpu.memory_space<vmem>>, vector<3x8x128xf32>
      %c0_164 = arith.constant 0 : index
      %c0_165 = arith.constant 0 : index
      %c0_166 = arith.constant 0 : index
      %596 = vector.load %arg8[%c0_164, %c0_165, %c0_166] : memref<3x8x128xf32, #tpu.memory_space<vmem>>, vector<3x8x128xf32>
      tpu.vector_store %arg8[%c0_164, %c0_165, %c0_166], %595 {strides = array<i32>} : memref<3x8x128xf32, #tpu.memory_space<vmem>>, vector<3x8x128xf32>,
      %c0_167 = arith.constant 0 : index
      %c0_168 = arith.constant 0 : index
      %c0_169 = arith.constant 0 : index
      %597 = vector.load %arg3[%c0_167, %c0_168, %c0_169] : memref<3x8x128xf32, #tpu.memory_space<vmem>>, vector<3x8x128xf32>
      %c0_170 = arith.constant 0 : index
      %c0_171 = arith.constant 0 : index
      %c0_172 = arith.constant 0 : index
      %598 = vector.load %arg9[%c0_170, %c0_171, %c0_172] : memref<3x8x128xf32, #tpu.memory_space<vmem>>, vector<3x8x128xf32>
      tpu.vector_store %arg9[%c0_170, %c0_171, %c0_172], %597 {strides = array<i32>} : memref<3x8x128xf32, #tpu.memory_space<vmem>>, vector<3x8x128xf32>,
    } else {
    }
    %c0 = arith.constant 0 : index
    %c0_1 = arith.constant 0 : index
    %c0_2 = arith.constant 0 : index
    %3 = vector.load %arg8[%c0, %c0_1, %c0_2] : memref<3x8x128xf32, #tpu.memory_space<vmem>>, vector<1x8x128xf32>
    %4 = vector.shape_cast %3 : vector<1x8x128xf32> to vector<8x128xf32>
    %c1 = arith.constant 1 : index
    %c0_3 = arith.constant 0 : index
    %c0_4 = arith.constant 0 : index
    %5 = vector.load %arg8[%c1, %c0_3, %c0_4] : memref<3x8x128xf32, #tpu.memory_space<vmem>>, vector<1x8x128xf32>
    %6 = vector.shape_cast %5 : vector<1x8x128xf32> to vector<8x128xf32>
    %c2 = arith.constant 2 : index
    %c0_5 = arith.constant 0 : index
    %c0_6 = arith.constant 0 : index
    %7 = vector.load %arg8[%c2, %c0_5, %c0_6] : memref<3x8x128xf32, #tpu.memory_space<vmem>>, vector<1x8x128xf32>
    %8 = vector.shape_cast %7 : vector<1x8x128xf32> to vector<8x128xf32>
    %c0_7 = arith.constant 0 : index
    %c0_8 = arith.constant 0 : index
    %c0_9 = arith.constant 0 : index
    %9 = vector.load %arg9[%c0_7, %c0_8, %c0_9] : memref<3x8x128xf32, #tpu.memory_space<vmem>>, vector<1x8x128xf32>
    %10 = vector.shape_cast %9 : vector<1x8x128xf32> to vector<8x128xf32>
    %c1_10 = arith.constant 1 : index
    %c0_11 = arith.constant 0 : index
    %c0_12 = arith.constant 0 : index
    %11 = vector.load %arg9[%c1_10, %c0_11, %c0_12] : memref<3x8x128xf32, #tpu.memory_space<vmem>>, vector<1x8x128xf32>
    %12 = vector.shape_cast %11 : vector<1x8x128xf32> to vector<8x128xf32>
    %c2_13 = arith.constant 2 : index
    %c0_14 = arith.constant 0 : index
    %c0_15 = arith.constant 0 : index
    %13 = vector.load %arg9[%c2_13, %c0_14, %c0_15] : memref<3x8x128xf32, #tpu.memory_space<vmem>>, vector<1x8x128xf32>
    %14 = vector.shape_cast %13 : vector<1x8x128xf32> to vector<8x128xf32>
    %c0_16 = arith.constant 0 : index
    %c0_17 = arith.constant 0 : index
    %c0_18 = arith.constant 0 : index
    %15 = vector.load %arg5[%c0_16, %c0_17, %c0_18] : memref<3x128x512xbf16, #tpu.memory_space<vmem>>, vector<1x128x512xbf16>
    %16 = vector.shape_cast %15 : vector<1x128x512xbf16> to vector<128x512xbf16>
    %c1_19 = arith.constant 1 : index
    %c0_20 = arith.constant 0 : index
    %c0_21 = arith.constant 0 : index
    %17 = vector.load %arg5[%c1_19, %c0_20, %c0_21] : memref<3x128x512xbf16, #tpu.memory_space<vmem>>, vector<1x128x512xbf16>
    %18 = vector.shape_cast %17 : vector<1x128x512xbf16> to vector<128x512xbf16>
    %c2_22 = arith.constant 2 : index
    %c0_23 = arith.constant 0 : index
    %c0_24 = arith.constant 0 : index
    %19 = vector.load %arg5[%c2_22, %c0_23, %c0_24] : memref<3x128x512xbf16, #tpu.memory_space<vmem>>, vector<1x128x512xbf16>
    %20 = vector.shape_cast %19 : vector<1x128x512xbf16> to vector<128x512xbf16>
    %c0_25 = arith.constant 0 : index
    %c0_26 = arith.constant 0 : index
    %c0_27 = arith.constant 0 : index
    %21 = vector.load %arg4[%c0_25, %c0_26, %c0_27] : memref<2x128x512xbf16, #tpu.memory_space<vmem>>, vector<1x128x512xbf16>
    %22 = vector.shape_cast %21 : vector<1x128x512xbf16> to vector<128x512xbf16>
    %c1_28 = arith.constant 1 : index
    %c0_29 = arith.constant 0 : index
    %c0_30 = arith.constant 0 : index
    %23 = vector.load %arg4[%c1_28, %c0_29, %c0_30] : memref<2x128x512xbf16, #tpu.memory_space<vmem>>, vector<1x128x512xbf16>
    %24 = vector.shape_cast %23 : vector<1x128x512xbf16> to vector<128x512xbf16>
    %c0_31 = arith.constant 0 : index
    %c0_32 = arith.constant 0 : index
    %c0_33 = arith.constant 0 : index
    %25 = vector.load %arg6[%c0_31, %c0_32, %c0_33] : memref<2x1x512xf32, #tpu.memory_space<vmem>>, vector<1x1x512xf32>
    %26 = vector.shape_cast %25 : vector<1x1x512xf32> to vector<1x512xf32>
    %27 = vector.shape_cast %26 : vector<1x512xf32> to vector<1x512xf32>
    %28 = vector.broadcast %27 : vector<1x512xf32> to vector<8x512xf32>
    %c1_34 = arith.constant 1 : index
    %c0_35 = arith.constant 0 : index
    %c0_36 = arith.constant 0 : index
    %29 = vector.load %arg6[%c1_34, %c0_35, %c0_36] : memref<2x1x512xf32, #tpu.memory_space<vmem>>, vector<1x1x512xf32>
    %30 = vector.shape_cast %29 : vector<1x1x512xf32> to vector<1x512xf32>
    %31 = vector.shape_cast %30 : vector<1x512xf32> to vector<1x512xf32>
    %32 = vector.broadcast %31 : vector<1x512xf32> to vector<8x512xf32>
    %c0_37 = arith.constant 0 : index
    %c0_38 = arith.constant 0 : index
    %c0_39 = arith.constant 0 : index
    %33 = vector.load %arg1[%c0_37, %c0_38, %c0_39] : memref<8x8x512xf32, #tpu.memory_space<vmem>>, vector<1x8x512xf32>
    %34 = vector.shape_cast %33 : vector<1x8x512xf32> to vector<8x512xf32>
    %35 = arith.truncf %4 : vector<8x128xf32> to vector<8x128xbf16>
    %cst = arith.constant dense<0.000000e+00> : vector<8x512xf32>
    %36 = tpu.matmul %35, %16, %cst {dimension_numbers = #tpu.dot_dimension_numbers<[1], [0], [0], [1], [0, 0, 1, 1], [], []>} : vector<8x128xbf16>, vector<128x512xbf16>, vector<8x512xf32> -> vector<8x512xf32>
    %37 = arith.addf %34, %36 : vector<8x512xf32>
    %38 = vector.extract_strided_slice %37 {offsets = [0, 0], sizes = [8, 384], strides = [1, 1]} : vector<8x512xf32> to vector<8x384xf32>
    %39 = arith.negf %38 : vector<8x384xf32>
    %40 = math.exp %39 : vector<8x384xf32>
    %cst_40 = arith.constant 1.000000e+00 : f32
    %41 = vector.broadcast %cst_40 : f32 to vector<8x384xf32>
    %42 = arith.addf %41, %40 : vector<8x384xf32>
    %43 = arith.divf %41, %42 : vector<8x384xf32>
    %44 = vector.extract_strided_slice %43 {offsets = [0, 0], sizes = [8, 128], strides = [1, 1]} : vector<8x384xf32> to vector<8x128xf32>
    %45 = vector.extract_strided_slice %43 {offsets = [0, 128], sizes = [8, 128], strides = [1, 1]} : vector<8x384xf32> to vector<8x128xf32>
    %46 = vector.extract_strided_slice %43 {offsets = [0, 256], sizes = [8, 128], strides = [1, 1]} : vector<8x384xf32> to vector<8x128xf32>
    %47 = vector.extract_strided_slice %37 {offsets = [0, 384], sizes = [8, 128], strides = [1, 1]} : vector<8x512xf32> to vector<8x128xf32>
    %48 = math.tanh %47 : vector<8x128xf32>
    %49 = arith.mulf %45, %10 : vector<8x128xf32>
    %50 = arith.mulf %44, %48 : vector<8x128xf32>
    %51 = arith.addf %49, %50 : vector<8x128xf32>
    %52 = math.tanh %51 : vector<8x128xf32>
    %53 = arith.mulf %46, %52 : vector<8x128xf32>
    %54 = arith.truncf %53 : vector<8x128xf32> to vector<8x128xbf16>
    %cst_41 = arith.constant dense<0.000000e+00> : vector<8x512xf32>
    %55 = tpu.matmul %54, %22, %cst_41 {dimension_numbers = #tpu.dot_dimension_numbers<[1], [0], [0], [1], [0, 0, 1, 1], [], []>} : vector<8x128xbf16>, vector<128x512xbf16>, vector<8x512xf32> -> vector<8x512xf32>
    %56 = arith.truncf %6 : vector<8x128xf32> to vector<8x128xbf16>
    %cst_42 = arith.constant dense<0.000000e+00> : vector<8x512xf32>
    %57 = tpu.matmul %56, %18, %cst_42 {dimension_numbers = #tpu.dot_dimension_numbers<[1], [0], [0], [1], [0, 0, 1, 1], [], []>} : vector<8x128xbf16>, vector<128x512xbf16>, vector<8x512xf32> -> vector<8x512xf32>
    %58 = arith.addf %55, %57 : vector<8x512xf32>
    %59 = arith.addf %58, %28 : vector<8x512xf32>
    %60 = vector.extract_strided_slice %59 {offsets = [0, 0], sizes = [8, 384], strides = [1, 1]} : vector<8x512xf32> to vector<8x384xf32>
    %61 = arith.negf %60 : vector<8x384xf32>
    %62 = math.exp %61 : vector<8x384xf32>
    %cst_43 = arith.constant 1.000000e+00 : f32
    %63 = vector.broadcast %cst_43 : f32 to vector<8x384xf32>
    %64 = arith.addf %63, %62 : vector<8x384xf32>
    %65 = arith.divf %63, %64 : vector<8x384xf32>
    %66 = vector.extract_strided_slice %65 {offsets = [0, 0], sizes = [8, 128], strides = [1, 1]} : vector<8x384xf32> to vector<8x128xf32>
    %67 = vector.extract_strided_slice %65 {offsets = [0, 128], sizes = [8, 128], strides = [1, 1]} : vector<8x384xf32> to vector<8x128xf32>
    %68 = vector.extract_strided_slice %65 {offsets = [0, 256], sizes = [8, 128], strides = [1, 1]} : vector<8x384xf32> to vector<8x128xf32>
    %69 = vector.extract_strided_slice %59 {offsets = [0, 384], sizes = [8, 128], strides = [1, 1]} : vector<8x512xf32> to vector<8x128xf32>
    %70 = math.tanh %69 : vector<8x128xf32>
    %71 = arith.mulf %67, %12 : vector<8x128xf32>
    %72 = arith.mulf %66, %70 : vector<8x128xf32>
    %73 = arith.addf %71, %72 : vector<8x128xf32>
    %74 = math.tanh %73 : vector<8x128xf32>
    %75 = arith.mulf %68, %74 : vector<8x128xf32>
    %76 = arith.truncf %75 : vector<8x128xf32> to vector<8x128xbf16>
    %cst_44 = arith.constant dense<0.000000e+00> : vector<8x512xf32>
    %77 = tpu.matmul %76, %24, %cst_44 {dimension_numbers = #tpu.dot_dimension_numbers<[1], [0], [0], [1], [0, 0, 1, 1], [], []>} : vector<8x128xbf16>, vector<128x512xbf16>, vector<8x512xf32> -> vector<8x512xf32>
    %78 = arith.truncf %8 : vector<8x128xf32> to vector<8x128xbf16>
    %cst_45 = arith.constant dense<0.000000e+00> : vector<8x512xf32>
    %79 = tpu.matmul %78, %20, %cst_45 {dimension_numbers = #tpu.dot_dimension_numbers<[1], [0], [0], [1], [0, 0, 1, 1], [], []>} : vector<8x128xbf16>, vector<128x512xbf16>, vector<8x512xf32> -> vector<8x512xf32>
    %80 = arith.addf %77, %79 : vector<8x512xf32>
    %81 = arith.addf %80, %32 : vector<8x512xf32>
    %82 = vector.extract_strided_slice %81 {offsets = [0, 0], sizes = [8, 384], strides = [1, 1]} : vector<8x512xf32> to vector<8x384xf32>
    %83 = arith.negf %82 : vector<8x384xf32>
    %84 = math.exp %83 : vector<8x384xf32>
    %cst_46 = arith.constant 1.000000e+00 : f32
    %85 = vector.broadcast %cst_46 : f32 to vector<8x384xf32>
    %86 = arith.addf %85, %84 : vector<8x384xf32>
    %87 = arith.divf %85, %86 : vector<8x384xf32>
    %88 = vector.extract_strided_slice %87 {offsets = [0, 0], sizes = [8, 128], strides = [1, 1]} : vector<8x384xf32> to vector<8x128xf32>
    %89 = vector.extract_strided_slice %87 {offsets = [0, 128], sizes = [8, 128], strides = [1, 1]} : vector<8x384xf32> to vector<8x128xf32>
    %90 = vector.extract_strided_slice %87 {offsets = [0, 256], sizes = [8, 128], strides = [1, 1]} : vector<8x384xf32> to vector<8x128xf32>
    %91 = vector.extract_strided_slice %81 {offsets = [0, 384], sizes = [8, 128], strides = [1, 1]} : vector<8x512xf32> to vector<8x128xf32>
    %92 = math.tanh %91 : vector<8x128xf32>
    %93 = arith.mulf %89, %14 : vector<8x128xf32>
    %94 = arith.mulf %88, %92 : vector<8x128xf32>
    %95 = arith.addf %93, %94 : vector<8x128xf32>
    %96 = math.tanh %95 : vector<8x128xf32>
    %97 = arith.mulf %90, %96 : vector<8x128xf32>
    %c0_47 = arith.constant 0 : index
    %c0_48 = arith.constant 0 : index
    %c0_49 = arith.constant 0 : index
    %98 = vector.load %arg7[%c0_47, %c0_48, %c0_49] : memref<8x8x128xf32, #tpu.memory_space<vmem>>, vector<1x8x128xf32>
    %99 = vector.shape_cast %98 : vector<1x8x128xf32> to vector<8x128xf32>
    %100 = vector.shape_cast %97 : vector<8x128xf32> to vector<1x8x128xf32>
    tpu.vector_store %arg7[%c0_47, %c0_48, %c0_49], %100 {strides = array<i32>} : memref<8x8x128xf32, #tpu.memory_space<vmem>>, vector<1x8x128xf32>,
    %c1_50 = arith.constant 1 : index
    %c0_51 = arith.constant 0 : index
    %c0_52 = arith.constant 0 : index
    %101 = vector.load %arg1[%c1_50, %c0_51, %c0_52] : memref<8x8x512xf32, #tpu.memory_space<vmem>>, vector<1x8x512xf32>
    %102 = vector.shape_cast %101 : vector<1x8x512xf32> to vector<8x512xf32>
    %103 = arith.truncf %53 : vector<8x128xf32> to vector<8x128xbf16>
    %cst_53 = arith.constant dense<0.000000e+00> : vector<8x512xf32>
    %104 = tpu.matmul %103, %16, %cst_53 {dimension_numbers = #tpu.dot_dimension_numbers<[1], [0], [0], [1], [0, 0, 1, 1], [], []>} : vector<8x128xbf16>, vector<128x512xbf16>, vector<8x512xf32> -> vector<8x512xf32>
    %105 = arith.addf %102, %104 : vector<8x512xf32>
    %106 = vector.extract_strided_slice %105 {offsets = [0, 0], sizes = [8, 384], strides = [1, 1]} : vector<8x512xf32> to vector<8x384xf32>
    %107 = arith.negf %106 : vector<8x384xf32>
    %108 = math.exp %107 : vector<8x384xf32>
    %cst_54 = arith.constant 1.000000e+00 : f32
    %109 = vector.broadcast %cst_54 : f32 to vector<8x384xf32>
    %110 = arith.addf %109, %108 : vector<8x384xf32>
    %111 = arith.divf %109, %110 : vector<8x384xf32>
    %112 = vector.extract_strided_slice %111 {offsets = [0, 0], sizes = [8, 128], strides = [1, 1]} : vector<8x384xf32> to vector<8x128xf32>
    %113 = vector.extract_strided_slice %111 {offsets = [0, 128], sizes = [8, 128], strides = [1, 1]} : vector<8x384xf32> to vector<8x128xf32>
    %114 = vector.extract_strided_slice %111 {offsets = [0, 256], sizes = [8, 128], strides = [1, 1]} : vector<8x384xf32> to vector<8x128xf32>
    %115 = vector.extract_strided_slice %105 {offsets = [0, 384], sizes = [8, 128], strides = [1, 1]} : vector<8x512xf32> to vector<8x128xf32>
    %116 = math.tanh %115 : vector<8x128xf32>
    %117 = arith.mulf %113, %51 : vector<8x128xf32>
    %118 = arith.mulf %112, %116 : vector<8x128xf32>
    %119 = arith.addf %117, %118 : vector<8x128xf32>
    %120 = math.tanh %119 : vector<8x128xf32>
    %121 = arith.mulf %114, %120 : vector<8x128xf32>
    %122 = arith.truncf %121 : vector<8x128xf32> to vector<8x128xbf16>
    %cst_55 = arith.constant dense<0.000000e+00> : vector<8x512xf32>
    %123 = tpu.matmul %122, %22, %cst_55 {dimension_numbers = #tpu.dot_dimension_numbers<[1], [0], [0], [1], [0, 0, 1, 1], [], []>} : vector<8x128xbf16>, vector<128x512xbf16>, vector<8x512xf32> -> vector<8x512xf32>
    %124 = arith.truncf %75 : vector<8x128xf32> to vector<8x128xbf16>
    %cst_56 = arith.constant dense<0.000000e+00> : vector<8x512xf32>
    %125 = tpu.matmul %124, %18, %cst_56 {dimension_numbers = #tpu.dot_dimension_numbers<[1], [0], [0], [1], [0, 0, 1, 1], [], []>} : vector<8x128xbf16>, vector<128x512xbf16>, vector<8x512xf32> -> vector<8x512xf32>
    %126 = arith.addf %123, %125 : vector<8x512xf32>
    %127 = arith.addf %126, %28 : vector<8x512xf32>
    %128 = vector.extract_strided_slice %127 {offsets = [0, 0], sizes = [8, 384], strides = [1, 1]} : vector<8x512xf32> to vector<8x384xf32>
    %129 = arith.negf %128 : vector<8x384xf32>
    %130 = math.exp %129 : vector<8x384xf32>
    %cst_57 = arith.constant 1.000000e+00 : f32
    %131 = vector.broadcast %cst_57 : f32 to vector<8x384xf32>
    %132 = arith.addf %131, %130 : vector<8x384xf32>
    %133 = arith.divf %131, %132 : vector<8x384xf32>
    %134 = vector.extract_strided_slice %133 {offsets = [0, 0], sizes = [8, 128], strides = [1, 1]} : vector<8x384xf32> to vector<8x128xf32>
    %135 = vector.extract_strided_slice %133 {offsets = [0, 128], sizes = [8, 128], strides = [1, 1]} : vector<8x384xf32> to vector<8x128xf32>
    %136 = vector.extract_strided_slice %133 {offsets = [0, 256], sizes = [8, 128], strides = [1, 1]} : vector<8x384xf32> to vector<8x128xf32>
    %137 = vector.extract_strided_slice %127 {offsets = [0, 384], sizes = [8, 128], strides = [1, 1]} : vector<8x512xf32> to vector<8x128xf32>
    %138 = math.tanh %137 : vector<8x128xf32>
    %139 = arith.mulf %135, %73 : vector<8x128xf32>
    %140 = arith.mulf %134, %138 : vector<8x128xf32>
    %141 = arith.addf %139, %140 : vector<8x128xf32>
    %142 = math.tanh %141 : vector<8x128xf32>
    %143 = arith.mulf %136, %142 : vector<8x128xf32>
    %144 = arith.truncf %143 : vector<8x128xf32> to vector<8x128xbf16>
    %cst_58 = arith.constant dense<0.000000e+00> : vector<8x512xf32>
    %145 = tpu.matmul %144, %24, %cst_58 {dimension_numbers = #tpu.dot_dimension_numbers<[1], [0], [0], [1], [0, 0, 1, 1], [], []>} : vector<8x128xbf16>, vector<128x512xbf16>, vector<8x512xf32> -> vector<8x512xf32>
    %146 = arith.truncf %97 : vector<8x128xf32> to vector<8x128xbf16>
    %cst_59 = arith.constant dense<0.000000e+00> : vector<8x512xf32>
    %147 = tpu.matmul %146, %20, %cst_59 {dimension_numbers = #tpu.dot_dimension_numbers<[1], [0], [0], [1], [0, 0, 1, 1], [], []>} : vector<8x128xbf16>, vector<128x512xbf16>, vector<8x512xf32> -> vector<8x512xf32>
    %148 = arith.addf %145, %147 : vector<8x512xf32>
    %149 = arith.addf %148, %32 : vector<8x512xf32>
    %150 = vector.extract_strided_slice %149 {offsets = [0, 0], sizes = [8, 384], strides = [1, 1]} : vector<8x512xf32> to vector<8x384xf32>
    %151 = arith.negf %150 : vector<8x384xf32>
    %152 = math.exp %151 : vector<8x384xf32>
    %cst_60 = arith.constant 1.000000e+00 : f32
    %153 = vector.broadcast %cst_60 : f32 to vector<8x384xf32>
    %154 = arith.addf %153, %152 : vector<8x384xf32>
    %155 = arith.divf %153, %154 : vector<8x384xf32>
    %156 = vector.extract_strided_slice %155 {offsets = [0, 0], sizes = [8, 128], strides = [1, 1]} : vector<8x384xf32> to vector<8x128xf32>
    %157 = vector.extract_strided_slice %155 {offsets = [0, 128], sizes = [8, 128], strides = [1, 1]} : vector<8x384xf32> to vector<8x128xf32>
    %158 = vector.extract_strided_slice %155 {offsets = [0, 256], sizes = [8, 128], strides = [1, 1]} : vector<8x384xf32> to vector<8x128xf32>
    %159 = vector.extract_strided_slice %149 {offsets = [0, 384], sizes = [8, 128], strides = [1, 1]} : vector<8x512xf32> to vector<8x128xf32>
    %160 = math.tanh %159 : vector<8x128xf32>
    %161 = arith.mulf %157, %95 : vector<8x128xf32>
    %162 = arith.mulf %156, %160 : vector<8x128xf32>
    %163 = arith.addf %161, %162 : vector<8x128xf32>
    %164 = math.tanh %163 : vector<8x128xf32>
    %165 = arith.mulf %158, %164 : vector<8x128xf32>
    %c1_61 = arith.constant 1 : index
    %c0_62 = arith.constant 0 : index
    %c0_63 = arith.constant 0 : index
    %166 = vector.load %arg7[%c1_61, %c0_62, %c0_63] : memref<8x8x128xf32, #tpu.memory_space<vmem>>, vector<1x8x128xf32>
    %167 = vector.shape_cast %166 : vector<1x8x128xf32> to vector<8x128xf32>
    %168 = vector.shape_cast %165 : vector<8x128xf32> to vector<1x8x128xf32>
    tpu.vector_store %arg7[%c1_61, %c0_62, %c0_63], %168 {strides = array<i32>} : memref<8x8x128xf32, #tpu.memory_space<vmem>>, vector<1x8x128xf32>,
    %c2_64 = arith.constant 2 : index
    %c0_65 = arith.constant 0 : index
    %c0_66 = arith.constant 0 : index
    %169 = vector.load %arg1[%c2_64, %c0_65, %c0_66] : memref<8x8x512xf32, #tpu.memory_space<vmem>>, vector<1x8x512xf32>
    %170 = vector.shape_cast %169 : vector<1x8x512xf32> to vector<8x512xf32>
    %171 = arith.truncf %121 : vector<8x128xf32> to vector<8x128xbf16>
    %cst_67 = arith.constant dense<0.000000e+00> : vector<8x512xf32>
    %172 = tpu.matmul %171, %16, %cst_67 {dimension_numbers = #tpu.dot_dimension_numbers<[1], [0], [0], [1], [0, 0, 1, 1], [], []>} : vector<8x128xbf16>, vector<128x512xbf16>, vector<8x512xf32> -> vector<8x512xf32>
    %173 = arith.addf %170, %172 : vector<8x512xf32>
    %174 = vector.extract_strided_slice %173 {offsets = [0, 0], sizes = [8, 384], strides = [1, 1]} : vector<8x512xf32> to vector<8x384xf32>
    %175 = arith.negf %174 : vector<8x384xf32>
    %176 = math.exp %175 : vector<8x384xf32>
    %cst_68 = arith.constant 1.000000e+00 : f32
    %177 = vector.broadcast %cst_68 : f32 to vector<8x384xf32>
    %178 = arith.addf %177, %176 : vector<8x384xf32>
    %179 = arith.divf %177, %178 : vector<8x384xf32>
    %180 = vector.extract_strided_slice %179 {offsets = [0, 0], sizes = [8, 128], strides = [1, 1]} : vector<8x384xf32> to vector<8x128xf32>
    %181 = vector.extract_strided_slice %179 {offsets = [0, 128], sizes = [8, 128], strides = [1, 1]} : vector<8x384xf32> to vector<8x128xf32>
    %182 = vector.extract_strided_slice %179 {offsets = [0, 256], sizes = [8, 128], strides = [1, 1]} : vector<8x384xf32> to vector<8x128xf32>
    %183 = vector.extract_strided_slice %173 {offsets = [0, 384], sizes = [8, 128], strides = [1, 1]} : vector<8x512xf32> to vector<8x128xf32>
    %184 = math.tanh %183 : vector<8x128xf32>
    %185 = arith.mulf %181, %119 : vector<8x128xf32>
    %186 = arith.mulf %180, %184 : vector<8x128xf32>
    %187 = arith.addf %185, %186 : vector<8x128xf32>
    %188 = math.tanh %187 : vector<8x128xf32>
    %189 = arith.mulf %182, %188 : vector<8x128xf32>
    %190 = arith.truncf %189 : vector<8x128xf32> to vector<8x128xbf16>
    %cst_69 = arith.constant dense<0.000000e+00> : vector<8x512xf32>
    %191 = tpu.matmul %190, %22, %cst_69 {dimension_numbers = #tpu.dot_dimension_numbers<[1], [0], [0], [1], [0, 0, 1, 1], [], []>} : vector<8x128xbf16>, vector<128x512xbf16>, vector<8x512xf32> -> vector<8x512xf32>
    %192 = arith.truncf %143 : vector<8x128xf32> to vector<8x128xbf16>
    %cst_70 = arith.constant dense<0.000000e+00> : vector<8x512xf32>
    %193 = tpu.matmul %192, %18, %cst_70 {dimension_numbers = #tpu.dot_dimension_numbers<[1], [0], [0], [1], [0, 0, 1, 1], [], []>} : vector<8x128xbf16>, vector<128x512xbf16>, vector<8x512xf32> -> vector<8x512xf32>
    %194 = arith.addf %191, %193 : vector<8x512xf32>
    %195 = arith.addf %194, %28 : vector<8x512xf32>
    %196 = vector.extract_strided_slice %195 {offsets = [0, 0], sizes = [8, 384], strides = [1, 1]} : vector<8x512xf32> to vector<8x384xf32>
    %197 = arith.negf %196 : vector<8x384xf32>
    %198 = math.exp %197 : vector<8x384xf32>
    %cst_71 = arith.constant 1.000000e+00 : f32
    %199 = vector.broadcast %cst_71 : f32 to vector<8x384xf32>
    %200 = arith.addf %199, %198 : vector<8x384xf32>
    %201 = arith.divf %199, %200 : vector<8x384xf32>
    %202 = vector.extract_strided_slice %201 {offsets = [0, 0], sizes = [8, 128], strides = [1, 1]} : vector<8x384xf32> to vector<8x128xf32>
    %203 = vector.extract_strided_slice %201 {offsets = [0, 128], sizes = [8, 128], strides = [1, 1]} : vector<8x384xf32> to vector<8x128xf32>
    %204 = vector.extract_strided_slice %201 {offsets = [0, 256], sizes = [8, 128], strides = [1, 1]} : vector<8x384xf32> to vector<8x128xf32>
    %205 = vector.extract_strided_slice %195 {offsets = [0, 384], sizes = [8, 128], strides = [1, 1]} : vector<8x512xf32> to vector<8x128xf32>
    %206 = math.tanh %205 : vector<8x128xf32>
    %207 = arith.mulf %203, %141 : vector<8x128xf32>
    %208 = arith.mulf %202, %206 : vector<8x128xf32>
    %209 = arith.addf %207, %208 : vector<8x128xf32>
    %210 = math.tanh %209 : vector<8x128xf32>
    %211 = arith.mulf %204, %210 : vector<8x128xf32>
    %212 = arith.truncf %211 : vector<8x128xf32> to vector<8x128xbf16>
    %cst_72 = arith.constant dense<0.000000e+00> : vector<8x512xf32>
    %213 = tpu.matmul %212, %24, %cst_72 {dimension_numbers = #tpu.dot_dimension_numbers<[1], [0], [0], [1], [0, 0, 1, 1], [], []>} : vector<8x128xbf16>, vector<128x512xbf16>, vector<8x512xf32> -> vector<8x512xf32>
    %214 = arith.truncf %165 : vector<8x128xf32> to vector<8x128xbf16>
    %cst_73 = arith.constant dense<0.000000e+00> : vector<8x512xf32>
    %215 = tpu.matmul %214, %20, %cst_73 {dimension_numbers = #tpu.dot_dimension_numbers<[1], [0], [0], [1], [0, 0, 1, 1], [], []>} : vector<8x128xbf16>, vector<128x512xbf16>, vector<8x512xf32> -> vector<8x512xf32>
    %216 = arith.addf %213, %215 : vector<8x512xf32>
    %217 = arith.addf %216, %32 : vector<8x512xf32>
    %218 = vector.extract_strided_slice %217 {offsets = [0, 0], sizes = [8, 384], strides = [1, 1]} : vector<8x512xf32> to vector<8x384xf32>
    %219 = arith.negf %218 : vector<8x384xf32>
    %220 = math.exp %219 : vector<8x384xf32>
    %cst_74 = arith.constant 1.000000e+00 : f32
    %221 = vector.broadcast %cst_74 : f32 to vector<8x384xf32>
    %222 = arith.addf %221, %220 : vector<8x384xf32>
    %223 = arith.divf %221, %222 : vector<8x384xf32>
    %224 = vector.extract_strided_slice %223 {offsets = [0, 0], sizes = [8, 128], strides = [1, 1]} : vector<8x384xf32> to vector<8x128xf32>
    %225 = vector.extract_strided_slice %223 {offsets = [0, 128], sizes = [8, 128], strides = [1, 1]} : vector<8x384xf32> to vector<8x128xf32>
    %226 = vector.extract_strided_slice %223 {offsets = [0, 256], sizes = [8, 128], strides = [1, 1]} : vector<8x384xf32> to vector<8x128xf32>
    %227 = vector.extract_strided_slice %217 {offsets = [0, 384], sizes = [8, 128], strides = [1, 1]} : vector<8x512xf32> to vector<8x128xf32>
    %228 = math.tanh %227 : vector<8x128xf32>
    %229 = arith.mulf %225, %163 : vector<8x128xf32>
    %230 = arith.mulf %224, %228 : vector<8x128xf32>
    %231 = arith.addf %229, %230 : vector<8x128xf32>
    %232 = math.tanh %231 : vector<8x128xf32>
    %233 = arith.mulf %226, %232 : vector<8x128xf32>
    %c2_75 = arith.constant 2 : index
    %c0_76 = arith.constant 0 : index
    %c0_77 = arith.constant 0 : index
    %234 = vector.load %arg7[%c2_75, %c0_76, %c0_77] : memref<8x8x128xf32, #tpu.memory_space<vmem>>, vector<1x8x128xf32>
    %235 = vector.shape_cast %234 : vector<1x8x128xf32> to vector<8x128xf32>
    %236 = vector.shape_cast %233 : vector<8x128xf32> to vector<1x8x128xf32>
    tpu.vector_store %arg7[%c2_75, %c0_76, %c0_77], %236 {strides = array<i32>} : memref<8x8x128xf32, #tpu.memory_space<vmem>>, vector<1x8x128xf32>,
    %c3 = arith.constant 3 : index
    %c0_78 = arith.constant 0 : index
    %c0_79 = arith.constant 0 : index
    %237 = vector.load %arg1[%c3, %c0_78, %c0_79] : memref<8x8x512xf32, #tpu.memory_space<vmem>>, vector<1x8x512xf32>
    %238 = vector.shape_cast %237 : vector<1x8x512xf32> to vector<8x512xf32>
    %239 = arith.truncf %189 : vector<8x128xf32> to vector<8x128xbf16>
    %cst_80 = arith.constant dense<0.000000e+00> : vector<8x512xf32>
    %240 = tpu.matmul %239, %16, %cst_80 {dimension_numbers = #tpu.dot_dimension_numbers<[1], [0], [0], [1], [0, 0, 1, 1], [], []>} : vector<8x128xbf16>, vector<128x512xbf16>, vector<8x512xf32> -> vector<8x512xf32>
    %241 = arith.addf %238, %240 : vector<8x512xf32>
    %242 = vector.extract_strided_slice %241 {offsets = [0, 0], sizes = [8, 384], strides = [1, 1]} : vector<8x512xf32> to vector<8x384xf32>
    %243 = arith.negf %242 : vector<8x384xf32>
    %244 = math.exp %243 : vector<8x384xf32>
    %cst_81 = arith.constant 1.000000e+00 : f32
    %245 = vector.broadcast %cst_81 : f32 to vector<8x384xf32>
    %246 = arith.addf %245, %244 : vector<8x384xf32>
    %247 = arith.divf %245, %246 : vector<8x384xf32>
    %248 = vector.extract_strided_slice %247 {offsets = [0, 0], sizes = [8, 128], strides = [1, 1]} : vector<8x384xf32> to vector<8x128xf32>
    %249 = vector.extract_strided_slice %247 {offsets = [0, 128], sizes = [8, 128], strides = [1, 1]} : vector<8x384xf32> to vector<8x128xf32>
    %250 = vector.extract_strided_slice %247 {offsets = [0, 256], sizes = [8, 128], strides = [1, 1]} : vector<8x384xf32> to vector<8x128xf32>
    %251 = vector.extract_strided_slice %241 {offsets = [0, 384], sizes = [8, 128], strides = [1, 1]} : vector<8x512xf32> to vector<8x128xf32>
    %252 = math.tanh %251 : vector<8x128xf32>
    %253 = arith.mulf %249, %187 : vector<8x128xf32>
    %254 = arith.mulf %248, %252 : vector<8x128xf32>
    %255 = arith.addf %253, %254 : vector<8x128xf32>
    %256 = math.tanh %255 : vector<8x128xf32>
    %257 = arith.mulf %250, %256 : vector<8x128xf32>
    %258 = arith.truncf %257 : vector<8x128xf32> to vector<8x128xbf16>
    %cst_82 = arith.constant dense<0.000000e+00> : vector<8x512xf32>
    %259 = tpu.matmul %258, %22, %cst_82 {dimension_numbers = #tpu.dot_dimension_numbers<[1], [0], [0], [1], [0, 0, 1, 1], [], []>} : vector<8x128xbf16>, vector<128x512xbf16>, vector<8x512xf32> -> vector<8x512xf32>
    %260 = arith.truncf %211 : vector<8x128xf32> to vector<8x128xbf16>
    %cst_83 = arith.constant dense<0.000000e+00> : vector<8x512xf32>
    %261 = tpu.matmul %260, %18, %cst_83 {dimension_numbers = #tpu.dot_dimension_numbers<[1], [0], [0], [1], [0, 0, 1, 1], [], []>} : vector<8x128xbf16>, vector<128x512xbf16>, vector<8x512xf32> -> vector<8x512xf32>
    %262 = arith.addf %259, %261 : vector<8x512xf32>
    %263 = arith.addf %262, %28 : vector<8x512xf32>
    %264 = vector.extract_strided_slice %263 {offsets = [0, 0], sizes = [8, 384], strides = [1, 1]} : vector<8x512xf32> to vector<8x384xf32>
    %265 = arith.negf %264 : vector<8x384xf32>
    %266 = math.exp %265 : vector<8x384xf32>
    %cst_84 = arith.constant 1.000000e+00 : f32
    %267 = vector.broadcast %cst_84 : f32 to vector<8x384xf32>
    %268 = arith.addf %267, %266 : vector<8x384xf32>
    %269 = arith.divf %267, %268 : vector<8x384xf32>
    %270 = vector.extract_strided_slice %269 {offsets = [0, 0], sizes = [8, 128], strides = [1, 1]} : vector<8x384xf32> to vector<8x128xf32>
    %271 = vector.extract_strided_slice %269 {offsets = [0, 128], sizes = [8, 128], strides = [1, 1]} : vector<8x384xf32> to vector<8x128xf32>
    %272 = vector.extract_strided_slice %269 {offsets = [0, 256], sizes = [8, 128], strides = [1, 1]} : vector<8x384xf32> to vector<8x128xf32>
    %273 = vector.extract_strided_slice %263 {offsets = [0, 384], sizes = [8, 128], strides = [1, 1]} : vector<8x512xf32> to vector<8x128xf32>
    %274 = math.tanh %273 : vector<8x128xf32>
    %275 = arith.mulf %271, %209 : vector<8x128xf32>
    %276 = arith.mulf %270, %274 : vector<8x128xf32>
    %277 = arith.addf %275, %276 : vector<8x128xf32>
    %278 = math.tanh %277 : vector<8x128xf32>
    %279 = arith.mulf %272, %278 : vector<8x128xf32>
    %280 = arith.truncf %279 : vector<8x128xf32> to vector<8x128xbf16>
    %cst_85 = arith.constant dense<0.000000e+00> : vector<8x512xf32>
    %281 = tpu.matmul %280, %24, %cst_85 {dimension_numbers = #tpu.dot_dimension_numbers<[1], [0], [0], [1], [0, 0, 1, 1], [], []>} : vector<8x128xbf16>, vector<128x512xbf16>, vector<8x512xf32> -> vector<8x512xf32>
    %282 = arith.truncf %233 : vector<8x128xf32> to vector<8x128xbf16>
    %cst_86 = arith.constant dense<0.000000e+00> : vector<8x512xf32>
    %283 = tpu.matmul %282, %20, %cst_86 {dimension_numbers = #tpu.dot_dimension_numbers<[1], [0], [0], [1], [0, 0, 1, 1], [], []>} : vector<8x128xbf16>, vector<128x512xbf16>, vector<8x512xf32> -> vector<8x512xf32>
    %284 = arith.addf %281, %283 : vector<8x512xf32>
    %285 = arith.addf %284, %32 : vector<8x512xf32>
    %286 = vector.extract_strided_slice %285 {offsets = [0, 0], sizes = [8, 384], strides = [1, 1]} : vector<8x512xf32> to vector<8x384xf32>
    %287 = arith.negf %286 : vector<8x384xf32>
    %288 = math.exp %287 : vector<8x384xf32>
    %cst_87 = arith.constant 1.000000e+00 : f32
    %289 = vector.broadcast %cst_87 : f32 to vector<8x384xf32>
    %290 = arith.addf %289, %288 : vector<8x384xf32>
    %291 = arith.divf %289, %290 : vector<8x384xf32>
    %292 = vector.extract_strided_slice %291 {offsets = [0, 0], sizes = [8, 128], strides = [1, 1]} : vector<8x384xf32> to vector<8x128xf32>
    %293 = vector.extract_strided_slice %291 {offsets = [0, 128], sizes = [8, 128], strides = [1, 1]} : vector<8x384xf32> to vector<8x128xf32>
    %294 = vector.extract_strided_slice %291 {offsets = [0, 256], sizes = [8, 128], strides = [1, 1]} : vector<8x384xf32> to vector<8x128xf32>
    %295 = vector.extract_strided_slice %285 {offsets = [0, 384], sizes = [8, 128], strides = [1, 1]} : vector<8x512xf32> to vector<8x128xf32>
    %296 = math.tanh %295 : vector<8x128xf32>
    %297 = arith.mulf %293, %231 : vector<8x128xf32>
    %298 = arith.mulf %292, %296 : vector<8x128xf32>
    %299 = arith.addf %297, %298 : vector<8x128xf32>
    %300 = math.tanh %299 : vector<8x128xf32>
    %301 = arith.mulf %294, %300 : vector<8x128xf32>
    %c3_88 = arith.constant 3 : index
    %c0_89 = arith.constant 0 : index
    %c0_90 = arith.constant 0 : index
    %302 = vector.load %arg7[%c3_88, %c0_89, %c0_90] : memref<8x8x128xf32, #tpu.memory_space<vmem>>, vector<1x8x128xf32>
    %303 = vector.shape_cast %302 : vector<1x8x128xf32> to vector<8x128xf32>
    %304 = vector.shape_cast %301 : vector<8x128xf32> to vector<1x8x128xf32>
    tpu.vector_store %arg7[%c3_88, %c0_89, %c0_90], %304 {strides = array<i32>} : memref<8x8x128xf32, #tpu.memory_space<vmem>>, vector<1x8x128xf32>,
    %c4 = arith.constant 4 : index
    %c0_91 = arith.constant 0 : index
    %c0_92 = arith.constant 0 : index
    %305 = vector.load %arg1[%c4, %c0_91, %c0_92] : memref<8x8x512xf32, #tpu.memory_space<vmem>>, vector<1x8x512xf32>
    %306 = vector.shape_cast %305 : vector<1x8x512xf32> to vector<8x512xf32>
    %307 = arith.truncf %257 : vector<8x128xf32> to vector<8x128xbf16>
    %cst_93 = arith.constant dense<0.000000e+00> : vector<8x512xf32>
    %308 = tpu.matmul %307, %16, %cst_93 {dimension_numbers = #tpu.dot_dimension_numbers<[1], [0], [0], [1], [0, 0, 1, 1], [], []>} : vector<8x128xbf16>, vector<128x512xbf16>, vector<8x512xf32> -> vector<8x512xf32>
    %309 = arith.addf %306, %308 : vector<8x512xf32>
    %310 = vector.extract_strided_slice %309 {offsets = [0, 0], sizes = [8, 384], strides = [1, 1]} : vector<8x512xf32> to vector<8x384xf32>
    %311 = arith.negf %310 : vector<8x384xf32>
    %312 = math.exp %311 : vector<8x384xf32>
    %cst_94 = arith.constant 1.000000e+00 : f32
    %313 = vector.broadcast %cst_94 : f32 to vector<8x384xf32>
    %314 = arith.addf %313, %312 : vector<8x384xf32>
    %315 = arith.divf %313, %314 : vector<8x384xf32>
    %316 = vector.extract_strided_slice %315 {offsets = [0, 0], sizes = [8, 128], strides = [1, 1]} : vector<8x384xf32> to vector<8x128xf32>
    %317 = vector.extract_strided_slice %315 {offsets = [0, 128], sizes = [8, 128], strides = [1, 1]} : vector<8x384xf32> to vector<8x128xf32>
    %318 = vector.extract_strided_slice %315 {offsets = [0, 256], sizes = [8, 128], strides = [1, 1]} : vector<8x384xf32> to vector<8x128xf32>
    %319 = vector.extract_strided_slice %309 {offsets = [0, 384], sizes = [8, 128], strides = [1, 1]} : vector<8x512xf32> to vector<8x128xf32>
    %320 = math.tanh %319 : vector<8x128xf32>
    %321 = arith.mulf %317, %255 : vector<8x128xf32>
    %322 = arith.mulf %316, %320 : vector<8x128xf32>
    %323 = arith.addf %321, %322 : vector<8x128xf32>
    %324 = math.tanh %323 : vector<8x128xf32>
    %325 = arith.mulf %318, %324 : vector<8x128xf32>
    %326 = arith.truncf %325 : vector<8x128xf32> to vector<8x128xbf16>
    %cst_95 = arith.constant dense<0.000000e+00> : vector<8x512xf32>
    %327 = tpu.matmul %326, %22, %cst_95 {dimension_numbers = #tpu.dot_dimension_numbers<[1], [0], [0], [1], [0, 0, 1, 1], [], []>} : vector<8x128xbf16>, vector<128x512xbf16>, vector<8x512xf32> -> vector<8x512xf32>
    %328 = arith.truncf %279 : vector<8x128xf32> to vector<8x128xbf16>
    %cst_96 = arith.constant dense<0.000000e+00> : vector<8x512xf32>
    %329 = tpu.matmul %328, %18, %cst_96 {dimension_numbers = #tpu.dot_dimension_numbers<[1], [0], [0], [1], [0, 0, 1, 1], [], []>} : vector<8x128xbf16>, vector<128x512xbf16>, vector<8x512xf32> -> vector<8x512xf32>
    %330 = arith.addf %327, %329 : vector<8x512xf32>
    %331 = arith.addf %330, %28 : vector<8x512xf32>
    %332 = vector.extract_strided_slice %331 {offsets = [0, 0], sizes = [8, 384], strides = [1, 1]} : vector<8x512xf32> to vector<8x384xf32>
    %333 = arith.negf %332 : vector<8x384xf32>
    %334 = math.exp %333 : vector<8x384xf32>
    %cst_97 = arith.constant 1.000000e+00 : f32
    %335 = vector.broadcast %cst_97 : f32 to vector<8x384xf32>
    %336 = arith.addf %335, %334 : vector<8x384xf32>
    %337 = arith.divf %335, %336 : vector<8x384xf32>
    %338 = vector.extract_strided_slice %337 {offsets = [0, 0], sizes = [8, 128], strides = [1, 1]} : vector<8x384xf32> to vector<8x128xf32>
    %339 = vector.extract_strided_slice %337 {offsets = [0, 128], sizes = [8, 128], strides = [1, 1]} : vector<8x384xf32> to vector<8x128xf32>
    %340 = vector.extract_strided_slice %337 {offsets = [0, 256], sizes = [8, 128], strides = [1, 1]} : vector<8x384xf32> to vector<8x128xf32>
    %341 = vector.extract_strided_slice %331 {offsets = [0, 384], sizes = [8, 128], strides = [1, 1]} : vector<8x512xf32> to vector<8x128xf32>
    %342 = math.tanh %341 : vector<8x128xf32>
    %343 = arith.mulf %339, %277 : vector<8x128xf32>
    %344 = arith.mulf %338, %342 : vector<8x128xf32>
    %345 = arith.addf %343, %344 : vector<8x128xf32>
    %346 = math.tanh %345 : vector<8x128xf32>
    %347 = arith.mulf %340, %346 : vector<8x128xf32>
    %348 = arith.truncf %347 : vector<8x128xf32> to vector<8x128xbf16>
    %cst_98 = arith.constant dense<0.000000e+00> : vector<8x512xf32>
    %349 = tpu.matmul %348, %24, %cst_98 {dimension_numbers = #tpu.dot_dimension_numbers<[1], [0], [0], [1], [0, 0, 1, 1], [], []>} : vector<8x128xbf16>, vector<128x512xbf16>, vector<8x512xf32> -> vector<8x512xf32>
    %350 = arith.truncf %301 : vector<8x128xf32> to vector<8x128xbf16>
    %cst_99 = arith.constant dense<0.000000e+00> : vector<8x512xf32>
    %351 = tpu.matmul %350, %20, %cst_99 {dimension_numbers = #tpu.dot_dimension_numbers<[1], [0], [0], [1], [0, 0, 1, 1], [], []>} : vector<8x128xbf16>, vector<128x512xbf16>, vector<8x512xf32> -> vector<8x512xf32>
    %352 = arith.addf %349, %351 : vector<8x512xf32>
    %353 = arith.addf %352, %32 : vector<8x512xf32>
    %354 = vector.extract_strided_slice %353 {offsets = [0, 0], sizes = [8, 384], strides = [1, 1]} : vector<8x512xf32> to vector<8x384xf32>
    %355 = arith.negf %354 : vector<8x384xf32>
    %356 = math.exp %355 : vector<8x384xf32>
    %cst_100 = arith.constant 1.000000e+00 : f32
    %357 = vector.broadcast %cst_100 : f32 to vector<8x384xf32>
    %358 = arith.addf %357, %356 : vector<8x384xf32>
    %359 = arith.divf %357, %358 : vector<8x384xf32>
    %360 = vector.extract_strided_slice %359 {offsets = [0, 0], sizes = [8, 128], strides = [1, 1]} : vector<8x384xf32> to vector<8x128xf32>
    %361 = vector.extract_strided_slice %359 {offsets = [0, 128], sizes = [8, 128], strides = [1, 1]} : vector<8x384xf32> to vector<8x128xf32>
    %362 = vector.extract_strided_slice %359 {offsets = [0, 256], sizes = [8, 128], strides = [1, 1]} : vector<8x384xf32> to vector<8x128xf32>
    %363 = vector.extract_strided_slice %353 {offsets = [0, 384], sizes = [8, 128], strides = [1, 1]} : vector<8x512xf32> to vector<8x128xf32>
    %364 = math.tanh %363 : vector<8x128xf32>
    %365 = arith.mulf %361, %299 : vector<8x128xf32>
    %366 = arith.mulf %360, %364 : vector<8x128xf32>
    %367 = arith.addf %365, %366 : vector<8x128xf32>
    %368 = math.tanh %367 : vector<8x128xf32>
    %369 = arith.mulf %362, %368 : vector<8x128xf32>
    %c4_101 = arith.constant 4 : index
    %c0_102 = arith.constant 0 : index
    %c0_103 = arith.constant 0 : index
    %370 = vector.load %arg7[%c4_101, %c0_102, %c0_103] : memref<8x8x128xf32, #tpu.memory_space<vmem>>, vector<1x8x128xf32>
    %371 = vector.shape_cast %370 : vector<1x8x128xf32> to vector<8x128xf32>
    %372 = vector.shape_cast %369 : vector<8x128xf32> to vector<1x8x128xf32>
    tpu.vector_store %arg7[%c4_101, %c0_102, %c0_103], %372 {strides = array<i32>} : memref<8x8x128xf32, #tpu.memory_space<vmem>>, vector<1x8x128xf32>,
    %c5 = arith.constant 5 : index
    %c0_104 = arith.constant 0 : index
    %c0_105 = arith.constant 0 : index
    %373 = vector.load %arg1[%c5, %c0_104, %c0_105] : memref<8x8x512xf32, #tpu.memory_space<vmem>>, vector<1x8x512xf32>
    %374 = vector.shape_cast %373 : vector<1x8x512xf32> to vector<8x512xf32>
    %375 = arith.truncf %325 : vector<8x128xf32> to vector<8x128xbf16>
    %cst_106 = arith.constant dense<0.000000e+00> : vector<8x512xf32>
    %376 = tpu.matmul %375, %16, %cst_106 {dimension_numbers = #tpu.dot_dimension_numbers<[1], [0], [0], [1], [0, 0, 1, 1], [], []>} : vector<8x128xbf16>, vector<128x512xbf16>, vector<8x512xf32> -> vector<8x512xf32>
    %377 = arith.addf %374, %376 : vector<8x512xf32>
    %378 = vector.extract_strided_slice %377 {offsets = [0, 0], sizes = [8, 384], strides = [1, 1]} : vector<8x512xf32> to vector<8x384xf32>
    %379 = arith.negf %378 : vector<8x384xf32>
    %380 = math.exp %379 : vector<8x384xf32>
    %cst_107 = arith.constant 1.000000e+00 : f32
    %381 = vector.broadcast %cst_107 : f32 to vector<8x384xf32>
    %382 = arith.addf %381, %380 : vector<8x384xf32>
    %383 = arith.divf %381, %382 : vector<8x384xf32>
    %384 = vector.extract_strided_slice %383 {offsets = [0, 0], sizes = [8, 128], strides = [1, 1]} : vector<8x384xf32> to vector<8x128xf32>
    %385 = vector.extract_strided_slice %383 {offsets = [0, 128], sizes = [8, 128], strides = [1, 1]} : vector<8x384xf32> to vector<8x128xf32>
    %386 = vector.extract_strided_slice %383 {offsets = [0, 256], sizes = [8, 128], strides = [1, 1]} : vector<8x384xf32> to vector<8x128xf32>
    %387 = vector.extract_strided_slice %377 {offsets = [0, 384], sizes = [8, 128], strides = [1, 1]} : vector<8x512xf32> to vector<8x128xf32>
    %388 = math.tanh %387 : vector<8x128xf32>
    %389 = arith.mulf %385, %323 : vector<8x128xf32>
    %390 = arith.mulf %384, %388 : vector<8x128xf32>
    %391 = arith.addf %389, %390 : vector<8x128xf32>
    %392 = math.tanh %391 : vector<8x128xf32>
    %393 = arith.mulf %386, %392 : vector<8x128xf32>
    %394 = arith.truncf %393 : vector<8x128xf32> to vector<8x128xbf16>
    %cst_108 = arith.constant dense<0.000000e+00> : vector<8x512xf32>
    %395 = tpu.matmul %394, %22, %cst_108 {dimension_numbers = #tpu.dot_dimension_numbers<[1], [0], [0], [1], [0, 0, 1, 1], [], []>} : vector<8x128xbf16>, vector<128x512xbf16>, vector<8x512xf32> -> vector<8x512xf32>
    %396 = arith.truncf %347 : vector<8x128xf32> to vector<8x128xbf16>
    %cst_109 = arith.constant dense<0.000000e+00> : vector<8x512xf32>
    %397 = tpu.matmul %396, %18, %cst_109 {dimension_numbers = #tpu.dot_dimension_numbers<[1], [0], [0], [1], [0, 0, 1, 1], [], []>} : vector<8x128xbf16>, vector<128x512xbf16>, vector<8x512xf32> -> vector<8x512xf32>
    %398 = arith.addf %395, %397 : vector<8x512xf32>
    %399 = arith.addf %398, %28 : vector<8x512xf32>
    %400 = vector.extract_strided_slice %399 {offsets = [0, 0], sizes = [8, 384], strides = [1, 1]} : vector<8x512xf32> to vector<8x384xf32>
    %401 = arith.negf %400 : vector<8x384xf32>
    %402 = math.exp %401 : vector<8x384xf32>
    %cst_110 = arith.constant 1.000000e+00 : f32
    %403 = vector.broadcast %cst_110 : f32 to vector<8x384xf32>
    %404 = arith.addf %403, %402 : vector<8x384xf32>
    %405 = arith.divf %403, %404 : vector<8x384xf32>
    %406 = vector.extract_strided_slice %405 {offsets = [0, 0], sizes = [8, 128], strides = [1, 1]} : vector<8x384xf32> to vector<8x128xf32>
    %407 = vector.extract_strided_slice %405 {offsets = [0, 128], sizes = [8, 128], strides = [1, 1]} : vector<8x384xf32> to vector<8x128xf32>
    %408 = vector.extract_strided_slice %405 {offsets = [0, 256], sizes = [8, 128], strides = [1, 1]} : vector<8x384xf32> to vector<8x128xf32>
    %409 = vector.extract_strided_slice %399 {offsets = [0, 384], sizes = [8, 128], strides = [1, 1]} : vector<8x512xf32> to vector<8x128xf32>
    %410 = math.tanh %409 : vector<8x128xf32>
    %411 = arith.mulf %407, %345 : vector<8x128xf32>
    %412 = arith.mulf %406, %410 : vector<8x128xf32>
    %413 = arith.addf %411, %412 : vector<8x128xf32>
    %414 = math.tanh %413 : vector<8x128xf32>
    %415 = arith.mulf %408, %414 : vector<8x128xf32>
    %416 = arith.truncf %415 : vector<8x128xf32> to vector<8x128xbf16>
    %cst_111 = arith.constant dense<0.000000e+00> : vector<8x512xf32>
    %417 = tpu.matmul %416, %24, %cst_111 {dimension_numbers = #tpu.dot_dimension_numbers<[1], [0], [0], [1], [0, 0, 1, 1], [], []>} : vector<8x128xbf16>, vector<128x512xbf16>, vector<8x512xf32> -> vector<8x512xf32>
    %418 = arith.truncf %369 : vector<8x128xf32> to vector<8x128xbf16>
    %cst_112 = arith.constant dense<0.000000e+00> : vector<8x512xf32>
    %419 = tpu.matmul %418, %20, %cst_112 {dimension_numbers = #tpu.dot_dimension_numbers<[1], [0], [0], [1], [0, 0, 1, 1], [], []>} : vector<8x128xbf16>, vector<128x512xbf16>, vector<8x512xf32> -> vector<8x512xf32>
    %420 = arith.addf %417, %419 : vector<8x512xf32>
    %421 = arith.addf %420, %32 : vector<8x512xf32>
    %422 = vector.extract_strided_slice %421 {offsets = [0, 0], sizes = [8, 384], strides = [1, 1]} : vector<8x512xf32> to vector<8x384xf32>
    %423 = arith.negf %422 : vector<8x384xf32>
    %424 = math.exp %423 : vector<8x384xf32>
    %cst_113 = arith.constant 1.000000e+00 : f32
    %425 = vector.broadcast %cst_113 : f32 to vector<8x384xf32>
    %426 = arith.addf %425, %424 : vector<8x384xf32>
    %427 = arith.divf %425, %426 : vector<8x384xf32>
    %428 = vector.extract_strided_slice %427 {offsets = [0, 0], sizes = [8, 128], strides = [1, 1]} : vector<8x384xf32> to vector<8x128xf32>
    %429 = vector.extract_strided_slice %427 {offsets = [0, 128], sizes = [8, 128], strides = [1, 1]} : vector<8x384xf32> to vector<8x128xf32>
    %430 = vector.extract_strided_slice %427 {offsets = [0, 256], sizes = [8, 128], strides = [1, 1]} : vector<8x384xf32> to vector<8x128xf32>
    %431 = vector.extract_strided_slice %421 {offsets = [0, 384], sizes = [8, 128], strides = [1, 1]} : vector<8x512xf32> to vector<8x128xf32>
    %432 = math.tanh %431 : vector<8x128xf32>
    %433 = arith.mulf %429, %367 : vector<8x128xf32>
    %434 = arith.mulf %428, %432 : vector<8x128xf32>
    %435 = arith.addf %433, %434 : vector<8x128xf32>
    %436 = math.tanh %435 : vector<8x128xf32>
    %437 = arith.mulf %430, %436 : vector<8x128xf32>
    %c5_114 = arith.constant 5 : index
    %c0_115 = arith.constant 0 : index
    %c0_116 = arith.constant 0 : index
    %438 = vector.load %arg7[%c5_114, %c0_115, %c0_116] : memref<8x8x128xf32, #tpu.memory_space<vmem>>, vector<1x8x128xf32>
    %439 = vector.shape_cast %438 : vector<1x8x128xf32> to vector<8x128xf32>
    %440 = vector.shape_cast %437 : vector<8x128xf32> to vector<1x8x128xf32>
    tpu.vector_store %arg7[%c5_114, %c0_115, %c0_116], %440 {strides = array<i32>} : memref<8x8x128xf32, #tpu.memory_space<vmem>>, vector<1x8x128xf32>,
    %c6 = arith.constant 6 : index
    %c0_117 = arith.constant 0 : index
    %c0_118 = arith.constant 0 : index
    %441 = vector.load %arg1[%c6, %c0_117, %c0_118] : memref<8x8x512xf32, #tpu.memory_space<vmem>>, vector<1x8x512xf32>
    %442 = vector.shape_cast %441 : vector<1x8x512xf32> to vector<8x512xf32>
    %443 = arith.truncf %393 : vector<8x128xf32> to vector<8x128xbf16>
    %cst_119 = arith.constant dense<0.000000e+00> : vector<8x512xf32>
    %444 = tpu.matmul %443, %16, %cst_119 {dimension_numbers = #tpu.dot_dimension_numbers<[1], [0], [0], [1], [0, 0, 1, 1], [], []>} : vector<8x128xbf16>, vector<128x512xbf16>, vector<8x512xf32> -> vector<8x512xf32>
    %445 = arith.addf %442, %444 : vector<8x512xf32>
    %446 = vector.extract_strided_slice %445 {offsets = [0, 0], sizes = [8, 384], strides = [1, 1]} : vector<8x512xf32> to vector<8x384xf32>
    %447 = arith.negf %446 : vector<8x384xf32>
    %448 = math.exp %447 : vector<8x384xf32>
    %cst_120 = arith.constant 1.000000e+00 : f32
    %449 = vector.broadcast %cst_120 : f32 to vector<8x384xf32>
    %450 = arith.addf %449, %448 : vector<8x384xf32>
    %451 = arith.divf %449, %450 : vector<8x384xf32>
    %452 = vector.extract_strided_slice %451 {offsets = [0, 0], sizes = [8, 128], strides = [1, 1]} : vector<8x384xf32> to vector<8x128xf32>
    %453 = vector.extract_strided_slice %451 {offsets = [0, 128], sizes = [8, 128], strides = [1, 1]} : vector<8x384xf32> to vector<8x128xf32>
    %454 = vector.extract_strided_slice %451 {offsets = [0, 256], sizes = [8, 128], strides = [1, 1]} : vector<8x384xf32> to vector<8x128xf32>
    %455 = vector.extract_strided_slice %445 {offsets = [0, 384], sizes = [8, 128], strides = [1, 1]} : vector<8x512xf32> to vector<8x128xf32>
    %456 = math.tanh %455 : vector<8x128xf32>
    %457 = arith.mulf %453, %391 : vector<8x128xf32>
    %458 = arith.mulf %452, %456 : vector<8x128xf32>
    %459 = arith.addf %457, %458 : vector<8x128xf32>
    %460 = math.tanh %459 : vector<8x128xf32>
    %461 = arith.mulf %454, %460 : vector<8x128xf32>
    %462 = arith.truncf %461 : vector<8x128xf32> to vector<8x128xbf16>
    %cst_121 = arith.constant dense<0.000000e+00> : vector<8x512xf32>
    %463 = tpu.matmul %462, %22, %cst_121 {dimension_numbers = #tpu.dot_dimension_numbers<[1], [0], [0], [1], [0, 0, 1, 1], [], []>} : vector<8x128xbf16>, vector<128x512xbf16>, vector<8x512xf32> -> vector<8x512xf32>
    %464 = arith.truncf %415 : vector<8x128xf32> to vector<8x128xbf16>
    %cst_122 = arith.constant dense<0.000000e+00> : vector<8x512xf32>
    %465 = tpu.matmul %464, %18, %cst_122 {dimension_numbers = #tpu.dot_dimension_numbers<[1], [0], [0], [1], [0, 0, 1, 1], [], []>} : vector<8x128xbf16>, vector<128x512xbf16>, vector<8x512xf32> -> vector<8x512xf32>
    %466 = arith.addf %463, %465 : vector<8x512xf32>
    %467 = arith.addf %466, %28 : vector<8x512xf32>
    %468 = vector.extract_strided_slice %467 {offsets = [0, 0], sizes = [8, 384], strides = [1, 1]} : vector<8x512xf32> to vector<8x384xf32>
    %469 = arith.negf %468 : vector<8x384xf32>
    %470 = math.exp %469 : vector<8x384xf32>
    %cst_123 = arith.constant 1.000000e+00 : f32
    %471 = vector.broadcast %cst_123 : f32 to vector<8x384xf32>
    %472 = arith.addf %471, %470 : vector<8x384xf32>
    %473 = arith.divf %471, %472 : vector<8x384xf32>
    %474 = vector.extract_strided_slice %473 {offsets = [0, 0], sizes = [8, 128], strides = [1, 1]} : vector<8x384xf32> to vector<8x128xf32>
    %475 = vector.extract_strided_slice %473 {offsets = [0, 128], sizes = [8, 128], strides = [1, 1]} : vector<8x384xf32> to vector<8x128xf32>
    %476 = vector.extract_strided_slice %473 {offsets = [0, 256], sizes = [8, 128], strides = [1, 1]} : vector<8x384xf32> to vector<8x128xf32>
    %477 = vector.extract_strided_slice %467 {offsets = [0, 384], sizes = [8, 128], strides = [1, 1]} : vector<8x512xf32> to vector<8x128xf32>
    %478 = math.tanh %477 : vector<8x128xf32>
    %479 = arith.mulf %475, %413 : vector<8x128xf32>
    %480 = arith.mulf %474, %478 : vector<8x128xf32>
    %481 = arith.addf %479, %480 : vector<8x128xf32>
    %482 = math.tanh %481 : vector<8x128xf32>
    %483 = arith.mulf %476, %482 : vector<8x128xf32>
    %484 = arith.truncf %483 : vector<8x128xf32> to vector<8x128xbf16>
    %cst_124 = arith.constant dense<0.000000e+00> : vector<8x512xf32>
    %485 = tpu.matmul %484, %24, %cst_124 {dimension_numbers = #tpu.dot_dimension_numbers<[1], [0], [0], [1], [0, 0, 1, 1], [], []>} : vector<8x128xbf16>, vector<128x512xbf16>, vector<8x512xf32> -> vector<8x512xf32>
    %486 = arith.truncf %437 : vector<8x128xf32> to vector<8x128xbf16>
    %cst_125 = arith.constant dense<0.000000e+00> : vector<8x512xf32>
    %487 = tpu.matmul %486, %20, %cst_125 {dimension_numbers = #tpu.dot_dimension_numbers<[1], [0], [0], [1], [0, 0, 1, 1], [], []>} : vector<8x128xbf16>, vector<128x512xbf16>, vector<8x512xf32> -> vector<8x512xf32>
    %488 = arith.addf %485, %487 : vector<8x512xf32>
    %489 = arith.addf %488, %32 : vector<8x512xf32>
    %490 = vector.extract_strided_slice %489 {offsets = [0, 0], sizes = [8, 384], strides = [1, 1]} : vector<8x512xf32> to vector<8x384xf32>
    %491 = arith.negf %490 : vector<8x384xf32>
    %492 = math.exp %491 : vector<8x384xf32>
    %cst_126 = arith.constant 1.000000e+00 : f32
    %493 = vector.broadcast %cst_126 : f32 to vector<8x384xf32>
    %494 = arith.addf %493, %492 : vector<8x384xf32>
    %495 = arith.divf %493, %494 : vector<8x384xf32>
    %496 = vector.extract_strided_slice %495 {offsets = [0, 0], sizes = [8, 128], strides = [1, 1]} : vector<8x384xf32> to vector<8x128xf32>
    %497 = vector.extract_strided_slice %495 {offsets = [0, 128], sizes = [8, 128], strides = [1, 1]} : vector<8x384xf32> to vector<8x128xf32>
    %498 = vector.extract_strided_slice %495 {offsets = [0, 256], sizes = [8, 128], strides = [1, 1]} : vector<8x384xf32> to vector<8x128xf32>
    %499 = vector.extract_strided_slice %489 {offsets = [0, 384], sizes = [8, 128], strides = [1, 1]} : vector<8x512xf32> to vector<8x128xf32>
    %500 = math.tanh %499 : vector<8x128xf32>
    %501 = arith.mulf %497, %435 : vector<8x128xf32>
    %502 = arith.mulf %496, %500 : vector<8x128xf32>
    %503 = arith.addf %501, %502 : vector<8x128xf32>
    %504 = math.tanh %503 : vector<8x128xf32>
    %505 = arith.mulf %498, %504 : vector<8x128xf32>
    %c6_127 = arith.constant 6 : index
    %c0_128 = arith.constant 0 : index
    %c0_129 = arith.constant 0 : index
    %506 = vector.load %arg7[%c6_127, %c0_128, %c0_129] : memref<8x8x128xf32, #tpu.memory_space<vmem>>, vector<1x8x128xf32>
    %507 = vector.shape_cast %506 : vector<1x8x128xf32> to vector<8x128xf32>
    %508 = vector.shape_cast %505 : vector<8x128xf32> to vector<1x8x128xf32>
    tpu.vector_store %arg7[%c6_127, %c0_128, %c0_129], %508 {strides = array<i32>} : memref<8x8x128xf32, #tpu.memory_space<vmem>>, vector<1x8x128xf32>,
    %c7 = arith.constant 7 : index
    %c0_130 = arith.constant 0 : index
    %c0_131 = arith.constant 0 : index
    %509 = vector.load %arg1[%c7, %c0_130, %c0_131] : memref<8x8x512xf32, #tpu.memory_space<vmem>>, vector<1x8x512xf32>
    %510 = vector.shape_cast %509 : vector<1x8x512xf32> to vector<8x512xf32>
    %511 = arith.truncf %461 : vector<8x128xf32> to vector<8x128xbf16>
    %cst_132 = arith.constant dense<0.000000e+00> : vector<8x512xf32>
    %512 = tpu.matmul %511, %16, %cst_132 {dimension_numbers = #tpu.dot_dimension_numbers<[1], [0], [0], [1], [0, 0, 1, 1], [], []>} : vector<8x128xbf16>, vector<128x512xbf16>, vector<8x512xf32> -> vector<8x512xf32>
    %513 = arith.addf %510, %512 : vector<8x512xf32>
    %514 = vector.extract_strided_slice %513 {offsets = [0, 0], sizes = [8, 384], strides = [1, 1]} : vector<8x512xf32> to vector<8x384xf32>
    %515 = arith.negf %514 : vector<8x384xf32>
    %516 = math.exp %515 : vector<8x384xf32>
    %cst_133 = arith.constant 1.000000e+00 : f32
    %517 = vector.broadcast %cst_133 : f32 to vector<8x384xf32>
    %518 = arith.addf %517, %516 : vector<8x384xf32>
    %519 = arith.divf %517, %518 : vector<8x384xf32>
    %520 = vector.extract_strided_slice %519 {offsets = [0, 0], sizes = [8, 128], strides = [1, 1]} : vector<8x384xf32> to vector<8x128xf32>
    %521 = vector.extract_strided_slice %519 {offsets = [0, 128], sizes = [8, 128], strides = [1, 1]} : vector<8x384xf32> to vector<8x128xf32>
    %522 = vector.extract_strided_slice %519 {offsets = [0, 256], sizes = [8, 128], strides = [1, 1]} : vector<8x384xf32> to vector<8x128xf32>
    %523 = vector.extract_strided_slice %513 {offsets = [0, 384], sizes = [8, 128], strides = [1, 1]} : vector<8x512xf32> to vector<8x128xf32>
    %524 = math.tanh %523 : vector<8x128xf32>
    %525 = arith.mulf %521, %459 : vector<8x128xf32>
    %526 = arith.mulf %520, %524 : vector<8x128xf32>
    %527 = arith.addf %525, %526 : vector<8x128xf32>
    %528 = math.tanh %527 : vector<8x128xf32>
    %529 = arith.mulf %522, %528 : vector<8x128xf32>
    %530 = arith.truncf %529 : vector<8x128xf32> to vector<8x128xbf16>
    %cst_134 = arith.constant dense<0.000000e+00> : vector<8x512xf32>
    %531 = tpu.matmul %530, %22, %cst_134 {dimension_numbers = #tpu.dot_dimension_numbers<[1], [0], [0], [1], [0, 0, 1, 1], [], []>} : vector<8x128xbf16>, vector<128x512xbf16>, vector<8x512xf32> -> vector<8x512xf32>
    %532 = arith.truncf %483 : vector<8x128xf32> to vector<8x128xbf16>
    %cst_135 = arith.constant dense<0.000000e+00> : vector<8x512xf32>
    %533 = tpu.matmul %532, %18, %cst_135 {dimension_numbers = #tpu.dot_dimension_numbers<[1], [0], [0], [1], [0, 0, 1, 1], [], []>} : vector<8x128xbf16>, vector<128x512xbf16>, vector<8x512xf32> -> vector<8x512xf32>
    %534 = arith.addf %531, %533 : vector<8x512xf32>
    %535 = arith.addf %534, %28 : vector<8x512xf32>
    %536 = vector.extract_strided_slice %535 {offsets = [0, 0], sizes = [8, 384], strides = [1, 1]} : vector<8x512xf32> to vector<8x384xf32>
    %537 = arith.negf %536 : vector<8x384xf32>
    %538 = math.exp %537 : vector<8x384xf32>
    %cst_136 = arith.constant 1.000000e+00 : f32
    %539 = vector.broadcast %cst_136 : f32 to vector<8x384xf32>
    %540 = arith.addf %539, %538 : vector<8x384xf32>
    %541 = arith.divf %539, %540 : vector<8x384xf32>
    %542 = vector.extract_strided_slice %541 {offsets = [0, 0], sizes = [8, 128], strides = [1, 1]} : vector<8x384xf32> to vector<8x128xf32>
    %543 = vector.extract_strided_slice %541 {offsets = [0, 128], sizes = [8, 128], strides = [1, 1]} : vector<8x384xf32> to vector<8x128xf32>
    %544 = vector.extract_strided_slice %541 {offsets = [0, 256], sizes = [8, 128], strides = [1, 1]} : vector<8x384xf32> to vector<8x128xf32>
    %545 = vector.extract_strided_slice %535 {offsets = [0, 384], sizes = [8, 128], strides = [1, 1]} : vector<8x512xf32> to vector<8x128xf32>
    %546 = math.tanh %545 : vector<8x128xf32>
    %547 = arith.mulf %543, %481 : vector<8x128xf32>
    %548 = arith.mulf %542, %546 : vector<8x128xf32>
    %549 = arith.addf %547, %548 : vector<8x128xf32>
    %550 = math.tanh %549 : vector<8x128xf32>
    %551 = arith.mulf %544, %550 : vector<8x128xf32>
    %552 = arith.truncf %551 : vector<8x128xf32> to vector<8x128xbf16>
    %cst_137 = arith.constant dense<0.000000e+00> : vector<8x512xf32>
    %553 = tpu.matmul %552, %24, %cst_137 {dimension_numbers = #tpu.dot_dimension_numbers<[1], [0], [0], [1], [0, 0, 1, 1], [], []>} : vector<8x128xbf16>, vector<128x512xbf16>, vector<8x512xf32> -> vector<8x512xf32>
    %554 = arith.truncf %505 : vector<8x128xf32> to vector<8x128xbf16>
    %cst_138 = arith.constant dense<0.000000e+00> : vector<8x512xf32>
    %555 = tpu.matmul %554, %20, %cst_138 {dimension_numbers = #tpu.dot_dimension_numbers<[1], [0], [0], [1], [0, 0, 1, 1], [], []>} : vector<8x128xbf16>, vector<128x512xbf16>, vector<8x512xf32> -> vector<8x512xf32>
    %556 = arith.addf %553, %555 : vector<8x512xf32>
    %557 = arith.addf %556, %32 : vector<8x512xf32>
    %558 = vector.extract_strided_slice %557 {offsets = [0, 0], sizes = [8, 384], strides = [1, 1]} : vector<8x512xf32> to vector<8x384xf32>
    %559 = arith.negf %558 : vector<8x384xf32>
    %560 = math.exp %559 : vector<8x384xf32>
    %cst_139 = arith.constant 1.000000e+00 : f32
    %561 = vector.broadcast %cst_139 : f32 to vector<8x384xf32>
    %562 = arith.addf %561, %560 : vector<8x384xf32>
    %563 = arith.divf %561, %562 : vector<8x384xf32>
    %564 = vector.extract_strided_slice %563 {offsets = [0, 0], sizes = [8, 128], strides = [1, 1]} : vector<8x384xf32> to vector<8x128xf32>
    %565 = vector.extract_strided_slice %563 {offsets = [0, 128], sizes = [8, 128], strides = [1, 1]} : vector<8x384xf32> to vector<8x128xf32>
    %566 = vector.extract_strided_slice %563 {offsets = [0, 256], sizes = [8, 128], strides = [1, 1]} : vector<8x384xf32> to vector<8x128xf32>
    %567 = vector.extract_strided_slice %557 {offsets = [0, 384], sizes = [8, 128], strides = [1, 1]} : vector<8x512xf32> to vector<8x128xf32>
    %568 = math.tanh %567 : vector<8x128xf32>
    %569 = arith.mulf %565, %503 : vector<8x128xf32>
    %570 = arith.mulf %564, %568 : vector<8x128xf32>
    %571 = arith.addf %569, %570 : vector<8x128xf32>
    %572 = math.tanh %571 : vector<8x128xf32>
    %573 = arith.mulf %566, %572 : vector<8x128xf32>
    %c7_140 = arith.constant 7 : index
    %c0_141 = arith.constant 0 : index
    %c0_142 = arith.constant 0 : index
    %574 = vector.load %arg7[%c7_140, %c0_141, %c0_142] : memref<8x8x128xf32, #tpu.memory_space<vmem>>, vector<1x8x128xf32>
    %575 = vector.shape_cast %574 : vector<1x8x128xf32> to vector<8x128xf32>
    %576 = vector.shape_cast %573 : vector<8x128xf32> to vector<1x8x128xf32>
    tpu.vector_store %arg7[%c7_140, %c0_141, %c0_142], %576 {strides = array<i32>} : memref<8x8x128xf32, #tpu.memory_space<vmem>>, vector<1x8x128xf32>,
    %c0_143 = arith.constant 0 : index
    %c0_144 = arith.constant 0 : index
    %c0_145 = arith.constant 0 : index
    %577 = vector.load %arg8[%c0_143, %c0_144, %c0_145] : memref<3x8x128xf32, #tpu.memory_space<vmem>>, vector<1x8x128xf32>
    %578 = vector.shape_cast %577 : vector<1x8x128xf32> to vector<8x128xf32>
    %579 = vector.shape_cast %529 : vector<8x128xf32> to vector<1x8x128xf32>
    tpu.vector_store %arg8[%c0_143, %c0_144, %c0_145], %579 {strides = array<i32>} : memref<3x8x128xf32, #tpu.memory_space<vmem>>, vector<1x8x128xf32>,
    %c0_146 = arith.constant 0 : index
    %c0_147 = arith.constant 0 : index
    %c0_148 = arith.constant 0 : index
    %580 = vector.load %arg9[%c0_146, %c0_147, %c0_148] : memref<3x8x128xf32, #tpu.memory_space<vmem>>, vector<1x8x128xf32>
    %581 = vector.shape_cast %580 : vector<1x8x128xf32> to vector<8x128xf32>
    %582 = vector.shape_cast %527 : vector<8x128xf32> to vector<1x8x128xf32>
    tpu.vector_store %arg9[%c0_146, %c0_147, %c0_148], %582 {strides = array<i32>} : memref<3x8x128xf32, #tpu.memory_space<vmem>>, vector<1x8x128xf32>,
    %c1_149 = arith.constant 1 : index
    %c0_150 = arith.constant 0 : index
    %c0_151 = arith.constant 0 : index
    %583 = vector.load %arg8[%c1_149, %c0_150, %c0_151] : memref<3x8x128xf32, #tpu.memory_space<vmem>>, vector<1x8x128xf32>
    %584 = vector.shape_cast %583 : vector<1x8x128xf32> to vector<8x128xf32>
    %585 = vector.shape_cast %551 : vector<8x128xf32> to vector<1x8x128xf32>
    tpu.vector_store %arg8[%c1_149, %c0_150, %c0_151], %585 {strides = array<i32>} : memref<3x8x128xf32, #tpu.memory_space<vmem>>, vector<1x8x128xf32>,
    %c1_152 = arith.constant 1 : index
    %c0_153 = arith.constant 0 : index
    %c0_154 = arith.constant 0 : index
    %586 = vector.load %arg9[%c1_152, %c0_153, %c0_154] : memref<3x8x128xf32, #tpu.memory_space<vmem>>, vector<1x8x128xf32>
    %587 = vector.shape_cast %586 : vector<1x8x128xf32> to vector<8x128xf32>
    %588 = vector.shape_cast %549 : vector<8x128xf32> to vector<1x8x128xf32>
    tpu.vector_store %arg9[%c1_152, %c0_153, %c0_154], %588 {strides = array<i32>} : memref<3x8x128xf32, #tpu.memory_space<vmem>>, vector<1x8x128xf32>,
    %c2_155 = arith.constant 2 : index
    %c0_156 = arith.constant 0 : index
    %c0_157 = arith.constant 0 : index
    %589 = vector.load %arg8[%c2_155, %c0_156, %c0_157] : memref<3x8x128xf32, #tpu.memory_space<vmem>>, vector<1x8x128xf32>
    %590 = vector.shape_cast %589 : vector<1x8x128xf32> to vector<8x128xf32>
    %591 = vector.shape_cast %573 : vector<8x128xf32> to vector<1x8x128xf32>
    tpu.vector_store %arg8[%c2_155, %c0_156, %c0_157], %591 {strides = array<i32>} : memref<3x8x128xf32, #tpu.memory_space<vmem>>, vector<1x8x128xf32>,
    %c2_158 = arith.constant 2 : index
    %c0_159 = arith.constant 0 : index
    %c0_160 = arith.constant 0 : index
    %592 = vector.load %arg9[%c2_158, %c0_159, %c0_160] : memref<3x8x128xf32, #tpu.memory_space<vmem>>, vector<1x8x128xf32>
    %593 = vector.shape_cast %592 : vector<1x8x128xf32> to vector<8x128xf32>
    %594 = vector.shape_cast %571 : vector<8x128xf32> to vector<1x8x128xf32>
    tpu.vector_store %arg9[%c2_158, %c0_159, %c0_160], %594 {strides = array<i32>} : memref<3x8x128xf32, #tpu.memory_space<vmem>>, vector<1x8x128xf32>,
    return
  }
  func.func @transform_0(%arg0: i32) -> (i32, i32, i32) {
    %c0_i32 = arith.constant 0 : i32
    %c0_i32_0 = arith.constant 0 : i32
    %c0_i32_1 = arith.constant 0 : i32
    return %arg0, %c0_i32, %c0_i32_0 : i32, i32, i32
  }
  func.func @transform_1(%arg0: i32) -> (i32, i32, i32) {
    %c0_i32 = arith.constant 0 : i32
    %c0_i32_0 = arith.constant 0 : i32
    %c0_i32_1 = arith.constant 0 : i32
    %c0_i32_2 = arith.constant 0 : i32
    return %c0_i32, %c0_i32_0, %c0_i32_1 : i32, i32, i32
  }
  func.func @transform_2(%arg0: i32) -> (i32, i32, i32) {
    %c0_i32 = arith.constant 0 : i32
    %c0_i32_0 = arith.constant 0 : i32
    %c0_i32_1 = arith.constant 0 : i32
    %c0_i32_2 = arith.constant 0 : i32
    return %c0_i32, %c0_i32_0, %c0_i32_1 : i32, i32, i32
  }
  func.func @transform_3(%arg0: i32) -> (i32, i32, i32) {
    %c0_i32 = arith.constant 0 : i32
    %c0_i32_0 = arith.constant 0 : i32
    %c0_i32_1 = arith.constant 0 : i32
    %c0_i32_2 = arith.constant 0 : i32
    return %c0_i32, %c0_i32_0, %c0_i32_1 : i32, i32, i32
  }
  func.func @transform_4(%arg0: i32) -> (i32, i32, i32) {
    %c0_i32 = arith.constant 0 : i32
    %c0_i32_0 = arith.constant 0 : i32
    %c0_i32_1 = arith.constant 0 : i32
    %c0_i32_2 = arith.constant 0 : i32
    return %c0_i32, %c0_i32_0, %c0_i32_1 : i32, i32, i32
  }
  func.func @transform_5(%arg0: i32) -> (i32, i32, i32) {
    %c0_i32 = arith.constant 0 : i32
    %c0_i32_0 = arith.constant 0 : i32
    %c0_i32_1 = arith.constant 0 : i32
    %c0_i32_2 = arith.constant 0 : i32
    return %c0_i32, %c0_i32_0, %c0_i32_1 : i32, i32, i32
  }
  func.func @transform_6(%arg0: i32) -> (i32, i32, i32) {
    %c0_i32 = arith.constant 0 : i32
    %c0_i32_0 = arith.constant 0 : i32
    %c0_i32_1 = arith.constant 0 : i32
    return %arg0, %c0_i32, %c0_i32_0 : i32, i32, i32
  }
  func.func @transform_7(%arg0: i32) -> (i32, i32, i32) {
    %c0_i32 = arith.constant 0 : i32
    %c0_i32_0 = arith.constant 0 : i32
    %c0_i32_1 = arith.constant 0 : i32
    %c0_i32_2 = arith.constant 0 : i32
    return %c0_i32, %c0_i32_0, %c0_i32_1 : i32, i32, i32
  }
  func.func @transform_8(%arg0: i32) -> (i32, i32, i32) {
    %c0_i32 = arith.constant 0 : i32
    %c0_i32_0 = arith.constant 0 : i32
    %c0_i32_1 = arith.constant 0 : i32
    %c0_i32_2 = arith.constant 0 : i32
    return %c0_i32, %c0_i32_0, %c0_i32_1 : i32, i32, i32
  }
}

</mosaic_0001>

<llo_original>
// kernel: tpu_custom_call.1
$region0: #{tpu_custom_call.1}
  #allocation0 [shape = 'u32[]', space=smem, size = 0x4, offset = 0x4, fixed_abs, tag = 'smem constant byte address 0x4 - core index']
  #allocation1 [shape = 'u32[144,128]{1,0:T(1,128)}', space=vmem, size = 0x12000, scoped, tag = 'internal scratch']
  %s0 = inlined_call_operand.hbm [shape: f32[8,8,512], index: 0, kind: input, shape index: {}]
  %s1 = inlined_call_operand.hbm [shape: f32[3,8,128], index: 1, kind: input, shape index: {}]
  %s2 = inlined_call_operand.hbm [shape: f32[3,8,128], index: 2, kind: input, shape index: {}]
  %s3 = inlined_call_operand.hbm [shape: bf16[2,128,512], index: 3, kind: input, shape index: {}]
  %s4 = inlined_call_operand.hbm [shape: bf16[3,128,512], index: 4, kind: input, shape index: {}]
  %s5 = inlined_call_operand.vmem [shape: f32[2,1,512], index: 5, kind: input, shape index: {}]
  %s6 = inlined_call_operand.hbm [shape: f32[8,8,128], index: 6, kind: output, shape index: {0}]
  %s7 = inlined_call_operand.hbm [shape: f32[3,8,128], index: 7, kind: output, shape index: {1}]
  %s8 = inlined_call_operand.hbm [shape: f32[3,8,128], index: 8, kind: output, shape index: {2}]
  %9 = xla_tuple %s6, %s7, %s8
  %s10 = sld [smem:[#allocation0]]
  $region74: #{tpu_custom_call.1} parent=0
    _
  %s12 = ssub.s32 1, %s10
  %s13 = scalar_select 0, %s12, %s10
  $region1: #{tpu_custom_call.1} parent=0
    #allocation2 [shape = 'u8[131072]{0}', space=vmem, size = 0x20000, scoped, tag = 'input window, operand 0, single buffered']
    #allocation3 [shape = 's32[1]{0}', space=sflag, size = 0x4, scoped, tag = 'scoped memory for tpu_custom_call.1']
    #allocation4 [shape = 's32[1]{0}', space=sflag, size = 0x4, scoped, tag = 'scoped memory for tpu_custom_call.1']
    #allocation5 [shape = 'u8[12288]{0}', space=vmem, size = 0x3000, scoped, tag = 'input window, operand 1, single buffered']
    #allocation6 [shape = 's32[1]{0}', space=sflag, size = 0x4, scoped, tag = 'scoped memory for tpu_custom_call.1']
    #allocation7 [shape = 'u8[12288]{0}', space=vmem, size = 0x3000, scoped, tag = 'input window, operand 2, single buffered']
    #allocation8 [shape = 'u8[262144]{0}', space=vmem, size = 0x40000, scoped, tag = 'input window, operand 3, single buffered']
    #allocation9 [shape = 's32[1]{0}', space=sflag, size = 0x4, scoped, tag = 'scoped memory for tpu_custom_call.1']
    #allocation10 [shape = 'u8[393216]{0}', space=vmem, size = 0x60000, scoped, tag = 'input window, operand 4, single buffered']
    #allocation11 [shape = 'u8[32768]{0}', space=vmem, size = 0x8000, scoped, tag = 'output window, operand 0, single buffered']
    #allocation12 [shape = 'u8[12288]{0}', space=vmem, size = 0x3000, scoped, tag = 'output window, operand 1, single buffered']
    #allocation13 [shape = 's32[1]{0}', space=sflag, size = 0x4, scoped, tag = 'scoped memory for tpu_custom_call.1']
    #allocation14 [shape = 'u8[12288]{0}', space=vmem, size = 0x3000, scoped, tag = 'output window, operand 2, single buffered']
    %14 = vsyncpa [#allocation3], 0
    %15 = vsyncpa [#allocation6], 0
    %16 = vsyncpa [#allocation9], 0
    %17 = vsyncpa [#allocation4], 0
    %18 = vsyncpa [#allocation13], 0
    // Predicated region
    $region2: #{tpu_custom_call.1} parent=1 // pred_check
      _
    $region3: #{tpu_custom_call.1} parent=1 // pred_check_branch
      %20 = sbr.rel (0) target = $region5
    $region4: #{tpu_custom_call.1} parent=1 // pred_region
      %s22 = ssub.s32 4096, 4096
      %23 = vsyncadd [#allocation3], %s22
      %s24 = sshll.u32 [#allocation2], 4
      %s25 = int_to_ptr.vmem [resolvable:$true] %s24
      %30 = dma.hbm_to_vmem [thread:$0]  %s0, 4096, %s25, [#allocation3], 512, 512, 32
    $region5: #{tpu_custom_call.1} parent=1 // pred_fallthru
      _
    // Predicated region
    $region6: #{tpu_custom_call.1} parent=1 // pred_check
      _
    $region7: #{tpu_custom_call.1} parent=1 // pred_check_branch
      %32 = sbr.rel (0) target = $region9
    $region8: #{tpu_custom_call.1} parent=1 // pred_region
      %s34 = ssub.s32 384, 384
      %35 = vsyncadd [#allocation6], %s34
      %s36 = sshll.u32 [#allocation5], 4
      %s37 = int_to_ptr.vmem [resolvable:$true] %s36
      %42 = dma.hbm_to_vmem [thread:$0]  %s1, 384, %s37, [#allocation6], 128, 128, 8
    $region9: #{tpu_custom_call.1} parent=1 // pred_fallthru
      _
    // Predicated region
    $region10: #{tpu_custom_call.1} parent=1 // pred_check
      _
    $region11: #{tpu_custom_call.1} parent=1 // pred_check_branch
      %44 = sbr.rel (0) target = $region13
    $region12: #{tpu_custom_call.1} parent=1 // pred_region
      %s46 = ssub.s32 384, 384
      %47 = vsyncadd [#allocation6], %s46
      %s48 = sshll.u32 [#allocation7], 4
      %s49 = int_to_ptr.vmem [resolvable:$true] %s48
      %54 = dma.hbm_to_vmem [thread:$0]  %s2, 384, %s49, [#allocation6], 128, 128, 8
    $region13: #{tpu_custom_call.1} parent=1 // pred_fallthru
      _
    // Predicated region
    $region14: #{tpu_custom_call.1} parent=1 // pred_check
      _
    $region15: #{tpu_custom_call.1} parent=1 // pred_check_branch
      %56 = sbr.rel (0) target = $region17
    $region16: #{tpu_custom_call.1} parent=1 // pred_region
      %s58 = ssub.s32 8192, 8192
      %59 = vsyncadd [#allocation9], %s58
      %s60 = sshll.u32 [#allocation8], 4
      %s61 = int_to_ptr.vmem [resolvable:$true] %s60
      %66 = dma.hbm_to_vmem [thread:$0]  %s3, 8192, %s61, [#allocation9], 256, 256, 16
    $region17: #{tpu_custom_call.1} parent=1 // pred_fallthru
      _
    // Predicated region
    $region18: #{tpu_custom_call.1} parent=1 // pred_check
      _
    $region19: #{tpu_custom_call.1} parent=1 // pred_check_branch
      %68 = sbr.rel (0) target = $region21
    $region20: #{tpu_custom_call.1} parent=1 // pred_region
      %s70 = ssub.s32 12288, 12288
      %71 = vsyncadd [#allocation9], %s70
      %s72 = sshll.u32 [#allocation10], 4
      %s73 = int_to_ptr.vmem [resolvable:$true] %s72
      %78 = dma.hbm_to_vmem [thread:$0]  %s4, 12288, %s73, [#allocation9], 256, 256, 16
    $region21: #{tpu_custom_call.1} parent=1 // pred_fallthru
      _
    // Predicated region
    $region22: #{tpu_custom_call.1} parent=1 // pred_check
      _
    $region23: #{tpu_custom_call.1} parent=1 // pred_check_branch
      %80 = sbr.rel (0) target = $region25
    $region24: #{tpu_custom_call.1} parent=1 // pred_region
      _
    $region25: #{tpu_custom_call.1} parent=1 // pred_fallthru
      _
    // Predicated region
    $region26: #{tpu_custom_call.1} parent=1 // pred_check
      _
    $region27: #{tpu_custom_call.1} parent=1 // pred_check_branch
      %82 = sbr.rel (0) target = $region29
    $region28: #{tpu_custom_call.1} parent=1 // pred_region
      %83 = dma.done [#allocation3], 4096
    $region29: #{tpu_custom_call.1} parent=1 // pred_fallthru
      _
    // Predicated region
    $region30: #{tpu_custom_call.1} parent=1 // pred_check
      _
    $region31: #{tpu_custom_call.1} parent=1 // pred_check_branch
      %85 = sbr.rel (0) target = $region33
    $region32: #{tpu_custom_call.1} parent=1 // pred_region
      %86 = dma.done [#allocation6], 384
    $region33: #{tpu_custom_call.1} parent=1 // pred_fallthru
      _
    // Predicated region
    $region34: #{tpu_custom_call.1} parent=1 // pred_check
      _
    $region35: #{tpu_custom_call.1} parent=1 // pred_check_branch
      %88 = sbr.rel (0) target = $region37
    $region36: #{tpu_custom_call.1} parent=1 // pred_region
      %89 = dma.done [#allocation6], 384
    $region37: #{tpu_custom_call.1} parent=1 // pred_fallthru
      _
    // Predicated region
    $region38: #{tpu_custom_call.1} parent=1 // pred_check
      _
    $region39: #{tpu_custom_call.1} parent=1 // pred_check_branch
      %91 = sbr.rel (0) target = $region41
    $region40: #{tpu_custom_call.1} parent=1 // pred_region
      %92 = dma.done [#allocation9], 8192
    $region41: #{tpu_custom_call.1} parent=1 // pred_fallthru
      _
    // Predicated region
    $region42: #{tpu_custom_call.1} parent=1 // pred_check
      _
    $region43: #{tpu_custom_call.1} parent=1 // pred_check_branch
      %94 = sbr.rel (0) target = $region45
    $region44: #{tpu_custom_call.1} parent=1 // pred_region
      %95 = dma.done [#allocation9], 12288
    $region45: #{tpu_custom_call.1} parent=1 // pred_fallthru
      _
    %p97 = scmp.eq.s32.totalorder 0, 0
    // Predicated region
    $region46: #{tpu_custom_call.1} parent=1 // pred_check
      %p98 = pneg %p97
    $region47: #{tpu_custom_call.1} parent=1 // pred_check_branch
      %100 = sbr.rel (%p98) target = $region49
    $region48: #{tpu_custom_call.1} parent=1 // pred_region
      %v101 = vld [vmem:[#allocation5] sm:$0xff]
      %v102 = vld [vmem:[#allocation5 + $0x8] sm:$0xff]
      %v103 = vld [vmem:[#allocation5 + $0x10] sm:$0xff]
      %104 = vst [vmem:[#allocation12] sm:$0xff] %v101
      %105 = vst [vmem:[#allocation12 + $0x8] sm:$0xff] %v102
      %106 = vst [vmem:[#allocation12 + $0x10] sm:$0xff] %v103
      %v107 = vld [vmem:[#allocation7] sm:$0xff]
      %v108 = vld [vmem:[#allocation7 + $0x8] sm:$0xff]
      %v109 = vld [vmem:[#allocation7 + $0x10] sm:$0xff]
      %110 = vst [vmem:[#allocation14] sm:$0xff] %v107
      %111 = vst [vmem:[#allocation14 + $0x8] sm:$0xff] %v108
      %112 = vst [vmem:[#allocation14 + $0x10] sm:$0xff] %v109
    $region49: #{tpu_custom_call.1} parent=1 // pred_fallthru
      _
    %v113 = vld [vmem:[#allocation12] sm:$0xff]
    %s114 = scalar_lea.vmem [#allocation12], 8
    %v115 = vld [vmem:[%s114] sm:$0xff]
    %s116 = scalar_lea.vmem [#allocation12], 16
    %v117 = vld [vmem:[%s116] sm:$0xff]
    %v118 = vld [vmem:[#allocation14] sm:$0xff]
    %s119 = scalar_lea.vmem [#allocation14], 8
    %v120 = vld [vmem:[%s119] sm:$0xff]
    %s121 = scalar_lea.vmem [#allocation14], 16
    %v122 = vld [vmem:[%s121] sm:$0xff]
    %v123 = vld [vmem:[#allocation10] sm:$0xff]
    %v124 = vld [vmem:[#allocation10 + $0x8] sm:$0xff]
    %v125 = vld [vmem:[#allocation10 + $0x10] sm:$0xff]
    %v126 = vld [vmem:[#allocation10 + $0x18] sm:$0xff]
    %v127 = vld [vmem:[#allocation10 + $0x20] sm:$0xff]
    %v128 = vld [vmem:[#allocation10 + $0x28] sm:$0xff]
    %v129 = vld [vmem:[#allocation10 + $0x30] sm:$0xff]
    %v130 = vld [vmem:[#allocation10 + $0x38] sm:$0xff]
    %v131 = vld [vmem:[#allocation10 + $0x40] sm:$0xff]
    %v132 = vld [vmem:[#allocation10 + $0x48] sm:$0xff]
    %v133 = vld [vmem:[#allocation10 + $0x50] sm:$0xff]
    %v134 = vld [vmem:[#allocation10 + $0x58] sm:$0xff]
    %v135 = vld [vmem:[#allocation10 + $0x60] sm:$0xff]
    %v136 = vld [vmem:[#allocation10 + $0x68] sm:$0xff]
    %v137 = vld [vmem:[#allocation10 + $0x70] sm:$0xff]
    %v138 = vld [vmem:[#allocation10 + $0x78] sm:$0xff]
    %v139 = vld [vmem:[#allocation10 + $0x80] sm:$0xff]
    %v140 = vld [vmem:[#allocation10 + $0x88] sm:$0xff]
    %v141 = vld [vmem:[#allocation10 + $0x90] sm:$0xff]
    %v142 = vld [vmem:[#allocation10 + $0x98] sm:$0xff]
    %v143 = vld [vmem:[#allocation10 + $0xa0] sm:$0xff]
    %v144 = vld [vmem:[#allocation10 + $0xa8] sm:$0xff]
    %v145 = vld [vmem:[#allocation10 + $0xb0] sm:$0xff]
    %v146 = vld [vmem:[#allocation10 + $0xb8] sm:$0xff]
    %v147 = vld [vmem:[#allocation10 + $0xc0] sm:$0xff]
    %v148 = vld [vmem:[#allocation10 + $0xc8] sm:$0xff]
    %v149 = vld [vmem:[#allocation10 + $0xd0] sm:$0xff]
    %v150 = vld [vmem:[#allocation10 + $0xd8] sm:$0xff]
    %v151 = vld [vmem:[#allocation10 + $0xe0] sm:$0xff]
    %v152 = vld [vmem:[#allocation10 + $0xe8] sm:$0xff]
    %v153 = vld [vmem:[#allocation10 + $0xf0] sm:$0xff]
    %v154 = vld [vmem:[#allocation10 + $0xf8] sm:$0xff]
    %s155 = scalar_lea.vmem [#allocation10], 256
    %v156 = vld [vmem:[%s155] sm:$0xff]
    %v157 = vld [vmem:[%s155 + $0x8] sm:$0xff]
    %v158 = vld [vmem:[%s155 + $0x10] sm:$0xff]
    %v159 = vld [vmem:[%s155 + $0x18] sm:$0xff]
    %v160 = vld [vmem:[%s155 + $0x20] sm:$0xff]
    %v161 = vld [vmem:[%s155 + $0x28] sm:$0xff]
    %v162 = vld [vmem:[%s155 + $0x30] sm:$0xff]
    %v163 = vld [vmem:[%s155 + $0x38] sm:$0xff]
    %v164 = vld [vmem:[%s155 + $0x40] sm:$0xff]
    %v165 = vld [vmem:[%s155 + $0x48] sm:$0xff]
    %v166 = vld [vmem:[%s155 + $0x50] sm:$0xff]
    %v167 = vld [vmem:[%s155 + $0x58] sm:$0xff]
    %v168 = vld [vmem:[%s155 + $0x60] sm:$0xff]
    %v169 = vld [vmem:[%s155 + $0x68] sm:$0xff]
    %v170 = vld [vmem:[%s155 + $0x70] sm:$0xff]
    %v171 = vld [vmem:[%s155 + $0x78] sm:$0xff]
    %v172 = vld [vmem:[%s155 + $0x80] sm:$0xff]
    %v173 = vld [vmem:[%s155 + $0x88] sm:$0xff]
    %v174 = vld [vmem:[%s155 + $0x90] sm:$0xff]
    %v175 = vld [vmem:[%s155 + $0x98] sm:$0xff]
    %v176 = vld [vmem:[%s155 + $0xa0] sm:$0xff]
    %v177 = vld [vmem:[%s155 + $0xa8] sm:$0xff]
    %v178 = vld [vmem:[%s155 + $0xb0] sm:$0xff]
    %v179 = vld [vmem:[%s155 + $0xb8] sm:$0xff]
    %v180 = vld [vmem:[%s155 + $0xc0] sm:$0xff]
    %v181 = vld [vmem:[%s155 + $0xc8] sm:$0xff]
    %v182 = vld [vmem:[%s155 + $0xd0] sm:$0xff]
    %v183 = vld [vmem:[%s155 + $0xd8] sm:$0xff]
    %v184 = vld [vmem:[%s155 + $0xe0] sm:$0xff]
    %v185 = vld [vmem:[%s155 + $0xe8] sm:$0xff]
    %v186 = vld [vmem:[%s155 + $0xf0] sm:$0xff]
    %v187 = vld [vmem:[%s155 + $0xf8] sm:$0xff]
    %s188 = scalar_lea.vmem [#allocation10], 512
    %v189 = vld [vmem:[%s188] sm:$0xff]
    %v190 = vld [vmem:[%s188 + $0x8] sm:$0xff]
    %v191 = vld [vmem:[%s188 + $0x10] sm:$0xff]
    %v192 = vld [vmem:[%s188 + $0x18] sm:$0xff]
    %v193 = vld [vmem:[%s188 + $0x20] sm:$0xff]
    %v194 = vld [vmem:[%s188 + $0x28] sm:$0xff]
    %v195 = vld [vmem:[%s188 + $0x30] sm:$0xff]
    %v196 = vld [vmem:[%s188 + $0x38] sm:$0xff]
    %v197 = vld [vmem:[%s188 + $0x40] sm:$0xff]
    %v198 = vld [vmem:[%s188 + $0x48] sm:$0xff]
    %v199 = vld [vmem:[%s188 + $0x50] sm:$0xff]
    %v200 = vld [vmem:[%s188 + $0x58] sm:$0xff]
    %v201 = vld [vmem:[%s188 + $0x60] sm:$0xff]
    %v202 = vld [vmem:[%s188 + $0x68] sm:$0xff]
    %v203 = vld [vmem:[%s188 + $0x70] sm:$0xff]
    %v204 = vld [vmem:[%s188 + $0x78] sm:$0xff]
    %v205 = vld [vmem:[%s188 + $0x80] sm:$0xff]
    %v206 = vld [vmem:[%s188 + $0x88] sm:$0xff]
    %v207 = vld [vmem:[%s188 + $0x90] sm:$0xff]
    %v208 = vld [vmem:[%s188 + $0x98] sm:$0xff]
    %v209 = vld [vmem:[%s188 + $0xa0] sm:$0xff]
    %v210 = vld [vmem:[%s188 + $0xa8] sm:$0xff]
    %v211 = vld [vmem:[%s188 + $0xb0] sm:$0xff]
    %v212 = vld [vmem:[%s188 + $0xb8] sm:$0xff]
    %v213 = vld [vmem:[%s188 + $0xc0] sm:$0xff]
    %v214 = vld [vmem:[%s188 + $0xc8] sm:$0xff]
    %v215 = vld [vmem:[%s188 + $0xd0] sm:$0xff]
    %v216 = vld [vmem:[%s188 + $0xd8] sm:$0xff]
    %v217 = vld [vmem:[%s188 + $0xe0] sm:$0xff]
    %v218 = vld [vmem:[%s188 + $0xe8] sm:$0xff]
    %v219 = vld [vmem:[%s188 + $0xf0] sm:$0xff]
    %v220 = vld [vmem:[%s188 + $0xf8] sm:$0xff]
    %v221 = vld [vmem:[#allocation8] sm:$0xff]
    %v222 = vld [vmem:[#allocation8 + $0x8] sm:$0xff]
    %v223 = vld [vmem:[#allocation8 + $0x10] sm:$0xff]
    %v224 = vld [vmem:[#allocation8 + $0x18] sm:$0xff]
    %v225 = vld [vmem:[#allocation8 + $0x20] sm:$0xff]
    %v226 = vld [vmem:[#allocation8 + $0x28] sm:$0xff]
    %v227 = vld [vmem:[#allocation8 + $0x30] sm:$0xff]
    %v228 = vld [vmem:[#allocation8 + $0x38] sm:$0xff]
    %v229 = vld [vmem:[#allocation8 + $0x40] sm:$0xff]
    %v230 = vld [vmem:[#allocation8 + $0x48] sm:$0xff]
    %v231 = vld [vmem:[#allocation8 + $0x50] sm:$0xff]
    %v232 = vld [vmem:[#allocation8 + $0x58] sm:$0xff]
    %v233 = vld [vmem:[#allocation8 + $0x60] sm:$0xff]
    %v234 = vld [vmem:[#allocation8 + $0x68] sm:$0xff]
    %v235 = vld [vmem:[#allocation8 + $0x70] sm:$0xff]
    %v236 = vld [vmem:[#allocation8 + $0x78] sm:$0xff]
    %v237 = vld [vmem:[#allocation8 + $0x80] sm:$0xff]
    %v238 = vld [vmem:[#allocation8 + $0x88] sm:$0xff]
    %v239 = vld [vmem:[#allocation8 + $0x90] sm:$0xff]
    %v240 = vld [vmem:[#allocation8 + $0x98] sm:$0xff]
    %v241 = vld [vmem:[#allocation8 + $0xa0] sm:$0xff]
    %v242 = vld [vmem:[#allocation8 + $0xa8] sm:$0xff]
    %v243 = vld [vmem:[#allocation8 + $0xb0] sm:$0xff]
    %v244 = vld [vmem:[#allocation8 + $0xb8] sm:$0xff]
    %v245 = vld [vmem:[#allocation8 + $0xc0] sm:$0xff]
    %v246 = vld [vmem:[#allocation8 + $0xc8] sm:$0xff]
    %v247 = vld [vmem:[#allocation8 + $0xd0] sm:$0xff]
    %v248 = vld [vmem:[#allocation8 + $0xd8] sm:$0xff]
    %v249 = vld [vmem:[#allocation8 + $0xe0] sm:$0xff]
    %v250 = vld [vmem:[#allocation8 + $0xe8] sm:$0xff]
    %v251 = vld [vmem:[#allocation8 + $0xf0] sm:$0xff]
    %v252 = vld [vmem:[#allocation8 + $0xf8] sm:$0xff]
    %s253 = scalar_lea.vmem [#allocation8], 256
    %v254 = vld [vmem:[%s253] sm:$0xff]
    %v255 = vld [vmem:[%s253 + $0x8] sm:$0xff]
    %v256 = vld [vmem:[%s253 + $0x10] sm:$0xff]
    %v257 = vld [vmem:[%s253 + $0x18] sm:$0xff]
    %v258 = vld [vmem:[%s253 + $0x20] sm:$0xff]
    %v259 = vld [vmem:[%s253 + $0x28] sm:$0xff]
    %v260 = vld [vmem:[%s253 + $0x30] sm:$0xff]
    %v261 = vld [vmem:[%s253 + $0x38] sm:$0xff]
    %v262 = vld [vmem:[%s253 + $0x40] sm:$0xff]
    %v263 = vld [vmem:[%s253 + $0x48] sm:$0xff]
    %v264 = vld [vmem:[%s253 + $0x50] sm:$0xff]
    %v265 = vld [vmem:[%s253 + $0x58] sm:$0xff]
    %v266 = vld [vmem:[%s253 + $0x60] sm:$0xff]
    %v267 = vld [vmem:[%s253 + $0x68] sm:$0xff]
    %v268 = vld [vmem:[%s253 + $0x70] sm:$0xff]
    %v269 = vld [vmem:[%s253 + $0x78] sm:$0xff]
    %v270 = vld [vmem:[%s253 + $0x80] sm:$0xff]
    %v271 = vld [vmem:[%s253 + $0x88] sm:$0xff]
    %v272 = vld [vmem:[%s253 + $0x90] sm:$0xff]
    %v273 = vld [vmem:[%s253 + $0x98] sm:$0xff]
    %v274 = vld [vmem:[%s253 + $0xa0] sm:$0xff]
    %v275 = vld [vmem:[%s253 + $0xa8] sm:$0xff]
    %v276 = vld [vmem:[%s253 + $0xb0] sm:$0xff]
    %v277 = vld [vmem:[%s253 + $0xb8] sm:$0xff]
    %v278 = vld [vmem:[%s253 + $0xc0] sm:$0xff]
    %v279 = vld [vmem:[%s253 + $0xc8] sm:$0xff]
    %v280 = vld [vmem:[%s253 + $0xd0] sm:$0xff]
    %v281 = vld [vmem:[%s253 + $0xd8] sm:$0xff]
    %v282 = vld [vmem:[%s253 + $0xe0] sm:$0xff]
    %v283 = vld [vmem:[%s253 + $0xe8] sm:$0xff]
    %v284 = vld [vmem:[%s253 + $0xf0] sm:$0xff]
    %v285 = vld [vmem:[%s253 + $0xf8] sm:$0xff]
    %v286 = vld [vmem:[%s5] sm:$0xf]
    %v288 = vlaneseq
    %v289 = vshrl.u32 %v288, 7
    %v290 = vsub.s32 0, %v289
    %v291 = vrot.slane %v286, %v290
    %v292 = vlaneseq
    %v293 = vshrl.u32 %v292, 7
    %v294 = vsub.s32 1, %v293
    %v295 = vrot.slane %v286, %v294
    %v296 = vlaneseq
    %v297 = vshrl.u32 %v296, 7
    %v298 = vsub.s32 2, %v297
    %v299 = vrot.slane %v286, %v298
    %v300 = vlaneseq
    %v301 = vshrl.u32 %v300, 7
    %v302 = vsub.s32 3, %v301
    %v303 = vrot.slane %v286, %v302
    %s308 = scalar_lea.vmem %s5, 4
    %v309 = vld [vmem:[%s308] sm:$0xf]
    %v311 = vlaneseq
    %v312 = vshrl.u32 %v311, 7
    %v313 = vsub.s32 0, %v312
    %v314 = vrot.slane %v309, %v313
    %v315 = vlaneseq
    %v316 = vshrl.u32 %v315, 7
    %v317 = vsub.s32 1, %v316
    %v318 = vrot.slane %v309, %v317
    %v319 = vlaneseq
    %v320 = vshrl.u32 %v319, 7
    %v321 = vsub.s32 2, %v320
    %v322 = vrot.slane %v309, %v321
    %v323 = vlaneseq
    %v324 = vshrl.u32 %v323, 7
    %v325 = vsub.s32 3, %v324
    %v326 = vrot.slane %v309, %v325
    %v331 = vld [vmem:[#allocation2] sm:$0xff]
    %v332 = vld [vmem:[#allocation2 + $0x8] sm:$0xff]
    %v333 = vld [vmem:[#allocation2 + $0x10] sm:$0xff]
    %v334 = vld [vmem:[#allocation2 + $0x18] sm:$0xff]
    %v335 = vpack.c.bf16 %v113, %v113
    %v368 = vunpack.c.l.b16 %v123
    %v369 = vunpack.c.h.b16 %v123
    %v370 = vunpack.c.l.b16 %v124
    %v371 = vunpack.c.h.b16 %v124
    %v372 = vunpack.c.l.b16 %v125
    %v373 = vunpack.c.h.b16 %v125
    %v374 = vunpack.c.l.b16 %v126
    %v375 = vunpack.c.h.b16 %v126
    %v376 = vunpack.c.l.b16 %v127
    %v377 = vunpack.c.h.b16 %v127
    %v378 = vunpack.c.l.b16 %v128
    %v379 = vunpack.c.h.b16 %v128
    %v380 = vunpack.c.l.b16 %v129
    %v381 = vunpack.c.h.b16 %v129
    %v382 = vunpack.c.l.b16 %v130
    %v383 = vunpack.c.h.b16 %v130
    %v384 = vunpack.c.l.b16 %v131
    %v385 = vunpack.c.h.b16 %v131
    %v386 = vunpack.c.l.b16 %v132
    %v387 = vunpack.c.h.b16 %v132
    %v388 = vunpack.c.l.b16 %v133
    %v389 = vunpack.c.h.b16 %v133
    %v390 = vunpack.c.l.b16 %v134
    %v391 = vunpack.c.h.b16 %v134
    %v392 = vunpack.c.l.b16 %v135
    %v393 = vunpack.c.h.b16 %v135
    %v394 = vunpack.c.l.b16 %v136
    %v395 = vunpack.c.h.b16 %v136
    %v396 = vunpack.c.l.b16 %v137
    %v397 = vunpack.c.h.b16 %v137
    %v398 = vunpack.c.l.b16 %v138
    %v399 = vunpack.c.h.b16 %v138
    %v400 = vunpack.c.l.b16 %v139
    %v401 = vunpack.c.h.b16 %v139
    %v402 = vunpack.c.l.b16 %v140
    %v403 = vunpack.c.h.b16 %v140
    %v404 = vunpack.c.l.b16 %v141
    %v405 = vunpack.c.h.b16 %v141
    %v406 = vunpack.c.l.b16 %v142
    %v407 = vunpack.c.h.b16 %v142
    %v408 = vunpack.c.l.b16 %v143
    %v409 = vunpack.c.h.b16 %v143
    %v410 = vunpack.c.l.b16 %v144
    %v411 = vunpack.c.h.b16 %v144
    %v412 = vunpack.c.l.b16 %v145
    %v413 = vunpack.c.h.b16 %v145
    %v414 = vunpack.c.l.b16 %v146
    %v415 = vunpack.c.h.b16 %v146
    %v416 = vunpack.c.l.b16 %v147
    %v417 = vunpack.c.h.b16 %v147
    %v418 = vunpack.c.l.b16 %v148
    %v419 = vunpack.c.h.b16 %v148
    %v420 = vunpack.c.l.b16 %v149
    %v421 = vunpack.c.h.b16 %v149
    %v422 = vunpack.c.l.b16 %v150
    %v423 = vunpack.c.h.b16 %v150
    %v424 = vunpack.c.l.b16 %v151
    %v425 = vunpack.c.h.b16 %v151
    %v426 = vunpack.c.l.b16 %v152
    %v427 = vunpack.c.h.b16 %v152
    %v428 = vunpack.c.l.b16 %v153
    %v429 = vunpack.c.h.b16 %v153
    %v430 = vunpack.c.l.b16 %v154
    %v431 = vunpack.c.h.b16 %v154
    %v432 = vpack.c.b16 %v372, %v368
    %v433 = vpack.c.b16 %v373, %v369
    %v434 = vpack.c.b16 %v374, %v370
    %v435 = vpack.c.b16 %v375, %v371
    %v436 = vpack.c.b16 %v380, %v376
    %v437 = vpack.c.b16 %v381, %v377
    %v438 = vpack.c.b16 %v382, %v378
    %v439 = vpack.c.b16 %v383, %v379
    %v440 = vpack.c.b16 %v388, %v384
    %v441 = vpack.c.b16 %v389, %v385
    %v442 = vpack.c.b16 %v390, %v386
    %v443 = vpack.c.b16 %v391, %v387
    %v444 = vpack.c.b16 %v396, %v392
    %v445 = vpack.c.b16 %v397, %v393
    %v446 = vpack.c.b16 %v398, %v394
    %v447 = vpack.c.b16 %v399, %v395
    %v448 = vpack.c.b16 %v404, %v400
    %v449 = vpack.c.b16 %v405, %v401
    %v450 = vpack.c.b16 %v406, %v402
    %v451 = vpack.c.b16 %v407, %v403
    %v452 = vpack.c.b16 %v412, %v408
    %v453 = vpack.c.b16 %v413, %v409
    %v454 = vpack.c.b16 %v414, %v410
    %v455 = vpack.c.b16 %v415, %v411
    %v456 = vpack.c.b16 %v420, %v416
    %v457 = vpack.c.b16 %v421, %v417
    %v458 = vpack.c.b16 %v422, %v418
    %v459 = vpack.c.b16 %v423, %v419
    %v460 = vpack.c.b16 %v428, %v424
    %v461 = vpack.c.b16 %v429, %v425
    %v462 = vpack.c.b16 %v430, %v426
    %v463 = vpack.c.b16 %v431, %v427
    %496 = vmatprep.subr.bf16.mxu0 %v433
    %497 = vmatpush1.bf16.msra.mxu0 %v432
    %498 = vmatprep.subr.bf16.mxu0 %v437
    %499 = vmatpush1.bf16.msra.mxu0 %v436
    %500 = vmatprep.subr.bf16.mxu0 %v441
    %501 = vmatpush1.bf16.msra.mxu0 %v440
    %502 = vmatprep.subr.bf16.mxu0 %v445
    %503 = vmatpush1.bf16.msra.mxu0 %v444
    %504 = vmatprep.subr.bf16.mxu0 %v449
    %505 = vmatpush1.bf16.msra.mxu0 %v448
    %506 = vmatprep.subr.bf16.mxu0 %v453
    %507 = vmatpush1.bf16.msra.mxu0 %v452
    %508 = vmatprep.subr.bf16.mxu0 %v457
    %509 = vmatpush1.bf16.msra.mxu0 %v456
    %510 = vmatprep.subr.bf16.mxu0 %v461
    %511 = vmatpush1.bf16.msra.mxu0 %v460
    %512 = vmatprep.subr.bf16.mxu0 0
    %513 = vmatpush1.bf16.msra.mxu0 0
    %514 = vmatprep.subr.bf16.mxu0 0
    %515 = vmatpush1.bf16.msra.mxu0 0
    %516 = vmatprep.subr.bf16.mxu0 0
    %517 = vmatpush1.bf16.msra.mxu0 0
    %518 = vmatprep.subr.bf16.mxu0 0
    %519 = vmatpush1.bf16.msra.mxu0 0
    %520 = vmatprep.subr.bf16.mxu0 0
    %521 = vmatpush1.bf16.msra.mxu0 0
    %522 = vmatprep.subr.bf16.mxu0 0
    %523 = vmatpush1.bf16.msra.mxu0 0
    %524 = vmatprep.subr.bf16.mxu0 0
    %525 = vmatpush1.bf16.msra.mxu0 0
    %526 = vmatprep.subr.bf16.mxu0 0
    %527 = vmatpush1.bf16.msra.mxu0 0
    %528 = vmatprep.mubr.bf16.mxu0 0
    %529 = vmatmul.mubr.bf16.gmra.mrb[0].mxu0 %v335
    %v530 = vpop.f32.mrb[0].mxu0
    %v531 = vadd.f32 0.0, %v530
    %v532 = vpop.f32.mrb[0].mxu0
    %v533 = vadd.f32 0.0, %v532
    %v534 = vpop.f32.mrb[0].mxu0
    %v535 = vpop.f32.mrb[0].mxu0
    %536 = vdwg.mxu0
    %537 = vmatprep.subr.bf16.mxu0 %v435
    %538 = vmatpush1.bf16.msra.mxu0 %v434
    %539 = vmatprep.subr.bf16.mxu0 %v439
    %540 = vmatpush1.bf16.msra.mxu0 %v438
    %541 = vmatprep.subr.bf16.mxu0 %v443
    %542 = vmatpush1.bf16.msra.mxu0 %v442
    %543 = vmatprep.subr.bf16.mxu0 %v447
    %544 = vmatpush1.bf16.msra.mxu0 %v446
    %545 = vmatprep.subr.bf16.mxu0 %v451
    %546 = vmatpush1.bf16.msra.mxu0 %v450
    %547 = vmatprep.subr.bf16.mxu0 %v455
    %548 = vmatpush1.bf16.msra.mxu0 %v454
    %549 = vmatprep.subr.bf16.mxu0 %v459
    %550 = vmatpush1.bf16.msra.mxu0 %v458
    %551 = vmatprep.subr.bf16.mxu0 %v463
    %552 = vmatpush1.bf16.msra.mxu0 %v462
    %553 = vmatprep.subr.bf16.mxu0 0
    %554 = vmatpush1.bf16.msra.mxu0 0
    %555 = vmatprep.subr.bf16.mxu0 0
    %556 = vmatpush1.bf16.msra.mxu0 0
    %557 = vmatprep.subr.bf16.mxu0 0
    %558 = vmatpush1.bf16.msra.mxu0 0
    %559 = vmatprep.subr.bf16.mxu0 0
    %560 = vmatpush1.bf16.msra.mxu0 0
    %561 = vmatprep.subr.bf16.mxu0 0
    %562 = vmatpush1.bf16.msra.mxu0 0
    %563 = vmatprep.subr.bf16.mxu0 0
    %564 = vmatpush1.bf16.msra.mxu0 0
    %565 = vmatprep.subr.bf16.mxu0 0
    %566 = vmatpush1.bf16.msra.mxu0 0
    %567 = vmatprep.subr.bf16.mxu0 0
    %568 = vmatpush1.bf16.msra.mxu0 0
    %569 = vmatprep.mubr.bf16.mxu0 0
    %570 = vmatmul.mubr.bf16.gmra.mrb[0].mxu0 %v335
    %v571 = vpop.f32.mrb[0].mxu0
    %v572 = vadd.f32 0.0, %v571
    %v573 = vpop.f32.mrb[0].mxu0
    %v574 = vadd.f32 0.0, %v573
    %v575 = vpop.f32.mrb[0].mxu0
    %v576 = vpop.f32.mrb[0].mxu0
    %577 = vdwg.mxu0
    %v578 = vadd.f32 %v331, %v531
    %v579 = vadd.f32 %v332, %v533
    %v580 = vadd.f32 %v333, %v572
    %v581 = vadd.f32 %v334, %v574
    %v582 = vxor.u32 %v578, 2147483648
    %v583 = vxor.u32 %v579, 2147483648
    %v584 = vxor.u32 %v580, 2147483648
    %v585 = vmul.f32 %v582, 1.442695
    %v586 = vpow.pop %v585
    %v587 = vmul.f32 %v583, 1.442695
    %v588 = vpow.pop %v587
    %v589 = vmul.f32 %v584, 1.442695
    %v590 = vpow.pop %v589
    %v591 = vadd.f32 %v586, 1.0
    %v592 = vadd.f32 %v588, 1.0
    %v593 = vadd.f32 %v590, 1.0
    %v594 = vrcp.pop %v591
    %v595 = vmul.f32 1.0, %v594
    %v596 = vrcp.pop %v592
    %v597 = vmul.f32 1.0, %v596
    %v598 = vrcp.pop %v593
    %v599 = vmul.f32 1.0, %v598
    %v600 = vtanh.pop %v581
    %v601 = vmul.f32 %v597, %v118
    %v602 = vmul.f32 %v595, %v600
    %v603 = vadd.f32 %v601, %v602
    %v604 = vtanh.pop %v603
    %v605 = vmul.f32 %v599, %v604
    %v606 = vpack.c.bf16 %v605, %v605
    %v607 = vpack.c.bf16 %v115, %v115
    %v640 = vunpack.c.l.b16 %v156
    %v641 = vunpack.c.h.b16 %v156
    %v642 = vunpack.c.l.b16 %v157
    %v643 = vunpack.c.h.b16 %v157
    %v644 = vunpack.c.l.b16 %v158
    %v645 = vunpack.c.h.b16 %v158
    %v646 = vunpack.c.l.b16 %v159
    %v647 = vunpack.c.h.b16 %v159
    %v648 = vunpack.c.l.b16 %v160
    %v649 = vunpack.c.h.b16 %v160
    %v650 = vunpack.c.l.b16 %v161
    %v651 = vunpack.c.h.b16 %v161
    %v652 = vunpack.c.l.b16 %v162
    %v653 = vunpack.c.h.b16 %v162
    %v654 = vunpack.c.l.b16 %v163
    %v655 = vunpack.c.h.b16 %v163
    %v656 = vunpack.c.l.b16 %v164
    %v657 = vunpack.c.h.b16 %v164
    %v658 = vunpack.c.l.b16 %v165
    %v659 = vunpack.c.h.b16 %v165
    %v660 = vunpack.c.l.b16 %v166
    %v661 = vunpack.c.h.b16 %v166
    %v662 = vunpack.c.l.b16 %v167
    %v663 = vunpack.c.h.b16 %v167
    %v664 = vunpack.c.l.b16 %v168
    %v665 = vunpack.c.h.b16 %v168
    %v666 = vunpack.c.l.b16 %v169
    %v667 = vunpack.c.h.b16 %v169
    %v668 = vunpack.c.l.b16 %v170
    %v669 = vunpack.c.h.b16 %v170
    %v670 = vunpack.c.l.b16 %v171
    %v671 = vunpack.c.h.b16 %v171
    %v672 = vunpack.c.l.b16 %v172
    %v673 = vunpack.c.h.b16 %v172
    %v674 = vunpack.c.l.b16 %v173
    %v675 = vunpack.c.h.b16 %v173
    %v676 = vunpack.c.l.b16 %v174
    %v677 = vunpack.c.h.b16 %v174
    %v678 = vunpack.c.l.b16 %v175
    %v679 = vunpack.c.h.b16 %v175
    %v680 = vunpack.c.l.b16 %v176
    %v681 = vunpack.c.h.b16 %v176
    %v682 = vunpack.c.l.b16 %v177
    %v683 = vunpack.c.h.b16 %v177
    %v684 = vunpack.c.l.b16 %v178
    %v685 = vunpack.c.h.b16 %v178
    %v686 = vunpack.c.l.b16 %v179
    %v687 = vunpack.c.h.b16 %v179
    %v688 = vunpack.c.l.b16 %v180
    %v689 = vunpack.c.h.b16 %v180
    %v690 = vunpack.c.l.b16 %v181
    %v691 = vunpack.c.h.b16 %v181
    %v692 = vunpack.c.l.b16 %v182
    %v693 = vunpack.c.h.b16 %v182
    %v694 = vunpack.c.l.b16 %v183
    %v695 = vunpack.c.h.b16 %v183
    %v696 = vunpack.c.l.b16 %v184
    %v697 = vunpack.c.h.b16 %v184
    %v698 = vunpack.c.l.b16 %v185
    %v699 = vunpack.c.h.b16 %v185
    %v700 = vunpack.c.l.b16 %v186
    %v701 = vunpack.c.h.b16 %v186
    %v702 = vunpack.c.l.b16 %v187
    %v703 = vunpack.c.h.b16 %v187
    %v704 = vpack.c.b16 %v644, %v640
    %v705 = vpack.c.b16 %v645, %v641
    %v706 = vpack.c.b16 %v646, %v642
    %v707 = vpack.c.b16 %v647, %v643
    %v708 = vpack.c.b16 %v652, %v648
    %v709 = vpack.c.b16 %v653, %v649
    %v710 = vpack.c.b16 %v654, %v650
    %v711 = vpack.c.b16 %v655, %v651
    %v712 = vpack.c.b16 %v660, %v656
    %v713 = vpack.c.b16 %v661, %v657
    %v714 = vpack.c.b16 %v662, %v658
    %v715 = vpack.c.b16 %v663, %v659
    %v716 = vpack.c.b16 %v668, %v664
    %v717 = vpack.c.b16 %v669, %v665
    %v718 = vpack.c.b16 %v670, %v666
    %v719 = vpack.c.b16 %v671, %v667
    %v720 = vpack.c.b16 %v676, %v672
    %v721 = vpack.c.b16 %v677, %v673
    %v722 = vpack.c.b16 %v678, %v674
    %v723 = vpack.c.b16 %v679, %v675
    %v724 = vpack.c.b16 %v684, %v680
    %v725 = vpack.c.b16 %v685, %v681
    %v726 = vpack.c.b16 %v686, %v682
    %v727 = vpack.c.b16 %v687, %v683
    %v728 = vpack.c.b16 %v692, %v688
    %v729 = vpack.c.b16 %v693, %v689
    %v730 = vpack.c.b16 %v694, %v690
    %v731 = vpack.c.b16 %v695, %v691
    %v732 = vpack.c.b16 %v700, %v696
    %v733 = vpack.c.b16 %v701, %v697
    %v734 = vpack.c.b16 %v702, %v698
    %v735 = vpack.c.b16 %v703, %v699
    %768 = vmatprep.subr.bf16.mxu0 %v705
    %769 = vmatpush1.bf16.msra.mxu0 %v704
    %770 = vmatprep.subr.bf16.mxu0 %v709
    %771 = vmatpush1.bf16.msra.mxu0 %v708
    %772 = vmatprep.subr.bf16.mxu0 %v713
    %773 = vmatpush1.bf16.msra.mxu0 %v712
    %774 = vmatprep.subr.bf16.mxu0 %v717
    %775 = vmatpush1.bf16.msra.mxu0 %v716
    %776 = vmatprep.subr.bf16.mxu0 %v721
    %777 = vmatpush1.bf16.msra.mxu0 %v720
    %778 = vmatprep.subr.bf16.mxu0 %v725
    %779 = vmatpush1.bf16.msra.mxu0 %v724
    %780 = vmatprep.subr.bf16.mxu0 %v729
    %781 = vmatpush1.bf16.msra.mxu0 %v728
    %782 = vmatprep.subr.bf16.mxu0 %v733
    %783 = vmatpush1.bf16.msra.mxu0 %v732
    %784 = vmatprep.subr.bf16.mxu0 0
    %785 = vmatpush1.bf16.msra.mxu0 0
    %786 = vmatprep.subr.bf16.mxu0 0
    %787 = vmatpush1.bf16.msra.mxu0 0
    %788 = vmatprep.subr.bf16.mxu0 0
    %789 = vmatpush1.bf16.msra.mxu0 0
    %790 = vmatprep.subr.bf16.mxu0 0
    %791 = vmatpush1.bf16.msra.mxu0 0
    %792 = vmatprep.subr.bf16.mxu0 0
    %793 = vmatpush1.bf16.msra.mxu0 0
    %794 = vmatprep.subr.bf16.mxu0 0
    %795 = vmatpush1.bf16.msra.mxu0 0
    %796 = vmatprep.subr.bf16.mxu0 0
    %797 = vmatpush1.bf16.msra.mxu0 0
    %798 = vmatprep.subr.bf16.mxu0 0
    %799 = vmatpush1.bf16.msra.mxu0 0
    %800 = vmatprep.mubr.bf16.mxu0 0
    %801 = vmatmul.mubr.bf16.gmra.mrb[0].mxu0 %v607
    %v802 = vpop.f32.mrb[0].mxu0
    %v803 = vadd.f32 0.0, %v802
    %v804 = vpop.f32.mrb[0].mxu0
    %v805 = vadd.f32 0.0, %v804
    %v806 = vpop.f32.mrb[0].mxu0
    %v807 = vpop.f32.mrb[0].mxu0
    %808 = vdwg.mxu0
    %809 = vmatprep.subr.bf16.mxu0 %v707
    %810 = vmatpush1.bf16.msra.mxu0 %v706
    %811 = vmatprep.subr.bf16.mxu0 %v711
    %812 = vmatpush1.bf16.msra.mxu0 %v710
    %813 = vmatprep.subr.bf16.mxu0 %v715
    %814 = vmatpush1.bf16.msra.mxu0 %v714
    %815 = vmatprep.subr.bf16.mxu0 %v719
    %816 = vmatpush1.bf16.msra.mxu0 %v718
    %817 = vmatprep.subr.bf16.mxu0 %v723
    %818 = vmatpush1.bf16.msra.mxu0 %v722
    %819 = vmatprep.subr.bf16.mxu0 %v727
    %820 = vmatpush1.bf16.msra.mxu0 %v726
    %821 = vmatprep.subr.bf16.mxu0 %v731
    %822 = vmatpush1.bf16.msra.mxu0 %v730
    %823 = vmatprep.subr.bf16.mxu0 %v735
    %824 = vmatpush1.bf16.msra.mxu0 %v734
    %825 = vmatprep.subr.bf16.mxu0 0
    %826 = vmatpush1.bf16.msra.mxu0 0
    %827 = vmatprep.subr.bf16.mxu0 0
    %828 = vmatpush1.bf16.msra.mxu0 0
    %829 = vmatprep.subr.bf16.mxu0 0
    %830 = vmatpush1.bf16.msra.mxu0 0
    %831 = vmatprep.subr.bf16.mxu0 0
    %832 = vmatpush1.bf16.msra.mxu0 0
    %833 = vmatprep.subr.bf16.mxu0 0
    %834 = vmatpush1.bf16.msra.mxu0 0
    %835 = vmatprep.subr.bf16.mxu0 0
    %836 = vmatpush1.bf16.msra.mxu0 0
    %837 = vmatprep.subr.bf16.mxu0 0
    %838 = vmatpush1.bf16.msra.mxu0 0
    %839 = vmatprep.subr.bf16.mxu0 0
    %840 = vmatpush1.bf16.msra.mxu0 0
    %841 = vmatprep.mubr.bf16.mxu0 0
    %842 = vmatmul.mubr.bf16.gmra.mrb[0].mxu0 %v607
    %v843 = vpop.f32.mrb[0].mxu0
    %v844 = vadd.f32 0.0, %v843
    %v845 = vpop.f32.mrb[0].mxu0
    %v846 = vadd.f32 0.0, %v845
    %v847 = vpop.f32.mrb[0].mxu0
    %v848 = vpop.f32.mrb[0].mxu0
    %849 = vdwg.mxu0
    %v882 = vunpack.c.l.b16 %v221
    %v883 = vunpack.c.h.b16 %v221
    %v884 = vunpack.c.l.b16 %v222
    %v885 = vunpack.c.h.b16 %v222
    %v886 = vunpack.c.l.b16 %v223
    %v887 = vunpack.c.h.b16 %v223
    %v888 = vunpack.c.l.b16 %v224
    %v889 = vunpack.c.h.b16 %v224
    %v890 = vunpack.c.l.b16 %v225
    %v891 = vunpack.c.h.b16 %v225
    %v892 = vunpack.c.l.b16 %v226
    %v893 = vunpack.c.h.b16 %v226
    %v894 = vunpack.c.l.b16 %v227
    %v895 = vunpack.c.h.b16 %v227
    %v896 = vunpack.c.l.b16 %v228
    %v897 = vunpack.c.h.b16 %v228
    %v898 = vunpack.c.l.b16 %v229
    %v899 = vunpack.c.h.b16 %v229
    %v900 = vunpack.c.l.b16 %v230
    %v901 = vunpack.c.h.b16 %v230
    %v902 = vunpack.c.l.b16 %v231
    %v903 = vunpack.c.h.b16 %v231
    %v904 = vunpack.c.l.b16 %v232
    %v905 = vunpack.c.h.b16 %v232
    %v906 = vunpack.c.l.b16 %v233
    %v907 = vunpack.c.h.b16 %v233
    %v908 = vunpack.c.l.b16 %v234
    %v909 = vunpack.c.h.b16 %v234
    %v910 = vunpack.c.l.b16 %v235
    %v911 = vunpack.c.h.b16 %v235
    %v912 = vunpack.c.l.b16 %v236
    %v913 = vunpack.c.h.b16 %v236
    %v914 = vunpack.c.l.b16 %v237
    %v915 = vunpack.c.h.b16 %v237
    %v916 = vunpack.c.l.b16 %v238
    %v917 = vunpack.c.h.b16 %v238
    %v918 = vunpack.c.l.b16 %v239
    %v919 = vunpack.c.h.b16 %v239
    %v920 = vunpack.c.l.b16 %v240
    %v921 = vunpack.c.h.b16 %v240
    %v922 = vunpack.c.l.b16 %v241
    %v923 = vunpack.c.h.b16 %v241
    %v924 = vunpack.c.l.b16 %v242
    %v925 = vunpack.c.h.b16 %v242
    %v926 = vunpack.c.l.b16 %v243
    %v927 = vunpack.c.h.b16 %v243
    %v928 = vunpack.c.l.b16 %v244
    %v929 = vunpack.c.h.b16 %v244
    %v930 = vunpack.c.l.b16 %v245
    %v931 = vunpack.c.h.b16 %v245
    %v932 = vunpack.c.l.b16 %v246
    %v933 = vunpack.c.h.b16 %v246
    %v934 = vunpack.c.l.b16 %v247
    %v935 = vunpack.c.h.b16 %v247
    %v936 = vunpack.c.l.b16 %v248
    %v937 = vunpack.c.h.b16 %v248
    %v938 = vunpack.c.l.b16 %v249
    %v939 = vunpack.c.h.b16 %v249
    %v940 = vunpack.c.l.b16 %v250
    %v941 = vunpack.c.h.b16 %v250
    %v942 = vunpack.c.l.b16 %v251
    %v943 = vunpack.c.h.b16 %v251
    %v944 = vunpack.c.l.b16 %v252
    %v945 = vunpack.c.h.b16 %v252
    %v946 = vpack.c.b16 %v886, %v882
    %v947 = vpack.c.b16 %v887, %v883
    %v948 = vpack.c.b16 %v888, %v884
    %v949 = vpack.c.b16 %v889, %v885
    %v950 = vpack.c.b16 %v894, %v890
    %v951 = vpack.c.b16 %v895, %v891
    %v952 = vpack.c.b16 %v896, %v892
    %v953 = vpack.c.b16 %v897, %v893
    %v954 = vpack.c.b16 %v902, %v898
    %v955 = vpack.c.b16 %v903, %v899
    %v956 = vpack.c.b16 %v904, %v900
    %v957 = vpack.c.b16 %v905, %v901
    %v958 = vpack.c.b16 %v910, %v906
    %v959 = vpack.c.b16 %v911, %v907
    %v960 = vpack.c.b16 %v912, %v908
    %v961 = vpack.c.b16 %v913, %v909
    %v962 = vpack.c.b16 %v918, %v914
    %v963 = vpack.c.b16 %v919, %v915
    %v964 = vpack.c.b16 %v920, %v916
    %v965 = vpack.c.b16 %v921, %v917
    %v966 = vpack.c.b16 %v926, %v922
    %v967 = vpack.c.b16 %v927, %v923
    %v968 = vpack.c.b16 %v928, %v924
    %v969 = vpack.c.b16 %v929, %v925
    %v970 = vpack.c.b16 %v934, %v930
    %v971 = vpack.c.b16 %v935, %v931
    %v972 = vpack.c.b16 %v936, %v932
    %v973 = vpack.c.b16 %v937, %v933
    %v974 = vpack.c.b16 %v942, %v938
    %v975 = vpack.c.b16 %v943, %v939
    %v976 = vpack.c.b16 %v944, %v940
    %v977 = vpack.c.b16 %v945, %v941
    %1010 = vmatprep.subr.bf16.mxu0 %v947
    %1011 = vmatpush1.bf16.msra.mxu0 %v946
    %1012 = vmatprep.subr.bf16.mxu0 %v951
    %1013 = vmatpush1.bf16.msra.mxu0 %v950
    %1014 = vmatprep.subr.bf16.mxu0 %v955
    %1015 = vmatpush1.bf16.msra.mxu0 %v954
    %1016 = vmatprep.subr.bf16.mxu0 %v959
    %1017 = vmatpush1.bf16.msra.mxu0 %v958
    %1018 = vmatprep.subr.bf16.mxu0 %v963
    %1019 = vmatpush1.bf16.msra.mxu0 %v962
    %1020 = vmatprep.subr.bf16.mxu0 %v967
    %1021 = vmatpush1.bf16.msra.mxu0 %v966
    %1022 = vmatprep.subr.bf16.mxu0 %v971
    %1023 = vmatpush1.bf16.msra.mxu0 %v970
    %1024 = vmatprep.subr.bf16.mxu0 %v975
    %1025 = vmatpush1.bf16.msra.mxu0 %v974
    %1026 = vmatprep.subr.bf16.mxu0 0
    %1027 = vmatpush1.bf16.msra.mxu0 0
    %1028 = vmatprep.subr.bf16.mxu0 0
    %1029 = vmatpush1.bf16.msra.mxu0 0
    %1030 = vmatprep.subr.bf16.mxu0 0
    %1031 = vmatpush1.bf16.msra.mxu0 0
    %1032 = vmatprep.subr.bf16.mxu0 0
    %1033 = vmatpush1.bf16.msra.mxu0 0
    %1034 = vmatprep.subr.bf16.mxu0 0
    %1035 = vmatpush1.bf16.msra.mxu0 0
    %1036 = vmatprep.subr.bf16.mxu0 0
    %1037 = vmatpush1.bf16.msra.mxu0 0
    %1038 = vmatprep.subr.bf16.mxu0 0
    %1039 = vmatpush1.bf16.msra.mxu0 0
    %1040 = vmatprep.subr.bf16.mxu0 0
    %1041 = vmatpush1.bf16.msra.mxu0 0
    %1042 = vmatprep.mubr.bf16.mxu0 0
    %1043 = vmatmul.mubr.bf16.gmra.mrb[0].mxu0 %v606
    %v1044 = vpop.f32.mrb[0].mxu0
    %v1045 = vadd.f32 %v803, %v1044
    %v1046 = vpop.f32.mrb[0].mxu0
    %v1047 = vadd.f32 %v805, %v1046
    %v1048 = vpop.f32.mrb[0].mxu0
    %v1049 = vpop.f32.mrb[0].mxu0
    %1050 = vdwg.mxu0
    %1051 = vmatprep.subr.bf16.mxu0 %v949
    %1052 = vmatpush1.bf16.msra.mxu0 %v948
    %1053 = vmatprep.subr.bf16.mxu0 %v953
    %1054 = vmatpush1.bf16.msra.mxu0 %v952
    %1055 = vmatprep.subr.bf16.mxu0 %v957
    %1056 = vmatpush1.bf16.msra.mxu0 %v956
    %1057 = vmatprep.subr.bf16.mxu0 %v961
    %1058 = vmatpush1.bf16.msra.mxu0 %v960
    %1059 = vmatprep.subr.bf16.mxu0 %v965
    %1060 = vmatpush1.bf16.msra.mxu0 %v964
    %1061 = vmatprep.subr.bf16.mxu0 %v969
    %1062 = vmatpush1.bf16.msra.mxu0 %v968
    %1063 = vmatprep.subr.bf16.mxu0 %v973
    %1064 = vmatpush1.bf16.msra.mxu0 %v972
    %1065 = vmatprep.subr.bf16.mxu0 %v977
    %1066 = vmatpush1.bf16.msra.mxu0 %v976
    %1067 = vmatprep.subr.bf16.mxu0 0
    %1068 = vmatpush1.bf16.msra.mxu0 0
    %1069 = vmatprep.subr.bf16.mxu0 0
    %1070 = vmatpush1.bf16.msra.mxu0 0
    %1071 = vmatprep.subr.bf16.mxu0 0
    %1072 = vmatpush1.bf16.msra.mxu0 0
    %1073 = vmatprep.subr.bf16.mxu0 0
    %1074 = vmatpush1.bf16.msra.mxu0 0
    %1075 = vmatprep.subr.bf16.mxu0 0
    %1076 = vmatpush1.bf16.msra.mxu0 0
    %1077 = vmatprep.subr.bf16.mxu0 0
    %1078 = vmatpush1.bf16.msra.mxu0 0
    %1079 = vmatprep.subr.bf16.mxu0 0
    %1080 = vmatpush1.bf16.msra.mxu0 0
    %1081 = vmatprep.subr.bf16.mxu0 0
    %1082 = vmatpush1.bf16.msra.mxu0 0
    %1083 = vmatprep.mubr.bf16.mxu0 0
    %1084 = vmatmul.mubr.bf16.gmra.mrb[0].mxu0 %v606
    %v1085 = vpop.f32.mrb[0].mxu0
    %v1086 = vadd.f32 %v844, %v1085
    %v1087 = vpop.f32.mrb[0].mxu0
    %v1088 = vadd.f32 %v846, %v1087
    %v1089 = vpop.f32.mrb[0].mxu0
    %v1090 = vpop.f32.mrb[0].mxu0
    %1091 = vdwg.mxu0
    %v1092 = vadd.f32 %v1045, %v291
    %v1093 = vadd.f32 %v1047, %v295
    %v1094 = vadd.f32 %v1086, %v299
    %v1095 = vadd.f32 %v1088, %v303
    %v1096 = vxor.u32 %v1092, 2147483648
    %v1097 = vxor.u32 %v1093, 2147483648
    %v1098 = vxor.u32 %v1094, 2147483648
    %v1099 = vmul.f32 %v1096, 1.442695
    %v1100 = vpow.pop %v1099
    %v1101 = vmul.f32 %v1097, 1.442695
    %v1102 = vpow.pop %v1101
    %v1103 = vmul.f32 %v1098, 1.442695
    %v1104 = vpow.pop %v1103
    %v1105 = vadd.f32 %v1100, 1.0
    %v1106 = vadd.f32 %v1102, 1.0
    %v1107 = vadd.f32 %v1104, 1.0
    %v1108 = vrcp.pop %v1105
    %v1109 = vmul.f32 1.0, %v1108
    %v1110 = vrcp.pop %v1106
    %v1111 = vmul.f32 1.0, %v1110
    %v1112 = vrcp.pop %v1107
    %v1113 = vmul.f32 1.0, %v1112
    %v1114 = vtanh.pop %v1095
    %v1115 = vmul.f32 %v1111, %v120
    %v1116 = vmul.f32 %v1109, %v1114
    %v1117 = vadd.f32 %v1115, %v1116
    %v1118 = vtanh.pop %v1117
    %v1119 = vmul.f32 %v1113, %v1118
    %v1120 = vpack.c.bf16 %v1119, %v1119
    %v1121 = vpack.c.bf16 %v117, %v117
    %v1154 = vunpack.c.l.b16 %v189
    %v1155 = vunpack.c.h.b16 %v189
    %v1156 = vunpack.c.l.b16 %v190
    %v1157 = vunpack.c.h.b16 %v190
    %v1158 = vunpack.c.l.b16 %v191
    %v1159 = vunpack.c.h.b16 %v191
    %v1160 = vunpack.c.l.b16 %v192
    %v1161 = vunpack.c.h.b16 %v192
    %v1162 = vunpack.c.l.b16 %v193
    %v1163 = vunpack.c.h.b16 %v193
    %v1164 = vunpack.c.l.b16 %v194
    %v1165 = vunpack.c.h.b16 %v194
    %v1166 = vunpack.c.l.b16 %v195
    %v1167 = vunpack.c.h.b16 %v195
    %v1168 = vunpack.c.l.b16 %v196
    %v1169 = vunpack.c.h.b16 %v196
    %v1170 = vunpack.c.l.b16 %v197
    %v1171 = vunpack.c.h.b16 %v197
    %v1172 = vunpack.c.l.b16 %v198
    %v1173 = vunpack.c.h.b16 %v198
    %v1174 = vunpack.c.l.b16 %v199
    %v1175 = vunpack.c.h.b16 %v199
    %v1176 = vunpack.c.l.b16 %v200
    %v1177 = vunpack.c.h.b16 %v200
    %v1178 = vunpack.c.l.b16 %v201
    %v1179 = vunpack.c.h.b16 %v201
    %v1180 = vunpack.c.l.b16 %v202
    %v1181 = vunpack.c.h.b16 %v202
    %v1182 = vunpack.c.l.b16 %v203
    %v1183 = vunpack.c.h.b16 %v203
    %v1184 = vunpack.c.l.b16 %v204
    %v1185 = vunpack.c.h.b16 %v204
    %v1186 = vunpack.c.l.b16 %v205
    %v1187 = vunpack.c.h.b16 %v205
    %v1188 = vunpack.c.l.b16 %v206
    %v1189 = vunpack.c.h.b16 %v206
    %v1190 = vunpack.c.l.b16 %v207
    %v1191 = vunpack.c.h.b16 %v207
    %v1192 = vunpack.c.l.b16 %v208
    %v1193 = vunpack.c.h.b16 %v208
    %v1194 = vunpack.c.l.b16 %v209
    %v1195 = vunpack.c.h.b16 %v209
    %v1196 = vunpack.c.l.b16 %v210
    %v1197 = vunpack.c.h.b16 %v210
    %v1198 = vunpack.c.l.b16 %v211
    %v1199 = vunpack.c.h.b16 %v211
    %v1200 = vunpack.c.l.b16 %v212
    %v1201 = vunpack.c.h.b16 %v212
    %v1202 = vunpack.c.l.b16 %v213
    %v1203 = vunpack.c.h.b16 %v213
    %v1204 = vunpack.c.l.b16 %v214
    %v1205 = vunpack.c.h.b16 %v214
    %v1206 = vunpack.c.l.b16 %v215
    %v1207 = vunpack.c.h.b16 %v215
    %v1208 = vunpack.c.l.b16 %v216
    %v1209 = vunpack.c.h.b16 %v216
    %v1210 = vunpack.c.l.b16 %v217
    %v1211 = vunpack.c.h.b16 %v217
    %v1212 = vunpack.c.l.b16 %v218
    %v1213 = vunpack.c.h.b16 %v218
    %v1214 = vunpack.c.l.b16 %v219
    %v1215 = vunpack.c.h.b16 %v219
    %v1216 = vunpack.c.l.b16 %v220
    %v1217 = vunpack.c.h.b16 %v220
    %v1218 = vpack.c.b16 %v1158, %v1154
    %v1219 = vpack.c.b16 %v1159, %v1155
    %v1220 = vpack.c.b16 %v1160, %v1156
    %v1221 = vpack.c.b16 %v1161, %v1157
    %v1222 = vpack.c.b16 %v1166, %v1162
    %v1223 = vpack.c.b16 %v1167, %v1163
    %v1224 = vpack.c.b16 %v1168, %v1164
    %v1225 = vpack.c.b16 %v1169, %v1165
    %v1226 = vpack.c.b16 %v1174, %v1170
    %v1227 = vpack.c.b16 %v1175, %v1171
    %v1228 = vpack.c.b16 %v1176, %v1172
    %v1229 = vpack.c.b16 %v1177, %v1173
    %v1230 = vpack.c.b16 %v1182, %v1178
    %v1231 = vpack.c.b16 %v1183, %v1179
    %v1232 = vpack.c.b16 %v1184, %v1180
    %v1233 = vpack.c.b16 %v1185, %v1181
    %v1234 = vpack.c.b16 %v1190, %v1186
    %v1235 = vpack.c.b16 %v1191, %v1187
    %v1236 = vpack.c.b16 %v1192, %v1188
    %v1237 = vpack.c.b16 %v1193, %v1189
    %v1238 = vpack.c.b16 %v1198, %v1194
    %v1239 = vpack.c.b16 %v1199, %v1195
    %v1240 = vpack.c.b16 %v1200, %v1196
    %v1241 = vpack.c.b16 %v1201, %v1197
    %v1242 = vpack.c.b16 %v1206, %v1202
    %v1243 = vpack.c.b16 %v1207, %v1203
    %v1244 = vpack.c.b16 %v1208, %v1204
    %v1245 = vpack.c.b16 %v1209, %v1205
    %v1246 = vpack.c.b16 %v1214, %v1210
    %v1247 = vpack.c.b16 %v1215, %v1211
    %v1248 = vpack.c.b16 %v1216, %v1212
    %v1249 = vpack.c.b16 %v1217, %v1213
    %1282 = vmatprep.subr.bf16.mxu0 %v1219
    %1283 = vmatpush1.bf16.msra.mxu0 %v1218
    %1284 = vmatprep.subr.bf16.mxu0 %v1223
    %1285 = vmatpush1.bf16.msra.mxu0 %v1222
    %1286 = vmatprep.subr.bf16.mxu0 %v1227
    %1287 = vmatpush1.bf16.msra.mxu0 %v1226
    %1288 = vmatprep.subr.bf16.mxu0 %v1231
    %1289 = vmatpush1.bf16.msra.mxu0 %v1230
    %1290 = vmatprep.subr.bf16.mxu0 %v1235
    %1291 = vmatpush1.bf16.msra.mxu0 %v1234
    %1292 = vmatprep.subr.bf16.mxu0 %v1239
    %1293 = vmatpush1.bf16.msra.mxu0 %v1238
    %1294 = vmatprep.subr.bf16.mxu0 %v1243
    %1295 = vmatpush1.bf16.msra.mxu0 %v1242
    %1296 = vmatprep.subr.bf16.mxu0 %v1247
    %1297 = vmatpush1.bf16.msra.mxu0 %v1246
    %1298 = vmatprep.subr.bf16.mxu0 0
    %1299 = vmatpush1.bf16.msra.mxu0 0
    %1300 = vmatprep.subr.bf16.mxu0 0
    %1301 = vmatpush1.bf16.msra.mxu0 0
    %1302 = vmatprep.subr.bf16.mxu0 0
    %1303 = vmatpush1.bf16.msra.mxu0 0
    %1304 = vmatprep.subr.bf16.mxu0 0
    %1305 = vmatpush1.bf16.msra.mxu0 0
    %1306 = vmatprep.subr.bf16.mxu0 0
    %1307 = vmatpush1.bf16.msra.mxu0 0
    %1308 = vmatprep.subr.bf16.mxu0 0
    %1309 = vmatpush1.bf16.msra.mxu0 0
    %1310 = vmatprep.subr.bf16.mxu0 0
    %1311 = vmatpush1.bf16.msra.mxu0 0
    %1312 = vmatprep.subr.bf16.mxu0 0
    %1313 = vmatpush1.bf16.msra.mxu0 0
    %1314 = vmatprep.mubr.bf16.mxu0 0
    %1315 = vmatmul.mubr.bf16.gmra.mrb[0].mxu0 %v1121
    %v1316 = vpop.f32.mrb[0].mxu0
    %v1317 = vadd.f32 0.0, %v1316
    %v1318 = vpop.f32.mrb[0].mxu0
    %v1319 = vadd.f32 0.0, %v1318
    %v1320 = vpop.f32.mrb[0].mxu0
    %v1321 = vpop.f32.mrb[0].mxu0
    %1322 = vdwg.mxu0
    %1323 = vmatprep.subr.bf16.mxu0 %v1221
    %1324 = vmatpush1.bf16.msra.mxu0 %v1220
    %1325 = vmatprep.subr.bf16.mxu0 %v1225
    %1326 = vmatpush1.bf16.msra.mxu0 %v1224
    %1327 = vmatprep.subr.bf16.mxu0 %v1229
    %1328 = vmatpush1.bf16.msra.mxu0 %v1228
    %1329 = vmatprep.subr.bf16.mxu0 %v1233
    %1330 = vmatpush1.bf16.msra.mxu0 %v1232
    %1331 = vmatprep.subr.bf16.mxu0 %v1237
    %1332 = vmatpush1.bf16.msra.mxu0 %v1236
    %1333 = vmatprep.subr.bf16.mxu0 %v1241
    %1334 = vmatpush1.bf16.msra.mxu0 %v1240
    %1335 = vmatprep.subr.bf16.mxu0 %v1245
    %1336 = vmatpush1.bf16.msra.mxu0 %v1244
    %1337 = vmatprep.subr.bf16.mxu0 %v1249
    %1338 = vmatpush1.bf16.msra.mxu0 %v1248
    %1339 = vmatprep.subr.bf16.mxu0 0
    %1340 = vmatpush1.bf16.msra.mxu0 0
    %1341 = vmatprep.subr.bf16.mxu0 0
    %1342 = vmatpush1.bf16.msra.mxu0 0
    %1343 = vmatprep.subr.bf16.mxu0 0
    %1344 = vmatpush1.bf16.msra.mxu0 0
    %1345 = vmatprep.subr.bf16.mxu0 0
    %1346 = vmatpush1.bf16.msra.mxu0 0
    %1347 = vmatprep.subr.bf16.mxu0 0
    %1348 = vmatpush1.bf16.msra.mxu0 0
    %1349 = vmatprep.subr.bf16.mxu0 0
    %1350 = vmatpush1.bf16.msra.mxu0 0
    %1351 = vmatprep.subr.bf16.mxu0 0
    %1352 = vmatpush1.bf16.msra.mxu0 0
    %1353 = vmatprep.subr.bf16.mxu0 0
    %1354 = vmatpush1.bf16.msra.mxu0 0
    %1355 = vmatprep.mubr.bf16.mxu0 0
    %1356 = vmatmul.mubr.bf16.gmra.mrb[0].mxu0 %v1121
    %v1357 = vpop.f32.mrb[0].mxu0
    %v1358 = vadd.f32 0.0, %v1357
    %v1359 = vpop.f32.mrb[0].mxu0
    %v1360 = vadd.f32 0.0, %v1359
    %v1361 = vpop.f32.mrb[0].mxu0
    %v1362 = vpop.f32.mrb[0].mxu0
    %1363 = vdwg.mxu0
    %v1396 = vunpack.c.l.b16 %v254
    %v1397 = vunpack.c.h.b16 %v254
    %v1398 = vunpack.c.l.b16 %v255
    %v1399 = vunpack.c.h.b16 %v255
    %v1400 = vunpack.c.l.b16 %v256
    %v1401 = vunpack.c.h.b16 %v256
    %v1402 = vunpack.c.l.b16 %v257
    %v1403 = vunpack.c.h.b16 %v257
    %v1404 = vunpack.c.l.b16 %v258
    %v1405 = vunpack.c.h.b16 %v258
    %v1406 = vunpack.c.l.b16 %v259
    %v1407 = vunpack.c.h.b16 %v259
    %v1408 = vunpack.c.l.b16 %v260
    %v1409 = vunpack.c.h.b16 %v260
    %v1410 = vunpack.c.l.b16 %v261
    %v1411 = vunpack.c.h.b16 %v261
    %v1412 = vunpack.c.l.b16 %v262
    %v1413 = vunpack.c.h.b16 %v262
    %v1414 = vunpack.c.l.b16 %v263
    %v1415 = vunpack.c.h.b16 %v263
    %v1416 = vunpack.c.l.b16 %v264
    %v1417 = vunpack.c.h.b16 %v264
    %v1418 = vunpack.c.l.b16 %v265
    %v1419 = vunpack.c.h.b16 %v265
    %v1420 = vunpack.c.l.b16 %v266
    %v1421 = vunpack.c.h.b16 %v266
    %v1422 = vunpack.c.l.b16 %v267
    %v1423 = vunpack.c.h.b16 %v267
    %v1424 = vunpack.c.l.b16 %v268
    %v1425 = vunpack.c.h.b16 %v268
    %v1426 = vunpack.c.l.b16 %v269
    %v1427 = vunpack.c.h.b16 %v269
    %v1428 = vunpack.c.l.b16 %v270
    %v1429 = vunpack.c.h.b16 %v270
    %v1430 = vunpack.c.l.b16 %v271
    %v1431 = vunpack.c.h.b16 %v271
    %v1432 = vunpack.c.l.b16 %v272
    %v1433 = vunpack.c.h.b16 %v272
    %v1434 = vunpack.c.l.b16 %v273
    %v1435 = vunpack.c.h.b16 %v273
    %v1436 = vunpack.c.l.b16 %v274
    %v1437 = vunpack.c.h.b16 %v274
    %v1438 = vunpack.c.l.b16 %v275
    %v1439 = vunpack.c.h.b16 %v275
    %v1440 = vunpack.c.l.b16 %v276
    %v1441 = vunpack.c.h.b16 %v276
    %v1442 = vunpack.c.l.b16 %v277
    %v1443 = vunpack.c.h.b16 %v277
    %v1444 = vunpack.c.l.b16 %v278
    %v1445 = vunpack.c.h.b16 %v278
    %v1446 = vunpack.c.l.b16 %v279
    %v1447 = vunpack.c.h.b16 %v279
    %v1448 = vunpack.c.l.b16 %v280
    %v1449 = vunpack.c.h.b16 %v280
    %v1450 = vunpack.c.l.b16 %v281
    %v1451 = vunpack.c.h.b16 %v281
    %v1452 = vunpack.c.l.b16 %v282
    %v1453 = vunpack.c.h.b16 %v282
    %v1454 = vunpack.c.l.b16 %v283
    %v1455 = vunpack.c.h.b16 %v283
    %v1456 = vunpack.c.l.b16 %v284
    %v1457 = vunpack.c.h.b16 %v284
    %v1458 = vunpack.c.l.b16 %v285
    %v1459 = vunpack.c.h.b16 %v285
    %v1460 = vpack.c.b16 %v1400, %v1396
    %v1461 = vpack.c.b16 %v1401, %v1397
    %v1462 = vpack.c.b16 %v1402, %v1398
    %v1463 = vpack.c.b16 %v1403, %v1399
    %v1464 = vpack.c.b16 %v1408, %v1404
    %v1465 = vpack.c.b16 %v1409, %v1405
    %v1466 = vpack.c.b16 %v1410, %v1406
    %v1467 = vpack.c.b16 %v1411, %v1407
    %v1468 = vpack.c.b16 %v1416, %v1412
    %v1469 = vpack.c.b16 %v1417, %v1413
    %v1470 = vpack.c.b16 %v1418, %v1414
    %v1471 = vpack.c.b16 %v1419, %v1415
    %v1472 = vpack.c.b16 %v1424, %v1420
    %v1473 = vpack.c.b16 %v1425, %v1421
    %v1474 = vpack.c.b16 %v1426, %v1422
    %v1475 = vpack.c.b16 %v1427, %v1423
    %v1476 = vpack.c.b16 %v1432, %v1428
    %v1477 = vpack.c.b16 %v1433, %v1429
    %v1478 = vpack.c.b16 %v1434, %v1430
    %v1479 = vpack.c.b16 %v1435, %v1431
    %v1480 = vpack.c.b16 %v1440, %v1436
    %v1481 = vpack.c.b16 %v1441, %v1437
    %v1482 = vpack.c.b16 %v1442, %v1438
    %v1483 = vpack.c.b16 %v1443, %v1439
    %v1484 = vpack.c.b16 %v1448, %v1444
    %v1485 = vpack.c.b16 %v1449, %v1445
    %v1486 = vpack.c.b16 %v1450, %v1446
    %v1487 = vpack.c.b16 %v1451, %v1447
    %v1488 = vpack.c.b16 %v1456, %v1452
    %v1489 = vpack.c.b16 %v1457, %v1453
    %v1490 = vpack.c.b16 %v1458, %v1454
    %v1491 = vpack.c.b16 %v1459, %v1455
    %1524 = vmatprep.subr.bf16.mxu0 %v1461
    %1525 = vmatpush1.bf16.msra.mxu0 %v1460
    %1526 = vmatprep.subr.bf16.mxu0 %v1465
    %1527 = vmatpush1.bf16.msra.mxu0 %v1464
    %1528 = vmatprep.subr.bf16.mxu0 %v1469
    %1529 = vmatpush1.bf16.msra.mxu0 %v1468
    %1530 = vmatprep.subr.bf16.mxu0 %v1473
    %1531 = vmatpush1.bf16.msra.mxu0 %v1472
    %1532 = vmatprep.subr.bf16.mxu0 %v1477
    %1533 = vmatpush1.bf16.msra.mxu0 %v1476
    %1534 = vmatprep.subr.bf16.mxu0 %v1481
    %1535 = vmatpush1.bf16.msra.mxu0 %v1480
    %1536 = vmatprep.subr.bf16.mxu0 %v1485
    %1537 = vmatpush1.bf16.msra.mxu0 %v1484
    %1538 = vmatprep.subr.bf16.mxu0 %v1489
    %1539 = vmatpush1.bf16.msra.mxu0 %v1488
    %1540 = vmatprep.subr.bf16.mxu0 0
    %1541 = vmatpush1.bf16.msra.mxu0 0
    %1542 = vmatprep.subr.bf16.mxu0 0
    %1543 = vmatpush1.bf16.msra.mxu0 0
    %1544 = vmatprep.subr.bf16.mxu0 0
    %1545 = vmatpush1.bf16.msra.mxu0 0
    %1546 = vmatprep.subr.bf16.mxu0 0
    %1547 = vmatpush1.bf16.msra.mxu0 0
    %1548 = vmatprep.subr.bf16.mxu0 0
    %1549 = vmatpush1.bf16.msra.mxu0 0
    %1550 = vmatprep.subr.bf16.mxu0 0
    %1551 = vmatpush1.bf16.msra.mxu0 0
    %1552 = vmatprep.subr.bf16.mxu0 0
    %1553 = vmatpush1.bf16.msra.mxu0 0
    %1554 = vmatprep.subr.bf16.mxu0 0
    %1555 = vmatpush1.bf16.msra.mxu0 0
    %1556 = vmatprep.mubr.bf16.mxu0 0
    %1557 = vmatmul.mubr.bf16.gmra.mrb[0].mxu0 %v1120
    %v1558 = vpop.f32.mrb[0].mxu0
    %v1559 = vadd.f32 %v1317, %v1558
    %v1560 = vpop.f32.mrb[0].mxu0
    %v1561 = vadd.f32 %v1319, %v1560
    %v1562 = vpop.f32.mrb[0].mxu0
    %v1563 = vpop.f32.mrb[0].mxu0
    %1564 = vdwg.mxu0
    %1565 = vmatprep.subr.bf16.mxu0 %v1463
    %1566 = vmatpush1.bf16.msra.mxu0 %v1462
    %1567 = vmatprep.subr.bf16.mxu0 %v1467
    %1568 = vmatpush1.bf16.msra.mxu0 %v1466
    %1569 = vmatprep.subr.bf16.mxu0 %v1471
    %1570 = vmatpush1.bf16.msra.mxu0 %v1470
    %1571 = vmatprep.subr.bf16.mxu0 %v1475
    %1572 = vmatpush1.bf16.msra.mxu0 %v1474
    %1573 = vmatprep.subr.bf16.mxu0 %v1479
    %1574 = vmatpush1.bf16.msra.mxu0 %v1478
    %1575 = vmatprep.subr.bf16.mxu0 %v1483
    %1576 = vmatpush1.bf16.msra.mxu0 %v1482
    %1577 = vmatprep.subr.bf16.mxu0 %v1487
    %1578 = vmatpush1.bf16.msra.mxu0 %v1486
    %1579 = vmatprep.subr.bf16.mxu0 %v1491
    %1580 = vmatpush1.bf16.msra.mxu0 %v1490
    %1581 = vmatprep.subr.bf16.mxu0 0
    %1582 = vmatpush1.bf16.msra.mxu0 0
    %1583 = vmatprep.subr.bf16.mxu0 0
    %1584 = vmatpush1.bf16.msra.mxu0 0
    %1585 = vmatprep.subr.bf16.mxu0 0
    %1586 = vmatpush1.bf16.msra.mxu0 0
    %1587 = vmatprep.subr.bf16.mxu0 0
    %1588 = vmatpush1.bf16.msra.mxu0 0
    %1589 = vmatprep.subr.bf16.mxu0 0
    %1590 = vmatpush1.bf16.msra.mxu0 0
    %1591 = vmatprep.subr.bf16.mxu0 0
    %1592 = vmatpush1.bf16.msra.mxu0 0
    %1593 = vmatprep.subr.bf16.mxu0 0
    %1594 = vmatpush1.bf16.msra.mxu0 0
    %1595 = vmatprep.subr.bf16.mxu0 0
    %1596 = vmatpush1.bf16.msra.mxu0 0
    %1597 = vmatprep.mubr.bf16.mxu0 0
    %1598 = vmatmul.mubr.bf16.gmra.mrb[0].mxu0 %v1120
    %v1599 = vpop.f32.mrb[0].mxu0
    %v1600 = vadd.f32 %v1358, %v1599
    %v1601 = vpop.f32.mrb[0].mxu0
    %v1602 = vadd.f32 %v1360, %v1601
    %v1603 = vpop.f32.mrb[0].mxu0
    %v1604 = vpop.f32.mrb[0].mxu0
    %1605 = vdwg.mxu0
    %v1606 = vadd.f32 %v1559, %v314
    %v1607 = vadd.f32 %v1561, %v318
    %v1608 = vadd.f32 %v1600, %v322
    %v1609 = vadd.f32 %v1602, %v326
    %v1610 = vxor.u32 %v1606, 2147483648
    %v1611 = vxor.u32 %v1607, 2147483648
    %v1612 = vxor.u32 %v1608, 2147483648
    %v1613 = vmul.f32 %v1610, 1.442695
    %v1614 = vpow.pop %v1613
    %v1615 = vmul.f32 %v1611, 1.442695
    %v1616 = vpow.pop %v1615
    %v1617 = vmul.f32 %v1612, 1.442695
    %v1618 = vpow.pop %v1617
    %v1619 = vadd.f32 %v1614, 1.0
    %v1620 = vadd.f32 %v1616, 1.0
    %v1621 = vadd.f32 %v1618, 1.0
    %v1622 = vrcp.pop %v1619
    %v1623 = vmul.f32 1.0, %v1622
    %v1624 = vrcp.pop %v1620
    %v1625 = vmul.f32 1.0, %v1624
    %v1626 = vrcp.pop %v1621
    %v1627 = vmul.f32 1.0, %v1626
    %v1628 = vtanh.pop %v1609
    %v1629 = vmul.f32 %v1625, %v122
    %v1630 = vmul.f32 %v1623, %v1628
    %v1631 = vadd.f32 %v1629, %v1630
    %v1632 = vtanh.pop %v1631
    %v1633 = vmul.f32 %v1627, %v1632
    %1634 = vst [vmem:[#allocation11] sm:$0xff] %v1633
    %s1635 = scalar_lea.vmem [#allocation2], 32
    %v1636 = vld [vmem:[%s1635] sm:$0xff]
    %v1637 = vld [vmem:[%s1635 + $0x8] sm:$0xff]
    %v1638 = vld [vmem:[%s1635 + $0x10] sm:$0xff]
    %v1639 = vld [vmem:[%s1635 + $0x18] sm:$0xff]
    %1640 = vmatprep.subr.bf16.mxu0 %v433
    %1641 = vmatpush1.bf16.msra.mxu0 %v432
    %1642 = vmatprep.subr.bf16.mxu0 %v437
    %1643 = vmatpush1.bf16.msra.mxu0 %v436
    %1644 = vmatprep.subr.bf16.mxu0 %v441
    %1645 = vmatpush1.bf16.msra.mxu0 %v440
    %1646 = vmatprep.subr.bf16.mxu0 %v445
    %1647 = vmatpush1.bf16.msra.mxu0 %v444
    %1648 = vmatprep.subr.bf16.mxu0 %v449
    %1649 = vmatpush1.bf16.msra.mxu0 %v448
    %1650 = vmatprep.subr.bf16.mxu0 %v453
    %1651 = vmatpush1.bf16.msra.mxu0 %v452
    %1652 = vmatprep.subr.bf16.mxu0 %v457
    %1653 = vmatpush1.bf16.msra.mxu0 %v456
    %1654 = vmatprep.subr.bf16.mxu0 %v461
    %1655 = vmatpush1.bf16.msra.mxu0 %v460
    %1656 = vmatprep.subr.bf16.mxu0 0
    %1657 = vmatpush1.bf16.msra.mxu0 0
    %1658 = vmatprep.subr.bf16.mxu0 0
    %1659 = vmatpush1.bf16.msra.mxu0 0
    %1660 = vmatprep.subr.bf16.mxu0 0
    %1661 = vmatpush1.bf16.msra.mxu0 0
    %1662 = vmatprep.subr.bf16.mxu0 0
    %1663 = vmatpush1.bf16.msra.mxu0 0
    %1664 = vmatprep.subr.bf16.mxu0 0
    %1665 = vmatpush1.bf16.msra.mxu0 0
    %1666 = vmatprep.subr.bf16.mxu0 0
    %1667 = vmatpush1.bf16.msra.mxu0 0
    %1668 = vmatprep.subr.bf16.mxu0 0
    %1669 = vmatpush1.bf16.msra.mxu0 0
    %1670 = vmatprep.subr.bf16.mxu0 0
    %1671 = vmatpush1.bf16.msra.mxu0 0
    %1672 = vmatprep.mubr.bf16.mxu0 0
    %1673 = vmatmul.mubr.bf16.gmra.mrb[0].mxu0 %v606
    %v1674 = vpop.f32.mrb[0].mxu0
    %v1675 = vadd.f32 0.0, %v1674
    %v1676 = vpop.f32.mrb[0].mxu0
    %v1677 = vadd.f32 0.0, %v1676
    %v1678 = vpop.f32.mrb[0].mxu0
    %v1679 = vpop.f32.mrb[0].mxu0
    %1680 = vdwg.mxu0
    %1681 = vmatprep.subr.bf16.mxu0 %v435
    %1682 = vmatpush1.bf16.msra.mxu0 %v434
    %1683 = vmatprep.subr.bf16.mxu0 %v439
    %1684 = vmatpush1.bf16.msra.mxu0 %v438
    %1685 = vmatprep.subr.bf16.mxu0 %v443
    %1686 = vmatpush1.bf16.msra.mxu0 %v442
    %1687 = vmatprep.subr.bf16.mxu0 %v447
    %1688 = vmatpush1.bf16.msra.mxu0 %v446
    %1689 = vmatprep.subr.bf16.mxu0 %v451
    %1690 = vmatpush1.bf16.msra.mxu0 %v450
    %1691 = vmatprep.subr.bf16.mxu0 %v455
    %1692 = vmatpush1.bf16.msra.mxu0 %v454
    %1693 = vmatprep.subr.bf16.mxu0 %v459
    %1694 = vmatpush1.bf16.msra.mxu0 %v458
    %1695 = vmatprep.subr.bf16.mxu0 %v463
    %1696 = vmatpush1.bf16.msra.mxu0 %v462
    %1697 = vmatprep.subr.bf16.mxu0 0
    %1698 = vmatpush1.bf16.msra.mxu0 0
    %1699 = vmatprep.subr.bf16.mxu0 0
    %1700 = vmatpush1.bf16.msra.mxu0 0
    %1701 = vmatprep.subr.bf16.mxu0 0
    %1702 = vmatpush1.bf16.msra.mxu0 0
    %1703 = vmatprep.subr.bf16.mxu0 0
    %1704 = vmatpush1.bf16.msra.mxu0 0
    %1705 = vmatprep.subr.bf16.mxu0 0
    %1706 = vmatpush1.bf16.msra.mxu0 0
    %1707 = vmatprep.subr.bf16.mxu0 0
    %1708 = vmatpush1.bf16.msra.mxu0 0
    %1709 = vmatprep.subr.bf16.mxu0 0
    %1710 = vmatpush1.bf16.msra.mxu0 0
    %1711 = vmatprep.subr.bf16.mxu0 0
    %1712 = vmatpush1.bf16.msra.mxu0 0
    %1713 = vmatprep.mubr.bf16.mxu0 0
    %1714 = vmatmul.mubr.bf16.gmra.mrb[0].mxu0 %v606
    %v1715 = vpop.f32.mrb[0].mxu0
    %v1716 = vadd.f32 0.0, %v1715
    %v1717 = vpop.f32.mrb[0].mxu0
    %v1718 = vadd.f32 0.0, %v1717
    %v1719 = vpop.f32.mrb[0].mxu0
    %v1720 = vpop.f32.mrb[0].mxu0
    %1721 = vdwg.mxu0
    %v1722 = vadd.f32 %v1636, %v1675
    %v1723 = vadd.f32 %v1637, %v1677
    %v1724 = vadd.f32 %v1638, %v1716
    %v1725 = vadd.f32 %v1639, %v1718
    %v1726 = vxor.u32 %v1722, 2147483648
    %v1727 = vxor.u32 %v1723, 2147483648
    %v1728 = vxor.u32 %v1724, 2147483648
    %v1729 = vmul.f32 %v1726, 1.442695
    %v1730 = vpow.pop %v1729
    %v1731 = vmul.f32 %v1727, 1.442695
    %v1732 = vpow.pop %v1731
    %v1733 = vmul.f32 %v1728, 1.442695
    %v1734 = vpow.pop %v1733
    %v1735 = vadd.f32 %v1730, 1.0
    %v1736 = vadd.f32 %v1732, 1.0
    %v1737 = vadd.f32 %v1734, 1.0
    %v1738 = vrcp.pop %v1735
    %v1739 = vmul.f32 1.0, %v1738
    %v1740 = vrcp.pop %v1736
    %v1741 = vmul.f32 1.0, %v1740
    %v1742 = vrcp.pop %v1737
    %v1743 = vmul.f32 1.0, %v1742
    %v1744 = vtanh.pop %v1725
    %v1745 = vmul.f32 %v1741, %v603
    %v1746 = vmul.f32 %v1739, %v1744
    %v1747 = vadd.f32 %v1745, %v1746
    %v1748 = vtanh.pop %v1747
    %v1749 = vmul.f32 %v1743, %v1748
    %v1750 = vpack.c.bf16 %v1749, %v1749
    %1751 = vmatprep.subr.bf16.mxu0 %v705
    %1752 = vmatpush1.bf16.msra.mxu0 %v704
    %1753 = vmatprep.subr.bf16.mxu0 %v709
    %1754 = vmatpush1.bf16.msra.mxu0 %v708
    %1755 = vmatprep.subr.bf16.mxu0 %v713
    %1756 = vmatpush1.bf16.msra.mxu0 %v712
    %1757 = vmatprep.subr.bf16.mxu0 %v717
    %1758 = vmatpush1.bf16.msra.mxu0 %v716
    %1759 = vmatprep.subr.bf16.mxu0 %v721
    %1760 = vmatpush1.bf16.msra.mxu0 %v720
    %1761 = vmatprep.subr.bf16.mxu0 %v725
    %1762 = vmatpush1.bf16.msra.mxu0 %v724
    %1763 = vmatprep.subr.bf16.mxu0 %v729
    %1764 = vmatpush1.bf16.msra.mxu0 %v728
    %1765 = vmatprep.subr.bf16.mxu0 %v733
    %1766 = vmatpush1.bf16.msra.mxu0 %v732
    %1767 = vmatprep.subr.bf16.mxu0 0
    %1768 = vmatpush1.bf16.msra.mxu0 0
    %1769 = vmatprep.subr.bf16.mxu0 0
    %1770 = vmatpush1.bf16.msra.mxu0 0
    %1771 = vmatprep.subr.bf16.mxu0 0
    %1772 = vmatpush1.bf16.msra.mxu0 0
    %1773 = vmatprep.subr.bf16.mxu0 0
    %1774 = vmatpush1.bf16.msra.mxu0 0
    %1775 = vmatprep.subr.bf16.mxu0 0
    %1776 = vmatpush1.bf16.msra.mxu0 0
    %1777 = vmatprep.subr.bf16.mxu0 0
    %1778 = vmatpush1.bf16.msra.mxu0 0
    %1779 = vmatprep.subr.bf16.mxu0 0
    %1780 = vmatpush1.bf16.msra.mxu0 0
    %1781 = vmatprep.subr.bf16.mxu0 0
    %1782 = vmatpush1.bf16.msra.mxu0 0
    %1783 = vmatprep.mubr.bf16.mxu0 0
    %1784 = vmatmul.mubr.bf16.gmra.mrb[0].mxu0 %v1120
    %v1785 = vpop.f32.mrb[0].mxu0
    %v1786 = vadd.f32 0.0, %v1785
    %v1787 = vpop.f32.mrb[0].mxu0
    %v1788 = vadd.f32 0.0, %v1787
    %v1789 = vpop.f32.mrb[0].mxu0
    %v1790 = vpop.f32.mrb[0].mxu0
    %1791 = vdwg.mxu0
    %1792 = vmatprep.subr.bf16.mxu0 %v707
    %1793 = vmatpush1.bf16.msra.mxu0 %v706
    %1794 = vmatprep.subr.bf16.mxu0 %v711
    %1795 = vmatpush1.bf16.msra.mxu0 %v710
    %1796 = vmatprep.subr.bf16.mxu0 %v715
    %1797 = vmatpush1.bf16.msra.mxu0 %v714
    %1798 = vmatprep.subr.bf16.mxu0 %v719
    %1799 = vmatpush1.bf16.msra.mxu0 %v718
    %1800 = vmatprep.subr.bf16.mxu0 %v723
    %1801 = vmatpush1.bf16.msra.mxu0 %v722
    %1802 = vmatprep.subr.bf16.mxu0 %v727
    %1803 = vmatpush1.bf16.msra.mxu0 %v726
    %1804 = vmatprep.subr.bf16.mxu0 %v731
    %1805 = vmatpush1.bf16.msra.mxu0 %v730
    %1806 = vmatprep.subr.bf16.mxu0 %v735
    %1807 = vmatpush1.bf16.msra.mxu0 %v734
    %1808 = vmatprep.subr.bf16.mxu0 0
    %1809 = vmatpush1.bf16.msra.mxu0 0
    %1810 = vmatprep.subr.bf16.mxu0 0
    %1811 = vmatpush1.bf16.msra.mxu0 0
    %1812 = vmatprep.subr.bf16.mxu0 0
    %1813 = vmatpush1.bf16.msra.mxu0 0
    %1814 = vmatprep.subr.bf16.mxu0 0
    %1815 = vmatpush1.bf16.msra.mxu0 0
    %1816 = vmatprep.subr.bf16.mxu0 0
    %1817 = vmatpush1.bf16.msra.mxu0 0
    %1818 = vmatprep.subr.bf16.mxu0 0
    %1819 = vmatpush1.bf16.msra.mxu0 0
    %1820 = vmatprep.subr.bf16.mxu0 0
    %1821 = vmatpush1.bf16.msra.mxu0 0
    %1822 = vmatprep.subr.bf16.mxu0 0
    %1823 = vmatpush1.bf16.msra.mxu0 0
    %1824 = vmatprep.mubr.bf16.mxu0 0
    %1825 = vmatmul.mubr.bf16.gmra.mrb[0].mxu0 %v1120
    %v1826 = vpop.f32.mrb[0].mxu0
    %v1827 = vadd.f32 0.0, %v1826
    %v1828 = vpop.f32.mrb[0].mxu0
    %v1829 = vadd.f32 0.0, %v1828
    %v1830 = vpop.f32.mrb[0].mxu0
    %v1831 = vpop.f32.mrb[0].mxu0
    %1832 = vdwg.mxu0
    %1833 = vmatprep.subr.bf16.mxu0 %v947
    %1834 = vmatpush1.bf16.msra.mxu0 %v946
    %1835 = vmatprep.subr.bf16.mxu0 %v951
    %1836 = vmatpush1.bf16.msra.mxu0 %v950
    %1837 = vmatprep.subr.bf16.mxu0 %v955
    %1838 = vmatpush1.bf16.msra.mxu0 %v954
    %1839 = vmatprep.subr.bf16.mxu0 %v959
    %1840 = vmatpush1.bf16.msra.mxu0 %v958
    %1841 = vmatprep.subr.bf16.mxu0 %v963
    %1842 = vmatpush1.bf16.msra.mxu0 %v962
    %1843 = vmatprep.subr.bf16.mxu0 %v967
    %1844 = vmatpush1.bf16.msra.mxu0 %v966
    %1845 = vmatprep.subr.bf16.mxu0 %v971
    %1846 = vmatpush1.bf16.msra.mxu0 %v970
    %1847 = vmatprep.subr.bf16.mxu0 %v975
    %1848 = vmatpush1.bf16.msra.mxu0 %v974
    %1849 = vmatprep.subr.bf16.mxu0 0
    %1850 = vmatpush1.bf16.msra.mxu0 0
    %1851 = vmatprep.subr.bf16.mxu0 0
    %1852 = vmatpush1.bf16.msra.mxu0 0
    %1853 = vmatprep.subr.bf16.mxu0 0
    %1854 = vmatpush1.bf16.msra.mxu0 0
    %1855 = vmatprep.subr.bf16.mxu0 0
    %1856 = vmatpush1.bf16.msra.mxu0 0
    %1857 = vmatprep.subr.bf16.mxu0 0
    %1858 = vmatpush1.bf16.msra.mxu0 0
    %1859 = vmatprep.subr.bf16.mxu0 0
    %1860 = vmatpush1.bf16.msra.mxu0 0
    %1861 = vmatprep.subr.bf16.mxu0 0
    %1862 = vmatpush1.bf16.msra.mxu0 0
    %1863 = vmatprep.subr.bf16.mxu0 0
    %1864 = vmatpush1.bf16.msra.mxu0 0
    %1865 = vmatprep.mubr.bf16.mxu0 0
    %1866 = vmatmul.mubr.bf16.gmra.mrb[0].mxu0 %v1750
    %v1867 = vpop.f32.mrb[0].mxu0
    %v1868 = vadd.f32 %v1786, %v1867
    %v1869 = vpop.f32.mrb[0].mxu0
    %v1870 = vadd.f32 %v1788, %v1869
    %v1871 = vpop.f32.mrb[0].mxu0
    %v1872 = vpop.f32.mrb[0].mxu0
    %1873 = vdwg.mxu0
    %1874 = vmatprep.subr.bf16.mxu0 %v949
    %1875 = vmatpush1.bf16.msra.mxu0 %v948
    %1876 = vmatprep.subr.bf16.mxu0 %v953
    %1877 = vmatpush1.bf16.msra.mxu0 %v952
    %1878 = vmatprep.subr.bf16.mxu0 %v957
    %1879 = vmatpush1.bf16.msra.mxu0 %v956
    %1880 = vmatprep.subr.bf16.mxu0 %v961
    %1881 = vmatpush1.bf16.msra.mxu0 %v960
    %1882 = vmatprep.subr.bf16.mxu0 %v965
    %1883 = vmatpush1.bf16.msra.mxu0 %v964
    %1884 = vmatprep.subr.bf16.mxu0 %v969
    %1885 = vmatpush1.bf16.msra.mxu0 %v968
    %1886 = vmatprep.subr.bf16.mxu0 %v973
    %1887 = vmatpush1.bf16.msra.mxu0 %v972
    %1888 = vmatprep.subr.bf16.mxu0 %v977
    %1889 = vmatpush1.bf16.msra.mxu0 %v976
    %1890 = vmatprep.subr.bf16.mxu0 0
    %1891 = vmatpush1.bf16.msra.mxu0 0
    %1892 = vmatprep.subr.bf16.mxu0 0
    %1893 = vmatpush1.bf16.msra.mxu0 0
    %1894 = vmatprep.subr.bf16.mxu0 0
    %1895 = vmatpush1.bf16.msra.mxu0 0
    %1896 = vmatprep.subr.bf16.mxu0 0
    %1897 = vmatpush1.bf16.msra.mxu0 0
    %1898 = vmatprep.subr.bf16.mxu0 0
    %1899 = vmatpush1.bf16.msra.mxu0 0
    %1900 = vmatprep.subr.bf16.mxu0 0
    %1901 = vmatpush1.bf16.msra.mxu0 0
    %1902 = vmatprep.subr.bf16.mxu0 0
    %1903 = vmatpush1.bf16.msra.mxu0 0
    %1904 = vmatprep.subr.bf16.mxu0 0
    %1905 = vmatpush1.bf16.msra.mxu0 0
    %1906 = vmatprep.mubr.bf16.mxu0 0
    %1907 = vmatmul.mubr.bf16.gmra.mrb[0].mxu0 %v1750
    %v1908 = vpop.f32.mrb[0].mxu0
    %v1909 = vadd.f32 %v1827, %v1908
    %v1910 = vpop.f32.mrb[0].mxu0
    %v1911 = vadd.f32 %v1829, %v1910
    %v1912 = vpop.f32.mrb[0].mxu0
    %v1913 = vpop.f32.mrb[0].mxu0
    %1914 = vdwg.mxu0
    %v1915 = vadd.f32 %v1868, %v291
    %v1916 = vadd.f32 %v1870, %v295
    %v1917 = vadd.f32 %v1909, %v299
    %v1918 = vadd.f32 %v1911, %v303
    %v1919 = vxor.u32 %v1915, 2147483648
    %v1920 = vxor.u32 %v1916, 2147483648
    %v1921 = vxor.u32 %v1917, 2147483648
    %v1922 = vmul.f32 %v1919, 1.442695
    %v1923 = vpow.pop %v1922
    %v1924 = vmul.f32 %v1920, 1.442695
    %v1925 = vpow.pop %v1924
    %v1926 = vmul.f32 %v1921, 1.442695
    %v1927 = vpow.pop %v1926
    %v1928 = vadd.f32 %v1923, 1.0
    %v1929 = vadd.f32 %v1925, 1.0
    %v1930 = vadd.f32 %v1927, 1.0
    %v1931 = vrcp.pop %v1928
    %v1932 = vmul.f32 1.0, %v1931
    %v1933 = vrcp.pop %v1929
    %v1934 = vmul.f32 1.0, %v1933
    %v1935 = vrcp.pop %v1930
    %v1936 = vmul.f32 1.0, %v1935
    %v1937 = vtanh.pop %v1918
    %v1938 = vmul.f32 %v1934, %v1117
    %v1939 = vmul.f32 %v1932, %v1937
    %v1940 = vadd.f32 %v1938, %v1939
    %v1941 = vtanh.pop %v1940
    %v1942 = vmul.f32 %v1936, %v1941
    %v1943 = vpack.c.bf16 %v1942, %v1942
    %v1944 = vpack.c.bf16 %v1633, %v1633
    %1945 = vmatprep.subr.bf16.mxu0 %v1219
    %1946 = vmatpush1.bf16.msra.mxu0 %v1218
    %1947 = vmatprep.subr.bf16.mxu0 %v1223
    %1948 = vmatpush1.bf16.msra.mxu0 %v1222
    %1949 = vmatprep.subr.bf16.mxu0 %v1227
    %1950 = vmatpush1.bf16.msra.mxu0 %v1226
    %1951 = vmatprep.subr.bf16.mxu0 %v1231
    %1952 = vmatpush1.bf16.msra.mxu0 %v1230
    %1953 = vmatprep.subr.bf16.mxu0 %v1235
    %1954 = vmatpush1.bf16.msra.mxu0 %v1234
    %1955 = vmatprep.subr.bf16.mxu0 %v1239
    %1956 = vmatpush1.bf16.msra.mxu0 %v1238
    %1957 = vmatprep.subr.bf16.mxu0 %v1243
    %1958 = vmatpush1.bf16.msra.mxu0 %v1242
    %1959 = vmatprep.subr.bf16.mxu0 %v1247
    %1960 = vmatpush1.bf16.msra.mxu0 %v1246
    %1961 = vmatprep.subr.bf16.mxu0 0
    %1962 = vmatpush1.bf16.msra.mxu0 0
    %1963 = vmatprep.subr.bf16.mxu0 0
    %1964 = vmatpush1.bf16.msra.mxu0 0
    %1965 = vmatprep.subr.bf16.mxu0 0
    %1966 = vmatpush1.bf16.msra.mxu0 0
    %1967 = vmatprep.subr.bf16.mxu0 0
    %1968 = vmatpush1.bf16.msra.mxu0 0
    %1969 = vmatprep.subr.bf16.mxu0 0
    %1970 = vmatpush1.bf16.msra.mxu0 0
    %1971 = vmatprep.subr.bf16.mxu0 0
    %1972 = vmatpush1.bf16.msra.mxu0 0
    %1973 = vmatprep.subr.bf16.mxu0 0
    %1974 = vmatpush1.bf16.msra.mxu0 0
    %1975 = vmatprep.subr.bf16.mxu0 0
    %1976 = vmatpush1.bf16.msra.mxu0 0
    %1977 = vmatprep.mubr.bf16.mxu0 0
    %1978 = vmatmul.mubr.bf16.gmra.mrb[0].mxu0 %v1944
    %v1979 = vpop.f32.mrb[0].mxu0
    %v1980 = vadd.f32 0.0, %v1979
    %v1981 = vpop.f32.mrb[0].mxu0
    %v1982 = vadd.f32 0.0, %v1981
    %v1983 = vpop.f32.mrb[0].mxu0
    %v1984 = vpop.f32.mrb[0].mxu0
    %1985 = vdwg.mxu0
    %1986 = vmatprep.subr.bf16.mxu0 %v1221
    %1987 = vmatpush1.bf16.msra.mxu0 %v1220
    %1988 = vmatprep.subr.bf16.mxu0 %v1225
    %1989 = vmatpush1.bf16.msra.mxu0 %v1224
    %1990 = vmatprep.subr.bf16.mxu0 %v1229
    %1991 = vmatpush1.bf16.msra.mxu0 %v1228
    %1992 = vmatprep.subr.bf16.mxu0 %v1233
    %1993 = vmatpush1.bf16.msra.mxu0 %v1232
    %1994 = vmatprep.subr.bf16.mxu0 %v1237
    %1995 = vmatpush1.bf16.msra.mxu0 %v1236
    %1996 = vmatprep.subr.bf16.mxu0 %v1241
    %1997 = vmatpush1.bf16.msra.mxu0 %v1240
    %1998 = vmatprep.subr.bf16.mxu0 %v1245
    %1999 = vmatpush1.bf16.msra.mxu0 %v1244
    %2000 = vmatprep.subr.bf16.mxu0 %v1249
    %2001 = vmatpush1.bf16.msra.mxu0 %v1248
    %2002 = vmatprep.subr.bf16.mxu0 0
    %2003 = vmatpush1.bf16.msra.mxu0 0
    %2004 = vmatprep.subr.bf16.mxu0 0
    %2005 = vmatpush1.bf16.msra.mxu0 0
    %2006 = vmatprep.subr.bf16.mxu0 0
    %2007 = vmatpush1.bf16.msra.mxu0 0
    %2008 = vmatprep.subr.bf16.mxu0 0
    %2009 = vmatpush1.bf16.msra.mxu0 0
    %2010 = vmatprep.subr.bf16.mxu0 0
    %2011 = vmatpush1.bf16.msra.mxu0 0
    %2012 = vmatprep.subr.bf16.mxu0 0
    %2013 = vmatpush1.bf16.msra.mxu0 0
    %2014 = vmatprep.subr.bf16.mxu0 0
    %2015 = vmatpush1.bf16.msra.mxu0 0
    %2016 = vmatprep.subr.bf16.mxu0 0
    %2017 = vmatpush1.bf16.msra.mxu0 0
    %2018 = vmatprep.mubr.bf16.mxu0 0
    %2019 = vmatmul.mubr.bf16.gmra.mrb[0].mxu0 %v1944
    %v2020 = vpop.f32.mrb[0].mxu0
    %v2021 = vadd.f32 0.0, %v2020
    %v2022 = vpop.f32.mrb[0].mxu0
    %v2023 = vadd.f32 0.0, %v2022
    %v2024 = vpop.f32.mrb[0].mxu0
    %v2025 = vpop.f32.mrb[0].mxu0
    %2026 = vdwg.mxu0
    %2027 = vmatprep.subr.bf16.mxu0 %v1461
    %2028 = vmatpush1.bf16.msra.mxu0 %v1460
    %2029 = vmatprep.subr.bf16.mxu0 %v1465
    %2030 = vmatpush1.bf16.msra.mxu0 %v1464
    %2031 = vmatprep.subr.bf16.mxu0 %v1469
    %2032 = vmatpush1.bf16.msra.mxu0 %v1468
    %2033 = vmatprep.subr.bf16.mxu0 %v1473
    %2034 = vmatpush1.bf16.msra.mxu0 %v1472
    %2035 = vmatprep.subr.bf16.mxu0 %v1477
    %2036 = vmatpush1.bf16.msra.mxu0 %v1476
    %2037 = vmatprep.subr.bf16.mxu0 %v1481
    %2038 = vmatpush1.bf16.msra.mxu0 %v1480
    %2039 = vmatprep.subr.bf16.mxu0 %v1485
    %2040 = vmatpush1.bf16.msra.mxu0 %v1484
    %2041 = vmatprep.subr.bf16.mxu0 %v1489
    %2042 = vmatpush1.bf16.msra.mxu0 %v1488
    %2043 = vmatprep.subr.bf16.mxu0 0
    %2044 = vmatpush1.bf16.msra.mxu0 0
    %2045 = vmatprep.subr.bf16.mxu0 0
    %2046 = vmatpush1.bf16.msra.mxu0 0
    %2047 = vmatprep.subr.bf16.mxu0 0
    %2048 = vmatpush1.bf16.msra.mxu0 0
    %2049 = vmatprep.subr.bf16.mxu0 0
    %2050 = vmatpush1.bf16.msra.mxu0 0
    %2051 = vmatprep.subr.bf16.mxu0 0
    %2052 = vmatpush1.bf16.msra.mxu0 0
    %2053 = vmatprep.subr.bf16.mxu0 0
    %2054 = vmatpush1.bf16.msra.mxu0 0
    %2055 = vmatprep.subr.bf16.mxu0 0
    %2056 = vmatpush1.bf16.msra.mxu0 0
    %2057 = vmatprep.subr.bf16.mxu0 0
    %2058 = vmatpush1.bf16.msra.mxu0 0
    %2059 = vmatprep.mubr.bf16.mxu0 0
    %2060 = vmatmul.mubr.bf16.gmra.mrb[0].mxu0 %v1943
    %v2061 = vpop.f32.mrb[0].mxu0
    %v2062 = vadd.f32 %v1980, %v2061
    %v2063 = vpop.f32.mrb[0].mxu0
    %v2064 = vadd.f32 %v1982, %v2063
    %v2065 = vpop.f32.mrb[0].mxu0
    %v2066 = vpop.f32.mrb[0].mxu0
    %2067 = vdwg.mxu0
    %2068 = vmatprep.subr.bf16.mxu0 %v1463
    %2069 = vmatpush1.bf16.msra.mxu0 %v1462
    %2070 = vmatprep.subr.bf16.mxu0 %v1467
    %2071 = vmatpush1.bf16.msra.mxu0 %v1466
    %2072 = vmatprep.subr.bf16.mxu0 %v1471
    %2073 = vmatpush1.bf16.msra.mxu0 %v1470
    %2074 = vmatprep.subr.bf16.mxu0 %v1475
    %2075 = vmatpush1.bf16.msra.mxu0 %v1474
    %2076 = vmatprep.subr.bf16.mxu0 %v1479
    %2077 = vmatpush1.bf16.msra.mxu0 %v1478
    %2078 = vmatprep.subr.bf16.mxu0 %v1483
    %2079 = vmatpush1.bf16.msra.mxu0 %v1482
    %2080 = vmatprep.subr.bf16.mxu0 %v1487
    %2081 = vmatpush1.bf16.msra.mxu0 %v1486
    %2082 = vmatprep.subr.bf16.mxu0 %v1491
    %2083 = vmatpush1.bf16.msra.mxu0 %v1490
    %2084 = vmatprep.subr.bf16.mxu0 0
    %2085 = vmatpush1.bf16.msra.mxu0 0
    %2086 = vmatprep.subr.bf16.mxu0 0
    %2087 = vmatpush1.bf16.msra.mxu0 0
    %2088 = vmatprep.subr.bf16.mxu0 0
    %2089 = vmatpush1.bf16.msra.mxu0 0
    %2090 = vmatprep.subr.bf16.mxu0 0
    %2091 = vmatpush1.bf16.msra.mxu0 0
    %2092 = vmatprep.subr.bf16.mxu0 0
    %2093 = vmatpush1.bf16.msra.mxu0 0
    %2094 = vmatprep.subr.bf16.mxu0 0
    %2095 = vmatpush1.bf16.msra.mxu0 0
    %2096 = vmatprep.subr.bf16.mxu0 0
    %2097 = vmatpush1.bf16.msra.mxu0 0
    %2098 = vmatprep.subr.bf16.mxu0 0
    %2099 = vmatpush1.bf16.msra.mxu0 0
    %2100 = vmatprep.mubr.bf16.mxu0 0
    %2101 = vmatmul.mubr.bf16.gmra.mrb[0].mxu0 %v1943
    %v2102 = vpop.f32.mrb[0].mxu0
    %v2103 = vadd.f32 %v2021, %v2102
    %v2104 = vpop.f32.mrb[0].mxu0
    %v2105 = vadd.f32 %v2023, %v2104
    %v2106 = vpop.f32.mrb[0].mxu0
    %v2107 = vpop.f32.mrb[0].mxu0
    %2108 = vdwg.mxu0
    %v2109 = vadd.f32 %v2062, %v314
    %v2110 = vadd.f32 %v2064, %v318
    %v2111 = vadd.f32 %v2103, %v322
    %v2112 = vadd.f32 %v2105, %v326
    %v2113 = vxor.u32 %v2109, 2147483648
    %v2114 = vxor.u32 %v2110, 2147483648
    %v2115 = vxor.u32 %v2111, 2147483648
    %v2116 = vmul.f32 %v2113, 1.442695
    %v2117 = vpow.pop %v2116
    %v2118 = vmul.f32 %v2114, 1.442695
    %v2119 = vpow.pop %v2118
    %v2120 = vmul.f32 %v2115, 1.442695
    %v2121 = vpow.pop %v2120
    %v2122 = vadd.f32 %v2117, 1.0
    %v2123 = vadd.f32 %v2119, 1.0
    %v2124 = vadd.f32 %v2121, 1.0
    %v2125 = vrcp.pop %v2122
    %v2126 = vmul.f32 1.0, %v2125
    %v2127 = vrcp.pop %v2123
    %v2128 = vmul.f32 1.0, %v2127
    %v2129 = vrcp.pop %v2124
    %v2130 = vmul.f32 1.0, %v2129
    %v2131 = vtanh.pop %v2112
    %v2132 = vmul.f32 %v2128, %v1631
    %v2133 = vmul.f32 %v2126, %v2131
    %v2134 = vadd.f32 %v2132, %v2133
    %v2135 = vtanh.pop %v2134
    %v2136 = vmul.f32 %v2130, %v2135
    %s2137 = scalar_lea.vmem [#allocation11], 8
    %2138 = vst [vmem:[%s2137] sm:$0xff] %v2136
    %s2139 = scalar_lea.vmem [#allocation2], 64
    %v2140 = vld [vmem:[%s2139] sm:$0xff]
    %v2141 = vld [vmem:[%s2139 + $0x8] sm:$0xff]
    %v2142 = vld [vmem:[%s2139 + $0x10] sm:$0xff]
    %v2143 = vld [vmem:[%s2139 + $0x18] sm:$0xff]
    %2144 = vmatprep.subr.bf16.mxu0 %v433
    %2145 = vmatpush1.bf16.msra.mxu0 %v432
    %2146 = vmatprep.subr.bf16.mxu0 %v437
    %2147 = vmatpush1.bf16.msra.mxu0 %v436
    %2148 = vmatprep.subr.bf16.mxu0 %v441
    %2149 = vmatpush1.bf16.msra.mxu0 %v440
    %2150 = vmatprep.subr.bf16.mxu0 %v445
    %2151 = vmatpush1.bf16.msra.mxu0 %v444
    %2152 = vmatprep.subr.bf16.mxu0 %v449
    %2153 = vmatpush1.bf16.msra.mxu0 %v448
    %2154 = vmatprep.subr.bf16.mxu0 %v453
    %2155 = vmatpush1.bf16.msra.mxu0 %v452
    %2156 = vmatprep.subr.bf16.mxu0 %v457
    %2157 = vmatpush1.bf16.msra.mxu0 %v456
    %2158 = vmatprep.subr.bf16.mxu0 %v461
    %2159 = vmatpush1.bf16.msra.mxu0 %v460
    %2160 = vmatprep.subr.bf16.mxu0 0
    %2161 = vmatpush1.bf16.msra.mxu0 0
    %2162 = vmatprep.subr.bf16.mxu0 0
    %2163 = vmatpush1.bf16.msra.mxu0 0
    %2164 = vmatprep.subr.bf16.mxu0 0
    %2165 = vmatpush1.bf16.msra.mxu0 0
    %2166 = vmatprep.subr.bf16.mxu0 0
    %2167 = vmatpush1.bf16.msra.mxu0 0
    %2168 = vmatprep.subr.bf16.mxu0 0
    %2169 = vmatpush1.bf16.msra.mxu0 0
    %2170 = vmatprep.subr.bf16.mxu0 0
    %2171 = vmatpush1.bf16.msra.mxu0 0
    %2172 = vmatprep.subr.bf16.mxu0 0
    %2173 = vmatpush1.bf16.msra.mxu0 0
    %2174 = vmatprep.subr.bf16.mxu0 0
    %2175 = vmatpush1.bf16.msra.mxu0 0
    %2176 = vmatprep.mubr.bf16.mxu0 0
    %2177 = vmatmul.mubr.bf16.gmra.mrb[0].mxu0 %v1750
    %v2178 = vpop.f32.mrb[0].mxu0
    %v2179 = vadd.f32 0.0, %v2178
    %v2180 = vpop.f32.mrb[0].mxu0
    %v2181 = vadd.f32 0.0, %v2180
    %v2182 = vpop.f32.mrb[0].mxu0
    %v2183 = vpop.f32.mrb[0].mxu0
    %2184 = vdwg.mxu0
    %2185 = vmatprep.subr.bf16.mxu0 %v435
    %2186 = vmatpush1.bf16.msra.mxu0 %v434
    %2187 = vmatprep.subr.bf16.mxu0 %v439
    %2188 = vmatpush1.bf16.msra.mxu0 %v438
    %2189 = vmatprep.subr.bf16.mxu0 %v443
    %2190 = vmatpush1.bf16.msra.mxu0 %v442
    %2191 = vmatprep.subr.bf16.mxu0 %v447
    %2192 = vmatpush1.bf16.msra.mxu0 %v446
    %2193 = vmatprep.subr.bf16.mxu0 %v451
    %2194 = vmatpush1.bf16.msra.mxu0 %v450
    %2195 = vmatprep.subr.bf16.mxu0 %v455
    %2196 = vmatpush1.bf16.msra.mxu0 %v454
    %2197 = vmatprep.subr.bf16.mxu0 %v459
    %2198 = vmatpush1.bf16.msra.mxu0 %v458
    %2199 = vmatprep.subr.bf16.mxu0 %v463
    %2200 = vmatpush1.bf16.msra.mxu0 %v462
    %2201 = vmatprep.subr.bf16.mxu0 0
    %2202 = vmatpush1.bf16.msra.mxu0 0
    %2203 = vmatprep.subr.bf16.mxu0 0
    %2204 = vmatpush1.bf16.msra.mxu0 0
    %2205 = vmatprep.subr.bf16.mxu0 0
    %2206 = vmatpush1.bf16.msra.mxu0 0
    %2207 = vmatprep.subr.bf16.mxu0 0
    %2208 = vmatpush1.bf16.msra.mxu0 0
    %2209 = vmatprep.subr.bf16.mxu0 0
    %2210 = vmatpush1.bf16.msra.mxu0 0
    %2211 = vmatprep.subr.bf16.mxu0 0
    %2212 = vmatpush1.bf16.msra.mxu0 0
    %2213 = vmatprep.subr.bf16.mxu0 0
    %2214 = vmatpush1.bf16.msra.mxu0 0
    %2215 = vmatprep.subr.bf16.mxu0 0
    %2216 = vmatpush1.bf16.msra.mxu0 0
    %2217 = vmatprep.mubr.bf16.mxu0 0
    %2218 = vmatmul.mubr.bf16.gmra.mrb[0].mxu0 %v1750
    %v2219 = vpop.f32.mrb[0].mxu0
    %v2220 = vadd.f32 0.0, %v2219
    %v2221 = vpop.f32.mrb[0].mxu0
    %v2222 = vadd.f32 0.0, %v2221
    %v2223 = vpop.f32.mrb[0].mxu0
    %v2224 = vpop.f32.mrb[0].mxu0
    %2225 = vdwg.mxu0
    %v2226 = vadd.f32 %v2140, %v2179
    %v2227 = vadd.f32 %v2141, %v2181
    %v2228 = vadd.f32 %v2142, %v2220
    %v2229 = vadd.f32 %v2143, %v2222
    %v2230 = vxor.u32 %v2226, 2147483648
    %v2231 = vxor.u32 %v2227, 2147483648
    %v2232 = vxor.u32 %v2228, 2147483648
    %v2233 = vmul.f32 %v2230, 1.442695
    %v2234 = vpow.pop %v2233
    %v2235 = vmul.f32 %v2231, 1.442695
    %v2236 = vpow.pop %v2235
    %v2237 = vmul.f32 %v2232, 1.442695
    %v2238 = vpow.pop %v2237
    %v2239 = vadd.f32 %v2234, 1.0
    %v2240 = vadd.f32 %v2236, 1.0
    %v2241 = vadd.f32 %v2238, 1.0
    %v2242 = vrcp.pop %v2239
    %v2243 = vmul.f32 1.0, %v2242
    %v2244 = vrcp.pop %v2240
    %v2245 = vmul.f32 1.0, %v2244
    %v2246 = vrcp.pop %v2241
    %v2247 = vmul.f32 1.0, %v2246
    %v2248 = vtanh.pop %v2229
    %v2249 = vmul.f32 %v2245, %v1747
    %v2250 = vmul.f32 %v2243, %v2248
    %v2251 = vadd.f32 %v2249, %v2250
    %v2252 = vtanh.pop %v2251
    %v2253 = vmul.f32 %v2247, %v2252
    %v2254 = vpack.c.bf16 %v2253, %v2253
    %2255 = vmatprep.subr.bf16.mxu0 %v705
    %2256 = vmatpush1.bf16.msra.mxu0 %v704
    %2257 = vmatprep.subr.bf16.mxu0 %v709
    %2258 = vmatpush1.bf16.msra.mxu0 %v708
    %2259 = vmatprep.subr.bf16.mxu0 %v713
    %2260 = vmatpush1.bf16.msra.mxu0 %v712
    %2261 = vmatprep.subr.bf16.mxu0 %v717
    %2262 = vmatpush1.bf16.msra.mxu0 %v716
    %2263 = vmatprep.subr.bf16.mxu0 %v721
    %2264 = vmatpush1.bf16.msra.mxu0 %v720
    %2265 = vmatprep.subr.bf16.mxu0 %v725
    %2266 = vmatpush1.bf16.msra.mxu0 %v724
    %2267 = vmatprep.subr.bf16.mxu0 %v729
    %2268 = vmatpush1.bf16.msra.mxu0 %v728
    %2269 = vmatprep.subr.bf16.mxu0 %v733
    %2270 = vmatpush1.bf16.msra.mxu0 %v732
    %2271 = vmatprep.subr.bf16.mxu0 0
    %2272 = vmatpush1.bf16.msra.mxu0 0
    %2273 = vmatprep.subr.bf16.mxu0 0
    %2274 = vmatpush1.bf16.msra.mxu0 0
    %2275 = vmatprep.subr.bf16.mxu0 0
    %2276 = vmatpush1.bf16.msra.mxu0 0
    %2277 = vmatprep.subr.bf16.mxu0 0
    %2278 = vmatpush1.bf16.msra.mxu0 0
    %2279 = vmatprep.subr.bf16.mxu0 0
    %2280 = vmatpush1.bf16.msra.mxu0 0
    %2281 = vmatprep.subr.bf16.mxu0 0
    %2282 = vmatpush1.bf16.msra.mxu0 0
    %2283 = vmatprep.subr.bf16.mxu0 0
    %2284 = vmatpush1.bf16.msra.mxu0 0
    %2285 = vmatprep.subr.bf16.mxu0 0
    %2286 = vmatpush1.bf16.msra.mxu0 0
    %2287 = vmatprep.mubr.bf16.mxu0 0
    %2288 = vmatmul.mubr.bf16.gmra.mrb[0].mxu0 %v1943
    %v2289 = vpop.f32.mrb[0].mxu0
    %v2290 = vadd.f32 0.0, %v2289
    %v2291 = vpop.f32.mrb[0].mxu0
    %v2292 = vadd.f32 0.0, %v2291
    %v2293 = vpop.f32.mrb[0].mxu0
    %v2294 = vpop.f32.mrb[0].mxu0
    %2295 = vdwg.mxu0
    %2296 = vmatprep.subr.bf16.mxu0 %v707
    %2297 = vmatpush1.bf16.msra.mxu0 %v706
    %2298 = vmatprep.subr.bf16.mxu0 %v711
    %2299 = vmatpush1.bf16.msra.mxu0 %v710
    %2300 = vmatprep.subr.bf16.mxu0 %v715
    %2301 = vmatpush1.bf16.msra.mxu0 %v714
    %2302 = vmatprep.subr.bf16.mxu0 %v719
    %2303 = vmatpush1.bf16.msra.mxu0 %v718
    %2304 = vmatprep.subr.bf16.mxu0 %v723
    %2305 = vmatpush1.bf16.msra.mxu0 %v722
    %2306 = vmatprep.subr.bf16.mxu0 %v727
    %2307 = vmatpush1.bf16.msra.mxu0 %v726
    %2308 = vmatprep.subr.bf16.mxu0 %v731
    %2309 = vmatpush1.bf16.msra.mxu0 %v730
    %2310 = vmatprep.subr.bf16.mxu0 %v735
    %2311 = vmatpush1.bf16.msra.mxu0 %v734
    %2312 = vmatprep.subr.bf16.mxu0 0
    %2313 = vmatpush1.bf16.msra.mxu0 0
    %2314 = vmatprep.subr.bf16.mxu0 0
    %2315 = vmatpush1.bf16.msra.mxu0 0
    %2316 = vmatprep.subr.bf16.mxu0 0
    %2317 = vmatpush1.bf16.msra.mxu0 0
    %2318 = vmatprep.subr.bf16.mxu0 0
    %2319 = vmatpush1.bf16.msra.mxu0 0
    %2320 = vmatprep.subr.bf16.mxu0 0
    %2321 = vmatpush1.bf16.msra.mxu0 0
    %2322 = vmatprep.subr.bf16.mxu0 0
    %2323 = vmatpush1.bf16.msra.mxu0 0
    %2324 = vmatprep.subr.bf16.mxu0 0
    %2325 = vmatpush1.bf16.msra.mxu0 0
    %2326 = vmatprep.subr.bf16.mxu0 0
    %2327 = vmatpush1.bf16.msra.mxu0 0
    %2328 = vmatprep.mubr.bf16.mxu0 0
    %2329 = vmatmul.mubr.bf16.gmra.mrb[0].mxu0 %v1943
    %v2330 = vpop.f32.mrb[0].mxu0
    %v2331 = vadd.f32 0.0, %v2330
    %v2332 = vpop.f32.mrb[0].mxu0
    %v2333 = vadd.f32 0.0, %v2332
    %v2334 = vpop.f32.mrb[0].mxu0
    %v2335 = vpop.f32.mrb[0].mxu0
    %2336 = vdwg.mxu0
    %2337 = vmatprep.subr.bf16.mxu0 %v947
    %2338 = vmatpush1.bf16.msra.mxu0 %v946
    %2339 = vmatprep.subr.bf16.mxu0 %v951
    %2340 = vmatpush1.bf16.msra.mxu0 %v950
    %2341 = vmatprep.subr.bf16.mxu0 %v955
    %2342 = vmatpush1.bf16.msra.mxu0 %v954
    %2343 = vmatprep.subr.bf16.mxu0 %v959
    %2344 = vmatpush1.bf16.msra.mxu0 %v958
    %2345 = vmatprep.subr.bf16.mxu0 %v963
    %2346 = vmatpush1.bf16.msra.mxu0 %v962
    %2347 = vmatprep.subr.bf16.mxu0 %v967
    %2348 = vmatpush1.bf16.msra.mxu0 %v966
    %2349 = vmatprep.subr.bf16.mxu0 %v971
    %2350 = vmatpush1.bf16.msra.mxu0 %v970
    %2351 = vmatprep.subr.bf16.mxu0 %v975
    %2352 = vmatpush1.bf16.msra.mxu0 %v974
    %2353 = vmatprep.subr.bf16.mxu0 0
    %2354 = vmatpush1.bf16.msra.mxu0 0
    %2355 = vmatprep.subr.bf16.mxu0 0
    %2356 = vmatpush1.bf16.msra.mxu0 0
    %2357 = vmatprep.subr.bf16.mxu0 0
    %2358 = vmatpush1.bf16.msra.mxu0 0
    %2359 = vmatprep.subr.bf16.mxu0 0
    %2360 = vmatpush1.bf16.msra.mxu0 0
    %2361 = vmatprep.subr.bf16.mxu0 0
    %2362 = vmatpush1.bf16.msra.mxu0 0
    %2363 = vmatprep.subr.bf16.mxu0 0
    %2364 = vmatpush1.bf16.msra.mxu0 0
    %2365 = vmatprep.subr.bf16.mxu0 0
    %2366 = vmatpush1.bf16.msra.mxu0 0
    %2367 = vmatprep.subr.bf16.mxu0 0
    %2368 = vmatpush1.bf16.msra.mxu0 0
    %2369 = vmatprep.mubr.bf16.mxu0 0
    %2370 = vmatmul.mubr.bf16.gmra.mrb[0].mxu0 %v2254
    %v2371 = vpop.f32.mrb[0].mxu0
    %v2372 = vadd.f32 %v2290, %v2371
    %v2373 = vpop.f32.mrb[0].mxu0
    %v2374 = vadd.f32 %v2292, %v2373
    %v2375 = vpop.f32.mrb[0].mxu0
    %v2376 = vpop.f32.mrb[0].mxu0
    %2377 = vdwg.mxu0
    %2378 = vmatprep.subr.bf16.mxu0 %v949
    %2379 = vmatpush1.bf16.msra.mxu0 %v948
    %2380 = vmatprep.subr.bf16.mxu0 %v953
    %2381 = vmatpush1.bf16.msra.mxu0 %v952
    %2382 = vmatprep.subr.bf16.mxu0 %v957
    %2383 = vmatpush1.bf16.msra.mxu0 %v956
    %2384 = vmatprep.subr.bf16.mxu0 %v961
    %2385 = vmatpush1.bf16.msra.mxu0 %v960
    %2386 = vmatprep.subr.bf16.mxu0 %v965
    %2387 = vmatpush1.bf16.msra.mxu0 %v964
    %2388 = vmatprep.subr.bf16.mxu0 %v969
    %2389 = vmatpush1.bf16.msra.mxu0 %v968
    %2390 = vmatprep.subr.bf16.mxu0 %v973
    %2391 = vmatpush1.bf16.msra.mxu0 %v972
    %2392 = vmatprep.subr.bf16.mxu0 %v977
    %2393 = vmatpush1.bf16.msra.mxu0 %v976
    %2394 = vmatprep.subr.bf16.mxu0 0
    %2395 = vmatpush1.bf16.msra.mxu0 0
    %2396 = vmatprep.subr.bf16.mxu0 0
    %2397 = vmatpush1.bf16.msra.mxu0 0
    %2398 = vmatprep.subr.bf16.mxu0 0
    %2399 = vmatpush1.bf16.msra.mxu0 0
    %2400 = vmatprep.subr.bf16.mxu0 0
    %2401 = vmatpush1.bf16.msra.mxu0 0
    %2402 = vmatprep.subr.bf16.mxu0 0
    %2403 = vmatpush1.bf16.msra.mxu0 0
    %2404 = vmatprep.subr.bf16.mxu0 0
    %2405 = vmatpush1.bf16.msra.mxu0 0
    %2406 = vmatprep.subr.bf16.mxu0 0
    %2407 = vmatpush1.bf16.msra.mxu0 0
    %2408 = vmatprep.subr.bf16.mxu0 0
    %2409 = vmatpush1.bf16.msra.mxu0 0
    %2410 = vmatprep.mubr.bf16.mxu0 0
    %2411 = vmatmul.mubr.bf16.gmra.mrb[0].mxu0 %v2254
    %v2412 = vpop.f32.mrb[0].mxu0
    %v2413 = vadd.f32 %v2331, %v2412
    %v2414 = vpop.f32.mrb[0].mxu0
    %v2415 = vadd.f32 %v2333, %v2414
    %v2416 = vpop.f32.mrb[0].mxu0
    %v2417 = vpop.f32.mrb[0].mxu0
    %2418 = vdwg.mxu0
    %v2419 = vadd.f32 %v2372, %v291
    %v2420 = vadd.f32 %v2374, %v295
    %v2421 = vadd.f32 %v2413, %v299
    %v2422 = vadd.f32 %v2415, %v303
    %v2423 = vxor.u32 %v2419, 2147483648
    %v2424 = vxor.u32 %v2420, 2147483648
    %v2425 = vxor.u32 %v2421, 2147483648
    %v2426 = vmul.f32 %v2423, 1.442695
    %v2427 = vpow.pop %v2426
    %v2428 = vmul.f32 %v2424, 1.442695
    %v2429 = vpow.pop %v2428
    %v2430 = vmul.f32 %v2425, 1.442695
    %v2431 = vpow.pop %v2430
    %v2432 = vadd.f32 %v2427, 1.0
    %v2433 = vadd.f32 %v2429, 1.0
    %v2434 = vadd.f32 %v2431, 1.0
    %v2435 = vrcp.pop %v2432
    %v2436 = vmul.f32 1.0, %v2435
    %v2437 = vrcp.pop %v2433
    %v2438 = vmul.f32 1.0, %v2437
    %v2439 = vrcp.pop %v2434
    %v2440 = vmul.f32 1.0, %v2439
    %v2441 = vtanh.pop %v2422
    %v2442 = vmul.f32 %v2438, %v1940
    %v2443 = vmul.f32 %v2436, %v2441
    %v2444 = vadd.f32 %v2442, %v2443
    %v2445 = vtanh.pop %v2444
    %v2446 = vmul.f32 %v2440, %v2445
    %v2447 = vpack.c.bf16 %v2446, %v2446
    %v2448 = vpack.c.bf16 %v2136, %v2136
    %2449 = vmatprep.subr.bf16.mxu0 %v1219
    %2450 = vmatpush1.bf16.msra.mxu0 %v1218
    %2451 = vmatprep.subr.bf16.mxu0 %v1223
    %2452 = vmatpush1.bf16.msra.mxu0 %v1222
    %2453 = vmatprep.subr.bf16.mxu0 %v1227
    %2454 = vmatpush1.bf16.msra.mxu0 %v1226
    %2455 = vmatprep.subr.bf16.mxu0 %v1231
    %2456 = vmatpush1.bf16.msra.mxu0 %v1230
    %2457 = vmatprep.subr.bf16.mxu0 %v1235
    %2458 = vmatpush1.bf16.msra.mxu0 %v1234
    %2459 = vmatprep.subr.bf16.mxu0 %v1239
    %2460 = vmatpush1.bf16.msra.mxu0 %v1238
    %2461 = vmatprep.subr.bf16.mxu0 %v1243
    %2462 = vmatpush1.bf16.msra.mxu0 %v1242
    %2463 = vmatprep.subr.bf16.mxu0 %v1247
    %2464 = vmatpush1.bf16.msra.mxu0 %v1246
    %2465 = vmatprep.subr.bf16.mxu0 0
    %2466 = vmatpush1.bf16.msra.mxu0 0
    %2467 = vmatprep.subr.bf16.mxu0 0
    %2468 = vmatpush1.bf16.msra.mxu0 0
    %2469 = vmatprep.subr.bf16.mxu0 0
    %2470 = vmatpush1.bf16.msra.mxu0 0
    %2471 = vmatprep.subr.bf16.mxu0 0
    %2472 = vmatpush1.bf16.msra.mxu0 0
    %2473 = vmatprep.subr.bf16.mxu0 0
    %2474 = vmatpush1.bf16.msra.mxu0 0
    %2475 = vmatprep.subr.bf16.mxu0 0
    %2476 = vmatpush1.bf16.msra.mxu0 0
    %2477 = vmatprep.subr.bf16.mxu0 0
    %2478 = vmatpush1.bf16.msra.mxu0 0
    %2479 = vmatprep.subr.bf16.mxu0 0
    %2480 = vmatpush1.bf16.msra.mxu0 0
    %2481 = vmatprep.mubr.bf16.mxu0 0
    %2482 = vmatmul.mubr.bf16.gmra.mrb[0].mxu0 %v2448
    %v2483 = vpop.f32.mrb[0].mxu0
    %v2484 = vadd.f32 0.0, %v2483
    %v2485 = vpop.f32.mrb[0].mxu0
    %v2486 = vadd.f32 0.0, %v2485
    %v2487 = vpop.f32.mrb[0].mxu0
    %v2488 = vpop.f32.mrb[0].mxu0
    %2489 = vdwg.mxu0
    %2490 = vmatprep.subr.bf16.mxu0 %v1221
    %2491 = vmatpush1.bf16.msra.mxu0 %v1220
    %2492 = vmatprep.subr.bf16.mxu0 %v1225
    %2493 = vmatpush1.bf16.msra.mxu0 %v1224
    %2494 = vmatprep.subr.bf16.mxu0 %v1229
    %2495 = vmatpush1.bf16.msra.mxu0 %v1228
    %2496 = vmatprep.subr.bf16.mxu0 %v1233
    %2497 = vmatpush1.bf16.msra.mxu0 %v1232
    %2498 = vmatprep.subr.bf16.mxu0 %v1237
    %2499 = vmatpush1.bf16.msra.mxu0 %v1236
    %2500 = vmatprep.subr.bf16.mxu0 %v1241
    %2501 = vmatpush1.bf16.msra.mxu0 %v1240
    %2502 = vmatprep.subr.bf16.mxu0 %v1245
    %2503 = vmatpush1.bf16.msra.mxu0 %v1244
    %2504 = vmatprep.subr.bf16.mxu0 %v1249
    %2505 = vmatpush1.bf16.msra.mxu0 %v1248
    %2506 = vmatprep.subr.bf16.mxu0 0
    %2507 = vmatpush1.bf16.msra.mxu0 0
    %2508 = vmatprep.subr.bf16.mxu0 0
    %2509 = vmatpush1.bf16.msra.mxu0 0
    %2510 = vmatprep.subr.bf16.mxu0 0
    %2511 = vmatpush1.bf16.msra.mxu0 0
    %2512 = vmatprep.subr.bf16.mxu0 0
    %2513 = vmatpush1.bf16.msra.mxu0 0
    %2514 = vmatprep.subr.bf16.mxu0 0
    %2515 = vmatpush1.bf16.msra.mxu0 0
    %2516 = vmatprep.subr.bf16.mxu0 0
    %2517 = vmatpush1.bf16.msra.mxu0 0
    %2518 = vmatprep.subr.bf16.mxu0 0
    %2519 = vmatpush1.bf16.msra.mxu0 0
    %2520 = vmatprep.subr.bf16.mxu0 0
    %2521 = vmatpush1.bf16.msra.mxu0 0
    %2522 = vmatprep.mubr.bf16.mxu0 0
    %2523 = vmatmul.mubr.bf16.gmra.mrb[0].mxu0 %v2448
    %v2524 = vpop.f32.mrb[0].mxu0
    %v2525 = vadd.f32 0.0, %v2524
    %v2526 = vpop.f32.mrb[0].mxu0
    %v2527 = vadd.f32 0.0, %v2526
    %v2528 = vpop.f32.mrb[0].mxu0
    %v2529 = vpop.f32.mrb[0].mxu0
    %2530 = vdwg.mxu0
    %2531 = vmatprep.subr.bf16.mxu0 %v1461
    %2532 = vmatpush1.bf16.msra.mxu0 %v1460
    %2533 = vmatprep.subr.bf16.mxu0 %v1465
    %2534 = vmatpush1.bf16.msra.mxu0 %v1464
    %2535 = vmatprep.subr.bf16.mxu0 %v1469
    %2536 = vmatpush1.bf16.msra.mxu0 %v1468
    %2537 = vmatprep.subr.bf16.mxu0 %v1473
    %2538 = vmatpush1.bf16.msra.mxu0 %v1472
    %2539 = vmatprep.subr.bf16.mxu0 %v1477
    %2540 = vmatpush1.bf16.msra.mxu0 %v1476
    %2541 = vmatprep.subr.bf16.mxu0 %v1481
    %2542 = vmatpush1.bf16.msra.mxu0 %v1480
    %2543 = vmatprep.subr.bf16.mxu0 %v1485
    %2544 = vmatpush1.bf16.msra.mxu0 %v1484
    %2545 = vmatprep.subr.bf16.mxu0 %v1489
    %2546 = vmatpush1.bf16.msra.mxu0 %v1488
    %2547 = vmatprep.subr.bf16.mxu0 0
    %2548 = vmatpush1.bf16.msra.mxu0 0
    %2549 = vmatprep.subr.bf16.mxu0 0
    %2550 = vmatpush1.bf16.msra.mxu0 0
    %2551 = vmatprep.subr.bf16.mxu0 0
    %2552 = vmatpush1.bf16.msra.mxu0 0
    %2553 = vmatprep.subr.bf16.mxu0 0
    %2554 = vmatpush1.bf16.msra.mxu0 0
    %2555 = vmatprep.subr.bf16.mxu0 0
    %2556 = vmatpush1.bf16.msra.mxu0 0
    %2557 = vmatprep.subr.bf16.mxu0 0
    %2558 = vmatpush1.bf16.msra.mxu0 0
    %2559 = vmatprep.subr.bf16.mxu0 0
    %2560 = vmatpush1.bf16.msra.mxu0 0
    %2561 = vmatprep.subr.bf16.mxu0 0
    %2562 = vmatpush1.bf16.msra.mxu0 0
    %2563 = vmatprep.mubr.bf16.mxu0 0
    %2564 = vmatmul.mubr.bf16.gmra.mrb[0].mxu0 %v2447
    %v2565 = vpop.f32.mrb[0].mxu0
    %v2566 = vadd.f32 %v2484, %v2565
    %v2567 = vpop.f32.mrb[0].mxu0
    %v2568 = vadd.f32 %v2486, %v2567
    %v2569 = vpop.f32.mrb[0].mxu0
    %v2570 = vpop.f32.mrb[0].mxu0
    %2571 = vdwg.mxu0
    %2572 = vmatprep.subr.bf16.mxu0 %v1463
    %2573 = vmatpush1.bf16.msra.mxu0 %v1462
    %2574 = vmatprep.subr.bf16.mxu0 %v1467
    %2575 = vmatpush1.bf16.msra.mxu0 %v1466
    %2576 = vmatprep.subr.bf16.mxu0 %v1471
    %2577 = vmatpush1.bf16.msra.mxu0 %v1470
    %2578 = vmatprep.subr.bf16.mxu0 %v1475
    %2579 = vmatpush1.bf16.msra.mxu0 %v1474
    %2580 = vmatprep.subr.bf16.mxu0 %v1479
    %2581 = vmatpush1.bf16.msra.mxu0 %v1478
    %2582 = vmatprep.subr.bf16.mxu0 %v1483
    %2583 = vmatpush1.bf16.msra.mxu0 %v1482
    %2584 = vmatprep.subr.bf16.mxu0 %v1487
    %2585 = vmatpush1.bf16.msra.mxu0 %v1486
    %2586 = vmatprep.subr.bf16.mxu0 %v1491
    %2587 = vmatpush1.bf16.msra.mxu0 %v1490
    %2588 = vmatprep.subr.bf16.mxu0 0
    %2589 = vmatpush1.bf16.msra.mxu0 0
    %2590 = vmatprep.subr.bf16.mxu0 0
    %2591 = vmatpush1.bf16.msra.mxu0 0
    %2592 = vmatprep.subr.bf16.mxu0 0
    %2593 = vmatpush1.bf16.msra.mxu0 0
    %2594 = vmatprep.subr.bf16.mxu0 0
    %2595 = vmatpush1.bf16.msra.mxu0 0
    %2596 = vmatprep.subr.bf16.mxu0 0
    %2597 = vmatpush1.bf16.msra.mxu0 0
    %2598 = vmatprep.subr.bf16.mxu0 0
    %2599 = vmatpush1.bf16.msra.mxu0 0
    %2600 = vmatprep.subr.bf16.mxu0 0
    %2601 = vmatpush1.bf16.msra.mxu0 0
    %2602 = vmatprep.subr.bf16.mxu0 0
    %2603 = vmatpush1.bf16.msra.mxu0 0
    %2604 = vmatprep.mubr.bf16.mxu0 0
    %2605 = vmatmul.mubr.bf16.gmra.mrb[0].mxu0 %v2447
    %v2606 = vpop.f32.mrb[0].mxu0
    %v2607 = vadd.f32 %v2525, %v2606
    %v2608 = vpop.f32.mrb[0].mxu0
    %v2609 = vadd.f32 %v2527, %v2608
    %v2610 = vpop.f32.mrb[0].mxu0
    %v2611 = vpop.f32.mrb[0].mxu0
    %2612 = vdwg.mxu0
    %v2613 = vadd.f32 %v2566, %v314
    %v2614 = vadd.f32 %v2568, %v318
    %v2615 = vadd.f32 %v2607, %v322
    %v2616 = vadd.f32 %v2609, %v326
    %v2617 = vxor.u32 %v2613, 2147483648
    %v2618 = vxor.u32 %v2614, 2147483648
    %v2619 = vxor.u32 %v2615, 2147483648
    %v2620 = vmul.f32 %v2617, 1.442695
    %v2621 = vpow.pop %v2620
    %v2622 = vmul.f32 %v2618, 1.442695
    %v2623 = vpow.pop %v2622
    %v2624 = vmul.f32 %v2619, 1.442695
    %v2625 = vpow.pop %v2624
    %v2626 = vadd.f32 %v2621, 1.0
    %v2627 = vadd.f32 %v2623, 1.0
    %v2628 = vadd.f32 %v2625, 1.0
    %v2629 = vrcp.pop %v2626
    %v2630 = vmul.f32 1.0, %v2629
    %v2631 = vrcp.pop %v2627
    %v2632 = vmul.f32 1.0, %v2631
    %v2633 = vrcp.pop %v2628
    %v2634 = vmul.f32 1.0, %v2633
    %v2635 = vtanh.pop %v2616
    %v2636 = vmul.f32 %v2632, %v2134
    %v2637 = vmul.f32 %v2630, %v2635
    %v2638 = vadd.f32 %v2636, %v2637
    %v2639 = vtanh.pop %v2638
    %v2640 = vmul.f32 %v2634, %v2639
    %s2641 = scalar_lea.vmem [#allocation11], 16
    %2642 = vst [vmem:[%s2641] sm:$0xff] %v2640
    %s2643 = scalar_lea.vmem [#allocation2], 96
    %v2644 = vld [vmem:[%s2643] sm:$0xff]
    %v2645 = vld [vmem:[%s2643 + $0x8] sm:$0xff]
    %v2646 = vld [vmem:[%s2643 + $0x10] sm:$0xff]
    %v2647 = vld [vmem:[%s2643 + $0x18] sm:$0xff]
    %2648 = vmatprep.subr.bf16.mxu0 %v433
    %2649 = vmatpush1.bf16.msra.mxu0 %v432
    %2650 = vmatprep.subr.bf16.mxu0 %v437
    %2651 = vmatpush1.bf16.msra.mxu0 %v436
    %2652 = vmatprep.subr.bf16.mxu0 %v441
    %2653 = vmatpush1.bf16.msra.mxu0 %v440
    %2654 = vmatprep.subr.bf16.mxu0 %v445
    %2655 = vmatpush1.bf16.msra.mxu0 %v444
    %2656 = vmatprep.subr.bf16.mxu0 %v449
    %2657 = vmatpush1.bf16.msra.mxu0 %v448
    %2658 = vmatprep.subr.bf16.mxu0 %v453
    %2659 = vmatpush1.bf16.msra.mxu0 %v452
    %2660 = vmatprep.subr.bf16.mxu0 %v457
    %2661 = vmatpush1.bf16.msra.mxu0 %v456
    %2662 = vmatprep.subr.bf16.mxu0 %v461
    %2663 = vmatpush1.bf16.msra.mxu0 %v460
    %2664 = vmatprep.subr.bf16.mxu0 0
    %2665 = vmatpush1.bf16.msra.mxu0 0
    %2666 = vmatprep.subr.bf16.mxu0 0
    %2667 = vmatpush1.bf16.msra.mxu0 0
    %2668 = vmatprep.subr.bf16.mxu0 0
    %2669 = vmatpush1.bf16.msra.mxu0 0
    %2670 = vmatprep.subr.bf16.mxu0 0
    %2671 = vmatpush1.bf16.msra.mxu0 0
    %2672 = vmatprep.subr.bf16.mxu0 0
    %2673 = vmatpush1.bf16.msra.mxu0 0
    %2674 = vmatprep.subr.bf16.mxu0 0
    %2675 = vmatpush1.bf16.msra.mxu0 0
    %2676 = vmatprep.subr.bf16.mxu0 0
    %2677 = vmatpush1.bf16.msra.mxu0 0
    %2678 = vmatprep.subr.bf16.mxu0 0
    %2679 = vmatpush1.bf16.msra.mxu0 0
    %2680 = vmatprep.mubr.bf16.mxu0 0
    %2681 = vmatmul.mubr.bf16.gmra.mrb[0].mxu0 %v2254
    %v2682 = vpop.f32.mrb[0].mxu0
    %v2683 = vadd.f32 0.0, %v2682
    %v2684 = vpop.f32.mrb[0].mxu0
    %v2685 = vadd.f32 0.0, %v2684
    %v2686 = vpop.f32.mrb[0].mxu0
    %v2687 = vpop.f32.mrb[0].mxu0
    %2688 = vdwg.mxu0
    %2689 = vmatprep.subr.bf16.mxu0 %v435
    %2690 = vmatpush1.bf16.msra.mxu0 %v434
    %2691 = vmatprep.subr.bf16.mxu0 %v439
    %2692 = vmatpush1.bf16.msra.mxu0 %v438
    %2693 = vmatprep.subr.bf16.mxu0 %v443
    %2694 = vmatpush1.bf16.msra.mxu0 %v442
    %2695 = vmatprep.subr.bf16.mxu0 %v447
    %2696 = vmatpush1.bf16.msra.mxu0 %v446
    %2697 = vmatprep.subr.bf16.mxu0 %v451
    %2698 = vmatpush1.bf16.msra.mxu0 %v450
    %2699 = vmatprep.subr.bf16.mxu0 %v455
    %2700 = vmatpush1.bf16.msra.mxu0 %v454
    %2701 = vmatprep.subr.bf16.mxu0 %v459
    %2702 = vmatpush1.bf16.msra.mxu0 %v458
    %2703 = vmatprep.subr.bf16.mxu0 %v463
    %2704 = vmatpush1.bf16.msra.mxu0 %v462
    %2705 = vmatprep.subr.bf16.mxu0 0
    %2706 = vmatpush1.bf16.msra.mxu0 0
    %2707 = vmatprep.subr.bf16.mxu0 0
    %2708 = vmatpush1.bf16.msra.mxu0 0
    %2709 = vmatprep.subr.bf16.mxu0 0
    %2710 = vmatpush1.bf16.msra.mxu0 0
    %2711 = vmatprep.subr.bf16.mxu0 0
    %2712 = vmatpush1.bf16.msra.mxu0 0
    %2713 = vmatprep.subr.bf16.mxu0 0
    %2714 = vmatpush1.bf16.msra.mxu0 0
    %2715 = vmatprep.subr.bf16.mxu0 0
    %2716 = vmatpush1.bf16.msra.mxu0 0
    %2717 = vmatprep.subr.bf16.mxu0 0
    %2718 = vmatpush1.bf16.msra.mxu0 0
    %2719 = vmatprep.subr.bf16.mxu0 0
    %2720 = vmatpush1.bf16.msra.mxu0 0
    %2721 = vmatprep.mubr.bf16.mxu0 0
    %2722 = vmatmul.mubr.bf16.gmra.mrb[0].mxu0 %v2254
    %v2723 = vpop.f32.mrb[0].mxu0
    %v2724 = vadd.f32 0.0, %v2723
    %v2725 = vpop.f32.mrb[0].mxu0
    %v2726 = vadd.f32 0.0, %v2725
    %v2727 = vpop.f32.mrb[0].mxu0
    %v2728 = vpop.f32.mrb[0].mxu0
    %2729 = vdwg.mxu0
    %v2730 = vadd.f32 %v2644, %v2683
    %v2731 = vadd.f32 %v2645, %v2685
    %v2732 = vadd.f32 %v2646, %v2724
    %v2733 = vadd.f32 %v2647, %v2726
    %v2734 = vxor.u32 %v2730, 2147483648
    %v2735 = vxor.u32 %v2731, 2147483648
    %v2736 = vxor.u32 %v2732, 2147483648
    %v2737 = vmul.f32 %v2734, 1.442695
    %v2738 = vpow.pop %v2737
    %v2739 = vmul.f32 %v2735, 1.442695
    %v2740 = vpow.pop %v2739
    %v2741 = vmul.f32 %v2736, 1.442695
    %v2742 = vpow.pop %v2741
    %v2743 = vadd.f32 %v2738, 1.0
    %v2744 = vadd.f32 %v2740, 1.0
    %v2745 = vadd.f32 %v2742, 1.0
    %v2746 = vrcp.pop %v2743
    %v2747 = vmul.f32 1.0, %v2746
    %v2748 = vrcp.pop %v2744
    %v2749 = vmul.f32 1.0, %v2748
    %v2750 = vrcp.pop %v2745
    %v2751 = vmul.f32 1.0, %v2750
    %v2752 = vtanh.pop %v2733
    %v2753 = vmul.f32 %v2749, %v2251
    %v2754 = vmul.f32 %v2747, %v2752
    %v2755 = vadd.f32 %v2753, %v2754
    %v2756 = vtanh.pop %v2755
    %v2757 = vmul.f32 %v2751, %v2756
    %v2758 = vpack.c.bf16 %v2757, %v2757
    %2759 = vmatprep.subr.bf16.mxu0 %v705
    %2760 = vmatpush1.bf16.msra.mxu0 %v704
    %2761 = vmatprep.subr.bf16.mxu0 %v709
    %2762 = vmatpush1.bf16.msra.mxu0 %v708
    %2763 = vmatprep.subr.bf16.mxu0 %v713
    %2764 = vmatpush1.bf16.msra.mxu0 %v712
    %2765 = vmatprep.subr.bf16.mxu0 %v717
    %2766 = vmatpush1.bf16.msra.mxu0 %v716
    %2767 = vmatprep.subr.bf16.mxu0 %v721
    %2768 = vmatpush1.bf16.msra.mxu0 %v720
    %2769 = vmatprep.subr.bf16.mxu0 %v725
    %2770 = vmatpush1.bf16.msra.mxu0 %v724
    %2771 = vmatprep.subr.bf16.mxu0 %v729
    %2772 = vmatpush1.bf16.msra.mxu0 %v728
    %2773 = vmatprep.subr.bf16.mxu0 %v733
    %2774 = vmatpush1.bf16.msra.mxu0 %v732
    %2775 = vmatprep.subr.bf16.mxu0 0
    %2776 = vmatpush1.bf16.msra.mxu0 0
    %2777 = vmatprep.subr.bf16.mxu0 0
    %2778 = vmatpush1.bf16.msra.mxu0 0
    %2779 = vmatprep.subr.bf16.mxu0 0
    %2780 = vmatpush1.bf16.msra.mxu0 0
    %2781 = vmatprep.subr.bf16.mxu0 0
    %2782 = vmatpush1.bf16.msra.mxu0 0
    %2783 = vmatprep.subr.bf16.mxu0 0
    %2784 = vmatpush1.bf16.msra.mxu0 0
    %2785 = vmatprep.subr.bf16.mxu0 0
    %2786 = vmatpush1.bf16.msra.mxu0 0
    %2787 = vmatprep.subr.bf16.mxu0 0
    %2788 = vmatpush1.bf16.msra.mxu0 0
    %2789 = vmatprep.subr.bf16.mxu0 0
    %2790 = vmatpush1.bf16.msra.mxu0 0
    %2791 = vmatprep.mubr.bf16.mxu0 0
    %2792 = vmatmul.mubr.bf16.gmra.mrb[0].mxu0 %v2447
    %v2793 = vpop.f32.mrb[0].mxu0
    %v2794 = vadd.f32 0.0, %v2793
    %v2795 = vpop.f32.mrb[0].mxu0
    %v2796 = vadd.f32 0.0, %v2795
    %v2797 = vpop.f32.mrb[0].mxu0
    %v2798 = vpop.f32.mrb[0].mxu0
    %2799 = vdwg.mxu0
    %2800 = vmatprep.subr.bf16.mxu0 %v707
    %2801 = vmatpush1.bf16.msra.mxu0 %v706
    %2802 = vmatprep.subr.bf16.mxu0 %v711
    %2803 = vmatpush1.bf16.msra.mxu0 %v710
    %2804 = vmatprep.subr.bf16.mxu0 %v715
    %2805 = vmatpush1.bf16.msra.mxu0 %v714
    %2806 = vmatprep.subr.bf16.mxu0 %v719
    %2807 = vmatpush1.bf16.msra.mxu0 %v718
    %2808 = vmatprep.subr.bf16.mxu0 %v723
    %2809 = vmatpush1.bf16.msra.mxu0 %v722
    %2810 = vmatprep.subr.bf16.mxu0 %v727
    %2811 = vmatpush1.bf16.msra.mxu0 %v726
    %2812 = vmatprep.subr.bf16.mxu0 %v731
    %2813 = vmatpush1.bf16.msra.mxu0 %v730
    %2814 = vmatprep.subr.bf16.mxu0 %v735
    %2815 = vmatpush1.bf16.msra.mxu0 %v734
    %2816 = vmatprep.subr.bf16.mxu0 0
    %2817 = vmatpush1.bf16.msra.mxu0 0
    %2818 = vmatprep.subr.bf16.mxu0 0
    %2819 = vmatpush1.bf16.msra.mxu0 0
    %2820 = vmatprep.subr.bf16.mxu0 0
    %2821 = vmatpush1.bf16.msra.mxu0 0
    %2822 = vmatprep.subr.bf16.mxu0 0
    %2823 = vmatpush1.bf16.msra.mxu0 0
    %2824 = vmatprep.subr.bf16.mxu0 0
    %2825 = vmatpush1.bf16.msra.mxu0 0
    %2826 = vmatprep.subr.bf16.mxu0 0
    %2827 = vmatpush1.bf16.msra.mxu0 0
    %2828 = vmatprep.subr.bf16.mxu0 0
    %2829 = vmatpush1.bf16.msra.mxu0 0
    %2830 = vmatprep.subr.bf16.mxu0 0
    %2831 = vmatpush1.bf16.msra.mxu0 0
    %2832 = vmatprep.mubr.bf16.mxu0 0
    %2833 = vmatmul.mubr.bf16.gmra.mrb[0].mxu0 %v2447
    %v2834 = vpop.f32.mrb[0].mxu0
    %v2835 = vadd.f32 0.0, %v2834
    %v2836 = vpop.f32.mrb[0].mxu0
    %v2837 = vadd.f32 0.0, %v2836
    %v2838 = vpop.f32.mrb[0].mxu0
    %v2839 = vpop.f32.mrb[0].mxu0
    %2840 = vdwg.mxu0
    %2841 = vmatprep.subr.bf16.mxu0 %v947
    %2842 = vmatpush1.bf16.msra.mxu0 %v946
    %2843 = vmatprep.subr.bf16.mxu0 %v951
    %2844 = vmatpush1.bf16.msra.mxu0 %v950
    %2845 = vmatprep.subr.bf16.mxu0 %v955
    %2846 = vmatpush1.bf16.msra.mxu0 %v954
    %2847 = vmatprep.subr.bf16.mxu0 %v959
    %2848 = vmatpush1.bf16.msra.mxu0 %v958
    %2849 = vmatprep.subr.bf16.mxu0 %v963
    %2850 = vmatpush1.bf16.msra.mxu0 %v962
    %2851 = vmatprep.subr.bf16.mxu0 %v967
    %2852 = vmatpush1.bf16.msra.mxu0 %v966
    %2853 = vmatprep.subr.bf16.mxu0 %v971
    %2854 = vmatpush1.bf16.msra.mxu0 %v970
    %2855 = vmatprep.subr.bf16.mxu0 %v975
    %2856 = vmatpush1.bf16.msra.mxu0 %v974
    %2857 = vmatprep.subr.bf16.mxu0 0
    %2858 = vmatpush1.bf16.msra.mxu0 0
    %2859 = vmatprep.subr.bf16.mxu0 0
    %2860 = vmatpush1.bf16.msra.mxu0 0
    %2861 = vmatprep.subr.bf16.mxu0 0
    %2862 = vmatpush1.bf16.msra.mxu0 0
    %2863 = vmatprep.subr.bf16.mxu0 0
    %2864 = vmatpush1.bf16.msra.mxu0 0
    %2865 = vmatprep.subr.bf16.mxu0 0
    %2866 = vmatpush1.bf16.msra.mxu0 0
    %2867 = vmatprep.subr.bf16.mxu0 0
    %2868 = vmatpush1.bf16.msra.mxu0 0
    %2869 = vmatprep.subr.bf16.mxu0 0
    %2870 = vmatpush1.bf16.msra.mxu0 0
    %2871 = vmatprep.subr.bf16.mxu0 0
    %2872 = vmatpush1.bf16.msra.mxu0 0
    %2873 = vmatprep.mubr.bf16.mxu0 0
    %2874 = vmatmul.mubr.bf16.gmra.mrb[0].mxu0 %v2758
    %v2875 = vpop.f32.mrb[0].mxu0
    %v2876 = vadd.f32 %v2794, %v2875
    %v2877 = vpop.f32.mrb[0].mxu0
    %v2878 = vadd.f32 %v2796, %v2877
    %v2879 = vpop.f32.mrb[0].mxu0
    %v2880 = vpop.f32.mrb[0].mxu0
    %2881 = vdwg.mxu0
    %2882 = vmatprep.subr.bf16.mxu0 %v949
    %2883 = vmatpush1.bf16.msra.mxu0 %v948
    %2884 = vmatprep.subr.bf16.mxu0 %v953
    %2885 = vmatpush1.bf16.msra.mxu0 %v952
    %2886 = vmatprep.subr.bf16.mxu0 %v957
    %2887 = vmatpush1.bf16.msra.mxu0 %v956
    %2888 = vmatprep.subr.bf16.mxu0 %v961
    %2889 = vmatpush1.bf16.msra.mxu0 %v960
    %2890 = vmatprep.subr.bf16.mxu0 %v965
    %2891 = vmatpush1.bf16.msra.mxu0 %v964
    %2892 = vmatprep.subr.bf16.mxu0 %v969
    %2893 = vmatpush1.bf16.msra.mxu0 %v968
    %2894 = vmatprep.subr.bf16.mxu0 %v973
    %2895 = vmatpush1.bf16.msra.mxu0 %v972
    %2896 = vmatprep.subr.bf16.mxu0 %v977
    %2897 = vmatpush1.bf16.msra.mxu0 %v976
    %2898 = vmatprep.subr.bf16.mxu0 0
    %2899 = vmatpush1.bf16.msra.mxu0 0
    %2900 = vmatprep.subr.bf16.mxu0 0
    %2901 = vmatpush1.bf16.msra.mxu0 0
    %2902 = vmatprep.subr.bf16.mxu0 0
    %2903 = vmatpush1.bf16.msra.mxu0 0
    %2904 = vmatprep.subr.bf16.mxu0 0
    %2905 = vmatpush1.bf16.msra.mxu0 0
    %2906 = vmatprep.subr.bf16.mxu0 0
    %2907 = vmatpush1.bf16.msra.mxu0 0
    %2908 = vmatprep.subr.bf16.mxu0 0
    %2909 = vmatpush1.bf16.msra.mxu0 0
    %2910 = vmatprep.subr.bf16.mxu0 0
    %2911 = vmatpush1.bf16.msra.mxu0 0
    %2912 = vmatprep.subr.bf16.mxu0 0
    %2913 = vmatpush1.bf16.msra.mxu0 0
    %2914 = vmatprep.mubr.bf16.mxu0 0
    %2915 = vmatmul.mubr.bf16.gmra.mrb[0].mxu0 %v2758
    %v2916 = vpop.f32.mrb[0].mxu0
    %v2917 = vadd.f32 %v2835, %v2916
    %v2918 = vpop.f32.mrb[0].mxu0
    %v2919 = vadd.f32 %v2837, %v2918
    %v2920 = vpop.f32.mrb[0].mxu0
    %v2921 = vpop.f32.mrb[0].mxu0
    %2922 = vdwg.mxu0
    %v2923 = vadd.f32 %v2876, %v291
    %v2924 = vadd.f32 %v2878, %v295
    %v2925 = vadd.f32 %v2917, %v299
    %v2926 = vadd.f32 %v2919, %v303
    %v2927 = vxor.u32 %v2923, 2147483648
    %v2928 = vxor.u32 %v2924, 2147483648
    %v2929 = vxor.u32 %v2925, 2147483648
    %v2930 = vmul.f32 %v2927, 1.442695
    %v2931 = vpow.pop %v2930
    %v2932 = vmul.f32 %v2928, 1.442695
    %v2933 = vpow.pop %v2932
    %v2934 = vmul.f32 %v2929, 1.442695
    %v2935 = vpow.pop %v2934
    %v2936 = vadd.f32 %v2931, 1.0
    %v2937 = vadd.f32 %v2933, 1.0
    %v2938 = vadd.f32 %v2935, 1.0
    %v2939 = vrcp.pop %v2936
    %v2940 = vmul.f32 1.0, %v2939
    %v2941 = vrcp.pop %v2937
    %v2942 = vmul.f32 1.0, %v2941
    %v2943 = vrcp.pop %v2938
    %v2944 = vmul.f32 1.0, %v2943
    %v2945 = vtanh.pop %v2926
    %v2946 = vmul.f32 %v2942, %v2444
    %v2947 = vmul.f32 %v2940, %v2945
    %v2948 = vadd.f32 %v2946, %v2947
    %v2949 = vtanh.pop %v2948
    %v2950 = vmul.f32 %v2944, %v2949
    %v2951 = vpack.c.bf16 %v2950, %v2950
    %v2952 = vpack.c.bf16 %v2640, %v2640
    %2953 = vmatprep.subr.bf16.mxu0 %v1219
    %2954 = vmatpush1.bf16.msra.mxu0 %v1218
    %2955 = vmatprep.subr.bf16.mxu0 %v1223
    %2956 = vmatpush1.bf16.msra.mxu0 %v1222
    %2957 = vmatprep.subr.bf16.mxu0 %v1227
    %2958 = vmatpush1.bf16.msra.mxu0 %v1226
    %2959 = vmatprep.subr.bf16.mxu0 %v1231
    %2960 = vmatpush1.bf16.msra.mxu0 %v1230
    %2961 = vmatprep.subr.bf16.mxu0 %v1235
    %2962 = vmatpush1.bf16.msra.mxu0 %v1234
    %2963 = vmatprep.subr.bf16.mxu0 %v1239
    %2964 = vmatpush1.bf16.msra.mxu0 %v1238
    %2965 = vmatprep.subr.bf16.mxu0 %v1243
    %2966 = vmatpush1.bf16.msra.mxu0 %v1242
    %2967 = vmatprep.subr.bf16.mxu0 %v1247
    %2968 = vmatpush1.bf16.msra.mxu0 %v1246
    %2969 = vmatprep.subr.bf16.mxu0 0
    %2970 = vmatpush1.bf16.msra.mxu0 0
    %2971 = vmatprep.subr.bf16.mxu0 0
    %2972 = vmatpush1.bf16.msra.mxu0 0
    %2973 = vmatprep.subr.bf16.mxu0 0
    %2974 = vmatpush1.bf16.msra.mxu0 0
    %2975 = vmatprep.subr.bf16.mxu0 0
    %2976 = vmatpush1.bf16.msra.mxu0 0
    %2977 = vmatprep.subr.bf16.mxu0 0
    %2978 = vmatpush1.bf16.msra.mxu0 0
    %2979 = vmatprep.subr.bf16.mxu0 0
    %2980 = vmatpush1.bf16.msra.mxu0 0
    %2981 = vmatprep.subr.bf16.mxu0 0
    %2982 = vmatpush1.bf16.msra.mxu0 0
    %2983 = vmatprep.subr.bf16.mxu0 0
    %2984 = vmatpush1.bf16.msra.mxu0 0
    %2985 = vmatprep.mubr.bf16.mxu0 0
    %2986 = vmatmul.mubr.bf16.gmra.mrb[0].mxu0 %v2952
    %v2987 = vpop.f32.mrb[0].mxu0
    %v2988 = vadd.f32 0.0, %v2987
    %v2989 = vpop.f32.mrb[0].mxu0
    %v2990 = vadd.f32 0.0, %v2989
    %v2991 = vpop.f32.mrb[0].mxu0
    %v2992 = vpop.f32.mrb[0].mxu0
    %2993 = vdwg.mxu0
    %2994 = vmatprep.subr.bf16.mxu0 %v1221
    %2995 = vmatpush1.bf16.msra.mxu0 %v1220
    %2996 = vmatprep.subr.bf16.mxu0 %v1225
    %2997 = vmatpush1.bf16.msra.mxu0 %v1224
    %2998 = vmatprep.subr.bf16.mxu0 %v1229
    %2999 = vmatpush1.bf16.msra.mxu0 %v1228
    %3000 = vmatprep.subr.bf16.mxu0 %v1233
    %3001 = vmatpush1.bf16.msra.mxu0 %v1232
    %3002 = vmatprep.subr.bf16.mxu0 %v1237
    %3003 = vmatpush1.bf16.msra.mxu0 %v1236
    %3004 = vmatprep.subr.bf16.mxu0 %v1241
    %3005 = vmatpush1.bf16.msra.mxu0 %v1240
    %3006 = vmatprep.subr.bf16.mxu0 %v1245
    %3007 = vmatpush1.bf16.msra.mxu0 %v1244
    %3008 = vmatprep.subr.bf16.mxu0 %v1249
    %3009 = vmatpush1.bf16.msra.mxu0 %v1248
    %3010 = vmatprep.subr.bf16.mxu0 0
    %3011 = vmatpush1.bf16.msra.mxu0 0
    %3012 = vmatprep.subr.bf16.mxu0 0
    %3013 = vmatpush1.bf16.msra.mxu0 0
    %3014 = vmatprep.subr.bf16.mxu0 0
    %3015 = vmatpush1.bf16.msra.mxu0 0
    %3016 = vmatprep.subr.bf16.mxu0 0
    %3017 = vmatpush1.bf16.msra.mxu0 0
    %3018 = vmatprep.subr.bf16.mxu0 0
    %3019 = vmatpush1.bf16.msra.mxu0 0
    %3020 = vmatprep.subr.bf16.mxu0 0
    %3021 = vmatpush1.bf16.msra.mxu0 0
    %3022 = vmatprep.subr.bf16.mxu0 0
    %3023 = vmatpush1.bf16.msra.mxu0 0
    %3024 = vmatprep.subr.bf16.mxu0 0
    %3025 = vmatpush1.bf16.msra.mxu0 0
    %3026 = vmatprep.mubr.bf16.mxu0 0
    %3027 = vmatmul.mubr.bf16.gmra.mrb[0].mxu0 %v2952
    %v3028 = vpop.f32.mrb[0].mxu0
    %v3029 = vadd.f32 0.0, %v3028
    %v3030 = vpop.f32.mrb[0].mxu0
    %v3031 = vadd.f32 0.0, %v3030
    %v3032 = vpop.f32.mrb[0].mxu0
    %v3033 = vpop.f32.mrb[0].mxu0
    %3034 = vdwg.mxu0
    %3035 = vmatprep.subr.bf16.mxu0 %v1461
    %3036 = vmatpush1.bf16.msra.mxu0 %v1460
    %3037 = vmatprep.subr.bf16.mxu0 %v1465
    %3038 = vmatpush1.bf16.msra.mxu0 %v1464
    %3039 = vmatprep.subr.bf16.mxu0 %v1469
    %3040 = vmatpush1.bf16.msra.mxu0 %v1468
    %3041 = vmatprep.subr.bf16.mxu0 %v1473
    %3042 = vmatpush1.bf16.msra.mxu0 %v1472
    %3043 = vmatprep.subr.bf16.mxu0 %v1477
    %3044 = vmatpush1.bf16.msra.mxu0 %v1476
    %3045 = vmatprep.subr.bf16.mxu0 %v1481
    %3046 = vmatpush1.bf16.msra.mxu0 %v1480
    %3047 = vmatprep.subr.bf16.mxu0 %v1485
    %3048 = vmatpush1.bf16.msra.mxu0 %v1484
    %3049 = vmatprep.subr.bf16.mxu0 %v1489
    %3050 = vmatpush1.bf16.msra.mxu0 %v1488
    %3051 = vmatprep.subr.bf16.mxu0 0
    %3052 = vmatpush1.bf16.msra.mxu0 0
    %3053 = vmatprep.subr.bf16.mxu0 0
    %3054 = vmatpush1.bf16.msra.mxu0 0
    %3055 = vmatprep.subr.bf16.mxu0 0
    %3056 = vmatpush1.bf16.msra.mxu0 0
    %3057 = vmatprep.subr.bf16.mxu0 0
    %3058 = vmatpush1.bf16.msra.mxu0 0
    %3059 = vmatprep.subr.bf16.mxu0 0
    %3060 = vmatpush1.bf16.msra.mxu0 0
    %3061 = vmatprep.subr.bf16.mxu0 0
    %3062 = vmatpush1.bf16.msra.mxu0 0
    %3063 = vmatprep.subr.bf16.mxu0 0
    %3064 = vmatpush1.bf16.msra.mxu0 0
    %3065 = vmatprep.subr.bf16.mxu0 0
    %3066 = vmatpush1.bf16.msra.mxu0 0
    %3067 = vmatprep.mubr.bf16.mxu0 0
    %3068 = vmatmul.mubr.bf16.gmra.mrb[0].mxu0 %v2951
    %v3069 = vpop.f32.mrb[0].mxu0
    %v3070 = vadd.f32 %v2988, %v3069
    %v3071 = vpop.f32.mrb[0].mxu0
    %v3072 = vadd.f32 %v2990, %v3071
    %v3073 = vpop.f32.mrb[0].mxu0
    %v3074 = vpop.f32.mrb[0].mxu0
    %3075 = vdwg.mxu0
    %3076 = vmatprep.subr.bf16.mxu0 %v1463
    %3077 = vmatpush1.bf16.msra.mxu0 %v1462
    %3078 = vmatprep.subr.bf16.mxu0 %v1467
    %3079 = vmatpush1.bf16.msra.mxu0 %v1466
    %3080 = vmatprep.subr.bf16.mxu0 %v1471
    %3081 = vmatpush1.bf16.msra.mxu0 %v1470
    %3082 = vmatprep.subr.bf16.mxu0 %v1475
    %3083 = vmatpush1.bf16.msra.mxu0 %v1474
    %3084 = vmatprep.subr.bf16.mxu0 %v1479
    %3085 = vmatpush1.bf16.msra.mxu0 %v1478
    %3086 = vmatprep.subr.bf16.mxu0 %v1483
    %3087 = vmatpush1.bf16.msra.mxu0 %v1482
    %3088 = vmatprep.subr.bf16.mxu0 %v1487
    %3089 = vmatpush1.bf16.msra.mxu0 %v1486
    %3090 = vmatprep.subr.bf16.mxu0 %v1491
    %3091 = vmatpush1.bf16.msra.mxu0 %v1490
    %3092 = vmatprep.subr.bf16.mxu0 0
    %3093 = vmatpush1.bf16.msra.mxu0 0
    %3094 = vmatprep.subr.bf16.mxu0 0
    %3095 = vmatpush1.bf16.msra.mxu0 0
    %3096 = vmatprep.subr.bf16.mxu0 0
    %3097 = vmatpush1.bf16.msra.mxu0 0
    %3098 = vmatprep.subr.bf16.mxu0 0
    %3099 = vmatpush1.bf16.msra.mxu0 0
    %3100 = vmatprep.subr.bf16.mxu0 0
    %3101 = vmatpush1.bf16.msra.mxu0 0
    %3102 = vmatprep.subr.bf16.mxu0 0
    %3103 = vmatpush1.bf16.msra.mxu0 0
    %3104 = vmatprep.subr.bf16.mxu0 0
    %3105 = vmatpush1.bf16.msra.mxu0 0
    %3106 = vmatprep.subr.bf16.mxu0 0
    %3107 = vmatpush1.bf16.msra.mxu0 0
    %3108 = vmatprep.mubr.bf16.mxu0 0
    %3109 = vmatmul.mubr.bf16.gmra.mrb[0].mxu0 %v2951
    %v3110 = vpop.f32.mrb[0].mxu0
    %v3111 = vadd.f32 %v3029, %v3110
    %v3112 = vpop.f32.mrb[0].mxu0
    %v3113 = vadd.f32 %v3031, %v3112
    %v3114 = vpop.f32.mrb[0].mxu0
    %v3115 = vpop.f32.mrb[0].mxu0
    %3116 = vdwg.mxu0
    %v3117 = vadd.f32 %v3070, %v314
    %v3118 = vadd.f32 %v3072, %v318
    %v3119 = vadd.f32 %v3111, %v322
    %v3120 = vadd.f32 %v3113, %v326
    %v3121 = vxor.u32 %v3117, 2147483648
    %v3122 = vxor.u32 %v3118, 2147483648
    %v3123 = vxor.u32 %v3119, 2147483648
    %v3124 = vmul.f32 %v3121, 1.442695
    %v3125 = vpow.pop %v3124
    %v3126 = vmul.f32 %v3122, 1.442695
    %v3127 = vpow.pop %v3126
    %v3128 = vmul.f32 %v3123, 1.442695
    %v3129 = vpow.pop %v3128
    %v3130 = vadd.f32 %v3125, 1.0
    %v3131 = vadd.f32 %v3127, 1.0
    %v3132 = vadd.f32 %v3129, 1.0
    %v3133 = vrcp.pop %v3130
    %v3134 = vmul.f32 1.0, %v3133
    %v3135 = vrcp.pop %v3131
    %v3136 = vmul.f32 1.0, %v3135
    %v3137 = vrcp.pop %v3132
    %v3138 = vmul.f32 1.0, %v3137
    %v3139 = vtanh.pop %v3120
    %v3140 = vmul.f32 %v3136, %v2638
    %v3141 = vmul.f32 %v3134, %v3139
    %v3142 = vadd.f32 %v3140, %v3141
    %v3143 = vtanh.pop %v3142
    %v3144 = vmul.f32 %v3138, %v3143
    %s3145 = scalar_lea.vmem [#allocation11], 24
    %3146 = vst [vmem:[%s3145] sm:$0xff] %v3144
    %s3147 = scalar_lea.vmem [#allocation2], 128
    %v3148 = vld [vmem:[%s3147] sm:$0xff]
    %v3149 = vld [vmem:[%s3147 + $0x8] sm:$0xff]
    %v3150 = vld [vmem:[%s3147 + $0x10] sm:$0xff]
    %v3151 = vld [vmem:[%s3147 + $0x18] sm:$0xff]
    %3152 = vmatprep.subr.bf16.mxu0 %v433
    %3153 = vmatpush1.bf16.msra.mxu0 %v432
    %3154 = vmatprep.subr.bf16.mxu0 %v437
    %3155 = vmatpush1.bf16.msra.mxu0 %v436
    %3156 = vmatprep.subr.bf16.mxu0 %v441
    %3157 = vmatpush1.bf16.msra.mxu0 %v440
    %3158 = vmatprep.subr.bf16.mxu0 %v445
    %3159 = vmatpush1.bf16.msra.mxu0 %v444
    %3160 = vmatprep.subr.bf16.mxu0 %v449
    %3161 = vmatpush1.bf16.msra.mxu0 %v448
    %3162 = vmatprep.subr.bf16.mxu0 %v453
    %3163 = vmatpush1.bf16.msra.mxu0 %v452
    %3164 = vmatprep.subr.bf16.mxu0 %v457
    %3165 = vmatpush1.bf16.msra.mxu0 %v456
    %3166 = vmatprep.subr.bf16.mxu0 %v461
    %3167 = vmatpush1.bf16.msra.mxu0 %v460
    %3168 = vmatprep.subr.bf16.mxu0 0
    %3169 = vmatpush1.bf16.msra.mxu0 0
    %3170 = vmatprep.subr.bf16.mxu0 0
    %3171 = vmatpush1.bf16.msra.mxu0 0
    %3172 = vmatprep.subr.bf16.mxu0 0
    %3173 = vmatpush1.bf16.msra.mxu0 0
    %3174 = vmatprep.subr.bf16.mxu0 0
    %3175 = vmatpush1.bf16.msra.mxu0 0
    %3176 = vmatprep.subr.bf16.mxu0 0
    %3177 = vmatpush1.bf16.msra.mxu0 0
    %3178 = vmatprep.subr.bf16.mxu0 0
    %3179 = vmatpush1.bf16.msra.mxu0 0
    %3180 = vmatprep.subr.bf16.mxu0 0
    %3181 = vmatpush1.bf16.msra.mxu0 0
    %3182 = vmatprep.subr.bf16.mxu0 0
    %3183 = vmatpush1.bf16.msra.mxu0 0
    %3184 = vmatprep.mubr.bf16.mxu0 0
    %3185 = vmatmul.mubr.bf16.gmra.mrb[0].mxu0 %v2758
    %v3186 = vpop.f32.mrb[0].mxu0
    %v3187 = vadd.f32 0.0, %v3186
    %v3188 = vpop.f32.mrb[0].mxu0
    %v3189 = vadd.f32 0.0, %v3188
    %v3190 = vpop.f32.mrb[0].mxu0
    %v3191 = vpop.f32.mrb[0].mxu0
    %3192 = vdwg.mxu0
    %3193 = vmatprep.subr.bf16.mxu0 %v435
    %3194 = vmatpush1.bf16.msra.mxu0 %v434
    %3195 = vmatprep.subr.bf16.mxu0 %v439
    %3196 = vmatpush1.bf16.msra.mxu0 %v438
    %3197 = vmatprep.subr.bf16.mxu0 %v443
    %3198 = vmatpush1.bf16.msra.mxu0 %v442
    %3199 = vmatprep.subr.bf16.mxu0 %v447
    %3200 = vmatpush1.bf16.msra.mxu0 %v446
    %3201 = vmatprep.subr.bf16.mxu0 %v451
    %3202 = vmatpush1.bf16.msra.mxu0 %v450
    %3203 = vmatprep.subr.bf16.mxu0 %v455
    %3204 = vmatpush1.bf16.msra.mxu0 %v454
    %3205 = vmatprep.subr.bf16.mxu0 %v459
    %3206 = vmatpush1.bf16.msra.mxu0 %v458
    %3207 = vmatprep.subr.bf16.mxu0 %v463
    %3208 = vmatpush1.bf16.msra.mxu0 %v462
    %3209 = vmatprep.subr.bf16.mxu0 0
    %3210 = vmatpush1.bf16.msra.mxu0 0
    %3211 = vmatprep.subr.bf16.mxu0 0
    %3212 = vmatpush1.bf16.msra.mxu0 0
    %3213 = vmatprep.subr.bf16.mxu0 0
    %3214 = vmatpush1.bf16.msra.mxu0 0
    %3215 = vmatprep.subr.bf16.mxu0 0
    %3216 = vmatpush1.bf16.msra.mxu0 0
    %3217 = vmatprep.subr.bf16.mxu0 0
    %3218 = vmatpush1.bf16.msra.mxu0 0
    %3219 = vmatprep.subr.bf16.mxu0 0
    %3220 = vmatpush1.bf16.msra.mxu0 0
    %3221 = vmatprep.subr.bf16.mxu0 0
    %3222 = vmatpush1.bf16.msra.mxu0 0
    %3223 = vmatprep.subr.bf16.mxu0 0
    %3224 = vmatpush1.bf16.msra.mxu0 0
    %3225 = vmatprep.mubr.bf16.mxu0 0
    %3226 = vmatmul.mubr.bf16.gmra.mrb[0].mxu0 %v2758
    %v3227 = vpop.f32.mrb[0].mxu0
    %v3228 = vadd.f32 0.0, %v3227
    %v3229 = vpop.f32.mrb[0].mxu0
    %v3230 = vadd.f32 0.0, %v3229
    %v3231 = vpop.f32.mrb[0].mxu0
    %v3232 = vpop.f32.mrb[0].mxu0
    %3233 = vdwg.mxu0
    %v3234 = vadd.f32 %v3148, %v3187
    %v3235 = vadd.f32 %v3149, %v3189
    %v3236 = vadd.f32 %v3150, %v3228
    %v3237 = vadd.f32 %v3151, %v3230
    %v3238 = vxor.u32 %v3234, 2147483648
    %v3239 = vxor.u32 %v3235, 2147483648
    %v3240 = vxor.u32 %v3236, 2147483648
    %v3241 = vmul.f32 %v3238, 1.442695
    %v3242 = vpow.pop %v3241
    %v3243 = vmul.f32 %v3239, 1.442695
    %v3244 = vpow.pop %v3243
    %v3245 = vmul.f32 %v3240, 1.442695
    %v3246 = vpow.pop %v3245
    %v3247 = vadd.f32 %v3242, 1.0
    %v3248 = vadd.f32 %v3244, 1.0
    %v3249 = vadd.f32 %v3246, 1.0
    %v3250 = vrcp.pop %v3247
    %v3251 = vmul.f32 1.0, %v3250
    %v3252 = vrcp.pop %v3248
    %v3253 = vmul.f32 1.0, %v3252
    %v3254 = vrcp.pop %v3249
    %v3255 = vmul.f32 1.0, %v3254
    %v3256 = vtanh.pop %v3237
    %v3257 = vmul.f32 %v3253, %v2755
    %v3258 = vmul.f32 %v3251, %v3256
    %v3259 = vadd.f32 %v3257, %v3258
    %v3260 = vtanh.pop %v3259
    %v3261 = vmul.f32 %v3255, %v3260
    %v3262 = vpack.c.bf16 %v3261, %v3261
    %3263 = vmatprep.subr.bf16.mxu0 %v705
    %3264 = vmatpush1.bf16.msra.mxu0 %v704
    %3265 = vmatprep.subr.bf16.mxu0 %v709
    %3266 = vmatpush1.bf16.msra.mxu0 %v708
    %3267 = vmatprep.subr.bf16.mxu0 %v713
    %3268 = vmatpush1.bf16.msra.mxu0 %v712
    %3269 = vmatprep.subr.bf16.mxu0 %v717
    %3270 = vmatpush1.bf16.msra.mxu0 %v716
    %3271 = vmatprep.subr.bf16.mxu0 %v721
    %3272 = vmatpush1.bf16.msra.mxu0 %v720
    %3273 = vmatprep.subr.bf16.mxu0 %v725
    %3274 = vmatpush1.bf16.msra.mxu0 %v724
    %3275 = vmatprep.subr.bf16.mxu0 %v729
    %3276 = vmatpush1.bf16.msra.mxu0 %v728
    %3277 = vmatprep.subr.bf16.mxu0 %v733
    %3278 = vmatpush1.bf16.msra.mxu0 %v732
    %3279 = vmatprep.subr.bf16.mxu0 0
    %3280 = vmatpush1.bf16.msra.mxu0 0
    %3281 = vmatprep.subr.bf16.mxu0 0
    %3282 = vmatpush1.bf16.msra.mxu0 0
    %3283 = vmatprep.subr.bf16.mxu0 0
    %3284 = vmatpush1.bf16.msra.mxu0 0
    %3285 = vmatprep.subr.bf16.mxu0 0
    %3286 = vmatpush1.bf16.msra.mxu0 0
    %3287 = vmatprep.subr.bf16.mxu0 0
    %3288 = vmatpush1.bf16.msra.mxu0 0
    %3289 = vmatprep.subr.bf16.mxu0 0
    %3290 = vmatpush1.bf16.msra.mxu0 0
    %3291 = vmatprep.subr.bf16.mxu0 0
    %3292 = vmatpush1.bf16.msra.mxu0 0
    %3293 = vmatprep.subr.bf16.mxu0 0
    %3294 = vmatpush1.bf16.msra.mxu0 0
    %3295 = vmatprep.mubr.bf16.mxu0 0
    %3296 = vmatmul.mubr.bf16.gmra.mrb[0].mxu0 %v2951
    %v3297 = vpop.f32.mrb[0].mxu0
    %v3298 = vadd.f32 0.0, %v3297
    %v3299 = vpop.f32.mrb[0].mxu0
    %v3300 = vadd.f32 0.0, %v3299
    %v3301 = vpop.f32.mrb[0].mxu0
    %v3302 = vpop.f32.mrb[0].mxu0
    %3303 = vdwg.mxu0
    %3304 = vmatprep.subr.bf16.mxu0 %v707
    %3305 = vmatpush1.bf16.msra.mxu0 %v706
    %3306 = vmatprep.subr.bf16.mxu0 %v711
    %3307 = vmatpush1.bf16.msra.mxu0 %v710
    %3308 = vmatprep.subr.bf16.mxu0 %v715
    %3309 = vmatpush1.bf16.msra.mxu0 %v714
    %3310 = vmatprep.subr.bf16.mxu0 %v719
    %3311 = vmatpush1.bf16.msra.mxu0 %v718
    %3312 = vmatprep.subr.bf16.mxu0 %v723
    %3313 = vmatpush1.bf16.msra.mxu0 %v722
    %3314 = vmatprep.subr.bf16.mxu0 %v727
    %3315 = vmatpush1.bf16.msra.mxu0 %v726
    %3316 = vmatprep.subr.bf16.mxu0 %v731
    %3317 = vmatpush1.bf16.msra.mxu0 %v730
    %3318 = vmatprep.subr.bf16.mxu0 %v735
    %3319 = vmatpush1.bf16.msra.mxu0 %v734
    %3320 = vmatprep.subr.bf16.mxu0 0
    %3321 = vmatpush1.bf16.msra.mxu0 0
    %3322 = vmatprep.subr.bf16.mxu0 0
    %3323 = vmatpush1.bf16.msra.mxu0 0
    %3324 = vmatprep.subr.bf16.mxu0 0
    %3325 = vmatpush1.bf16.msra.mxu0 0
    %3326 = vmatprep.subr.bf16.mxu0 0
    %3327 = vmatpush1.bf16.msra.mxu0 0
    %3328 = vmatprep.subr.bf16.mxu0 0
    %3329 = vmatpush1.bf16.msra.mxu0 0
    %3330 = vmatprep.subr.bf16.mxu0 0
    %3331 = vmatpush1.bf16.msra.mxu0 0
    %3332 = vmatprep.subr.bf16.mxu0 0
    %3333 = vmatpush1.bf16.msra.mxu0 0
    %3334 = vmatprep.subr.bf16.mxu0 0
    %3335 = vmatpush1.bf16.msra.mxu0 0
    %3336 = vmatprep.mubr.bf16.mxu0 0
    %3337 = vmatmul.mubr.bf16.gmra.mrb[0].mxu0 %v2951
    %v3338 = vpop.f32.mrb[0].mxu0
    %v3339 = vadd.f32 0.0, %v3338
    %v3340 = vpop.f32.mrb[0].mxu0
    %v3341 = vadd.f32 0.0, %v3340
    %v3342 = vpop.f32.mrb[0].mxu0
    %v3343 = vpop.f32.mrb[0].mxu0
    %3344 = vdwg.mxu0
    %3345 = vmatprep.subr.bf16.mxu0 %v947
    %3346 = vmatpush1.bf16.msra.mxu0 %v946
    %3347 = vmatprep.subr.bf16.mxu0 %v951
    %3348 = vmatpush1.bf16.msra.mxu0 %v950
    %3349 = vmatprep.subr.bf16.mxu0 %v955
    %3350 = vmatpush1.bf16.msra.mxu0 %v954
    %3351 = vmatprep.subr.bf16.mxu0 %v959
    %3352 = vmatpush1.bf16.msra.mxu0 %v958
    %3353 = vmatprep.subr.bf16.mxu0 %v963
    %3354 = vmatpush1.bf16.msra.mxu0 %v962
    %3355 = vmatprep.subr.bf16.mxu0 %v967
    %3356 = vmatpush1.bf16.msra.mxu0 %v966
    %3357 = vmatprep.subr.bf16.mxu0 %v971
    %3358 = vmatpush1.bf16.msra.mxu0 %v970
    %3359 = vmatprep.subr.bf16.mxu0 %v975
    %3360 = vmatpush1.bf16.msra.mxu0 %v974
    %3361 = vmatprep.subr.bf16.mxu0 0
    %3362 = vmatpush1.bf16.msra.mxu0 0
    %3363 = vmatprep.subr.bf16.mxu0 0
    %3364 = vmatpush1.bf16.msra.mxu0 0
    %3365 = vmatprep.subr.bf16.mxu0 0
    %3366 = vmatpush1.bf16.msra.mxu0 0
    %3367 = vmatprep.subr.bf16.mxu0 0
    %3368 = vmatpush1.bf16.msra.mxu0 0
    %3369 = vmatprep.subr.bf16.mxu0 0
    %3370 = vmatpush1.bf16.msra.mxu0 0
    %3371 = vmatprep.subr.bf16.mxu0 0
    %3372 = vmatpush1.bf16.msra.mxu0 0
    %3373 = vmatprep.subr.bf16.mxu0 0
    %3374 = vmatpush1.bf16.msra.mxu0 0
    %3375 = vmatprep.subr.bf16.mxu0 0
    %3376 = vmatpush1.bf16.msra.mxu0 0
    %3377 = vmatprep.mubr.bf16.mxu0 0
    %3378 = vmatmul.mubr.bf16.gmra.mrb[0].mxu0 %v3262
    %v3379 = vpop.f32.mrb[0].mxu0
    %v3380 = vadd.f32 %v3298, %v3379
    %v3381 = vpop.f32.mrb[0].mxu0
    %v3382 = vadd.f32 %v3300, %v3381
    %v3383 = vpop.f32.mrb[0].mxu0
    %v3384 = vpop.f32.mrb[0].mxu0
    %3385 = vdwg.mxu0
    %3386 = vmatprep.subr.bf16.mxu0 %v949
    %3387 = vmatpush1.bf16.msra.mxu0 %v948
    %3388 = vmatprep.subr.bf16.mxu0 %v953
    %3389 = vmatpush1.bf16.msra.mxu0 %v952
    %3390 = vmatprep.subr.bf16.mxu0 %v957
    %3391 = vmatpush1.bf16.msra.mxu0 %v956
    %3392 = vmatprep.subr.bf16.mxu0 %v961
    %3393 = vmatpush1.bf16.msra.mxu0 %v960
    %3394 = vmatprep.subr.bf16.mxu0 %v965
    %3395 = vmatpush1.bf16.msra.mxu0 %v964
    %3396 = vmatprep.subr.bf16.mxu0 %v969
    %3397 = vmatpush1.bf16.msra.mxu0 %v968
    %3398 = vmatprep.subr.bf16.mxu0 %v973
    %3399 = vmatpush1.bf16.msra.mxu0 %v972
    %3400 = vmatprep.subr.bf16.mxu0 %v977
    %3401 = vmatpush1.bf16.msra.mxu0 %v976
    %3402 = vmatprep.subr.bf16.mxu0 0
    %3403 = vmatpush1.bf16.msra.mxu0 0
    %3404 = vmatprep.subr.bf16.mxu0 0
    %3405 = vmatpush1.bf16.msra.mxu0 0
    %3406 = vmatprep.subr.bf16.mxu0 0
    %3407 = vmatpush1.bf16.msra.mxu0 0
    %3408 = vmatprep.subr.bf16.mxu0 0
    %3409 = vmatpush1.bf16.msra.mxu0 0
    %3410 = vmatprep.subr.bf16.mxu0 0
    %3411 = vmatpush1.bf16.msra.mxu0 0
    %3412 = vmatprep.subr.bf16.mxu0 0
    %3413 = vmatpush1.bf16.msra.mxu0 0
    %3414 = vmatprep.subr.bf16.mxu0 0
    %3415 = vmatpush1.bf16.msra.mxu0 0
    %3416 = vmatprep.subr.bf16.mxu0 0
    %3417 = vmatpush1.bf16.msra.mxu0 0
    %3418 = vmatprep.mubr.bf16.mxu0 0
    %3419 = vmatmul.mubr.bf16.gmra.mrb[0].mxu0 %v3262
    %v3420 = vpop.f32.mrb[0].mxu0
    %v3421 = vadd.f32 %v3339, %v3420
    %v3422 = vpop.f32.mrb[0].mxu0
    %v3423 = vadd.f32 %v3341, %v3422
    %v3424 = vpop.f32.mrb[0].mxu0
    %v3425 = vpop.f32.mrb[0].mxu0
    %3426 = vdwg.mxu0
    %v3427 = vadd.f32 %v3380, %v291
    %v3428 = vadd.f32 %v3382, %v295
    %v3429 = vadd.f32 %v3421, %v299
    %v3430 = vadd.f32 %v3423, %v303
    %v3431 = vxor.u32 %v3427, 2147483648
    %v3432 = vxor.u32 %v3428, 2147483648
    %v3433 = vxor.u32 %v3429, 2147483648
    %v3434 = vmul.f32 %v3431, 1.442695
    %v3435 = vpow.pop %v3434
    %v3436 = vmul.f32 %v3432, 1.442695
    %v3437 = vpow.pop %v3436
    %v3438 = vmul.f32 %v3433, 1.442695
    %v3439 = vpow.pop %v3438
    %v3440 = vadd.f32 %v3435, 1.0
    %v3441 = vadd.f32 %v3437, 1.0
    %v3442 = vadd.f32 %v3439, 1.0
    %v3443 = vrcp.pop %v3440
    %v3444 = vmul.f32 1.0, %v3443
    %v3445 = vrcp.pop %v3441
    %v3446 = vmul.f32 1.0, %v3445
    %v3447 = vrcp.pop %v3442
    %v3448 = vmul.f32 1.0, %v3447
    %v3449 = vtanh.pop %v3430
    %v3450 = vmul.f32 %v3446, %v2948
    %v3451 = vmul.f32 %v3444, %v3449
    %v3452 = vadd.f32 %v3450, %v3451
    %v3453 = vtanh.pop %v3452
    %v3454 = vmul.f32 %v3448, %v3453
    %v3455 = vpack.c.bf16 %v3454, %v3454
    %v3456 = vpack.c.bf16 %v3144, %v3144
    %3457 = vmatprep.subr.bf16.mxu0 %v1219
    %3458 = vmatpush1.bf16.msra.mxu0 %v1218
    %3459 = vmatprep.subr.bf16.mxu0 %v1223
    %3460 = vmatpush1.bf16.msra.mxu0 %v1222
    %3461 = vmatprep.subr.bf16.mxu0 %v1227
    %3462 = vmatpush1.bf16.msra.mxu0 %v1226
    %3463 = vmatprep.subr.bf16.mxu0 %v1231
    %3464 = vmatpush1.bf16.msra.mxu0 %v1230
    %3465 = vmatprep.subr.bf16.mxu0 %v1235
    %3466 = vmatpush1.bf16.msra.mxu0 %v1234
    %3467 = vmatprep.subr.bf16.mxu0 %v1239
    %3468 = vmatpush1.bf16.msra.mxu0 %v1238
    %3469 = vmatprep.subr.bf16.mxu0 %v1243
    %3470 = vmatpush1.bf16.msra.mxu0 %v1242
    %3471 = vmatprep.subr.bf16.mxu0 %v1247
    %3472 = vmatpush1.bf16.msra.mxu0 %v1246
    %3473 = vmatprep.subr.bf16.mxu0 0
    %3474 = vmatpush1.bf16.msra.mxu0 0
    %3475 = vmatprep.subr.bf16.mxu0 0
    %3476 = vmatpush1.bf16.msra.mxu0 0
    %3477 = vmatprep.subr.bf16.mxu0 0
    %3478 = vmatpush1.bf16.msra.mxu0 0
    %3479 = vmatprep.subr.bf16.mxu0 0
    %3480 = vmatpush1.bf16.msra.mxu0 0
    %3481 = vmatprep.subr.bf16.mxu0 0
    %3482 = vmatpush1.bf16.msra.mxu0 0
    %3483 = vmatprep.subr.bf16.mxu0 0
    %3484 = vmatpush1.bf16.msra.mxu0 0
    %3485 = vmatprep.subr.bf16.mxu0 0
    %3486 = vmatpush1.bf16.msra.mxu0 0
    %3487 = vmatprep.subr.bf16.mxu0 0
    %3488 = vmatpush1.bf16.msra.mxu0 0
    %3489 = vmatprep.mubr.bf16.mxu0 0
    %3490 = vmatmul.mubr.bf16.gmra.mrb[0].mxu0 %v3456
    %v3491 = vpop.f32.mrb[0].mxu0
    %v3492 = vadd.f32 0.0, %v3491
    %v3493 = vpop.f32.mrb[0].mxu0
    %v3494 = vadd.f32 0.0, %v3493
    %v3495 = vpop.f32.mrb[0].mxu0
    %v3496 = vpop.f32.mrb[0].mxu0
    %3497 = vdwg.mxu0
    %3498 = vmatprep.subr.bf16.mxu0 %v1221
    %3499 = vmatpush1.bf16.msra.mxu0 %v1220
    %3500 = vmatprep.subr.bf16.mxu0 %v1225
    %3501 = vmatpush1.bf16.msra.mxu0 %v1224
    %3502 = vmatprep.subr.bf16.mxu0 %v1229
    %3503 = vmatpush1.bf16.msra.mxu0 %v1228
    %3504 = vmatprep.subr.bf16.mxu0 %v1233
    %3505 = vmatpush1.bf16.msra.mxu0 %v1232
    %3506 = vmatprep.subr.bf16.mxu0 %v1237
    %3507 = vmatpush1.bf16.msra.mxu0 %v1236
    %3508 = vmatprep.subr.bf16.mxu0 %v1241
    %3509 = vmatpush1.bf16.msra.mxu0 %v1240
    %3510 = vmatprep.subr.bf16.mxu0 %v1245
    %3511 = vmatpush1.bf16.msra.mxu0 %v1244
    %3512 = vmatprep.subr.bf16.mxu0 %v1249
    %3513 = vmatpush1.bf16.msra.mxu0 %v1248
    %3514 = vmatprep.subr.bf16.mxu0 0
    %3515 = vmatpush1.bf16.msra.mxu0 0
    %3516 = vmatprep.subr.bf16.mxu0 0
    %3517 = vmatpush1.bf16.msra.mxu0 0
    %3518 = vmatprep.subr.bf16.mxu0 0
    %3519 = vmatpush1.bf16.msra.mxu0 0
    %3520 = vmatprep.subr.bf16.mxu0 0
    %3521 = vmatpush1.bf16.msra.mxu0 0
    %3522 = vmatprep.subr.bf16.mxu0 0
    %3523 = vmatpush1.bf16.msra.mxu0 0
    %3524 = vmatprep.subr.bf16.mxu0 0
    %3525 = vmatpush1.bf16.msra.mxu0 0
    %3526 = vmatprep.subr.bf16.mxu0 0
    %3527 = vmatpush1.bf16.msra.mxu0 0
    %3528 = vmatprep.subr.bf16.mxu0 0
    %3529 = vmatpush1.bf16.msra.mxu0 0
    %3530 = vmatprep.mubr.bf16.mxu0 0
    %3531 = vmatmul.mubr.bf16.gmra.mrb[0].mxu0 %v3456
    %v3532 = vpop.f32.mrb[0].mxu0
    %v3533 = vadd.f32 0.0, %v3532
    %v3534 = vpop.f32.mrb[0].mxu0
    %v3535 = vadd.f32 0.0, %v3534
    %v3536 = vpop.f32.mrb[0].mxu0
    %v3537 = vpop.f32.mrb[0].mxu0
    %3538 = vdwg.mxu0
    %3539 = vmatprep.subr.bf16.mxu0 %v1461
    %3540 = vmatpush1.bf16.msra.mxu0 %v1460
    %3541 = vmatprep.subr.bf16.mxu0 %v1465
    %3542 = vmatpush1.bf16.msra.mxu0 %v1464
    %3543 = vmatprep.subr.bf16.mxu0 %v1469
    %3544 = vmatpush1.bf16.msra.mxu0 %v1468
    %3545 = vmatprep.subr.bf16.mxu0 %v1473
    %3546 = vmatpush1.bf16.msra.mxu0 %v1472
    %3547 = vmatprep.subr.bf16.mxu0 %v1477
    %3548 = vmatpush1.bf16.msra.mxu0 %v1476
    %3549 = vmatprep.subr.bf16.mxu0 %v1481
    %3550 = vmatpush1.bf16.msra.mxu0 %v1480
    %3551 = vmatprep.subr.bf16.mxu0 %v1485
    %3552 = vmatpush1.bf16.msra.mxu0 %v1484
    %3553 = vmatprep.subr.bf16.mxu0 %v1489
    %3554 = vmatpush1.bf16.msra.mxu0 %v1488
    %3555 = vmatprep.subr.bf16.mxu0 0
    %3556 = vmatpush1.bf16.msra.mxu0 0
    %3557 = vmatprep.subr.bf16.mxu0 0
    %3558 = vmatpush1.bf16.msra.mxu0 0
    %3559 = vmatprep.subr.bf16.mxu0 0
    %3560 = vmatpush1.bf16.msra.mxu0 0
    %3561 = vmatprep.subr.bf16.mxu0 0
    %3562 = vmatpush1.bf16.msra.mxu0 0
    %3563 = vmatprep.subr.bf16.mxu0 0
    %3564 = vmatpush1.bf16.msra.mxu0 0
    %3565 = vmatprep.subr.bf16.mxu0 0
    %3566 = vmatpush1.bf16.msra.mxu0 0
    %3567 = vmatprep.subr.bf16.mxu0 0
    %3568 = vmatpush1.bf16.msra.mxu0 0
    %3569 = vmatprep.subr.bf16.mxu0 0
    %3570 = vmatpush1.bf16.msra.mxu0 0
    %3571 = vmatprep.mubr.bf16.mxu0 0
    %3572 = vmatmul.mubr.bf16.gmra.mrb[0].mxu0 %v3455
    %v3573 = vpop.f32.mrb[0].mxu0
    %v3574 = vadd.f32 %v3492, %v3573
    %v3575 = vpop.f32.mrb[0].mxu0
    %v3576 = vadd.f32 %v3494, %v3575
    %v3577 = vpop.f32.mrb[0].mxu0
    %v3578 = vpop.f32.mrb[0].mxu0
    %3579 = vdwg.mxu0
    %3580 = vmatprep.subr.bf16.mxu0 %v1463
    %3581 = vmatpush1.bf16.msra.mxu0 %v1462
    %3582 = vmatprep.subr.bf16.mxu0 %v1467
    %3583 = vmatpush1.bf16.msra.mxu0 %v1466
    %3584 = vmatprep.subr.bf16.mxu0 %v1471
    %3585 = vmatpush1.bf16.msra.mxu0 %v1470
    %3586 = vmatprep.subr.bf16.mxu0 %v1475
    %3587 = vmatpush1.bf16.msra.mxu0 %v1474
    %3588 = vmatprep.subr.bf16.mxu0 %v1479
    %3589 = vmatpush1.bf16.msra.mxu0 %v1478
    %3590 = vmatprep.subr.bf16.mxu0 %v1483
    %3591 = vmatpush1.bf16.msra.mxu0 %v1482
    %3592 = vmatprep.subr.bf16.mxu0 %v1487
    %3593 = vmatpush1.bf16.msra.mxu0 %v1486
    %3594 = vmatprep.subr.bf16.mxu0 %v1491
    %3595 = vmatpush1.bf16.msra.mxu0 %v1490
    %3596 = vmatprep.subr.bf16.mxu0 0
    %3597 = vmatpush1.bf16.msra.mxu0 0
    %3598 = vmatprep.subr.bf16.mxu0 0
    %3599 = vmatpush1.bf16.msra.mxu0 0
    %3600 = vmatprep.subr.bf16.mxu0 0
    %3601 = vmatpush1.bf16.msra.mxu0 0
    %3602 = vmatprep.subr.bf16.mxu0 0
    %3603 = vmatpush1.bf16.msra.mxu0 0
    %3604 = vmatprep.subr.bf16.mxu0 0
    %3605 = vmatpush1.bf16.msra.mxu0 0
    %3606 = vmatprep.subr.bf16.mxu0 0
    %3607 = vmatpush1.bf16.msra.mxu0 0
    %3608 = vmatprep.subr.bf16.mxu0 0
    %3609 = vmatpush1.bf16.msra.mxu0 0
    %3610 = vmatprep.subr.bf16.mxu0 0
    %3611 = vmatpush1.bf16.msra.mxu0 0
    %3612 = vmatprep.mubr.bf16.mxu0 0
    %3613 = vmatmul.mubr.bf16.gmra.mrb[0].mxu0 %v3455
    %v3614 = vpop.f32.mrb[0].mxu0
    %v3615 = vadd.f32 %v3533, %v3614
    %v3616 = vpop.f32.mrb[0].mxu0
    %v3617 = vadd.f32 %v3535, %v3616
    %v3618 = vpop.f32.mrb[0].mxu0
    %v3619 = vpop.f32.mrb[0].mxu0
    %3620 = vdwg.mxu0
    %v3621 = vadd.f32 %v3574, %v314
    %v3622 = vadd.f32 %v3576, %v318
    %v3623 = vadd.f32 %v3615, %v322
    %v3624 = vadd.f32 %v3617, %v326
    %v3625 = vxor.u32 %v3621, 2147483648
    %v3626 = vxor.u32 %v3622, 2147483648
    %v3627 = vxor.u32 %v3623, 2147483648
    %v3628 = vmul.f32 %v3625, 1.442695
    %v3629 = vpow.pop %v3628
    %v3630 = vmul.f32 %v3626, 1.442695
    %v3631 = vpow.pop %v3630
    %v3632 = vmul.f32 %v3627, 1.442695
    %v3633 = vpow.pop %v3632
    %v3634 = vadd.f32 %v3629, 1.0
    %v3635 = vadd.f32 %v3631, 1.0
    %v3636 = vadd.f32 %v3633, 1.0
    %v3637 = vrcp.pop %v3634
    %v3638 = vmul.f32 1.0, %v3637
    %v3639 = vrcp.pop %v3635
    %v3640 = vmul.f32 1.0, %v3639
    %v3641 = vrcp.pop %v3636
    %v3642 = vmul.f32 1.0, %v3641
    %v3643 = vtanh.pop %v3624
    %v3644 = vmul.f32 %v3640, %v3142
    %v3645 = vmul.f32 %v3638, %v3643
    %v3646 = vadd.f32 %v3644, %v3645
    %v3647 = vtanh.pop %v3646
    %v3648 = vmul.f32 %v3642, %v3647
    %s3649 = scalar_lea.vmem [#allocation11], 32
    %3650 = vst [vmem:[%s3649] sm:$0xff] %v3648
    %s3651 = scalar_lea.vmem [#allocation2], 160
    %v3652 = vld [vmem:[%s3651] sm:$0xff]
    %v3653 = vld [vmem:[%s3651 + $0x8] sm:$0xff]
    %v3654 = vld [vmem:[%s3651 + $0x10] sm:$0xff]
    %v3655 = vld [vmem:[%s3651 + $0x18] sm:$0xff]
    %3656 = vmatprep.subr.bf16.mxu0 %v433
    %3657 = vmatpush1.bf16.msra.mxu0 %v432
    %3658 = vmatprep.subr.bf16.mxu0 %v437
    %3659 = vmatpush1.bf16.msra.mxu0 %v436
    %3660 = vmatprep.subr.bf16.mxu0 %v441
    %3661 = vmatpush1.bf16.msra.mxu0 %v440
    %3662 = vmatprep.subr.bf16.mxu0 %v445
    %3663 = vmatpush1.bf16.msra.mxu0 %v444
    %3664 = vmatprep.subr.bf16.mxu0 %v449
    %3665 = vmatpush1.bf16.msra.mxu0 %v448
    %3666 = vmatprep.subr.bf16.mxu0 %v453
    %3667 = vmatpush1.bf16.msra.mxu0 %v452
    %3668 = vmatprep.subr.bf16.mxu0 %v457
    %3669 = vmatpush1.bf16.msra.mxu0 %v456
    %3670 = vmatprep.subr.bf16.mxu0 %v461
    %3671 = vmatpush1.bf16.msra.mxu0 %v460
    %3672 = vmatprep.subr.bf16.mxu0 0
    %3673 = vmatpush1.bf16.msra.mxu0 0
    %3674 = vmatprep.subr.bf16.mxu0 0
    %3675 = vmatpush1.bf16.msra.mxu0 0
    %3676 = vmatprep.subr.bf16.mxu0 0
    %3677 = vmatpush1.bf16.msra.mxu0 0
    %3678 = vmatprep.subr.bf16.mxu0 0
    %3679 = vmatpush1.bf16.msra.mxu0 0
    %3680 = vmatprep.subr.bf16.mxu0 0
    %3681 = vmatpush1.bf16.msra.mxu0 0
    %3682 = vmatprep.subr.bf16.mxu0 0
    %3683 = vmatpush1.bf16.msra.mxu0 0
    %3684 = vmatprep.subr.bf16.mxu0 0
    %3685 = vmatpush1.bf16.msra.mxu0 0
    %3686 = vmatprep.subr.bf16.mxu0 0
    %3687 = vmatpush1.bf16.msra.mxu0 0
    %3688 = vmatprep.mubr.bf16.mxu0 0
    %3689 = vmatmul.mubr.bf16.gmra.mrb[0].mxu0 %v3262
    %v3690 = vpop.f32.mrb[0].mxu0
    %v3691 = vadd.f32 0.0, %v3690
    %v3692 = vpop.f32.mrb[0].mxu0
    %v3693 = vadd.f32 0.0, %v3692
    %v3694 = vpop.f32.mrb[0].mxu0
    %v3695 = vpop.f32.mrb[0].mxu0
    %3696 = vdwg.mxu0
    %3697 = vmatprep.subr.bf16.mxu0 %v435
    %3698 = vmatpush1.bf16.msra.mxu0 %v434
    %3699 = vmatprep.subr.bf16.mxu0 %v439
    %3700 = vmatpush1.bf16.msra.mxu0 %v438
    %3701 = vmatprep.subr.bf16.mxu0 %v443
    %3702 = vmatpush1.bf16.msra.mxu0 %v442
    %3703 = vmatprep.subr.bf16.mxu0 %v447
    %3704 = vmatpush1.bf16.msra.mxu0 %v446
    %3705 = vmatprep.subr.bf16.mxu0 %v451
    %3706 = vmatpush1.bf16.msra.mxu0 %v450
    %3707 = vmatprep.subr.bf16.mxu0 %v455
    %3708 = vmatpush1.bf16.msra.mxu0 %v454
    %3709 = vmatprep.subr.bf16.mxu0 %v459
    %3710 = vmatpush1.bf16.msra.mxu0 %v458
    %3711 = vmatprep.subr.bf16.mxu0 %v463
    %3712 = vmatpush1.bf16.msra.mxu0 %v462
    %3713 = vmatprep.subr.bf16.mxu0 0
    %3714 = vmatpush1.bf16.msra.mxu0 0
    %3715 = vmatprep.subr.bf16.mxu0 0
    %3716 = vmatpush1.bf16.msra.mxu0 0
    %3717 = vmatprep.subr.bf16.mxu0 0
    %3718 = vmatpush1.bf16.msra.mxu0 0
    %3719 = vmatprep.subr.bf16.mxu0 0
    %3720 = vmatpush1.bf16.msra.mxu0 0
    %3721 = vmatprep.subr.bf16.mxu0 0
    %3722 = vmatpush1.bf16.msra.mxu0 0
    %3723 = vmatprep.subr.bf16.mxu0 0
    %3724 = vmatpush1.bf16.msra.mxu0 0
    %3725 = vmatprep.subr.bf16.mxu0 0
    %3726 = vmatpush1.bf16.msra.mxu0 0
    %3727 = vmatprep.subr.bf16.mxu0 0
    %3728 = vmatpush1.bf16.msra.mxu0 0
    %3729 = vmatprep.mubr.bf16.mxu0 0
    %3730 = vmatmul.mubr.bf16.gmra.mrb[0].mxu0 %v3262
    %v3731 = vpop.f32.mrb[0].mxu0
    %v3732 = vadd.f32 0.0, %v3731
    %v3733 = vpop.f32.mrb[0].mxu0
    %v3734 = vadd.f32 0.0, %v3733
    %v3735 = vpop.f32.mrb[0].mxu0
    %v3736 = vpop.f32.mrb[0].mxu0
    %3737 = vdwg.mxu0
    %v3738 = vadd.f32 %v3652, %v3691
    %v3739 = vadd.f32 %v3653, %v3693
    %v3740 = vadd.f32 %v3654, %v3732
    %v3741 = vadd.f32 %v3655, %v3734
    %v3742 = vxor.u32 %v3738, 2147483648
    %v3743 = vxor.u32 %v3739, 2147483648
    %v3744 = vxor.u32 %v3740, 2147483648
    %v3745 = vmul.f32 %v3742, 1.442695
    %v3746 = vpow.pop %v3745
    %v3747 = vmul.f32 %v3743, 1.442695
    %v3748 = vpow.pop %v3747
    %v3749 = vmul.f32 %v3744, 1.442695
    %v3750 = vpow.pop %v3749
    %v3751 = vadd.f32 %v3746, 1.0
    %v3752 = vadd.f32 %v3748, 1.0
    %v3753 = vadd.f32 %v3750, 1.0
    %v3754 = vrcp.pop %v3751
    %v3755 = vmul.f32 1.0, %v3754
    %v3756 = vrcp.pop %v3752
    %v3757 = vmul.f32 1.0, %v3756
    %v3758 = vrcp.pop %v3753
    %v3759 = vmul.f32 1.0, %v3758
    %v3760 = vtanh.pop %v3741
    %v3761 = vmul.f32 %v3757, %v3259
    %v3762 = vmul.f32 %v3755, %v3760
    %v3763 = vadd.f32 %v3761, %v3762
    %v3764 = vtanh.pop %v3763
    %v3765 = vmul.f32 %v3759, %v3764
    %v3766 = vpack.c.bf16 %v3765, %v3765
    %3767 = vmatprep.subr.bf16.mxu0 %v705
    %3768 = vmatpush1.bf16.msra.mxu0 %v704
    %3769 = vmatprep.subr.bf16.mxu0 %v709
    %3770 = vmatpush1.bf16.msra.mxu0 %v708
    %3771 = vmatprep.subr.bf16.mxu0 %v713
    %3772 = vmatpush1.bf16.msra.mxu0 %v712
    %3773 = vmatprep.subr.bf16.mxu0 %v717
    %3774 = vmatpush1.bf16.msra.mxu0 %v716
    %3775 = vmatprep.subr.bf16.mxu0 %v721
    %3776 = vmatpush1.bf16.msra.mxu0 %v720
    %3777 = vmatprep.subr.bf16.mxu0 %v725
    %3778 = vmatpush1.bf16.msra.mxu0 %v724
    %3779 = vmatprep.subr.bf16.mxu0 %v729
    %3780 = vmatpush1.bf16.msra.mxu0 %v728
    %3781 = vmatprep.subr.bf16.mxu0 %v733
    %3782 = vmatpush1.bf16.msra.mxu0 %v732
    %3783 = vmatprep.subr.bf16.mxu0 0
    %3784 = vmatpush1.bf16.msra.mxu0 0
    %3785 = vmatprep.subr.bf16.mxu0 0
    %3786 = vmatpush1.bf16.msra.mxu0 0
    %3787 = vmatprep.subr.bf16.mxu0 0
    %3788 = vmatpush1.bf16.msra.mxu0 0
    %3789 = vmatprep.subr.bf16.mxu0 0
    %3790 = vmatpush1.bf16.msra.mxu0 0
    %3791 = vmatprep.subr.bf16.mxu0 0
    %3792 = vmatpush1.bf16.msra.mxu0 0
    %3793 = vmatprep.subr.bf16.mxu0 0
    %3794 = vmatpush1.bf16.msra.mxu0 0
    %3795 = vmatprep.subr.bf16.mxu0 0
    %3796 = vmatpush1.bf16.msra.mxu0 0
    %3797 = vmatprep.subr.bf16.mxu0 0
    %3798 = vmatpush1.bf16.msra.mxu0 0
    %3799 = vmatprep.mubr.bf16.mxu0 0
    %3800 = vmatmul.mubr.bf16.gmra.mrb[0].mxu0 %v3455
    %v3801 = vpop.f32.mrb[0].mxu0
    %v3802 = vadd.f32 0.0, %v3801
    %v3803 = vpop.f32.mrb[0].mxu0
    %v3804 = vadd.f32 0.0, %v3803
    %v3805 = vpop.f32.mrb[0].mxu0
    %v3806 = vpop.f32.mrb[0].mxu0
    %3807 = vdwg.mxu0
    %3808 = vmatprep.subr.bf16.mxu0 %v707
    %3809 = vmatpush1.bf16.msra.mxu0 %v706
    %3810 = vmatprep.subr.bf16.mxu0 %v711
    %3811 = vmatpush1.bf16.msra.mxu0 %v710
    %3812 = vmatprep.subr.bf16.mxu0 %v715
    %3813 = vmatpush1.bf16.msra.mxu0 %v714
    %3814 = vmatprep.subr.bf16.mxu0 %v719
    %3815 = vmatpush1.bf16.msra.mxu0 %v718
    %3816 = vmatprep.subr.bf16.mxu0 %v723
    %3817 = vmatpush1.bf16.msra.mxu0 %v722
    %3818 = vmatprep.subr.bf16.mxu0 %v727
    %3819 = vmatpush1.bf16.msra.mxu0 %v726
    %3820 = vmatprep.subr.bf16.mxu0 %v731
    %3821 = vmatpush1.bf16.msra.mxu0 %v730
    %3822 = vmatprep.subr.bf16.mxu0 %v735
    %3823 = vmatpush1.bf16.msra.mxu0 %v734
    %3824 = vmatprep.subr.bf16.mxu0 0
    %3825 = vmatpush1.bf16.msra.mxu0 0
    %3826 = vmatprep.subr.bf16.mxu0 0
    %3827 = vmatpush1.bf16.msra.mxu0 0
    %3828 = vmatprep.subr.bf16.mxu0 0
    %3829 = vmatpush1.bf16.msra.mxu0 0
    %3830 = vmatprep.subr.bf16.mxu0 0
    %3831 = vmatpush1.bf16.msra.mxu0 0
    %3832 = vmatprep.subr.bf16.mxu0 0
    %3833 = vmatpush1.bf16.msra.mxu0 0
    %3834 = vmatprep.subr.bf16.mxu0 0
    %3835 = vmatpush1.bf16.msra.mxu0 0
    %3836 = vmatprep.subr.bf16.mxu0 0
    %3837 = vmatpush1.bf16.msra.mxu0 0
    %3838 = vmatprep.subr.bf16.mxu0 0
    %3839 = vmatpush1.bf16.msra.mxu0 0
    %3840 = vmatprep.mubr.bf16.mxu0 0
    %3841 = vmatmul.mubr.bf16.gmra.mrb[0].mxu0 %v3455
    %v3842 = vpop.f32.mrb[0].mxu0
    %v3843 = vadd.f32 0.0, %v3842
    %v3844 = vpop.f32.mrb[0].mxu0
    %v3845 = vadd.f32 0.0, %v3844
    %v3846 = vpop.f32.mrb[0].mxu0
    %v3847 = vpop.f32.mrb[0].mxu0
    %3848 = vdwg.mxu0
    %3849 = vmatprep.subr.bf16.mxu0 %v947
    %3850 = vmatpush1.bf16.msra.mxu0 %v946
    %3851 = vmatprep.subr.bf16.mxu0 %v951
    %3852 = vmatpush1.bf16.msra.mxu0 %v950
    %3853 = vmatprep.subr.bf16.mxu0 %v955
    %3854 = vmatpush1.bf16.msra.mxu0 %v954
    %3855 = vmatprep.subr.bf16.mxu0 %v959
    %3856 = vmatpush1.bf16.msra.mxu0 %v958
    %3857 = vmatprep.subr.bf16.mxu0 %v963
    %3858 = vmatpush1.bf16.msra.mxu0 %v962
    %3859 = vmatprep.subr.bf16.mxu0 %v967
    %3860 = vmatpush1.bf16.msra.mxu0 %v966
    %3861 = vmatprep.subr.bf16.mxu0 %v971
    %3862 = vmatpush1.bf16.msra.mxu0 %v970
    %3863 = vmatprep.subr.bf16.mxu0 %v975
    %3864 = vmatpush1.bf16.msra.mxu0 %v974
    %3865 = vmatprep.subr.bf16.mxu0 0
    %3866 = vmatpush1.bf16.msra.mxu0 0
    %3867 = vmatprep.subr.bf16.mxu0 0
    %3868 = vmatpush1.bf16.msra.mxu0 0
    %3869 = vmatprep.subr.bf16.mxu0 0
    %3870 = vmatpush1.bf16.msra.mxu0 0
    %3871 = vmatprep.subr.bf16.mxu0 0
    %3872 = vmatpush1.bf16.msra.mxu0 0
    %3873 = vmatprep.subr.bf16.mxu0 0
    %3874 = vmatpush1.bf16.msra.mxu0 0
    %3875 = vmatprep.subr.bf16.mxu0 0
    %3876 = vmatpush1.bf16.msra.mxu0 0
    %3877 = vmatprep.subr.bf16.mxu0 0
    %3878 = vmatpush1.bf16.msra.mxu0 0
    %3879 = vmatprep.subr.bf16.mxu0 0
    %3880 = vmatpush1.bf16.msra.mxu0 0
    %3881 = vmatprep.mubr.bf16.mxu0 0
    %3882 = vmatmul.mubr.bf16.gmra.mrb[0].mxu0 %v3766
    %v3883 = vpop.f32.mrb[0].mxu0
    %v3884 = vadd.f32 %v3802, %v3883
    %v3885 = vpop.f32.mrb[0].mxu0
    %v3886 = vadd.f32 %v3804, %v3885
    %v3887 = vpop.f32.mrb[0].mxu0
    %v3888 = vpop.f32.mrb[0].mxu0
    %3889 = vdwg.mxu0
    %3890 = vmatprep.subr.bf16.mxu0 %v949
    %3891 = vmatpush1.bf16.msra.mxu0 %v948
    %3892 = vmatprep.subr.bf16.mxu0 %v953
    %3893 = vmatpush1.bf16.msra.mxu0 %v952
    %3894 = vmatprep.subr.bf16.mxu0 %v957
    %3895 = vmatpush1.bf16.msra.mxu0 %v956
    %3896 = vmatprep.subr.bf16.mxu0 %v961
    %3897 = vmatpush1.bf16.msra.mxu0 %v960
    %3898 = vmatprep.subr.bf16.mxu0 %v965
    %3899 = vmatpush1.bf16.msra.mxu0 %v964
    %3900 = vmatprep.subr.bf16.mxu0 %v969
    %3901 = vmatpush1.bf16.msra.mxu0 %v968
    %3902 = vmatprep.subr.bf16.mxu0 %v973
    %3903 = vmatpush1.bf16.msra.mxu0 %v972
    %3904 = vmatprep.subr.bf16.mxu0 %v977
    %3905 = vmatpush1.bf16.msra.mxu0 %v976
    %3906 = vmatprep.subr.bf16.mxu0 0
    %3907 = vmatpush1.bf16.msra.mxu0 0
    %3908 = vmatprep.subr.bf16.mxu0 0
    %3909 = vmatpush1.bf16.msra.mxu0 0
    %3910 = vmatprep.subr.bf16.mxu0 0
    %3911 = vmatpush1.bf16.msra.mxu0 0
    %3912 = vmatprep.subr.bf16.mxu0 0
    %3913 = vmatpush1.bf16.msra.mxu0 0
    %3914 = vmatprep.subr.bf16.mxu0 0
    %3915 = vmatpush1.bf16.msra.mxu0 0
    %3916 = vmatprep.subr.bf16.mxu0 0
    %3917 = vmatpush1.bf16.msra.mxu0 0
    %3918 = vmatprep.subr.bf16.mxu0 0
    %3919 = vmatpush1.bf16.msra.mxu0 0
    %3920 = vmatprep.subr.bf16.mxu0 0
    %3921 = vmatpush1.bf16.msra.mxu0 0
    %3922 = vmatprep.mubr.bf16.mxu0 0
    %3923 = vmatmul.mubr.bf16.gmra.mrb[0].mxu0 %v3766
    %v3924 = vpop.f32.mrb[0].mxu0
    %v3925 = vadd.f32 %v3843, %v3924
    %v3926 = vpop.f32.mrb[0].mxu0
    %v3927 = vadd.f32 %v3845, %v3926
    %v3928 = vpop.f32.mrb[0].mxu0
    %v3929 = vpop.f32.mrb[0].mxu0
    %3930 = vdwg.mxu0
    %v3931 = vadd.f32 %v3884, %v291
    %v3932 = vadd.f32 %v3886, %v295
    %v3933 = vadd.f32 %v3925, %v299
    %v3934 = vadd.f32 %v3927, %v303
    %v3935 = vxor.u32 %v3931, 2147483648
    %v3936 = vxor.u32 %v3932, 2147483648
    %v3937 = vxor.u32 %v3933, 2147483648
    %v3938 = vmul.f32 %v3935, 1.442695
    %v3939 = vpow.pop %v3938
    %v3940 = vmul.f32 %v3936, 1.442695
    %v3941 = vpow.pop %v3940
    %v3942 = vmul.f32 %v3937, 1.442695
    %v3943 = vpow.pop %v3942
    %v3944 = vadd.f32 %v3939, 1.0
    %v3945 = vadd.f32 %v3941, 1.0
    %v3946 = vadd.f32 %v3943, 1.0
    %v3947 = vrcp.pop %v3944
    %v3948 = vmul.f32 1.0, %v3947
    %v3949 = vrcp.pop %v3945
    %v3950 = vmul.f32 1.0, %v3949
    %v3951 = vrcp.pop %v3946
    %v3952 = vmul.f32 1.0, %v3951
    %v3953 = vtanh.pop %v3934
    %v3954 = vmul.f32 %v3950, %v3452
    %v3955 = vmul.f32 %v3948, %v3953
    %v3956 = vadd.f32 %v3954, %v3955
    %v3957 = vtanh.pop %v3956
    %v3958 = vmul.f32 %v3952, %v3957
    %v3959 = vpack.c.bf16 %v3958, %v3958
    %v3960 = vpack.c.bf16 %v3648, %v3648
    %3961 = vmatprep.subr.bf16.mxu0 %v1219
    %3962 = vmatpush1.bf16.msra.mxu0 %v1218
    %3963 = vmatprep.subr.bf16.mxu0 %v1223
    %3964 = vmatpush1.bf16.msra.mxu0 %v1222
    %3965 = vmatprep.subr.bf16.mxu0 %v1227
    %3966 = vmatpush1.bf16.msra.mxu0 %v1226
    %3967 = vmatprep.subr.bf16.mxu0 %v1231
    %3968 = vmatpush1.bf16.msra.mxu0 %v1230
    %3969 = vmatprep.subr.bf16.mxu0 %v1235
    %3970 = vmatpush1.bf16.msra.mxu0 %v1234
    %3971 = vmatprep.subr.bf16.mxu0 %v1239
    %3972 = vmatpush1.bf16.msra.mxu0 %v1238
    %3973 = vmatprep.subr.bf16.mxu0 %v1243
    %3974 = vmatpush1.bf16.msra.mxu0 %v1242
    %3975 = vmatprep.subr.bf16.mxu0 %v1247
    %3976 = vmatpush1.bf16.msra.mxu0 %v1246
    %3977 = vmatprep.subr.bf16.mxu0 0
    %3978 = vmatpush1.bf16.msra.mxu0 0
    %3979 = vmatprep.subr.bf16.mxu0 0
    %3980 = vmatpush1.bf16.msra.mxu0 0
    %3981 = vmatprep.subr.bf16.mxu0 0
    %3982 = vmatpush1.bf16.msra.mxu0 0
    %3983 = vmatprep.subr.bf16.mxu0 0
    %3984 = vmatpush1.bf16.msra.mxu0 0
    %3985 = vmatprep.subr.bf16.mxu0 0
    %3986 = vmatpush1.bf16.msra.mxu0 0
    %3987 = vmatprep.subr.bf16.mxu0 0
    %3988 = vmatpush1.bf16.msra.mxu0 0
    %3989 = vmatprep.subr.bf16.mxu0 0
    %3990 = vmatpush1.bf16.msra.mxu0 0
    %3991 = vmatprep.subr.bf16.mxu0 0
    %3992 = vmatpush1.bf16.msra.mxu0 0
    %3993 = vmatprep.mubr.bf16.mxu0 0
    %3994 = vmatmul.mubr.bf16.gmra.mrb[0].mxu0 %v3960
    %v3995 = vpop.f32.mrb[0].mxu0
    %v3996 = vadd.f32 0.0, %v3995
    %v3997 = vpop.f32.mrb[0].mxu0
    %v3998 = vadd.f32 0.0, %v3997
    %v3999 = vpop.f32.mrb[0].mxu0
    %v4000 = vpop.f32.mrb[0].mxu0
    %4001 = vdwg.mxu0
    %4002 = vmatprep.subr.bf16.mxu0 %v1221
    %4003 = vmatpush1.bf16.msra.mxu0 %v1220
    %4004 = vmatprep.subr.bf16.mxu0 %v1225
    %4005 = vmatpush1.bf16.msra.mxu0 %v1224
    %4006 = vmatprep.subr.bf16.mxu0 %v1229
    %4007 = vmatpush1.bf16.msra.mxu0 %v1228
    %4008 = vmatprep.subr.bf16.mxu0 %v1233
    %4009 = vmatpush1.bf16.msra.mxu0 %v1232
    %4010 = vmatprep.subr.bf16.mxu0 %v1237
    %4011 = vmatpush1.bf16.msra.mxu0 %v1236
    %4012 = vmatprep.subr.bf16.mxu0 %v1241
    %4013 = vmatpush1.bf16.msra.mxu0 %v1240
    %4014 = vmatprep.subr.bf16.mxu0 %v1245
    %4015 = vmatpush1.bf16.msra.mxu0 %v1244
    %4016 = vmatprep.subr.bf16.mxu0 %v1249
    %4017 = vmatpush1.bf16.msra.mxu0 %v1248
    %4018 = vmatprep.subr.bf16.mxu0 0
    %4019 = vmatpush1.bf16.msra.mxu0 0
    %4020 = vmatprep.subr.bf16.mxu0 0
    %4021 = vmatpush1.bf16.msra.mxu0 0
    %4022 = vmatprep.subr.bf16.mxu0 0
    %4023 = vmatpush1.bf16.msra.mxu0 0
    %4024 = vmatprep.subr.bf16.mxu0 0
    %4025 = vmatpush1.bf16.msra.mxu0 0
    %4026 = vmatprep.subr.bf16.mxu0 0
    %4027 = vmatpush1.bf16.msra.mxu0 0
    %4028 = vmatprep.subr.bf16.mxu0 0
    %4029 = vmatpush1.bf16.msra.mxu0 0
    %4030 = vmatprep.subr.bf16.mxu0 0
    %4031 = vmatpush1.bf16.msra.mxu0 0
    %4032 = vmatprep.subr.bf16.mxu0 0
    %4033 = vmatpush1.bf16.msra.mxu0 0
    %4034 = vmatprep.mubr.bf16.mxu0 0
    %4035 = vmatmul.mubr.bf16.gmra.mrb[0].mxu0 %v3960
    %v4036 = vpop.f32.mrb[0].mxu0
    %v4037 = vadd.f32 0.0, %v4036
    %v4038 = vpop.f32.mrb[0].mxu0
    %v4039 = vadd.f32 0.0, %v4038
    %v4040 = vpop.f32.mrb[0].mxu0
    %v4041 = vpop.f32.mrb[0].mxu0
    %4042 = vdwg.mxu0
    %4043 = vmatprep.subr.bf16.mxu0 %v1461
    %4044 = vmatpush1.bf16.msra.mxu0 %v1460
    %4045 = vmatprep.subr.bf16.mxu0 %v1465
    %4046 = vmatpush1.bf16.msra.mxu0 %v1464
    %4047 = vmatprep.subr.bf16.mxu0 %v1469
    %4048 = vmatpush1.bf16.msra.mxu0 %v1468
    %4049 = vmatprep.subr.bf16.mxu0 %v1473
    %4050 = vmatpush1.bf16.msra.mxu0 %v1472
    %4051 = vmatprep.subr.bf16.mxu0 %v1477
    %4052 = vmatpush1.bf16.msra.mxu0 %v1476
    %4053 = vmatprep.subr.bf16.mxu0 %v1481
    %4054 = vmatpush1.bf16.msra.mxu0 %v1480
    %4055 = vmatprep.subr.bf16.mxu0 %v1485
    %4056 = vmatpush1.bf16.msra.mxu0 %v1484
    %4057 = vmatprep.subr.bf16.mxu0 %v1489
    %4058 = vmatpush1.bf16.msra.mxu0 %v1488
    %4059 = vmatprep.subr.bf16.mxu0 0
    %4060 = vmatpush1.bf16.msra.mxu0 0
    %4061 = vmatprep.subr.bf16.mxu0 0
    %4062 = vmatpush1.bf16.msra.mxu0 0
    %4063 = vmatprep.subr.bf16.mxu0 0
    %4064 = vmatpush1.bf16.msra.mxu0 0
    %4065 = vmatprep.subr.bf16.mxu0 0
    %4066 = vmatpush1.bf16.msra.mxu0 0
    %4067 = vmatprep.subr.bf16.mxu0 0
    %4068 = vmatpush1.bf16.msra.mxu0 0
    %4069 = vmatprep.subr.bf16.mxu0 0
    %4070 = vmatpush1.bf16.msra.mxu0 0
    %4071 = vmatprep.subr.bf16.mxu0 0
    %4072 = vmatpush1.bf16.msra.mxu0 0
    %4073 = vmatprep.subr.bf16.mxu0 0
    %4074 = vmatpush1.bf16.msra.mxu0 0
    %4075 = vmatprep.mubr.bf16.mxu0 0
    %4076 = vmatmul.mubr.bf16.gmra.mrb[0].mxu0 %v3959
    %v4077 = vpop.f32.mrb[0].mxu0
    %v4078 = vadd.f32 %v3996, %v4077
    %v4079 = vpop.f32.mrb[0].mxu0
    %v4080 = vadd.f32 %v3998, %v4079
    %v4081 = vpop.f32.mrb[0].mxu0
    %v4082 = vpop.f32.mrb[0].mxu0
    %4083 = vdwg.mxu0
    %4084 = vmatprep.subr.bf16.mxu0 %v1463
    %4085 = vmatpush1.bf16.msra.mxu0 %v1462
    %4086 = vmatprep.subr.bf16.mxu0 %v1467
    %4087 = vmatpush1.bf16.msra.mxu0 %v1466
    %4088 = vmatprep.subr.bf16.mxu0 %v1471
    %4089 = vmatpush1.bf16.msra.mxu0 %v1470
    %4090 = vmatprep.subr.bf16.mxu0 %v1475
    %4091 = vmatpush1.bf16.msra.mxu0 %v1474
    %4092 = vmatprep.subr.bf16.mxu0 %v1479
    %4093 = vmatpush1.bf16.msra.mxu0 %v1478
    %4094 = vmatprep.subr.bf16.mxu0 %v1483
    %4095 = vmatpush1.bf16.msra.mxu0 %v1482
    %4096 = vmatprep.subr.bf16.mxu0 %v1487
    %4097 = vmatpush1.bf16.msra.mxu0 %v1486
    %4098 = vmatprep.subr.bf16.mxu0 %v1491
    %4099 = vmatpush1.bf16.msra.mxu0 %v1490
    %4100 = vmatprep.subr.bf16.mxu0 0
    %4101 = vmatpush1.bf16.msra.mxu0 0
    %4102 = vmatprep.subr.bf16.mxu0 0
    %4103 = vmatpush1.bf16.msra.mxu0 0
    %4104 = vmatprep.subr.bf16.mxu0 0
    %4105 = vmatpush1.bf16.msra.mxu0 0
    %4106 = vmatprep.subr.bf16.mxu0 0
    %4107 = vmatpush1.bf16.msra.mxu0 0
    %4108 = vmatprep.subr.bf16.mxu0 0
    %4109 = vmatpush1.bf16.msra.mxu0 0
    %4110 = vmatprep.subr.bf16.mxu0 0
    %4111 = vmatpush1.bf16.msra.mxu0 0
    %4112 = vmatprep.subr.bf16.mxu0 0
    %4113 = vmatpush1.bf16.msra.mxu0 0
    %4114 = vmatprep.subr.bf16.mxu0 0
    %4115 = vmatpush1.bf16.msra.mxu0 0
    %4116 = vmatprep.mubr.bf16.mxu0 0
    %4117 = vmatmul.mubr.bf16.gmra.mrb[0].mxu0 %v3959
    %v4118 = vpop.f32.mrb[0].mxu0
    %v4119 = vadd.f32 %v4037, %v4118
    %v4120 = vpop.f32.mrb[0].mxu0
    %v4121 = vadd.f32 %v4039, %v4120
    %v4122 = vpop.f32.mrb[0].mxu0
    %v4123 = vpop.f32.mrb[0].mxu0
    %4124 = vdwg.mxu0
    %v4125 = vadd.f32 %v4078, %v314
    %v4126 = vadd.f32 %v4080, %v318
    %v4127 = vadd.f32 %v4119, %v322
    %v4128 = vadd.f32 %v4121, %v326
    %v4129 = vxor.u32 %v4125, 2147483648
    %v4130 = vxor.u32 %v4126, 2147483648
    %v4131 = vxor.u32 %v4127, 2147483648
    %v4132 = vmul.f32 %v4129, 1.442695
    %v4133 = vpow.pop %v4132
    %v4134 = vmul.f32 %v4130, 1.442695
    %v4135 = vpow.pop %v4134
    %v4136 = vmul.f32 %v4131, 1.442695
    %v4137 = vpow.pop %v4136
    %v4138 = vadd.f32 %v4133, 1.0
    %v4139 = vadd.f32 %v4135, 1.0
    %v4140 = vadd.f32 %v4137, 1.0
    %v4141 = vrcp.pop %v4138
    %v4142 = vmul.f32 1.0, %v4141
    %v4143 = vrcp.pop %v4139
    %v4144 = vmul.f32 1.0, %v4143
    %v4145 = vrcp.pop %v4140
    %v4146 = vmul.f32 1.0, %v4145
    %v4147 = vtanh.pop %v4128
    %v4148 = vmul.f32 %v4144, %v3646
    %v4149 = vmul.f32 %v4142, %v4147
    %v4150 = vadd.f32 %v4148, %v4149
    %v4151 = vtanh.pop %v4150
    %v4152 = vmul.f32 %v4146, %v4151
    %s4153 = scalar_lea.vmem [#allocation11], 40
    %4154 = vst [vmem:[%s4153] sm:$0xff] %v4152
    %s4155 = scalar_lea.vmem [#allocation2], 192
    %v4156 = vld [vmem:[%s4155] sm:$0xff]
    %v4157 = vld [vmem:[%s4155 + $0x8] sm:$0xff]
    %v4158 = vld [vmem:[%s4155 + $0x10] sm:$0xff]
    %v4159 = vld [vmem:[%s4155 + $0x18] sm:$0xff]
    %4160 = vmatprep.subr.bf16.mxu0 %v433
    %4161 = vmatpush1.bf16.msra.mxu0 %v432
    %4162 = vmatprep.subr.bf16.mxu0 %v437
    %4163 = vmatpush1.bf16.msra.mxu0 %v436
    %4164 = vmatprep.subr.bf16.mxu0 %v441
    %4165 = vmatpush1.bf16.msra.mxu0 %v440
    %4166 = vmatprep.subr.bf16.mxu0 %v445
    %4167 = vmatpush1.bf16.msra.mxu0 %v444
    %4168 = vmatprep.subr.bf16.mxu0 %v449
    %4169 = vmatpush1.bf16.msra.mxu0 %v448
    %4170 = vmatprep.subr.bf16.mxu0 %v453
    %4171 = vmatpush1.bf16.msra.mxu0 %v452
    %4172 = vmatprep.subr.bf16.mxu0 %v457
    %4173 = vmatpush1.bf16.msra.mxu0 %v456
    %4174 = vmatprep.subr.bf16.mxu0 %v461
    %4175 = vmatpush1.bf16.msra.mxu0 %v460
    %4176 = vmatprep.subr.bf16.mxu0 0
    %4177 = vmatpush1.bf16.msra.mxu0 0
    %4178 = vmatprep.subr.bf16.mxu0 0
    %4179 = vmatpush1.bf16.msra.mxu0 0
    %4180 = vmatprep.subr.bf16.mxu0 0
    %4181 = vmatpush1.bf16.msra.mxu0 0
    %4182 = vmatprep.subr.bf16.mxu0 0
    %4183 = vmatpush1.bf16.msra.mxu0 0
    %4184 = vmatprep.subr.bf16.mxu0 0
    %4185 = vmatpush1.bf16.msra.mxu0 0
    %4186 = vmatprep.subr.bf16.mxu0 0
    %4187 = vmatpush1.bf16.msra.mxu0 0
    %4188 = vmatprep.subr.bf16.mxu0 0
    %4189 = vmatpush1.bf16.msra.mxu0 0
    %4190 = vmatprep.subr.bf16.mxu0 0
    %4191 = vmatpush1.bf16.msra.mxu0 0
    %4192 = vmatprep.mubr.bf16.mxu0 0
    %4193 = vmatmul.mubr.bf16.gmra.mrb[0].mxu0 %v3766
    %v4194 = vpop.f32.mrb[0].mxu0
    %v4195 = vadd.f32 0.0, %v4194
    %v4196 = vpop.f32.mrb[0].mxu0
    %v4197 = vadd.f32 0.0, %v4196
    %v4198 = vpop.f32.mrb[0].mxu0
    %v4199 = vpop.f32.mrb[0].mxu0
    %4200 = vdwg.mxu0
    %4201 = vmatprep.subr.bf16.mxu0 %v435
    %4202 = vmatpush1.bf16.msra.mxu0 %v434
    %4203 = vmatprep.subr.bf16.mxu0 %v439
    %4204 = vmatpush1.bf16.msra.mxu0 %v438
    %4205 = vmatprep.subr.bf16.mxu0 %v443
    %4206 = vmatpush1.bf16.msra.mxu0 %v442
    %4207 = vmatprep.subr.bf16.mxu0 %v447
    %4208 = vmatpush1.bf16.msra.mxu0 %v446
    %4209 = vmatprep.subr.bf16.mxu0 %v451
    %4210 = vmatpush1.bf16.msra.mxu0 %v450
    %4211 = vmatprep.subr.bf16.mxu0 %v455
    %4212 = vmatpush1.bf16.msra.mxu0 %v454
    %4213 = vmatprep.subr.bf16.mxu0 %v459
    %4214 = vmatpush1.bf16.msra.mxu0 %v458
    %4215 = vmatprep.subr.bf16.mxu0 %v463
    %4216 = vmatpush1.bf16.msra.mxu0 %v462
    %4217 = vmatprep.subr.bf16.mxu0 0
    %4218 = vmatpush1.bf16.msra.mxu0 0
    %4219 = vmatprep.subr.bf16.mxu0 0
    %4220 = vmatpush1.bf16.msra.mxu0 0
    %4221 = vmatprep.subr.bf16.mxu0 0
    %4222 = vmatpush1.bf16.msra.mxu0 0
    %4223 = vmatprep.subr.bf16.mxu0 0
    %4224 = vmatpush1.bf16.msra.mxu0 0
    %4225 = vmatprep.subr.bf16.mxu0 0
    %4226 = vmatpush1.bf16.msra.mxu0 0
    %4227 = vmatprep.subr.bf16.mxu0 0
    %4228 = vmatpush1.bf16.msra.mxu0 0
    %4229 = vmatprep.subr.bf16.mxu0 0
    %4230 = vmatpush1.bf16.msra.mxu0 0
    %4231 = vmatprep.subr.bf16.mxu0 0
    %4232 = vmatpush1.bf16.msra.mxu0 0
    %4233 = vmatprep.mubr.bf16.mxu0 0
    %4234 = vmatmul.mubr.bf16.gmra.mrb[0].mxu0 %v3766
    %v4235 = vpop.f32.mrb[0].mxu0
    %v4236 = vadd.f32 0.0, %v4235
    %v4237 = vpop.f32.mrb[0].mxu0
    %v4238 = vadd.f32 0.0, %v4237
    %v4239 = vpop.f32.mrb[0].mxu0
    %v4240 = vpop.f32.mrb[0].mxu0
    %4241 = vdwg.mxu0
    %v4242 = vadd.f32 %v4156, %v4195
    %v4243 = vadd.f32 %v4157, %v4197
    %v4244 = vadd.f32 %v4158, %v4236
    %v4245 = vadd.f32 %v4159, %v4238
    %v4246 = vxor.u32 %v4242, 2147483648
    %v4247 = vxor.u32 %v4243, 2147483648
    %v4248 = vxor.u32 %v4244, 2147483648
    %v4249 = vmul.f32 %v4246, 1.442695
    %v4250 = vpow.pop %v4249
    %v4251 = vmul.f32 %v4247, 1.442695
    %v4252 = vpow.pop %v4251
    %v4253 = vmul.f32 %v4248, 1.442695
    %v4254 = vpow.pop %v4253
    %v4255 = vadd.f32 %v4250, 1.0
    %v4256 = vadd.f32 %v4252, 1.0
    %v4257 = vadd.f32 %v4254, 1.0
    %v4258 = vrcp.pop %v4255
    %v4259 = vmul.f32 1.0, %v4258
    %v4260 = vrcp.pop %v4256
    %v4261 = vmul.f32 1.0, %v4260
    %v4262 = vrcp.pop %v4257
    %v4263 = vmul.f32 1.0, %v4262
    %v4264 = vtanh.pop %v4245
    %v4265 = vmul.f32 %v4261, %v3763
    %v4266 = vmul.f32 %v4259, %v4264
    %v4267 = vadd.f32 %v4265, %v4266
    %v4268 = vtanh.pop %v4267
    %v4269 = vmul.f32 %v4263, %v4268
    %v4270 = vpack.c.bf16 %v4269, %v4269
    %4271 = vmatprep.subr.bf16.mxu0 %v705
    %4272 = vmatpush1.bf16.msra.mxu0 %v704
    %4273 = vmatprep.subr.bf16.mxu0 %v709
    %4274 = vmatpush1.bf16.msra.mxu0 %v708
    %4275 = vmatprep.subr.bf16.mxu0 %v713
    %4276 = vmatpush1.bf16.msra.mxu0 %v712
    %4277 = vmatprep.subr.bf16.mxu0 %v717
    %4278 = vmatpush1.bf16.msra.mxu0 %v716
    %4279 = vmatprep.subr.bf16.mxu0 %v721
    %4280 = vmatpush1.bf16.msra.mxu0 %v720
    %4281 = vmatprep.subr.bf16.mxu0 %v725
    %4282 = vmatpush1.bf16.msra.mxu0 %v724
    %4283 = vmatprep.subr.bf16.mxu0 %v729
    %4284 = vmatpush1.bf16.msra.mxu0 %v728
    %4285 = vmatprep.subr.bf16.mxu0 %v733
    %4286 = vmatpush1.bf16.msra.mxu0 %v732
    %4287 = vmatprep.subr.bf16.mxu0 0
    %4288 = vmatpush1.bf16.msra.mxu0 0
    %4289 = vmatprep.subr.bf16.mxu0 0
    %4290 = vmatpush1.bf16.msra.mxu0 0
    %4291 = vmatprep.subr.bf16.mxu0 0
    %4292 = vmatpush1.bf16.msra.mxu0 0
    %4293 = vmatprep.subr.bf16.mxu0 0
    %4294 = vmatpush1.bf16.msra.mxu0 0
    %4295 = vmatprep.subr.bf16.mxu0 0
    %4296 = vmatpush1.bf16.msra.mxu0 0
    %4297 = vmatprep.subr.bf16.mxu0 0
    %4298 = vmatpush1.bf16.msra.mxu0 0
    %4299 = vmatprep.subr.bf16.mxu0 0
    %4300 = vmatpush1.bf16.msra.mxu0 0
    %4301 = vmatprep.subr.bf16.mxu0 0
    %4302 = vmatpush1.bf16.msra.mxu0 0
    %4303 = vmatprep.mubr.bf16.mxu0 0
    %4304 = vmatmul.mubr.bf16.gmra.mrb[0].mxu0 %v3959
    %v4305 = vpop.f32.mrb[0].mxu0
    %v4306 = vadd.f32 0.0, %v4305
    %v4307 = vpop.f32.mrb[0].mxu0
    %v4308 = vadd.f32 0.0, %v4307
    %v4309 = vpop.f32.mrb[0].mxu0
    %v4310 = vpop.f32.mrb[0].mxu0
    %4311 = vdwg.mxu0
    %4312 = vmatprep.subr.bf16.mxu0 %v707
    %4313 = vmatpush1.bf16.msra.mxu0 %v706
    %4314 = vmatprep.subr.bf16.mxu0 %v711
    %4315 = vmatpush1.bf16.msra.mxu0 %v710
    %4316 = vmatprep.subr.bf16.mxu0 %v715
    %4317 = vmatpush1.bf16.msra.mxu0 %v714
    %4318 = vmatprep.subr.bf16.mxu0 %v719
    %4319 = vmatpush1.bf16.msra.mxu0 %v718
    %4320 = vmatprep.subr.bf16.mxu0 %v723
    %4321 = vmatpush1.bf16.msra.mxu0 %v722
    %4322 = vmatprep.subr.bf16.mxu0 %v727
    %4323 = vmatpush1.bf16.msra.mxu0 %v726
    %4324 = vmatprep.subr.bf16.mxu0 %v731
    %4325 = vmatpush1.bf16.msra.mxu0 %v730
    %4326 = vmatprep.subr.bf16.mxu0 %v735
    %4327 = vmatpush1.bf16.msra.mxu0 %v734
    %4328 = vmatprep.subr.bf16.mxu0 0
    %4329 = vmatpush1.bf16.msra.mxu0 0
    %4330 = vmatprep.subr.bf16.mxu0 0
    %4331 = vmatpush1.bf16.msra.mxu0 0
    %4332 = vmatprep.subr.bf16.mxu0 0
    %4333 = vmatpush1.bf16.msra.mxu0 0
    %4334 = vmatprep.subr.bf16.mxu0 0
    %4335 = vmatpush1.bf16.msra.mxu0 0
    %4336 = vmatprep.subr.bf16.mxu0 0
    %4337 = vmatpush1.bf16.msra.mxu0 0
    %4338 = vmatprep.subr.bf16.mxu0 0
    %4339 = vmatpush1.bf16.msra.mxu0 0
    %4340 = vmatprep.subr.bf16.mxu0 0
    %4341 = vmatpush1.bf16.msra.mxu0 0
    %4342 = vmatprep.subr.bf16.mxu0 0
    %4343 = vmatpush1.bf16.msra.mxu0 0
    %4344 = vmatprep.mubr.bf16.mxu0 0
    %4345 = vmatmul.mubr.bf16.gmra.mrb[0].mxu0 %v3959
    %v4346 = vpop.f32.mrb[0].mxu0
    %v4347 = vadd.f32 0.0, %v4346
    %v4348 = vpop.f32.mrb[0].mxu0
    %v4349 = vadd.f32 0.0, %v4348
    %v4350 = vpop.f32.mrb[0].mxu0
    %v4351 = vpop.f32.mrb[0].mxu0
    %4352 = vdwg.mxu0
    %4353 = vmatprep.subr.bf16.mxu0 %v947
    %4354 = vmatpush1.bf16.msra.mxu0 %v946
    %4355 = vmatprep.subr.bf16.mxu0 %v951
    %4356 = vmatpush1.bf16.msra.mxu0 %v950
    %4357 = vmatprep.subr.bf16.mxu0 %v955
    %4358 = vmatpush1.bf16.msra.mxu0 %v954
    %4359 = vmatprep.subr.bf16.mxu0 %v959
    %4360 = vmatpush1.bf16.msra.mxu0 %v958
    %4361 = vmatprep.subr.bf16.mxu0 %v963
    %4362 = vmatpush1.bf16.msra.mxu0 %v962
    %4363 = vmatprep.subr.bf16.mxu0 %v967
    %4364 = vmatpush1.bf16.msra.mxu0 %v966
    %4365 = vmatprep.subr.bf16.mxu0 %v971
    %4366 = vmatpush1.bf16.msra.mxu0 %v970
    %4367 = vmatprep.subr.bf16.mxu0 %v975
    %4368 = vmatpush1.bf16.msra.mxu0 %v974
    %4369 = vmatprep.subr.bf16.mxu0 0
    %4370 = vmatpush1.bf16.msra.mxu0 0
    %4371 = vmatprep.subr.bf16.mxu0 0
    %4372 = vmatpush1.bf16.msra.mxu0 0
    %4373 = vmatprep.subr.bf16.mxu0 0
    %4374 = vmatpush1.bf16.msra.mxu0 0
    %4375 = vmatprep.subr.bf16.mxu0 0
    %4376 = vmatpush1.bf16.msra.mxu0 0
    %4377 = vmatprep.subr.bf16.mxu0 0
    %4378 = vmatpush1.bf16.msra.mxu0 0
    %4379 = vmatprep.subr.bf16.mxu0 0
    %4380 = vmatpush1.bf16.msra.mxu0 0
    %4381 = vmatprep.subr.bf16.mxu0 0
    %4382 = vmatpush1.bf16.msra.mxu0 0
    %4383 = vmatprep.subr.bf16.mxu0 0
    %4384 = vmatpush1.bf16.msra.mxu0 0
    %4385 = vmatprep.mubr.bf16.mxu0 0
    %4386 = vmatmul.mubr.bf16.gmra.mrb[0].mxu0 %v4270
    %v4387 = vpop.f32.mrb[0].mxu0
    %v4388 = vadd.f32 %v4306, %v4387
    %v4389 = vpop.f32.mrb[0].mxu0
    %v4390 = vadd.f32 %v4308, %v4389
    %v4391 = vpop.f32.mrb[0].mxu0
    %v4392 = vpop.f32.mrb[0].mxu0
    %4393 = vdwg.mxu0
    %4394 = vmatprep.subr.bf16.mxu0 %v949
    %4395 = vmatpush1.bf16.msra.mxu0 %v948
    %4396 = vmatprep.subr.bf16.mxu0 %v953
    %4397 = vmatpush1.bf16.msra.mxu0 %v952
    %4398 = vmatprep.subr.bf16.mxu0 %v957
    %4399 = vmatpush1.bf16.msra.mxu0 %v956
    %4400 = vmatprep.subr.bf16.mxu0 %v961
    %4401 = vmatpush1.bf16.msra.mxu0 %v960
    %4402 = vmatprep.subr.bf16.mxu0 %v965
    %4403 = vmatpush1.bf16.msra.mxu0 %v964
    %4404 = vmatprep.subr.bf16.mxu0 %v969
    %4405 = vmatpush1.bf16.msra.mxu0 %v968
    %4406 = vmatprep.subr.bf16.mxu0 %v973
    %4407 = vmatpush1.bf16.msra.mxu0 %v972
    %4408 = vmatprep.subr.bf16.mxu0 %v977
    %4409 = vmatpush1.bf16.msra.mxu0 %v976
    %4410 = vmatprep.subr.bf16.mxu0 0
    %4411 = vmatpush1.bf16.msra.mxu0 0
    %4412 = vmatprep.subr.bf16.mxu0 0
    %4413 = vmatpush1.bf16.msra.mxu0 0
    %4414 = vmatprep.subr.bf16.mxu0 0
    %4415 = vmatpush1.bf16.msra.mxu0 0
    %4416 = vmatprep.subr.bf16.mxu0 0
    %4417 = vmatpush1.bf16.msra.mxu0 0
    %4418 = vmatprep.subr.bf16.mxu0 0
    %4419 = vmatpush1.bf16.msra.mxu0 0
    %4420 = vmatprep.subr.bf16.mxu0 0
    %4421 = vmatpush1.bf16.msra.mxu0 0
    %4422 = vmatprep.subr.bf16.mxu0 0
    %4423 = vmatpush1.bf16.msra.mxu0 0
    %4424 = vmatprep.subr.bf16.mxu0 0
    %4425 = vmatpush1.bf16.msra.mxu0 0
    %4426 = vmatprep.mubr.bf16.mxu0 0
    %4427 = vmatmul.mubr.bf16.gmra.mrb[0].mxu0 %v4270
    %v4428 = vpop.f32.mrb[0].mxu0
    %v4429 = vadd.f32 %v4347, %v4428
    %v4430 = vpop.f32.mrb[0].mxu0
    %v4431 = vadd.f32 %v4349, %v4430
    %v4432 = vpop.f32.mrb[0].mxu0
    %v4433 = vpop.f32.mrb[0].mxu0
    %4434 = vdwg.mxu0
    %v4435 = vadd.f32 %v4388, %v291
    %v4436 = vadd.f32 %v4390, %v295
    %v4437 = vadd.f32 %v4429, %v299
    %v4438 = vadd.f32 %v4431, %v303
    %v4439 = vxor.u32 %v4435, 2147483648
    %v4440 = vxor.u32 %v4436, 2147483648
    %v4441 = vxor.u32 %v4437, 2147483648
    %v4442 = vmul.f32 %v4439, 1.442695
    %v4443 = vpow.pop %v4442
    %v4444 = vmul.f32 %v4440, 1.442695
    %v4445 = vpow.pop %v4444
    %v4446 = vmul.f32 %v4441, 1.442695
    %v4447 = vpow.pop %v4446
    %v4448 = vadd.f32 %v4443, 1.0
    %v4449 = vadd.f32 %v4445, 1.0
    %v4450 = vadd.f32 %v4447, 1.0
    %v4451 = vrcp.pop %v4448
    %v4452 = vmul.f32 1.0, %v4451
    %v4453 = vrcp.pop %v4449
    %v4454 = vmul.f32 1.0, %v4453
    %v4455 = vrcp.pop %v4450
    %v4456 = vmul.f32 1.0, %v4455
    %v4457 = vtanh.pop %v4438
    %v4458 = vmul.f32 %v4454, %v3956
    %v4459 = vmul.f32 %v4452, %v4457
    %v4460 = vadd.f32 %v4458, %v4459
    %v4461 = vtanh.pop %v4460
    %v4462 = vmul.f32 %v4456, %v4461
    %v4463 = vpack.c.bf16 %v4462, %v4462
    %v4464 = vpack.c.bf16 %v4152, %v4152
    %4465 = vmatprep.subr.bf16.mxu0 %v1219
    %4466 = vmatpush1.bf16.msra.mxu0 %v1218
    %4467 = vmatprep.subr.bf16.mxu0 %v1223
    %4468 = vmatpush1.bf16.msra.mxu0 %v1222
    %4469 = vmatprep.subr.bf16.mxu0 %v1227
    %4470 = vmatpush1.bf16.msra.mxu0 %v1226
    %4471 = vmatprep.subr.bf16.mxu0 %v1231
    %4472 = vmatpush1.bf16.msra.mxu0 %v1230
    %4473 = vmatprep.subr.bf16.mxu0 %v1235
    %4474 = vmatpush1.bf16.msra.mxu0 %v1234
    %4475 = vmatprep.subr.bf16.mxu0 %v1239
    %4476 = vmatpush1.bf16.msra.mxu0 %v1238
    %4477 = vmatprep.subr.bf16.mxu0 %v1243
    %4478 = vmatpush1.bf16.msra.mxu0 %v1242
    %4479 = vmatprep.subr.bf16.mxu0 %v1247
    %4480 = vmatpush1.bf16.msra.mxu0 %v1246
    %4481 = vmatprep.subr.bf16.mxu0 0
    %4482 = vmatpush1.bf16.msra.mxu0 0
    %4483 = vmatprep.subr.bf16.mxu0 0
    %4484 = vmatpush1.bf16.msra.mxu0 0
    %4485 = vmatprep.subr.bf16.mxu0 0
    %4486 = vmatpush1.bf16.msra.mxu0 0
    %4487 = vmatprep.subr.bf16.mxu0 0
    %4488 = vmatpush1.bf16.msra.mxu0 0
    %4489 = vmatprep.subr.bf16.mxu0 0
    %4490 = vmatpush1.bf16.msra.mxu0 0
    %4491 = vmatprep.subr.bf16.mxu0 0
    %4492 = vmatpush1.bf16.msra.mxu0 0
    %4493 = vmatprep.subr.bf16.mxu0 0
    %4494 = vmatpush1.bf16.msra.mxu0 0
    %4495 = vmatprep.subr.bf16.mxu0 0
    %4496 = vmatpush1.bf16.msra.mxu0 0
    %4497 = vmatprep.mubr.bf16.mxu0 0
    %4498 = vmatmul.mubr.bf16.gmra.mrb[0].mxu0 %v4464
    %v4499 = vpop.f32.mrb[0].mxu0
    %v4500 = vadd.f32 0.0, %v4499
    %v4501 = vpop.f32.mrb[0].mxu0
    %v4502 = vadd.f32 0.0, %v4501
    %v4503 = vpop.f32.mrb[0].mxu0
    %v4504 = vpop.f32.mrb[0].mxu0
    %4505 = vdwg.mxu0
    %4506 = vmatprep.subr.bf16.mxu0 %v1221
    %4507 = vmatpush1.bf16.msra.mxu0 %v1220
    %4508 = vmatprep.subr.bf16.mxu0 %v1225
    %4509 = vmatpush1.bf16.msra.mxu0 %v1224
    %4510 = vmatprep.subr.bf16.mxu0 %v1229
    %4511 = vmatpush1.bf16.msra.mxu0 %v1228
    %4512 = vmatprep.subr.bf16.mxu0 %v1233
    %4513 = vmatpush1.bf16.msra.mxu0 %v1232
    %4514 = vmatprep.subr.bf16.mxu0 %v1237
    %4515 = vmatpush1.bf16.msra.mxu0 %v1236
    %4516 = vmatprep.subr.bf16.mxu0 %v1241
    %4517 = vmatpush1.bf16.msra.mxu0 %v1240
    %4518 = vmatprep.subr.bf16.mxu0 %v1245
    %4519 = vmatpush1.bf16.msra.mxu0 %v1244
    %4520 = vmatprep.subr.bf16.mxu0 %v1249
    %4521 = vmatpush1.bf16.msra.mxu0 %v1248
    %4522 = vmatprep.subr.bf16.mxu0 0
    %4523 = vmatpush1.bf16.msra.mxu0 0
    %4524 = vmatprep.subr.bf16.mxu0 0
    %4525 = vmatpush1.bf16.msra.mxu0 0
    %4526 = vmatprep.subr.bf16.mxu0 0
    %4527 = vmatpush1.bf16.msra.mxu0 0
    %4528 = vmatprep.subr.bf16.mxu0 0
    %4529 = vmatpush1.bf16.msra.mxu0 0
    %4530 = vmatprep.subr.bf16.mxu0 0
    %4531 = vmatpush1.bf16.msra.mxu0 0
    %4532 = vmatprep.subr.bf16.mxu0 0
    %4533 = vmatpush1.bf16.msra.mxu0 0
    %4534 = vmatprep.subr.bf16.mxu0 0
    %4535 = vmatpush1.bf16.msra.mxu0 0
    %4536 = vmatprep.subr.bf16.mxu0 0
    %4537 = vmatpush1.bf16.msra.mxu0 0
    %4538 = vmatprep.mubr.bf16.mxu0 0
    %4539 = vmatmul.mubr.bf16.gmra.mrb[0].mxu0 %v4464
    %v4540 = vpop.f32.mrb[0].mxu0
    %v4541 = vadd.f32 0.0, %v4540
    %v4542 = vpop.f32.mrb[0].mxu0
    %v4543 = vadd.f32 0.0, %v4542
    %v4544 = vpop.f32.mrb[0].mxu0
    %v4545 = vpop.f32.mrb[0].mxu0
    %4546 = vdwg.mxu0
    %4547 = vmatprep.subr.bf16.mxu0 %v1461
    %4548 = vmatpush1.bf16.msra.mxu0 %v1460
    %4549 = vmatprep.subr.bf16.mxu0 %v1465
    %4550 = vmatpush1.bf16.msra.mxu0 %v1464
    %4551 = vmatprep.subr.bf16.mxu0 %v1469
    %4552 = vmatpush1.bf16.msra.mxu0 %v1468
    %4553 = vmatprep.subr.bf16.mxu0 %v1473
    %4554 = vmatpush1.bf16.msra.mxu0 %v1472
    %4555 = vmatprep.subr.bf16.mxu0 %v1477
    %4556 = vmatpush1.bf16.msra.mxu0 %v1476
    %4557 = vmatprep.subr.bf16.mxu0 %v1481
    %4558 = vmatpush1.bf16.msra.mxu0 %v1480
    %4559 = vmatprep.subr.bf16.mxu0 %v1485
    %4560 = vmatpush1.bf16.msra.mxu0 %v1484
    %4561 = vmatprep.subr.bf16.mxu0 %v1489
    %4562 = vmatpush1.bf16.msra.mxu0 %v1488
    %4563 = vmatprep.subr.bf16.mxu0 0
    %4564 = vmatpush1.bf16.msra.mxu0 0
    %4565 = vmatprep.subr.bf16.mxu0 0
    %4566 = vmatpush1.bf16.msra.mxu0 0
    %4567 = vmatprep.subr.bf16.mxu0 0
    %4568 = vmatpush1.bf16.msra.mxu0 0
    %4569 = vmatprep.subr.bf16.mxu0 0
    %4570 = vmatpush1.bf16.msra.mxu0 0
    %4571 = vmatprep.subr.bf16.mxu0 0
    %4572 = vmatpush1.bf16.msra.mxu0 0
    %4573 = vmatprep.subr.bf16.mxu0 0
    %4574 = vmatpush1.bf16.msra.mxu0 0
    %4575 = vmatprep.subr.bf16.mxu0 0
    %4576 = vmatpush1.bf16.msra.mxu0 0
    %4577 = vmatprep.subr.bf16.mxu0 0
    %4578 = vmatpush1.bf16.msra.mxu0 0
    %4579 = vmatprep.mubr.bf16.mxu0 0
    %4580 = vmatmul.mubr.bf16.gmra.mrb[0].mxu0 %v4463
    %v4581 = vpop.f32.mrb[0].mxu0
    %v4582 = vadd.f32 %v4500, %v4581
    %v4583 = vpop.f32.mrb[0].mxu0
    %v4584 = vadd.f32 %v4502, %v4583
    %v4585 = vpop.f32.mrb[0].mxu0
    %v4586 = vpop.f32.mrb[0].mxu0
    %4587 = vdwg.mxu0
    %4588 = vmatprep.subr.bf16.mxu0 %v1463
    %4589 = vmatpush1.bf16.msra.mxu0 %v1462
    %4590 = vmatprep.subr.bf16.mxu0 %v1467
    %4591 = vmatpush1.bf16.msra.mxu0 %v1466
    %4592 = vmatprep.subr.bf16.mxu0 %v1471
    %4593 = vmatpush1.bf16.msra.mxu0 %v1470
    %4594 = vmatprep.subr.bf16.mxu0 %v1475
    %4595 = vmatpush1.bf16.msra.mxu0 %v1474
    %4596 = vmatprep.subr.bf16.mxu0 %v1479
    %4597 = vmatpush1.bf16.msra.mxu0 %v1478
    %4598 = vmatprep.subr.bf16.mxu0 %v1483
    %4599 = vmatpush1.bf16.msra.mxu0 %v1482
    %4600 = vmatprep.subr.bf16.mxu0 %v1487
    %4601 = vmatpush1.bf16.msra.mxu0 %v1486
    %4602 = vmatprep.subr.bf16.mxu0 %v1491
    %4603 = vmatpush1.bf16.msra.mxu0 %v1490
    %4604 = vmatprep.subr.bf16.mxu0 0
    %4605 = vmatpush1.bf16.msra.mxu0 0
    %4606 = vmatprep.subr.bf16.mxu0 0
    %4607 = vmatpush1.bf16.msra.mxu0 0
    %4608 = vmatprep.subr.bf16.mxu0 0
    %4609 = vmatpush1.bf16.msra.mxu0 0
    %4610 = vmatprep.subr.bf16.mxu0 0
    %4611 = vmatpush1.bf16.msra.mxu0 0
    %4612 = vmatprep.subr.bf16.mxu0 0
    %4613 = vmatpush1.bf16.msra.mxu0 0
    %4614 = vmatprep.subr.bf16.mxu0 0
    %4615 = vmatpush1.bf16.msra.mxu0 0
    %4616 = vmatprep.subr.bf16.mxu0 0
    %4617 = vmatpush1.bf16.msra.mxu0 0
    %4618 = vmatprep.subr.bf16.mxu0 0
    %4619 = vmatpush1.bf16.msra.mxu0 0
    %4620 = vmatprep.mubr.bf16.mxu0 0
    %4621 = vmatmul.mubr.bf16.gmra.mrb[0].mxu0 %v4463
    %v4622 = vpop.f32.mrb[0].mxu0
    %v4623 = vadd.f32 %v4541, %v4622
    %v4624 = vpop.f32.mrb[0].mxu0
    %v4625 = vadd.f32 %v4543, %v4624
    %v4626 = vpop.f32.mrb[0].mxu0
    %v4627 = vpop.f32.mrb[0].mxu0
    %4628 = vdwg.mxu0
    %v4629 = vadd.f32 %v4582, %v314
    %v4630 = vadd.f32 %v4584, %v318
    %v4631 = vadd.f32 %v4623, %v322
    %v4632 = vadd.f32 %v4625, %v326
    %v4633 = vxor.u32 %v4629, 2147483648
    %v4634 = vxor.u32 %v4630, 2147483648
    %v4635 = vxor.u32 %v4631, 2147483648
    %v4636 = vmul.f32 %v4633, 1.442695
    %v4637 = vpow.pop %v4636
    %v4638 = vmul.f32 %v4634, 1.442695
    %v4639 = vpow.pop %v4638
    %v4640 = vmul.f32 %v4635, 1.442695
    %v4641 = vpow.pop %v4640
    %v4642 = vadd.f32 %v4637, 1.0
    %v4643 = vadd.f32 %v4639, 1.0
    %v4644 = vadd.f32 %v4641, 1.0
    %v4645 = vrcp.pop %v4642
    %v4646 = vmul.f32 1.0, %v4645
    %v4647 = vrcp.pop %v4643
    %v4648 = vmul.f32 1.0, %v4647
    %v4649 = vrcp.pop %v4644
    %v4650 = vmul.f32 1.0, %v4649
    %v4651 = vtanh.pop %v4632
    %v4652 = vmul.f32 %v4648, %v4150
    %v4653 = vmul.f32 %v4646, %v4651
    %v4654 = vadd.f32 %v4652, %v4653
    %v4655 = vtanh.pop %v4654
    %v4656 = vmul.f32 %v4650, %v4655
    %s4657 = scalar_lea.vmem [#allocation11], 48
    %4658 = vst [vmem:[%s4657] sm:$0xff] %v4656
    %s4659 = scalar_lea.vmem [#allocation2], 224
    %v4660 = vld [vmem:[%s4659] sm:$0xff]
    %v4661 = vld [vmem:[%s4659 + $0x8] sm:$0xff]
    %v4662 = vld [vmem:[%s4659 + $0x10] sm:$0xff]
    %v4663 = vld [vmem:[%s4659 + $0x18] sm:$0xff]
    %4664 = vmatprep.subr.bf16.mxu0 %v433
    %4665 = vmatpush1.bf16.msra.mxu0 %v432
    %4666 = vmatprep.subr.bf16.mxu0 %v437
    %4667 = vmatpush1.bf16.msra.mxu0 %v436
    %4668 = vmatprep.subr.bf16.mxu0 %v441
    %4669 = vmatpush1.bf16.msra.mxu0 %v440
    %4670 = vmatprep.subr.bf16.mxu0 %v445
    %4671 = vmatpush1.bf16.msra.mxu0 %v444
    %4672 = vmatprep.subr.bf16.mxu0 %v449
    %4673 = vmatpush1.bf16.msra.mxu0 %v448
    %4674 = vmatprep.subr.bf16.mxu0 %v453
    %4675 = vmatpush1.bf16.msra.mxu0 %v452
    %4676 = vmatprep.subr.bf16.mxu0 %v457
    %4677 = vmatpush1.bf16.msra.mxu0 %v456
    %4678 = vmatprep.subr.bf16.mxu0 %v461
    %4679 = vmatpush1.bf16.msra.mxu0 %v460
    %4680 = vmatprep.subr.bf16.mxu0 0
    %4681 = vmatpush1.bf16.msra.mxu0 0
    %4682 = vmatprep.subr.bf16.mxu0 0
    %4683 = vmatpush1.bf16.msra.mxu0 0
    %4684 = vmatprep.subr.bf16.mxu0 0
    %4685 = vmatpush1.bf16.msra.mxu0 0
    %4686 = vmatprep.subr.bf16.mxu0 0
    %4687 = vmatpush1.bf16.msra.mxu0 0
    %4688 = vmatprep.subr.bf16.mxu0 0
    %4689 = vmatpush1.bf16.msra.mxu0 0
    %4690 = vmatprep.subr.bf16.mxu0 0
    %4691 = vmatpush1.bf16.msra.mxu0 0
    %4692 = vmatprep.subr.bf16.mxu0 0
    %4693 = vmatpush1.bf16.msra.mxu0 0
    %4694 = vmatprep.subr.bf16.mxu0 0
    %4695 = vmatpush1.bf16.msra.mxu0 0
    %4696 = vmatprep.mubr.bf16.mxu0 0
    %4697 = vmatmul.mubr.bf16.gmra.mrb[0].mxu0 %v4270
    %v4698 = vpop.f32.mrb[0].mxu0
    %v4699 = vadd.f32 0.0, %v4698
    %v4700 = vpop.f32.mrb[0].mxu0
    %v4701 = vadd.f32 0.0, %v4700
    %v4702 = vpop.f32.mrb[0].mxu0
    %v4703 = vpop.f32.mrb[0].mxu0
    %4704 = vdwg.mxu0
    %4705 = vmatprep.subr.bf16.mxu0 %v435
    %4706 = vmatpush1.bf16.msra.mxu0 %v434
    %4707 = vmatprep.subr.bf16.mxu0 %v439
    %4708 = vmatpush1.bf16.msra.mxu0 %v438
    %4709 = vmatprep.subr.bf16.mxu0 %v443
    %4710 = vmatpush1.bf16.msra.mxu0 %v442
    %4711 = vmatprep.subr.bf16.mxu0 %v447
    %4712 = vmatpush1.bf16.msra.mxu0 %v446
    %4713 = vmatprep.subr.bf16.mxu0 %v451
    %4714 = vmatpush1.bf16.msra.mxu0 %v450
    %4715 = vmatprep.subr.bf16.mxu0 %v455
    %4716 = vmatpush1.bf16.msra.mxu0 %v454
    %4717 = vmatprep.subr.bf16.mxu0 %v459
    %4718 = vmatpush1.bf16.msra.mxu0 %v458
    %4719 = vmatprep.subr.bf16.mxu0 %v463
    %4720 = vmatpush1.bf16.msra.mxu0 %v462
    %4721 = vmatprep.subr.bf16.mxu0 0
    %4722 = vmatpush1.bf16.msra.mxu0 0
    %4723 = vmatprep.subr.bf16.mxu0 0
    %4724 = vmatpush1.bf16.msra.mxu0 0
    %4725 = vmatprep.subr.bf16.mxu0 0
    %4726 = vmatpush1.bf16.msra.mxu0 0
    %4727 = vmatprep.subr.bf16.mxu0 0
    %4728 = vmatpush1.bf16.msra.mxu0 0
    %4729 = vmatprep.subr.bf16.mxu0 0
    %4730 = vmatpush1.bf16.msra.mxu0 0
    %4731 = vmatprep.subr.bf16.mxu0 0
    %4732 = vmatpush1.bf16.msra.mxu0 0
    %4733 = vmatprep.subr.bf16.mxu0 0
    %4734 = vmatpush1.bf16.msra.mxu0 0
    %4735 = vmatprep.subr.bf16.mxu0 0
    %4736 = vmatpush1.bf16.msra.mxu0 0
    %4737 = vmatprep.mubr.bf16.mxu0 0
    %4738 = vmatmul.mubr.bf16.gmra.mrb[0].mxu0 %v4270
    %v4739 = vpop.f32.mrb[0].mxu0
    %v4740 = vadd.f32 0.0, %v4739
    %v4741 = vpop.f32.mrb[0].mxu0
    %v4742 = vadd.f32 0.0, %v4741
    %v4743 = vpop.f32.mrb[0].mxu0
    %v4744 = vpop.f32.mrb[0].mxu0
    %4745 = vdwg.mxu0
    %v4746 = vadd.f32 %v4660, %v4699
    %v4747 = vadd.f32 %v4661, %v4701
    %v4748 = vadd.f32 %v4662, %v4740
    %v4749 = vadd.f32 %v4663, %v4742
    %v4750 = vxor.u32 %v4746, 2147483648
    %v4751 = vxor.u32 %v4747, 2147483648
    %v4752 = vxor.u32 %v4748, 2147483648
    %v4753 = vmul.f32 %v4750, 1.442695
    %v4754 = vpow.pop %v4753
    %v4755 = vmul.f32 %v4751, 1.442695
    %v4756 = vpow.pop %v4755
    %v4757 = vmul.f32 %v4752, 1.442695
    %v4758 = vpow.pop %v4757
    %v4759 = vadd.f32 %v4754, 1.0
    %v4760 = vadd.f32 %v4756, 1.0
    %v4761 = vadd.f32 %v4758, 1.0
    %v4762 = vrcp.pop %v4759
    %v4763 = vmul.f32 1.0, %v4762
    %v4764 = vrcp.pop %v4760
    %v4765 = vmul.f32 1.0, %v4764
    %v4766 = vrcp.pop %v4761
    %v4767 = vmul.f32 1.0, %v4766
    %v4768 = vtanh.pop %v4749
    %v4769 = vmul.f32 %v4765, %v4267
    %v4770 = vmul.f32 %v4763, %v4768
    %v4771 = vadd.f32 %v4769, %v4770
    %v4772 = vtanh.pop %v4771
    %v4773 = vmul.f32 %v4767, %v4772
    %v4774 = vpack.c.bf16 %v4773, %v4773
    %4775 = vmatprep.subr.bf16.mxu0 %v705
    %4776 = vmatpush1.bf16.msra.mxu0 %v704
    %4777 = vmatprep.subr.bf16.mxu0 %v709
    %4778 = vmatpush1.bf16.msra.mxu0 %v708
    %4779 = vmatprep.subr.bf16.mxu0 %v713
    %4780 = vmatpush1.bf16.msra.mxu0 %v712
    %4781 = vmatprep.subr.bf16.mxu0 %v717
    %4782 = vmatpush1.bf16.msra.mxu0 %v716
    %4783 = vmatprep.subr.bf16.mxu0 %v721
    %4784 = vmatpush1.bf16.msra.mxu0 %v720
    %4785 = vmatprep.subr.bf16.mxu0 %v725
    %4786 = vmatpush1.bf16.msra.mxu0 %v724
    %4787 = vmatprep.subr.bf16.mxu0 %v729
    %4788 = vmatpush1.bf16.msra.mxu0 %v728
    %4789 = vmatprep.subr.bf16.mxu0 %v733
    %4790 = vmatpush1.bf16.msra.mxu0 %v732
    %4791 = vmatprep.subr.bf16.mxu0 0
    %4792 = vmatpush1.bf16.msra.mxu0 0
    %4793 = vmatprep.subr.bf16.mxu0 0
    %4794 = vmatpush1.bf16.msra.mxu0 0
    %4795 = vmatprep.subr.bf16.mxu0 0
    %4796 = vmatpush1.bf16.msra.mxu0 0
    %4797 = vmatprep.subr.bf16.mxu0 0
    %4798 = vmatpush1.bf16.msra.mxu0 0
    %4799 = vmatprep.subr.bf16.mxu0 0
    %4800 = vmatpush1.bf16.msra.mxu0 0
    %4801 = vmatprep.subr.bf16.mxu0 0
    %4802 = vmatpush1.bf16.msra.mxu0 0
    %4803 = vmatprep.subr.bf16.mxu0 0
    %4804 = vmatpush1.bf16.msra.mxu0 0
    %4805 = vmatprep.subr.bf16.mxu0 0
    %4806 = vmatpush1.bf16.msra.mxu0 0
    %4807 = vmatprep.mubr.bf16.mxu0 0
    %4808 = vmatmul.mubr.bf16.gmra.mrb[0].mxu0 %v4463
    %v4809 = vpop.f32.mrb[0].mxu0
    %v4810 = vadd.f32 0.0, %v4809
    %v4811 = vpop.f32.mrb[0].mxu0
    %v4812 = vadd.f32 0.0, %v4811
    %v4813 = vpop.f32.mrb[0].mxu0
    %v4814 = vpop.f32.mrb[0].mxu0
    %4815 = vdwg.mxu0
    %4816 = vmatprep.subr.bf16.mxu0 %v707
    %4817 = vmatpush1.bf16.msra.mxu0 %v706
    %4818 = vmatprep.subr.bf16.mxu0 %v711
    %4819 = vmatpush1.bf16.msra.mxu0 %v710
    %4820 = vmatprep.subr.bf16.mxu0 %v715
    %4821 = vmatpush1.bf16.msra.mxu0 %v714
    %4822 = vmatprep.subr.bf16.mxu0 %v719
    %4823 = vmatpush1.bf16.msra.mxu0 %v718
    %4824 = vmatprep.subr.bf16.mxu0 %v723
    %4825 = vmatpush1.bf16.msra.mxu0 %v722
    %4826 = vmatprep.subr.bf16.mxu0 %v727
    %4827 = vmatpush1.bf16.msra.mxu0 %v726
    %4828 = vmatprep.subr.bf16.mxu0 %v731
    %4829 = vmatpush1.bf16.msra.mxu0 %v730
    %4830 = vmatprep.subr.bf16.mxu0 %v735
    %4831 = vmatpush1.bf16.msra.mxu0 %v734
    %4832 = vmatprep.subr.bf16.mxu0 0
    %4833 = vmatpush1.bf16.msra.mxu0 0
    %4834 = vmatprep.subr.bf16.mxu0 0
    %4835 = vmatpush1.bf16.msra.mxu0 0
    %4836 = vmatprep.subr.bf16.mxu0 0
    %4837 = vmatpush1.bf16.msra.mxu0 0
    %4838 = vmatprep.subr.bf16.mxu0 0
    %4839 = vmatpush1.bf16.msra.mxu0 0
    %4840 = vmatprep.subr.bf16.mxu0 0
    %4841 = vmatpush1.bf16.msra.mxu0 0
    %4842 = vmatprep.subr.bf16.mxu0 0
    %4843 = vmatpush1.bf16.msra.mxu0 0
    %4844 = vmatprep.subr.bf16.mxu0 0
    %4845 = vmatpush1.bf16.msra.mxu0 0
    %4846 = vmatprep.subr.bf16.mxu0 0
    %4847 = vmatpush1.bf16.msra.mxu0 0
    %4848 = vmatprep.mubr.bf16.mxu0 0
    %4849 = vmatmul.mubr.bf16.gmra.mrb[0].mxu0 %v4463
    %v4850 = vpop.f32.mrb[0].mxu0
    %v4851 = vadd.f32 0.0, %v4850
    %v4852 = vpop.f32.mrb[0].mxu0
    %v4853 = vadd.f32 0.0, %v4852
    %v4854 = vpop.f32.mrb[0].mxu0
    %v4855 = vpop.f32.mrb[0].mxu0
    %4856 = vdwg.mxu0
    %4857 = vmatprep.subr.bf16.mxu0 %v947
    %4858 = vmatpush1.bf16.msra.mxu0 %v946
    %4859 = vmatprep.subr.bf16.mxu0 %v951
    %4860 = vmatpush1.bf16.msra.mxu0 %v950
    %4861 = vmatprep.subr.bf16.mxu0 %v955
    %4862 = vmatpush1.bf16.msra.mxu0 %v954
    %4863 = vmatprep.subr.bf16.mxu0 %v959
    %4864 = vmatpush1.bf16.msra.mxu0 %v958
    %4865 = vmatprep.subr.bf16.mxu0 %v963
    %4866 = vmatpush1.bf16.msra.mxu0 %v962
    %4867 = vmatprep.subr.bf16.mxu0 %v967
    %4868 = vmatpush1.bf16.msra.mxu0 %v966
    %4869 = vmatprep.subr.bf16.mxu0 %v971
    %4870 = vmatpush1.bf16.msra.mxu0 %v970
    %4871 = vmatprep.subr.bf16.mxu0 %v975
    %4872 = vmatpush1.bf16.msra.mxu0 %v974
    %4873 = vmatprep.subr.bf16.mxu0 0
    %4874 = vmatpush1.bf16.msra.mxu0 0
    %4875 = vmatprep.subr.bf16.mxu0 0
    %4876 = vmatpush1.bf16.msra.mxu0 0
    %4877 = vmatprep.subr.bf16.mxu0 0
    %4878 = vmatpush1.bf16.msra.mxu0 0
    %4879 = vmatprep.subr.bf16.mxu0 0
    %4880 = vmatpush1.bf16.msra.mxu0 0
    %4881 = vmatprep.subr.bf16.mxu0 0
    %4882 = vmatpush1.bf16.msra.mxu0 0
    %4883 = vmatprep.subr.bf16.mxu0 0
    %4884 = vmatpush1.bf16.msra.mxu0 0
    %4885 = vmatprep.subr.bf16.mxu0 0
    %4886 = vmatpush1.bf16.msra.mxu0 0
    %4887 = vmatprep.subr.bf16.mxu0 0
    %4888 = vmatpush1.bf16.msra.mxu0 0
    %4889 = vmatprep.mubr.bf16.mxu0 0
    %4890 = vmatmul.mubr.bf16.gmra.mrb[0].mxu0 %v4774
    %v4891 = vpop.f32.mrb[0].mxu0
    %v4892 = vadd.f32 %v4810, %v4891
    %v4893 = vpop.f32.mrb[0].mxu0
    %v4894 = vadd.f32 %v4812, %v4893
    %v4895 = vpop.f32.mrb[0].mxu0
    %v4896 = vpop.f32.mrb[0].mxu0
    %4897 = vdwg.mxu0
    %4898 = vmatprep.subr.bf16.mxu0 %v949
    %4899 = vmatpush1.bf16.msra.mxu0 %v948
    %4900 = vmatprep.subr.bf16.mxu0 %v953
    %4901 = vmatpush1.bf16.msra.mxu0 %v952
    %4902 = vmatprep.subr.bf16.mxu0 %v957
    %4903 = vmatpush1.bf16.msra.mxu0 %v956
    %4904 = vmatprep.subr.bf16.mxu0 %v961
    %4905 = vmatpush1.bf16.msra.mxu0 %v960
    %4906 = vmatprep.subr.bf16.mxu0 %v965
    %4907 = vmatpush1.bf16.msra.mxu0 %v964
    %4908 = vmatprep.subr.bf16.mxu0 %v969
    %4909 = vmatpush1.bf16.msra.mxu0 %v968
    %4910 = vmatprep.subr.bf16.mxu0 %v973
    %4911 = vmatpush1.bf16.msra.mxu0 %v972
    %4912 = vmatprep.subr.bf16.mxu0 %v977
    %4913 = vmatpush1.bf16.msra.mxu0 %v976
    %4914 = vmatprep.subr.bf16.mxu0 0
    %4915 = vmatpush1.bf16.msra.mxu0 0
    %4916 = vmatprep.subr.bf16.mxu0 0
    %4917 = vmatpush1.bf16.msra.mxu0 0
    %4918 = vmatprep.subr.bf16.mxu0 0
    %4919 = vmatpush1.bf16.msra.mxu0 0
    %4920 = vmatprep.subr.bf16.mxu0 0
    %4921 = vmatpush1.bf16.msra.mxu0 0
    %4922 = vmatprep.subr.bf16.mxu0 0
    %4923 = vmatpush1.bf16.msra.mxu0 0
    %4924 = vmatprep.subr.bf16.mxu0 0
    %4925 = vmatpush1.bf16.msra.mxu0 0
    %4926 = vmatprep.subr.bf16.mxu0 0
    %4927 = vmatpush1.bf16.msra.mxu0 0
    %4928 = vmatprep.subr.bf16.mxu0 0
    %4929 = vmatpush1.bf16.msra.mxu0 0
    %4930 = vmatprep.mubr.bf16.mxu0 0
    %4931 = vmatmul.mubr.bf16.gmra.mrb[0].mxu0 %v4774
    %v4932 = vpop.f32.mrb[0].mxu0
    %v4933 = vadd.f32 %v4851, %v4932
    %v4934 = vpop.f32.mrb[0].mxu0
    %v4935 = vadd.f32 %v4853, %v4934
    %v4936 = vpop.f32.mrb[0].mxu0
    %v4937 = vpop.f32.mrb[0].mxu0
    %4938 = vdwg.mxu0
    %v4939 = vadd.f32 %v4892, %v291
    %v4940 = vadd.f32 %v4894, %v295
    %v4941 = vadd.f32 %v4933, %v299
    %v4942 = vadd.f32 %v4935, %v303
    %v4943 = vxor.u32 %v4939, 2147483648
    %v4944 = vxor.u32 %v4940, 2147483648
    %v4945 = vxor.u32 %v4941, 2147483648
    %v4946 = vmul.f32 %v4943, 1.442695
    %v4947 = vpow.pop %v4946
    %v4948 = vmul.f32 %v4944, 1.442695
    %v4949 = vpow.pop %v4948
    %v4950 = vmul.f32 %v4945, 1.442695
    %v4951 = vpow.pop %v4950
    %v4952 = vadd.f32 %v4947, 1.0
    %v4953 = vadd.f32 %v4949, 1.0
    %v4954 = vadd.f32 %v4951, 1.0
    %v4955 = vrcp.pop %v4952
    %v4956 = vmul.f32 1.0, %v4955
    %v4957 = vrcp.pop %v4953
    %v4958 = vmul.f32 1.0, %v4957
    %v4959 = vrcp.pop %v4954
    %v4960 = vmul.f32 1.0, %v4959
    %v4961 = vtanh.pop %v4942
    %v4962 = vmul.f32 %v4958, %v4460
    %v4963 = vmul.f32 %v4956, %v4961
    %v4964 = vadd.f32 %v4962, %v4963
    %v4965 = vtanh.pop %v4964
    %v4966 = vmul.f32 %v4960, %v4965
    %v4967 = vpack.c.bf16 %v4966, %v4966
    %v4968 = vpack.c.bf16 %v4656, %v4656
    %4969 = vmatprep.subr.bf16.mxu0 %v1219
    %4970 = vmatpush1.bf16.msra.mxu0 %v1218
    %4971 = vmatprep.subr.bf16.mxu0 %v1223
    %4972 = vmatpush1.bf16.msra.mxu0 %v1222
    %4973 = vmatprep.subr.bf16.mxu0 %v1227
    %4974 = vmatpush1.bf16.msra.mxu0 %v1226
    %4975 = vmatprep.subr.bf16.mxu0 %v1231
    %4976 = vmatpush1.bf16.msra.mxu0 %v1230
    %4977 = vmatprep.subr.bf16.mxu0 %v1235
    %4978 = vmatpush1.bf16.msra.mxu0 %v1234
    %4979 = vmatprep.subr.bf16.mxu0 %v1239
    %4980 = vmatpush1.bf16.msra.mxu0 %v1238
    %4981 = vmatprep.subr.bf16.mxu0 %v1243
    %4982 = vmatpush1.bf16.msra.mxu0 %v1242
    %4983 = vmatprep.subr.bf16.mxu0 %v1247
    %4984 = vmatpush1.bf16.msra.mxu0 %v1246
    %4985 = vmatprep.subr.bf16.mxu0 0
    %4986 = vmatpush1.bf16.msra.mxu0 0
    %4987 = vmatprep.subr.bf16.mxu0 0
    %4988 = vmatpush1.bf16.msra.mxu0 0
    %4989 = vmatprep.subr.bf16.mxu0 0
    %4990 = vmatpush1.bf16.msra.mxu0 0
    %4991 = vmatprep.subr.bf16.mxu0 0
    %4992 = vmatpush1.bf16.msra.mxu0 0
    %4993 = vmatprep.subr.bf16.mxu0 0
    %4994 = vmatpush1.bf16.msra.mxu0 0
    %4995 = vmatprep.subr.bf16.mxu0 0
    %4996 = vmatpush1.bf16.msra.mxu0 0
    %4997 = vmatprep.subr.bf16.mxu0 0
    %4998 = vmatpush1.bf16.msra.mxu0 0
    %4999 = vmatprep.subr.bf16.mxu0 0
    %5000 = vmatpush1.bf16.msra.mxu0 0
    %5001 = vmatprep.mubr.bf16.mxu0 0
    %5002 = vmatmul.mubr.bf16.gmra.mrb[0].mxu0 %v4968
    %v5003 = vpop.f32.mrb[0].mxu0
    %v5004 = vadd.f32 0.0, %v5003
    %v5005 = vpop.f32.mrb[0].mxu0
    %v5006 = vadd.f32 0.0, %v5005
    %v5007 = vpop.f32.mrb[0].mxu0
    %v5008 = vpop.f32.mrb[0].mxu0
    %5009 = vdwg.mxu0
    %5010 = vmatprep.subr.bf16.mxu0 %v1221
    %5011 = vmatpush1.bf16.msra.mxu0 %v1220
    %5012 = vmatprep.subr.bf16.mxu0 %v1225
    %5013 = vmatpush1.bf16.msra.mxu0 %v1224
    %5014 = vmatprep.subr.bf16.mxu0 %v1229
    %5015 = vmatpush1.bf16.msra.mxu0 %v1228
    %5016 = vmatprep.subr.bf16.mxu0 %v1233
    %5017 = vmatpush1.bf16.msra.mxu0 %v1232
    %5018 = vmatprep.subr.bf16.mxu0 %v1237
    %5019 = vmatpush1.bf16.msra.mxu0 %v1236
    %5020 = vmatprep.subr.bf16.mxu0 %v1241
    %5021 = vmatpush1.bf16.msra.mxu0 %v1240
    %5022 = vmatprep.subr.bf16.mxu0 %v1245
    %5023 = vmatpush1.bf16.msra.mxu0 %v1244
    %5024 = vmatprep.subr.bf16.mxu0 %v1249
    %5025 = vmatpush1.bf16.msra.mxu0 %v1248
    %5026 = vmatprep.subr.bf16.mxu0 0
    %5027 = vmatpush1.bf16.msra.mxu0 0
    %5028 = vmatprep.subr.bf16.mxu0 0
    %5029 = vmatpush1.bf16.msra.mxu0 0
    %5030 = vmatprep.subr.bf16.mxu0 0
    %5031 = vmatpush1.bf16.msra.mxu0 0
    %5032 = vmatprep.subr.bf16.mxu0 0
    %5033 = vmatpush1.bf16.msra.mxu0 0
    %5034 = vmatprep.subr.bf16.mxu0 0
    %5035 = vmatpush1.bf16.msra.mxu0 0
    %5036 = vmatprep.subr.bf16.mxu0 0
    %5037 = vmatpush1.bf16.msra.mxu0 0
    %5038 = vmatprep.subr.bf16.mxu0 0
    %5039 = vmatpush1.bf16.msra.mxu0 0
    %5040 = vmatprep.subr.bf16.mxu0 0
    %5041 = vmatpush1.bf16.msra.mxu0 0
    %5042 = vmatprep.mubr.bf16.mxu0 0
    %5043 = vmatmul.mubr.bf16.gmra.mrb[0].mxu0 %v4968
    %v5044 = vpop.f32.mrb[0].mxu0
    %v5045 = vadd.f32 0.0, %v5044
    %v5046 = vpop.f32.mrb[0].mxu0
    %v5047 = vadd.f32 0.0, %v5046
    %v5048 = vpop.f32.mrb[0].mxu0
    %v5049 = vpop.f32.mrb[0].mxu0
    %5050 = vdwg.mxu0
    %5051 = vmatprep.subr.bf16.mxu0 %v1461
    %5052 = vmatpush1.bf16.msra.mxu0 %v1460
    %5053 = vmatprep.subr.bf16.mxu0 %v1465
    %5054 = vmatpush1.bf16.msra.mxu0 %v1464
    %5055 = vmatprep.subr.bf16.mxu0 %v1469
    %5056 = vmatpush1.bf16.msra.mxu0 %v1468
    %5057 = vmatprep.subr.bf16.mxu0 %v1473
    %5058 = vmatpush1.bf16.msra.mxu0 %v1472
    %5059 = vmatprep.subr.bf16.mxu0 %v1477
    %5060 = vmatpush1.bf16.msra.mxu0 %v1476
    %5061 = vmatprep.subr.bf16.mxu0 %v1481
    %5062 = vmatpush1.bf16.msra.mxu0 %v1480
    %5063 = vmatprep.subr.bf16.mxu0 %v1485
    %5064 = vmatpush1.bf16.msra.mxu0 %v1484
    %5065 = vmatprep.subr.bf16.mxu0 %v1489
    %5066 = vmatpush1.bf16.msra.mxu0 %v1488
    %5067 = vmatprep.subr.bf16.mxu0 0
    %5068 = vmatpush1.bf16.msra.mxu0 0
    %5069 = vmatprep.subr.bf16.mxu0 0
    %5070 = vmatpush1.bf16.msra.mxu0 0
    %5071 = vmatprep.subr.bf16.mxu0 0
    %5072 = vmatpush1.bf16.msra.mxu0 0
    %5073 = vmatprep.subr.bf16.mxu0 0
    %5074 = vmatpush1.bf16.msra.mxu0 0
    %5075 = vmatprep.subr.bf16.mxu0 0
    %5076 = vmatpush1.bf16.msra.mxu0 0
    %5077 = vmatprep.subr.bf16.mxu0 0
    %5078 = vmatpush1.bf16.msra.mxu0 0
    %5079 = vmatprep.subr.bf16.mxu0 0
    %5080 = vmatpush1.bf16.msra.mxu0 0
    %5081 = vmatprep.subr.bf16.mxu0 0
    %5082 = vmatpush1.bf16.msra.mxu0 0
    %5083 = vmatprep.mubr.bf16.mxu0 0
    %5084 = vmatmul.mubr.bf16.gmra.mrb[0].mxu0 %v4967
    %v5085 = vpop.f32.mrb[0].mxu0
    %v5086 = vadd.f32 %v5004, %v5085
    %v5087 = vpop.f32.mrb[0].mxu0
    %v5088 = vadd.f32 %v5006, %v5087
    %v5089 = vpop.f32.mrb[0].mxu0
    %v5090 = vpop.f32.mrb[0].mxu0
    %5091 = vdwg.mxu0
    %5092 = vmatprep.subr.bf16.mxu0 %v1463
    %5093 = vmatpush1.bf16.msra.mxu0 %v1462
    %5094 = vmatprep.subr.bf16.mxu0 %v1467
    %5095 = vmatpush1.bf16.msra.mxu0 %v1466
    %5096 = vmatprep.subr.bf16.mxu0 %v1471
    %5097 = vmatpush1.bf16.msra.mxu0 %v1470
    %5098 = vmatprep.subr.bf16.mxu0 %v1475
    %5099 = vmatpush1.bf16.msra.mxu0 %v1474
    %5100 = vmatprep.subr.bf16.mxu0 %v1479
    %5101 = vmatpush1.bf16.msra.mxu0 %v1478
    %5102 = vmatprep.subr.bf16.mxu0 %v1483
    %5103 = vmatpush1.bf16.msra.mxu0 %v1482
    %5104 = vmatprep.subr.bf16.mxu0 %v1487
    %5105 = vmatpush1.bf16.msra.mxu0 %v1486
    %5106 = vmatprep.subr.bf16.mxu0 %v1491
    %5107 = vmatpush1.bf16.msra.mxu0 %v1490
    %5108 = vmatprep.subr.bf16.mxu0 0
    %5109 = vmatpush1.bf16.msra.mxu0 0
    %5110 = vmatprep.subr.bf16.mxu0 0
    %5111 = vmatpush1.bf16.msra.mxu0 0
    %5112 = vmatprep.subr.bf16.mxu0 0
    %5113 = vmatpush1.bf16.msra.mxu0 0
    %5114 = vmatprep.subr.bf16.mxu0 0
    %5115 = vmatpush1.bf16.msra.mxu0 0
    %5116 = vmatprep.subr.bf16.mxu0 0
    %5117 = vmatpush1.bf16.msra.mxu0 0
    %5118 = vmatprep.subr.bf16.mxu0 0
    %5119 = vmatpush1.bf16.msra.mxu0 0
    %5120 = vmatprep.subr.bf16.mxu0 0
    %5121 = vmatpush1.bf16.msra.mxu0 0
    %5122 = vmatprep.subr.bf16.mxu0 0
    %5123 = vmatpush1.bf16.msra.mxu0 0
    %5124 = vmatprep.mubr.bf16.mxu0 0
    %5125 = vmatmul.mubr.bf16.gmra.mrb[0].mxu0 %v4967
    %v5126 = vpop.f32.mrb[0].mxu0
    %v5127 = vadd.f32 %v5045, %v5126
    %v5128 = vpop.f32.mrb[0].mxu0
    %v5129 = vadd.f32 %v5047, %v5128
    %v5130 = vpop.f32.mrb[0].mxu0
    %v5131 = vpop.f32.mrb[0].mxu0
    %5132 = vdwg.mxu0
    %v5133 = vadd.f32 %v5086, %v314
    %v5134 = vadd.f32 %v5088, %v318
    %v5135 = vadd.f32 %v5127, %v322
    %v5136 = vadd.f32 %v5129, %v326
    %v5137 = vxor.u32 %v5133, 2147483648
    %v5138 = vxor.u32 %v5134, 2147483648
    %v5139 = vxor.u32 %v5135, 2147483648
    %v5140 = vmul.f32 %v5137, 1.442695
    %v5141 = vpow.pop %v5140
    %v5142 = vmul.f32 %v5138, 1.442695
    %v5143 = vpow.pop %v5142
    %v5144 = vmul.f32 %v5139, 1.442695
    %v5145 = vpow.pop %v5144
    %v5146 = vadd.f32 %v5141, 1.0
    %v5147 = vadd.f32 %v5143, 1.0
    %v5148 = vadd.f32 %v5145, 1.0
    %v5149 = vrcp.pop %v5146
    %v5150 = vmul.f32 1.0, %v5149
    %v5151 = vrcp.pop %v5147
    %v5152 = vmul.f32 1.0, %v5151
    %v5153 = vrcp.pop %v5148
    %v5154 = vmul.f32 1.0, %v5153
    %v5155 = vtanh.pop %v5136
    %v5156 = vmul.f32 %v5152, %v4654
    %v5157 = vmul.f32 %v5150, %v5155
    %v5158 = vadd.f32 %v5156, %v5157
    %v5159 = vtanh.pop %v5158
    %v5160 = vmul.f32 %v5154, %v5159
    %s5161 = scalar_lea.vmem [#allocation11], 56
    %5162 = vst [vmem:[%s5161] sm:$0xff] %v5160
    %5163 = vst [vmem:[#allocation12] sm:$0xff] %v4773
    %5164 = vst [vmem:[#allocation14] sm:$0xff] %v4771
    %5165 = vst [vmem:[%s114] sm:$0xff] %v4966
    %5166 = vst [vmem:[%s119] sm:$0xff] %v4964
    %5167 = vst [vmem:[%s116] sm:$0xff] %v5160
    %5168 = vst [vmem:[%s121] sm:$0xff] %v5158
    // Predicated region
    $region50: #{tpu_custom_call.1} parent=1 // pred_check
      _
    $region51: #{tpu_custom_call.1} parent=1 // pred_check_branch
      %5170 = sbr.rel (0) target = $region53
    $region52: #{tpu_custom_call.1} parent=1 // pred_region
      %s5172 = ssub.s32 1024, 1024
      %5173 = vsyncadd [#allocation4], %s5172
      %s5174 = sshll.u32 [#allocation11], 4
      %s5175 = int_to_ptr.vmem [resolvable:$true] %s5174
      %5180 = dma.vmem_to_hbm [thread:$0]  %s5175, 1024, %s6, [#allocation4], 128, 128, 8
    $region53: #{tpu_custom_call.1} parent=1 // pred_fallthru
      _
    // Predicated region
    $region54: #{tpu_custom_call.1} parent=1 // pred_check
      _
    $region55: #{tpu_custom_call.1} parent=1 // pred_check_branch
      %5182 = sbr.rel (0) target = $region57
    $region56: #{tpu_custom_call.1} parent=1 // pred_region
      %s5184 = ssub.s32 384, 384
      %5185 = vsyncadd [#allocation13], %s5184
      %s5186 = sshll.u32 [#allocation12], 4
      %s5187 = int_to_ptr.vmem [resolvable:$true] %s5186
      %5192 = dma.vmem_to_hbm [thread:$0]  %s5187, 384, %s7, [#allocation13], 128, 128, 8
    $region57: #{tpu_custom_call.1} parent=1 // pred_fallthru
      _
    // Predicated region
    $region58: #{tpu_custom_call.1} parent=1 // pred_check
      _
    $region59: #{tpu_custom_call.1} parent=1 // pred_check_branch
      %5194 = sbr.rel (0) target = $region61
    $region60: #{tpu_custom_call.1} parent=1 // pred_region
      %s5196 = ssub.s32 384, 384
      %5197 = vsyncadd [#allocation13], %s5196
      %s5198 = sshll.u32 [#allocation14], 4
      %s5199 = int_to_ptr.vmem [resolvable:$true] %s5198
      %5204 = dma.vmem_to_hbm [thread:$0]  %s5199, 384, %s8, [#allocation13], 128, 128, 8
    $region61: #{tpu_custom_call.1} parent=1 // pred_fallthru
      _
    // Predicated region
    $region62: #{tpu_custom_call.1} parent=1 // pred_check
      _
    $region63: #{tpu_custom_call.1} parent=1 // pred_check_branch
      %5206 = sbr.rel (0) target = $region65
    $region64: #{tpu_custom_call.1} parent=1 // pred_region
      %5207 = dma.done [#allocation4], 1024
    $region65: #{tpu_custom_call.1} parent=1 // pred_fallthru
      _
    // Predicated region
    $region66: #{tpu_custom_call.1} parent=1 // pred_check
      _
    $region67: #{tpu_custom_call.1} parent=1 // pred_check_branch
      %5209 = sbr.rel (0) target = $region69
    $region68: #{tpu_custom_call.1} parent=1 // pred_region
      %5210 = dma.done [#allocation13], 384
    $region69: #{tpu_custom_call.1} parent=1 // pred_fallthru
      _
    // Predicated region
    $region70: #{tpu_custom_call.1} parent=1 // pred_check
      _
    $region71: #{tpu_custom_call.1} parent=1 // pred_check_branch
      %5212 = sbr.rel (0) target = $region73
    $region72: #{tpu_custom_call.1} parent=1 // pred_region
      %5213 = dma.done [#allocation13], 384
    $region73: #{tpu_custom_call.1} parent=1 // pred_fallthru
      _
    %5214 = vsyncpa [#allocation3], 1
    %5215 = vsyncpa [#allocation6], 1
    %5216 = vsyncpa [#allocation9], 1
    %5217 = vsyncpa [#allocation4], 1
    %5218 = vsyncpa [#allocation13], 1

</llo_original>
